<compile_context>
chip_gen: v7x
topology: tpu7x:2x2x1
jax: 0.10.0
libtpu: 0.0.40
codegen_flags: <defaults>
</compile_context>

<pallas_src>
import functools

import jax
import jax.numpy as jnp
from jax import lax
from jax.experimental import pallas as pl
from jax.experimental.pallas import tpu as pltpu

EPS = 1e-5
LP = 8  # sublane-aligned left pad of the in-kernel halo scratch


# --------------------------------------------------------------------------- helpers
def _pick_rb(H, W):
    """Smallest divisor rb of H with rb >= 4 and rb*W >= 128 (keeps the MXU M
    dimension reasonably tall while bounding per-step VMEM); fallback H."""
    for rb in range(1, H + 1):
        if H % rb == 0 and rb >= min(4, H) and rb * W >= min(128, H * W):
            return rb
    return H


def _pick_rows3(NH, WC):
    """Pass-3 row block: a multiple of 8 dividing NH, ~<= 2 MiB per f32 block."""
    target = max(8, (2 * 2**20) // (4 * WC))
    best = NH
    for r in range(8, NH, 8):
        if NH % r == 0 and r <= target:
            best = r
    return best


def _padded_block_bytes(shape, itemsize=4):
    """VMEM bytes of one buffer of a block: last dim padded to 128 lanes,
    second-to-last to 8 sublanes (the (8,128) tile)."""
    s = list(shape)
    if len(s) >= 1:
        s[-1] = -(-s[-1] // 128) * 128
    if len(s) >= 2:
        s[-2] = -(-s[-2] // 8) * 8
    n = 1
    for d in s:
        n *= d
    return n * itemsize


def _vmem_cap_bytes():
    """~75% of physical VMEM (v7x: 64 MiB, v5e/v6e: 128 MiB); safe 48 MiB fallback."""
    try:
        return int(pltpu.get_tpu_info().vmem_capacity_bytes * 3 // 4)
    except Exception:
        return 48 * 2**20


def _vmem_limit(blocks, scratches):
    """blocks: list of (block_shape, n_buffers). scratches: list of shapes."""
    total = 0
    for shape, bufs in blocks:
        total += bufs * _padded_block_bytes(shape)
    for shape in scratches:
        total += _padded_block_bytes(shape)
    total = 2 * total + (4 << 20)  # headroom for im2col temporaries / relayouts
    return int(max(16 * 2**20, min(_vmem_cap_bytes(), total)))


# --------------------------------------------------------------------------- kernels
def _zero_read_halo_cols(scr):
    """Zero only the two pad columns the conv taps actually read (LP-1, LP+W)."""
    R, Wp, C = scr.shape
    W = Wp - LP - 1
    scr[:, LP - 1:LP, :] = jnp.zeros((R, 1, C), jnp.float32)
    scr[:, LP + W:LP + W + 1, :] = jnp.zeros((R, 1, C), jnp.float32)


def _conv3x3_from_scratch(scr, w_ref, rb, W):
    """3x3 conv of the zero-haloed (rb+2, W+LP+1, Cin) scratch.

    w_ref is (3, 3*Cin, Cout) (dh-major), so each dh group is a free leading-axis
    slice and only an (rb*W, 3*Cin) im2col slab is live at a time.
    Returns (acc[rb*W, Cout] f32, sum[1, Cout], sumsq[1, Cout]).
    """
    Cin = scr.shape[-1]
    mmdt = w_ref.dtype
    acc = None
    for dh in range(3):
        # TODO(synk): generate the +/-1 W shifts with pltpu.roll + an iota mask to
        # avoid the two sublane-misaligned slices per dh group.
        taps = [scr[dh:dh + rb, LP - 1 + dw:LP - 1 + dw + W, :] for dw in range(3)]
        col = jnp.concatenate(taps, axis=-1).reshape(rb * W, 3 * Cin)
        part = jnp.dot(col.astype(mmdt), w_ref[dh],
                       preferred_element_type=jnp.float32)
        acc = part if acc is None else acc + part
    s = jnp.sum(acc, axis=0, keepdims=True)
    ss = jnp.sum(acc * acc, axis=0, keepdims=True)
    return acc, s, ss


def _conv1_kernel(xc_ref, xt_ref, xb_ref, w_ref, y_ref, st_ref, scr, *, rb):
    W = xc_ref.shape[2]
    i = pl.program_id(1)
    top_ok = (i > 0).astype(jnp.float32)
    bot_ok = (i < pl.num_programs(1) - 1).astype(jnp.float32)

    _zero_read_halo_cols(scr)
    scr[0:1, LP:LP + W, :] = xt_ref[0] * top_ok
    scr[rb + 1:rb + 2, LP:LP + W, :] = xb_ref[0] * bot_ok
    scr[1:rb + 1, LP:LP + W, :] = xc_ref[0]          # aligned interior store (offset 8)
    # TODO(synk): read the center taps directly from xc_ref (border via masks) to
    # avoid staging the whole block through the padded scratch.

    acc, s, ss = _conv3x3_from_scratch(scr, w_ref, rb, W)
    Cout = y_ref.shape[3]
    y_ref[...] = acc.reshape(1, rb, W, Cout)
    st_ref[...] = jnp.concatenate([s, ss], axis=0).reshape(1, 1, 2, Cout)


def _conv2_kernel(yc_ref, yt_ref, yb_ref, sc_ref, sh_ref, w_ref,
                  y_ref, st_ref, scr, *, rb):
    W = yc_ref.shape[2]
    Cmid = yc_ref.shape[3]
    i = pl.program_id(1)
    top_ok = (i > 0).astype(jnp.float32)
    bot_ok = (i < pl.num_programs(1) - 1).astype(jnp.float32)

    sc = sc_ref[...].reshape(1, 1, Cmid)
    sh = sh_ref[...].reshape(1, 1, Cmid)

    _zero_read_halo_cols(scr)
    scr[0:1, LP:LP + W, :] = jnp.maximum(yt_ref[0] * sc + sh, 0.0) * top_ok
    scr[rb + 1:rb + 2, LP:LP + W, :] = jnp.maximum(yb_ref[0] * sc + sh, 0.0) * bot_ok
    scr[1:rb + 1, LP:LP + W, :] = jnp.maximum(yc_ref[0] * sc + sh, 0.0)  # BN1+ReLU once

    acc, s, ss = _conv3x3_from_scratch(scr, w_ref, rb, W)
    Cout = y_ref.shape[3]
    y_ref[...] = acc.reshape(1, rb, W, Cout)
    st_ref[...] = jnp.concatenate([s, ss], axis=0).reshape(1, 1, 2, Cout)


def _bn_relu_kernel(y_ref, sc_ref, sh_ref, o_ref):
    # lane-dense (rows, W*Cout) streaming BN + ReLU
    o_ref[...] = jnp.maximum(y_ref[...] * sc_ref[...] + sh_ref[...], 0.0
                             ).astype(o_ref.dtype)


# --------------------------------------------------------------------------- wrapper
def _bn_scale_shift(stats, gamma, beta, count):
    """Fold training-mode BatchNorm (biased variance) into per-channel scale/shift."""
    s = jnp.sum(stats[:, :, 0, :], axis=(0, 1))
    ss = jnp.sum(stats[:, :, 1, :], axis=(0, 1))
    mean = s / count
    var = ss / count - mean * mean
    # TODO(synk): for huge N*H*W or high-mean activations switch to a shifted /
    # Welford-style combine to avoid E[x^2]-E[x]^2 cancellation.
    inv = lax.rsqrt(var + EPS)
    scale = gamma.astype(jnp.float32) * inv
    shift = beta.astype(jnp.float32) - mean * scale
    return scale.reshape(1, -1), shift.reshape(1, -1)


def _bdouble_conv_impl(x_nchw, w1, b1, g1, be1, w2, b2, g2, be2,
                       *, matmul_dtype=jnp.float32, single_buffer_consts=True):
    # Conv bias is exactly cancelled by the batch-stats BN that follows each conv.
    del b1, b2

    N, Cin, H, W = x_nchw.shape
    Cmid = w1.shape[-1]
    Cout = w2.shape[-1]

    # NHWC: channels on lanes for the conv passes.
    # TODO(synk): fuse this transpose (and the final NCHW one) into passes 1/3 to
    # save one HBM round trip per transpose.
    x = jnp.transpose(x_nchw, (0, 2, 3, 1)).astype(jnp.float32)

    # weights as (dh, 3*Cin, Cout): dh groups become free leading-axis slices
    w1f = w1.astype(matmul_dtype).reshape(3, 3 * Cin, Cmid)
    w2f = w2.astype(matmul_dtype).reshape(3, 3 * Cmid, Cout)

    rb = _pick_rb(H, W)
    n_rb = H // rb
    grid = (N, n_rb)
    count = float(N * H * W)
    wbytes = 2 if matmul_dtype == jnp.bfloat16 else 4

    def const_spec(shape, index_map):
        if single_buffer_consts:
            return pl.BlockSpec(shape, index_map, pipeline_mode=pl.Buffered(1))
        return pl.BlockSpec(shape, index_map)

    # TODO(synk): use pltpu.CORE_PARALLEL on the batch axis for v7x dual-TC sharding.
    sem2 = ("parallel", "parallel")

    # ---------------- pass 1: conv1 + BN1 partial statistics -------------------
    vmem1 = _vmem_limit(
        [((1, rb, W, Cin), 2), ((1, 1, W, Cin), 4),
         ((3, 3 * Cin, Cmid), (1 if single_buffer_consts else 2) * wbytes // 4),
         ((1, rb, W, Cmid), 2), ((1, 1, 2, Cmid), 2),
         ((rb * W, 3 * Cin), 2), ((rb * W, Cmid), 2)],
        [(rb + 2, W + LP + 1, Cin)])

    y1, st1 = pl.pallas_call(
        functools.partial(_conv1_kernel, rb=rb),
        grid=grid,
        in_specs=[
            pl.BlockSpec((1, rb, W, Cin), lambda n, i: (n, i, 0, 0)),
            pl.BlockSpec((1, 1, W, Cin),
                         lambda n, i: (n, jnp.maximum(i * rb - 1, 0), 0, 0)),
            pl.BlockSpec((1, 1, W, Cin),
                         lambda n, i: (n, jnp.minimum(i * rb + rb, H - 1), 0, 0)),
            const_spec((3, 3 * Cin, Cmid), lambda n, i: (0, 0, 0)),
        ],
        out_specs=(
            pl.BlockSpec((1, rb, W, Cmid), lambda n, i: (n, i, 0, 0)),
            pl.BlockSpec((1, 1, 2, Cmid), lambda n, i: (n, i, 0, 0)),
        ),
        out_shape=(
            jax.ShapeDtypeStruct((N, H, W, Cmid), jnp.float32),
            jax.ShapeDtypeStruct((N, n_rb, 2, Cmid), jnp.float32),
        ),
        scratch_shapes=[pltpu.VMEM((rb + 2, W + LP + 1, Cin), jnp.float32)],
        compiler_params=pltpu.CompilerParams(
            dimension_semantics=sem2, vmem_limit_bytes=vmem1),
        cost_estimate=pl.CostEstimate(
            flops=2 * 9 * N * H * W * Cin * Cmid, transcendentals=0,
            bytes_accessed=4 * N * H * W * (Cin + Cmid)),
    )(x, x, x, w1f)

    sc1, sh1 = _bn_scale_shift(st1, g1, be1, count)

    # -------- pass 2: BN1+ReLU (folded) -> conv2 + BN2 partial statistics ------
    vmem2 = _vmem_limit(
        [((1, rb, W, Cmid), 2), ((1, 1, W, Cmid), 4),
         ((1, Cmid), 4),
         ((3, 3 * Cmid, Cout), (1 if single_buffer_consts else 2) * wbytes // 4),
         ((1, rb, W, Cout), 2), ((1, 1, 2, Cout), 2),
         ((rb * W, 3 * Cmid), 2), ((rb * W, Cout), 2)],
        [(rb + 2, W + LP + 1, Cmid)])

    y2, st2 = pl.pallas_call(
        functools.partial(_conv2_kernel, rb=rb),
        grid=grid,
        in_specs=[
            pl.BlockSpec((1, rb, W, Cmid), lambda n, i: (n, i, 0, 0)),
            pl.BlockSpec((1, 1, W, Cmid),
                         lambda n, i: (n, jnp.maximum(i * rb - 1, 0), 0, 0)),
            pl.BlockSpec((1, 1, W, Cmid),
                         lambda n, i: (n, jnp.minimum(i * rb + rb, H - 1), 0, 0)),
            const_spec((1, Cmid), lambda n, i: (0, 0)),
            const_spec((1, Cmid), lambda n, i: (0, 0)),
            const_spec((3, 3 * Cmid, Cout), lambda n, i: (0, 0, 0)),
        ],
        out_specs=(
            pl.BlockSpec((1, rb, W, Cout), lambda n, i: (n, i, 0, 0)),
            pl.BlockSpec((1, 1, 2, Cout), lambda n, i: (n, i, 0, 0)),
        ),
        out_shape=(
            jax.ShapeDtypeStruct((N, H, W, Cout), jnp.float32),
            jax.ShapeDtypeStruct((N, n_rb, 2, Cout), jnp.float32),
        ),
        scratch_shapes=[pltpu.VMEM((rb + 2, W + LP + 1, Cmid), jnp.float32)],
        compiler_params=pltpu.CompilerParams(
            dimension_semantics=sem2, vmem_limit_bytes=vmem2),
        cost_estimate=pl.CostEstimate(
            flops=2 * 9 * N * H * W * Cmid * Cout + 4 * N * H * W * Cmid,
            transcendentals=0,
            bytes_accessed=4 * N * H * W * (Cmid + Cout)),
    )(y1, y1, y1, sc1, sh1, w2f)

    sc2, sh2 = _bn_scale_shift(st2, g2, be2, count)

    # ---------------- pass 3: BN2 (scale/shift) + ReLU, lane-dense streaming ----
    NH, WC = N * H, W * Cout
    r3 = _pick_rows3(NH, WC)
    y2v = y2.reshape(NH, WC)                                   # free: NHWC contiguous
    sc2t = jnp.tile(sc2.reshape(-1), W).reshape(1, WC)
    sh2t = jnp.tile(sh2.reshape(-1), W).reshape(1, WC)

    vmem3 = _vmem_limit([((r3, WC), 2), ((1, WC), 4), ((r3, WC), 2)], [])

    out2d = pl.pallas_call(
        _bn_relu_kernel,
        grid=(NH // r3,),
        in_specs=[
            pl.BlockSpec((r3, WC), lambda i: (i, 0)),
            const_spec((1, WC), lambda i: (0, 0)),
            const_spec((1, WC), lambda i: (0, 0)),
        ],
        out_specs=pl.BlockSpec((r3, WC), lambda i: (i, 0)),
        out_shape=jax.ShapeDtypeStruct((NH, WC), jnp.float32),
        compiler_params=pltpu.CompilerParams(
            dimension_semantics=("parallel",), vmem_limit_bytes=vmem3),
        cost_estimate=pl.CostEstimate(
            flops=3 * NH * WC, transcendentals=0, bytes_accessed=8 * NH * WC),
    )(y2v, sc2t, sh2t)

    out_nhwc = out2d.reshape(N, H, W, Cout)
    return jnp.transpose(out_nhwc, (0, 3, 1, 2))


bdouble_conv = jax.jit(_bdouble_conv_impl,
                       static_argnames=("matmul_dtype", "single_buffer_consts"))


# --------------------------------------------------------------------------- reference
def _reference(x_nchw, w1, b1, g1, be1, w2, b2, g2, be2):
    """Pure-JAX reference of the PyTorch forward (training-mode BN)."""
    x = jnp.transpose(x_nchw, (0, 2, 3, 1))

    def conv(h, w, b):
        y = lax.conv_general_dilated(
            h, w, window_strides=(1, 1), padding="SAME",
            dimension_numbers=("NHWC", "HWIO", "NHWC"))
        return y + b

    def bn_relu(y, g, be):
        m = jnp.mean(y, axis=(0, 1, 2), keepdims=True)
        v = jnp.mean((y - m) ** 2, axis=(0, 1, 2), keepdims=True)
        return jnp.maximum((y - m) * lax.rsqrt(v + EPS) * g + be, 0.0)

    h = bn_relu(conv(x, w1, b1), g1, be1)
    h = bn_relu(conv(h, w2, b2), g2, be2)
    return jnp.transpose(h, (0, 3, 1, 2))


if __name__ == "__main__":
    # small shapes consistent with the module
    N, Cin, H, W = 2, 4, 16, 16
    Cout = 8
    Cmid = Cout  # mid_channels defaults to out_channels

    key = jax.random.PRNGKey(0)
    k = jax.random.split(key, 5)

    x = jax.random.normal(k[0], (N, Cin, H, W), jnp.float32)

    bound1 = 1.0 / jnp.sqrt(Cin * 9.0)
    w1 = jax.random.uniform(k[1], (3, 3, Cin, Cmid), jnp.float32, -bound1, bound1)
    b1 = jax.random.uniform(k[2], (Cmid,), jnp.float32, -bound1, bound1)
    g1 = jnp.ones((Cmid,), jnp.float32)     # BatchNorm2d default weight
    be1 = jnp.zeros((Cmid,), jnp.float32)   # BatchNorm2d default bias

    bound2 = 1.0 / jnp.sqrt(Cmid * 9.0)
    w2 = jax.random.uniform(k[3], (3, 3, Cmid, Cout), jnp.float32, -bound2, bound2)
    b2 = jax.random.uniform(k[4], (Cout,), jnp.float32, -bound2, bound2)
    g2 = jnp.ones((Cout,), jnp.float32)
    be2 = jnp.zeros((Cout,), jnp.float32)

    args = (x, w1, b1, g1, be1, w2, b2, g2, be2)
    try:
        out = jax.block_until_ready(bdouble_conv(*args))
    except Exception:
        # fall back to double-buffered constant blocks if this jax/libtpu
        # rejects pipeline_mode=pl.Buffered(1)
        out = jax.block_until_ready(bdouble_conv(*args, single_buffer_consts=False))

    ref = _reference(*args)
    assert out.shape == (N, Cout, H, W), out.shape
    assert jnp.allclose(out, ref, atol=1e-4, rtol=1e-4), \
        float(jnp.max(jnp.abs(out - ref)))

    print("KERNEL_OK")
</pallas_src>

<mosaic_0001>
module attributes {stable_mosaic.version = 11 : i64} {
  func.func @_conv1_kernel(%arg0: i32, %arg1: i32, %arg2: memref<1x8x16x4xf32, #tpu.memory_space<vmem>>, %arg3: memref<1x1x16x4xf32, #tpu.memory_space<vmem>>, %arg4: memref<1x1x16x4xf32, #tpu.memory_space<vmem>>, %arg5: memref<3x12x8xf32, #tpu.memory_space<vmem>>, %arg6: memref<1x8x16x8xf32, #tpu.memory_space<vmem>>, %arg7: memref<1x1x2x8xf32, #tpu.memory_space<vmem>>, %arg8: memref<10x25x4xf32, #tpu.memory_space<vmem>>) attributes {dimension_semantics = [#tpu.dimension_semantics<parallel>, #tpu.dimension_semantics<parallel>], iteration_bounds = array<i64: 2, 2>, scalar_prefetch = 0 : i64, scratch_operands = 1 : i64, tpu.core_type = #tpu.core_type<tc>, window_params = [{transform_indices = @transform_0, window_bounds = array<i64: 1, 8, 16, 4>}, {transform_indices = @transform_1, window_bounds = array<i64: 1, 1, 16, 4>}, {transform_indices = @transform_2, window_bounds = array<i64: 1, 1, 16, 4>}, {pipeline_mode = #tpu.pipeline_mode<synchronous>, transform_indices = @transform_3, window_bounds = array<i64: 3, 12, 8>}, {transform_indices = @transform_4, window_bounds = array<i64: 1, 8, 16, 8>}, {transform_indices = @transform_5, window_bounds = array<i64: 1, 1, 2, 8>}]} {
    %c0_i32 = arith.constant 0 : i32
    %0 = arith.cmpi sgt, %arg1, %c0_i32 : i32
    %1 = arith.extui %0 : i1 to i32
    %2 = arith.sitofp %1 : i32 to f32
    %c1_i32 = arith.constant 1 : i32
    %3 = arith.cmpi slt, %arg1, %c1_i32 : i32
    %4 = arith.extui %3 : i1 to i32
    %5 = arith.sitofp %4 : i32 to f32
    %cst = arith.constant 0.000000e+00 : f32
    %6 = vector.broadcast %cst : f32 to vector<10x1x4xf32>
    %c0 = arith.constant 0 : index
    %c7 = arith.constant 7 : index
    %c0_0 = arith.constant 0 : index
    %7 = vector.load %arg8[%c0, %c7, %c0_0] : memref<10x25x4xf32, #tpu.memory_space<vmem>>, vector<10x1x4xf32>
    tpu.vector_store %arg8[%c0, %c7, %c0_0], %6 {strides = array<i32>} : memref<10x25x4xf32, #tpu.memory_space<vmem>>, vector<10x1x4xf32>,
    %cst_1 = arith.constant 0.000000e+00 : f32
    %8 = vector.broadcast %cst_1 : f32 to vector<10x1x4xf32>
    %c0_2 = arith.constant 0 : index
    %c24 = arith.constant 24 : index
    %c0_3 = arith.constant 0 : index
    %9 = vector.load %arg8[%c0_2, %c24, %c0_3] : memref<10x25x4xf32, #tpu.memory_space<vmem>>, vector<10x1x4xf32>
    tpu.vector_store %arg8[%c0_2, %c24, %c0_3], %8 {strides = array<i32>} : memref<10x25x4xf32, #tpu.memory_space<vmem>>, vector<10x1x4xf32>,
    %c0_4 = arith.constant 0 : index
    %c0_5 = arith.constant 0 : index
    %c0_6 = arith.constant 0 : index
    %c0_7 = arith.constant 0 : index
    %10 = vector.load %arg3[%c0_4, %c0_5, %c0_6, %c0_7] : memref<1x1x16x4xf32, #tpu.memory_space<vmem>>, vector<1x1x16x4xf32>
    %11 = vector.shape_cast %10 : vector<1x1x16x4xf32> to vector<1x16x4xf32>
    %12 = vector.broadcast %2 : f32 to vector<1x16x4xf32>
    %13 = arith.mulf %11, %12 : vector<1x16x4xf32>
    %c0_8 = arith.constant 0 : index
    %c8 = arith.constant 8 : index
    %c0_9 = arith.constant 0 : index
    %14 = vector.load %arg8[%c0_8, %c8, %c0_9] : memref<10x25x4xf32, #tpu.memory_space<vmem>>, vector<1x16x4xf32>
    tpu.vector_store %arg8[%c0_8, %c8, %c0_9], %13 {strides = array<i32>} : memref<10x25x4xf32, #tpu.memory_space<vmem>>, vector<1x16x4xf32>,
    %c0_10 = arith.constant 0 : index
    %c0_11 = arith.constant 0 : index
    %c0_12 = arith.constant 0 : index
    %c0_13 = arith.constant 0 : index
    %15 = vector.load %arg4[%c0_10, %c0_11, %c0_12, %c0_13] : memref<1x1x16x4xf32, #tpu.memory_space<vmem>>, vector<1x1x16x4xf32>
    %16 = vector.shape_cast %15 : vector<1x1x16x4xf32> to vector<1x16x4xf32>
    %17 = vector.broadcast %5 : f32 to vector<1x16x4xf32>
    %18 = arith.mulf %16, %17 : vector<1x16x4xf32>
    %c9 = arith.constant 9 : index
    %c8_14 = arith.constant 8 : index
    %c0_15 = arith.constant 0 : index
    %19 = vector.load %arg8[%c9, %c8_14, %c0_15] : memref<10x25x4xf32, #tpu.memory_space<vmem>>, vector<1x16x4xf32>
    tpu.vector_store %arg8[%c9, %c8_14, %c0_15], %18 {strides = array<i32>} : memref<10x25x4xf32, #tpu.memory_space<vmem>>, vector<1x16x4xf32>,
    %c0_16 = arith.constant 0 : index
    %c0_17 = arith.constant 0 : index
    %c0_18 = arith.constant 0 : index
    %c0_19 = arith.constant 0 : index
    %20 = vector.load %arg2[%c0_16, %c0_17, %c0_18, %c0_19] : memref<1x8x16x4xf32, #tpu.memory_space<vmem>>, vector<1x8x16x4xf32>
    %21 = vector.shape_cast %20 : vector<1x8x16x4xf32> to vector<8x16x4xf32>
    %c1 = arith.constant 1 : index
    %c8_20 = arith.constant 8 : index
    %c0_21 = arith.constant 0 : index
    %22 = vector.load %arg8[%c1, %c8_20, %c0_21] : memref<10x25x4xf32, #tpu.memory_space<vmem>>, vector<8x16x4xf32>
    tpu.vector_store %arg8[%c1, %c8_20, %c0_21], %21 {strides = array<i32>} : memref<10x25x4xf32, #tpu.memory_space<vmem>>, vector<8x16x4xf32>,
    %c0_22 = arith.constant 0 : index
    %c7_23 = arith.constant 7 : index
    %c0_24 = arith.constant 0 : index
    %23 = vector.load %arg8[%c0_22, %c7_23, %c0_24] : memref<10x25x4xf32, #tpu.memory_space<vmem>>, vector<8x16x4xf32>
    %c0_25 = arith.constant 0 : index
    %c8_26 = arith.constant 8 : index
    %c0_27 = arith.constant 0 : index
    %24 = vector.load %arg8[%c0_25, %c8_26, %c0_27] : memref<10x25x4xf32, #tpu.memory_space<vmem>>, vector<8x16x4xf32>
    %c0_28 = arith.constant 0 : index
    %c9_29 = arith.constant 9 : index
    %c0_30 = arith.constant 0 : index
    %25 = vector.load %arg8[%c0_28, %c9_29, %c0_30] : memref<10x25x4xf32, #tpu.memory_space<vmem>>, vector<8x16x4xf32>
    %26 = tpu.concatenate %23, %24, %25 in 2 : vector<8x16x4xf32>, vector<8x16x4xf32>, vector<8x16x4xf32> -> vector<8x16x12xf32>
    %27 = vector.shape_cast %26 : vector<8x16x12xf32> to vector<128x12xf32>
    %c0_31 = arith.constant 0 : index
    %c0_32 = arith.constant 0 : index
    %c0_33 = arith.constant 0 : index
    %28 = vector.load %arg5[%c0_31, %c0_32, %c0_33] : memref<3x12x8xf32, #tpu.memory_space<vmem>>, vector<1x12x8xf32>
    %29 = vector.shape_cast %28 : vector<1x12x8xf32> to vector<12x8xf32>
    %cst_34 = arith.constant dense<0.000000e+00> : vector<128x8xf32>
    %30 = tpu.matmul %27, %29, %cst_34 {dimension_numbers = #tpu.dot_dimension_numbers<[1], [0], [0], [1], [0, 0, 1, 1], [], []>} : vector<128x12xf32>, vector<12x8xf32>, vector<128x8xf32> -> vector<128x8xf32>
    %c1_35 = arith.constant 1 : index
    %c7_36 = arith.constant 7 : index
    %c0_37 = arith.constant 0 : index
    %31 = vector.load %arg8[%c1_35, %c7_36, %c0_37] : memref<10x25x4xf32, #tpu.memory_space<vmem>>, vector<8x16x4xf32>
    %c1_38 = arith.constant 1 : index
    %c8_39 = arith.constant 8 : index
    %c0_40 = arith.constant 0 : index
    %32 = vector.load %arg8[%c1_38, %c8_39, %c0_40] : memref<10x25x4xf32, #tpu.memory_space<vmem>>, vector<8x16x4xf32>
    %c1_41 = arith.constant 1 : index
    %c9_42 = arith.constant 9 : index
    %c0_43 = arith.constant 0 : index
    %33 = vector.load %arg8[%c1_41, %c9_42, %c0_43] : memref<10x25x4xf32, #tpu.memory_space<vmem>>, vector<8x16x4xf32>
    %34 = tpu.concatenate %31, %32, %33 in 2 : vector<8x16x4xf32>, vector<8x16x4xf32>, vector<8x16x4xf32> -> vector<8x16x12xf32>
    %35 = vector.shape_cast %34 : vector<8x16x12xf32> to vector<128x12xf32>
    %c1_44 = arith.constant 1 : index
    %c0_45 = arith.constant 0 : index
    %c0_46 = arith.constant 0 : index
    %36 = vector.load %arg5[%c1_44, %c0_45, %c0_46] : memref<3x12x8xf32, #tpu.memory_space<vmem>>, vector<1x12x8xf32>
    %37 = vector.shape_cast %36 : vector<1x12x8xf32> to vector<12x8xf32>
    %cst_47 = arith.constant dense<0.000000e+00> : vector<128x8xf32>
    %38 = tpu.matmul %35, %37, %cst_47 {dimension_numbers = #tpu.dot_dimension_numbers<[1], [0], [0], [1], [0, 0, 1, 1], [], []>} : vector<128x12xf32>, vector<12x8xf32>, vector<128x8xf32> -> vector<128x8xf32>
    %39 = arith.addf %30, %38 : vector<128x8xf32>
    %c2 = arith.constant 2 : index
    %c7_48 = arith.constant 7 : index
    %c0_49 = arith.constant 0 : index
    %40 = vector.load %arg8[%c2, %c7_48, %c0_49] : memref<10x25x4xf32, #tpu.memory_space<vmem>>, vector<8x16x4xf32>
    %c2_50 = arith.constant 2 : index
    %c8_51 = arith.constant 8 : index
    %c0_52 = arith.constant 0 : index
    %41 = vector.load %arg8[%c2_50, %c8_51, %c0_52] : memref<10x25x4xf32, #tpu.memory_space<vmem>>, vector<8x16x4xf32>
    %c2_53 = arith.constant 2 : index
    %c9_54 = arith.constant 9 : index
    %c0_55 = arith.constant 0 : index
    %42 = vector.load %arg8[%c2_53, %c9_54, %c0_55] : memref<10x25x4xf32, #tpu.memory_space<vmem>>, vector<8x16x4xf32>
    %43 = tpu.concatenate %40, %41, %42 in 2 : vector<8x16x4xf32>, vector<8x16x4xf32>, vector<8x16x4xf32> -> vector<8x16x12xf32>
    %44 = vector.shape_cast %43 : vector<8x16x12xf32> to vector<128x12xf32>
    %c2_56 = arith.constant 2 : index
    %c0_57 = arith.constant 0 : index
    %c0_58 = arith.constant 0 : index
    %45 = vector.load %arg5[%c2_56, %c0_57, %c0_58] : memref<3x12x8xf32, #tpu.memory_space<vmem>>, vector<1x12x8xf32>
    %46 = vector.shape_cast %45 : vector<1x12x8xf32> to vector<12x8xf32>
    %cst_59 = arith.constant dense<0.000000e+00> : vector<128x8xf32>
    %47 = tpu.matmul %44, %46, %cst_59 {dimension_numbers = #tpu.dot_dimension_numbers<[1], [0], [0], [1], [0, 0, 1, 1], [], []>} : vector<128x12xf32>, vector<12x8xf32>, vector<128x8xf32> -> vector<128x8xf32>
    %48 = arith.addf %39, %47 : vector<128x8xf32>
    %cst_60 = arith.constant dense<0.000000e+00> : vector<8xf32>
    %49 = vector.multi_reduction <add>, %48, %cst_60 [0] : vector<128x8xf32> to vector<8xf32>
    %50 = vector.shape_cast %49 : vector<8xf32> to vector<1x8xf32>
    %51 = arith.mulf %48, %48 : vector<128x8xf32>
    %cst_61 = arith.constant dense<0.000000e+00> : vector<8xf32>
    %52 = vector.multi_reduction <add>, %51, %cst_61 [0] : vector<128x8xf32> to vector<8xf32>
    %53 = vector.shape_cast %52 : vector<8xf32> to vector<1x8xf32>
    %54 = vector.shape_cast %48 : vector<128x8xf32> to vector<1x8x16x8xf32>
    %c0_62 = arith.constant 0 : index
    %c0_63 = arith.constant 0 : index
    %c0_64 = arith.constant 0 : index
    %c0_65 = arith.constant 0 : index
    %55 = vector.load %arg6[%c0_62, %c0_63, %c0_64, %c0_65] : memref<1x8x16x8xf32, #tpu.memory_space<vmem>>, vector<1x8x16x8xf32>
    tpu.vector_store %arg6[%c0_62, %c0_63, %c0_64, %c0_65], %54 {strides = array<i32>} : memref<1x8x16x8xf32, #tpu.memory_space<vmem>>, vector<1x8x16x8xf32>,
    %56 = tpu.concatenate %50, %53 in 0 : vector<1x8xf32>, vector<1x8xf32> -> vector<2x8xf32>
    %57 = vector.shape_cast %56 : vector<2x8xf32> to vector<1x1x2x8xf32>
    %c0_66 = arith.constant 0 : index
    %c0_67 = arith.constant 0 : index
    %c0_68 = arith.constant 0 : index
    %c0_69 = arith.constant 0 : index
    %58 = vector.load %arg7[%c0_66, %c0_67, %c0_68, %c0_69] : memref<1x1x2x8xf32, #tpu.memory_space<vmem>>, vector<1x1x2x8xf32>
    tpu.vector_store %arg7[%c0_66, %c0_67, %c0_68, %c0_69], %57 {strides = array<i32>} : memref<1x1x2x8xf32, #tpu.memory_space<vmem>>, vector<1x1x2x8xf32>,
    return
  }
  func.func @transform_0(%arg0: i32, %arg1: i32) -> (i32, i32, i32, i32) {
    %c0_i32 = arith.constant 0 : i32
    %c0_i32_0 = arith.constant 0 : i32
    %c0_i32_1 = arith.constant 0 : i32
    return %arg0, %arg1, %c0_i32, %c0_i32_0 : i32, i32, i32, i32
  }
  func.func @transform_1(%arg0: i32, %arg1: i32) -> (i32, i32, i32, i32) {
    %c8_i32 = arith.constant 8 : i32
    %0 = arith.muli %arg1, %c8_i32 : i32
    %c1_i32 = arith.constant 1 : i32
    %1 = arith.subi %0, %c1_i32 : i32
    %c0_i32 = arith.constant 0 : i32
    %2 = arith.maxsi %1, %c0_i32 : i32
    %c0_i32_0 = arith.constant 0 : i32
    %c0_i32_1 = arith.constant 0 : i32
    %c0_i32_2 = arith.constant 0 : i32
    return %arg0, %2, %c0_i32_0, %c0_i32_1 : i32, i32, i32, i32
  }
  func.func @transform_2(%arg0: i32, %arg1: i32) -> (i32, i32, i32, i32) {
    %c8_i32 = arith.constant 8 : i32
    %0 = arith.muli %arg1, %c8_i32 : i32
    %c8_i32_0 = arith.constant 8 : i32
    %1 = arith.addi %0, %c8_i32_0 : i32
    %c15_i32 = arith.constant 15 : i32
    %2 = arith.minsi %1, %c15_i32 : i32
    %c0_i32 = arith.constant 0 : i32
    %c0_i32_1 = arith.constant 0 : i32
    %c0_i32_2 = arith.constant 0 : i32
    return %arg0, %2, %c0_i32, %c0_i32_1 : i32, i32, i32, i32
  }
  func.func @transform_3(%arg0: i32, %arg1: i32) -> (i32, i32, i32) {
    %c0_i32 = arith.constant 0 : i32
    %c0_i32_0 = arith.constant 0 : i32
    %c0_i32_1 = arith.constant 0 : i32
    %c0_i32_2 = arith.constant 0 : i32
    return %c0_i32, %c0_i32_0, %c0_i32_1 : i32, i32, i32
  }
  func.func @transform_4(%arg0: i32, %arg1: i32) -> (i32, i32, i32, i32) {
    %c0_i32 = arith.constant 0 : i32
    %c0_i32_0 = arith.constant 0 : i32
    %c0_i32_1 = arith.constant 0 : i32
    return %arg0, %arg1, %c0_i32, %c0_i32_0 : i32, i32, i32, i32
  }
  func.func @transform_5(%arg0: i32, %arg1: i32) -> (i32, i32, i32, i32) {
    %c0_i32 = arith.constant 0 : i32
    %c0_i32_0 = arith.constant 0 : i32
    %c0_i32_1 = arith.constant 0 : i32
    return %arg0, %arg1, %c0_i32, %c0_i32_0 : i32, i32, i32, i32
  }
}

module attributes {stable_mosaic.version = 11 : i64} {
  func.func @_conv2_kernel(%arg0: i32, %arg1: i32, %arg2: memref<1x8x16x8xf32, #tpu.memory_space<vmem>>, %arg3: memref<1x1x16x8xf32, #tpu.memory_space<vmem>>, %arg4: memref<1x1x16x8xf32, #tpu.memory_space<vmem>>, %arg5: memref<1x8xf32, #tpu.memory_space<vmem>>, %arg6: memref<1x8xf32, #tpu.memory_space<vmem>>, %arg7: memref<3x24x8xf32, #tpu.memory_space<vmem>>, %arg8: memref<1x8x16x8xf32, #tpu.memory_space<vmem>>, %arg9: memref<1x1x2x8xf32, #tpu.memory_space<vmem>>, %arg10: memref<10x25x8xf32, #tpu.memory_space<vmem>>) attributes {dimension_semantics = [#tpu.dimension_semantics<parallel>, #tpu.dimension_semantics<parallel>], iteration_bounds = array<i64: 2, 2>, scalar_prefetch = 0 : i64, scratch_operands = 1 : i64, tpu.core_type = #tpu.core_type<tc>, window_params = [{transform_indices = @transform_0, window_bounds = array<i64: 1, 8, 16, 8>}, {transform_indices = @transform_1, window_bounds = array<i64: 1, 1, 16, 8>}, {transform_indices = @transform_2, window_bounds = array<i64: 1, 1, 16, 8>}, {pipeline_mode = #tpu.pipeline_mode<synchronous>, transform_indices = @transform_3, window_bounds = array<i64: 1, 8>}, {pipeline_mode = #tpu.pipeline_mode<synchronous>, transform_indices = @transform_4, window_bounds = array<i64: 1, 8>}, {pipeline_mode = #tpu.pipeline_mode<synchronous>, transform_indices = @transform_5, window_bounds = array<i64: 3, 24, 8>}, {transform_indices = @transform_6, window_bounds = array<i64: 1, 8, 16, 8>}, {transform_indices = @transform_7, window_bounds = array<i64: 1, 1, 2, 8>}]} {
    %c0_i32 = arith.constant 0 : i32
    %0 = arith.cmpi sgt, %arg1, %c0_i32 : i32
    %1 = arith.extui %0 : i1 to i32
    %2 = arith.sitofp %1 : i32 to f32
    %c1_i32 = arith.constant 1 : i32
    %3 = arith.cmpi slt, %arg1, %c1_i32 : i32
    %4 = arith.extui %3 : i1 to i32
    %5 = arith.sitofp %4 : i32 to f32
    %c0 = arith.constant 0 : index
    %c0_0 = arith.constant 0 : index
    %6 = vector.load %arg5[%c0, %c0_0] : memref<1x8xf32, #tpu.memory_space<vmem>>, vector<1x8xf32>
    %7 = vector.shape_cast %6 : vector<1x8xf32> to vector<1x1x8xf32>
    %c0_1 = arith.constant 0 : index
    %c0_2 = arith.constant 0 : index
    %8 = vector.load %arg6[%c0_1, %c0_2] : memref<1x8xf32, #tpu.memory_space<vmem>>, vector<1x8xf32>
    %9 = vector.shape_cast %8 : vector<1x8xf32> to vector<1x1x8xf32>
    %cst = arith.constant 0.000000e+00 : f32
    %10 = vector.broadcast %cst : f32 to vector<10x1x8xf32>
    %c0_3 = arith.constant 0 : index
    %c7 = arith.constant 7 : index
    %c0_4 = arith.constant 0 : index
    %11 = vector.load %arg10[%c0_3, %c7, %c0_4] : memref<10x25x8xf32, #tpu.memory_space<vmem>>, vector<10x1x8xf32>
    tpu.vector_store %arg10[%c0_3, %c7, %c0_4], %10 {strides = array<i32>} : memref<10x25x8xf32, #tpu.memory_space<vmem>>, vector<10x1x8xf32>,
    %cst_5 = arith.constant 0.000000e+00 : f32
    %12 = vector.broadcast %cst_5 : f32 to vector<10x1x8xf32>
    %c0_6 = arith.constant 0 : index
    %c24 = arith.constant 24 : index
    %c0_7 = arith.constant 0 : index
    %13 = vector.load %arg10[%c0_6, %c24, %c0_7] : memref<10x25x8xf32, #tpu.memory_space<vmem>>, vector<10x1x8xf32>
    tpu.vector_store %arg10[%c0_6, %c24, %c0_7], %12 {strides = array<i32>} : memref<10x25x8xf32, #tpu.memory_space<vmem>>, vector<10x1x8xf32>,
    %c0_8 = arith.constant 0 : index
    %c0_9 = arith.constant 0 : index
    %c0_10 = arith.constant 0 : index
    %c0_11 = arith.constant 0 : index
    %14 = vector.load %arg3[%c0_8, %c0_9, %c0_10, %c0_11] : memref<1x1x16x8xf32, #tpu.memory_space<vmem>>, vector<1x1x16x8xf32>
    %15 = vector.shape_cast %14 : vector<1x1x16x8xf32> to vector<1x16x8xf32>
    %16 = vector.broadcast %7 : vector<1x1x8xf32> to vector<1x16x8xf32>
    %17 = arith.mulf %15, %16 : vector<1x16x8xf32>
    %18 = vector.broadcast %9 : vector<1x1x8xf32> to vector<1x16x8xf32>
    %19 = arith.addf %17, %18 : vector<1x16x8xf32>
    %cst_12 = arith.constant 0.000000e+00 : f32
    %20 = vector.broadcast %cst_12 : f32 to vector<1x16x8xf32>
    %21 = arith.maximumf %19, %20 : vector<1x16x8xf32>
    %22 = vector.broadcast %2 : f32 to vector<1x16x8xf32>
    %23 = arith.mulf %21, %22 : vector<1x16x8xf32>
    %c0_13 = arith.constant 0 : index
    %c8 = arith.constant 8 : index
    %c0_14 = arith.constant 0 : index
    %24 = vector.load %arg10[%c0_13, %c8, %c0_14] : memref<10x25x8xf32, #tpu.memory_space<vmem>>, vector<1x16x8xf32>
    tpu.vector_store %arg10[%c0_13, %c8, %c0_14], %23 {strides = array<i32>} : memref<10x25x8xf32, #tpu.memory_space<vmem>>, vector<1x16x8xf32>,
    %c0_15 = arith.constant 0 : index
    %c0_16 = arith.constant 0 : index
    %c0_17 = arith.constant 0 : index
    %c0_18 = arith.constant 0 : index
    %25 = vector.load %arg4[%c0_15, %c0_16, %c0_17, %c0_18] : memref<1x1x16x8xf32, #tpu.memory_space<vmem>>, vector<1x1x16x8xf32>
    %26 = vector.shape_cast %25 : vector<1x1x16x8xf32> to vector<1x16x8xf32>
    %27 = vector.broadcast %7 : vector<1x1x8xf32> to vector<1x16x8xf32>
    %28 = arith.mulf %26, %27 : vector<1x16x8xf32>
    %29 = vector.broadcast %9 : vector<1x1x8xf32> to vector<1x16x8xf32>
    %30 = arith.addf %28, %29 : vector<1x16x8xf32>
    %cst_19 = arith.constant 0.000000e+00 : f32
    %31 = vector.broadcast %cst_19 : f32 to vector<1x16x8xf32>
    %32 = arith.maximumf %30, %31 : vector<1x16x8xf32>
    %33 = vector.broadcast %5 : f32 to vector<1x16x8xf32>
    %34 = arith.mulf %32, %33 : vector<1x16x8xf32>
    %c9 = arith.constant 9 : index
    %c8_20 = arith.constant 8 : index
    %c0_21 = arith.constant 0 : index
    %35 = vector.load %arg10[%c9, %c8_20, %c0_21] : memref<10x25x8xf32, #tpu.memory_space<vmem>>, vector<1x16x8xf32>
    tpu.vector_store %arg10[%c9, %c8_20, %c0_21], %34 {strides = array<i32>} : memref<10x25x8xf32, #tpu.memory_space<vmem>>, vector<1x16x8xf32>,
    %c0_22 = arith.constant 0 : index
    %c0_23 = arith.constant 0 : index
    %c0_24 = arith.constant 0 : index
    %c0_25 = arith.constant 0 : index
    %36 = vector.load %arg2[%c0_22, %c0_23, %c0_24, %c0_25] : memref<1x8x16x8xf32, #tpu.memory_space<vmem>>, vector<1x8x16x8xf32>
    %37 = vector.shape_cast %36 : vector<1x8x16x8xf32> to vector<8x16x8xf32>
    %38 = vector.broadcast %7 : vector<1x1x8xf32> to vector<8x16x8xf32>
    %39 = arith.mulf %37, %38 : vector<8x16x8xf32>
    %40 = vector.broadcast %9 : vector<1x1x8xf32> to vector<8x16x8xf32>
    %41 = arith.addf %39, %40 : vector<8x16x8xf32>
    %cst_26 = arith.constant 0.000000e+00 : f32
    %42 = vector.broadcast %cst_26 : f32 to vector<8x16x8xf32>
    %43 = arith.maximumf %41, %42 : vector<8x16x8xf32>
    %c1 = arith.constant 1 : index
    %c8_27 = arith.constant 8 : index
    %c0_28 = arith.constant 0 : index
    %44 = vector.load %arg10[%c1, %c8_27, %c0_28] : memref<10x25x8xf32, #tpu.memory_space<vmem>>, vector<8x16x8xf32>
    tpu.vector_store %arg10[%c1, %c8_27, %c0_28], %43 {strides = array<i32>} : memref<10x25x8xf32, #tpu.memory_space<vmem>>, vector<8x16x8xf32>,
    %c0_29 = arith.constant 0 : index
    %c7_30 = arith.constant 7 : index
    %c0_31 = arith.constant 0 : index
    %45 = vector.load %arg10[%c0_29, %c7_30, %c0_31] : memref<10x25x8xf32, #tpu.memory_space<vmem>>, vector<8x16x8xf32>
    %c0_32 = arith.constant 0 : index
    %c8_33 = arith.constant 8 : index
    %c0_34 = arith.constant 0 : index
    %46 = vector.load %arg10[%c0_32, %c8_33, %c0_34] : memref<10x25x8xf32, #tpu.memory_space<vmem>>, vector<8x16x8xf32>
    %c0_35 = arith.constant 0 : index
    %c9_36 = arith.constant 9 : index
    %c0_37 = arith.constant 0 : index
    %47 = vector.load %arg10[%c0_35, %c9_36, %c0_37] : memref<10x25x8xf32, #tpu.memory_space<vmem>>, vector<8x16x8xf32>
    %48 = tpu.concatenate %45, %46, %47 in 2 : vector<8x16x8xf32>, vector<8x16x8xf32>, vector<8x16x8xf32> -> vector<8x16x24xf32>
    %49 = vector.shape_cast %48 : vector<8x16x24xf32> to vector<128x24xf32>
    %c0_38 = arith.constant 0 : index
    %c0_39 = arith.constant 0 : index
    %c0_40 = arith.constant 0 : index
    %50 = vector.load %arg7[%c0_38, %c0_39, %c0_40] : memref<3x24x8xf32, #tpu.memory_space<vmem>>, vector<1x24x8xf32>
    %51 = vector.shape_cast %50 : vector<1x24x8xf32> to vector<24x8xf32>
    %cst_41 = arith.constant dense<0.000000e+00> : vector<128x8xf32>
    %52 = tpu.matmul %49, %51, %cst_41 {dimension_numbers = #tpu.dot_dimension_numbers<[1], [0], [0], [1], [0, 0, 1, 1], [], []>} : vector<128x24xf32>, vector<24x8xf32>, vector<128x8xf32> -> vector<128x8xf32>
    %c1_42 = arith.constant 1 : index
    %c7_43 = arith.constant 7 : index
    %c0_44 = arith.constant 0 : index
    %53 = vector.load %arg10[%c1_42, %c7_43, %c0_44] : memref<10x25x8xf32, #tpu.memory_space<vmem>>, vector<8x16x8xf32>
    %c1_45 = arith.constant 1 : index
    %c8_46 = arith.constant 8 : index
    %c0_47 = arith.constant 0 : index
    %54 = vector.load %arg10[%c1_45, %c8_46, %c0_47] : memref<10x25x8xf32, #tpu.memory_space<vmem>>, vector<8x16x8xf32>
    %c1_48 = arith.constant 1 : index
    %c9_49 = arith.constant 9 : index
    %c0_50 = arith.constant 0 : index
    %55 = vector.load %arg10[%c1_48, %c9_49, %c0_50] : memref<10x25x8xf32, #tpu.memory_space<vmem>>, vector<8x16x8xf32>
    %56 = tpu.concatenate %53, %54, %55 in 2 : vector<8x16x8xf32>, vector<8x16x8xf32>, vector<8x16x8xf32> -> vector<8x16x24xf32>
    %57 = vector.shape_cast %56 : vector<8x16x24xf32> to vector<128x24xf32>
    %c1_51 = arith.constant 1 : index
    %c0_52 = arith.constant 0 : index
    %c0_53 = arith.constant 0 : index
    %58 = vector.load %arg7[%c1_51, %c0_52, %c0_53] : memref<3x24x8xf32, #tpu.memory_space<vmem>>, vector<1x24x8xf32>
    %59 = vector.shape_cast %58 : vector<1x24x8xf32> to vector<24x8xf32>
    %cst_54 = arith.constant dense<0.000000e+00> : vector<128x8xf32>
    %60 = tpu.matmul %57, %59, %cst_54 {dimension_numbers = #tpu.dot_dimension_numbers<[1], [0], [0], [1], [0, 0, 1, 1], [], []>} : vector<128x24xf32>, vector<24x8xf32>, vector<128x8xf32> -> vector<128x8xf32>
    %61 = arith.addf %52, %60 : vector<128x8xf32>
    %c2 = arith.constant 2 : index
    %c7_55 = arith.constant 7 : index
    %c0_56 = arith.constant 0 : index
    %62 = vector.load %arg10[%c2, %c7_55, %c0_56] : memref<10x25x8xf32, #tpu.memory_space<vmem>>, vector<8x16x8xf32>
    %c2_57 = arith.constant 2 : index
    %c8_58 = arith.constant 8 : index
    %c0_59 = arith.constant 0 : index
    %63 = vector.load %arg10[%c2_57, %c8_58, %c0_59] : memref<10x25x8xf32, #tpu.memory_space<vmem>>, vector<8x16x8xf32>
    %c2_60 = arith.constant 2 : index
    %c9_61 = arith.constant 9 : index
    %c0_62 = arith.constant 0 : index
    %64 = vector.load %arg10[%c2_60, %c9_61, %c0_62] : memref<10x25x8xf32, #tpu.memory_space<vmem>>, vector<8x16x8xf32>
    %65 = tpu.concatenate %62, %63, %64 in 2 : vector<8x16x8xf32>, vector<8x16x8xf32>, vector<8x16x8xf32> -> vector<8x16x24xf32>
    %66 = vector.shape_cast %65 : vector<8x16x24xf32> to vector<128x24xf32>
    %c2_63 = arith.constant 2 : index
    %c0_64 = arith.constant 0 : index
    %c0_65 = arith.constant 0 : index
    %67 = vector.load %arg7[%c2_63, %c0_64, %c0_65] : memref<3x24x8xf32, #tpu.memory_space<vmem>>, vector<1x24x8xf32>
    %68 = vector.shape_cast %67 : vector<1x24x8xf32> to vector<24x8xf32>
    %cst_66 = arith.constant dense<0.000000e+00> : vector<128x8xf32>
    %69 = tpu.matmul %66, %68, %cst_66 {dimension_numbers = #tpu.dot_dimension_numbers<[1], [0], [0], [1], [0, 0, 1, 1], [], []>} : vector<128x24xf32>, vector<24x8xf32>, vector<128x8xf32> -> vector<128x8xf32>
    %70 = arith.addf %61, %69 : vector<128x8xf32>
    %cst_67 = arith.constant dense<0.000000e+00> : vector<8xf32>
    %71 = vector.multi_reduction <add>, %70, %cst_67 [0] : vector<128x8xf32> to vector<8xf32>
    %72 = vector.shape_cast %71 : vector<8xf32> to vector<1x8xf32>
    %73 = arith.mulf %70, %70 : vector<128x8xf32>
    %cst_68 = arith.constant dense<0.000000e+00> : vector<8xf32>
    %74 = vector.multi_reduction <add>, %73, %cst_68 [0] : vector<128x8xf32> to vector<8xf32>
    %75 = vector.shape_cast %74 : vector<8xf32> to vector<1x8xf32>
    %76 = vector.shape_cast %70 : vector<128x8xf32> to vector<1x8x16x8xf32>
    %c0_69 = arith.constant 0 : index
    %c0_70 = arith.constant 0 : index
    %c0_71 = arith.constant 0 : index
    %c0_72 = arith.constant 0 : index
    %77 = vector.load %arg8[%c0_69, %c0_70, %c0_71, %c0_72] : memref<1x8x16x8xf32, #tpu.memory_space<vmem>>, vector<1x8x16x8xf32>
    tpu.vector_store %arg8[%c0_69, %c0_70, %c0_71, %c0_72], %76 {strides = array<i32>} : memref<1x8x16x8xf32, #tpu.memory_space<vmem>>, vector<1x8x16x8xf32>,
    %78 = tpu.concatenate %72, %75 in 0 : vector<1x8xf32>, vector<1x8xf32> -> vector<2x8xf32>
    %79 = vector.shape_cast %78 : vector<2x8xf32> to vector<1x1x2x8xf32>
    %c0_73 = arith.constant 0 : index
    %c0_74 = arith.constant 0 : index
    %c0_75 = arith.constant 0 : index
    %c0_76 = arith.constant 0 : index
    %80 = vector.load %arg9[%c0_73, %c0_74, %c0_75, %c0_76] : memref<1x1x2x8xf32, #tpu.memory_space<vmem>>, vector<1x1x2x8xf32>
    tpu.vector_store %arg9[%c0_73, %c0_74, %c0_75, %c0_76], %79 {strides = array<i32>} : memref<1x1x2x8xf32, #tpu.memory_space<vmem>>, vector<1x1x2x8xf32>,
    return
  }
  func.func @transform_0(%arg0: i32, %arg1: i32) -> (i32, i32, i32, i32) {
    %c0_i32 = arith.constant 0 : i32
    %c0_i32_0 = arith.constant 0 : i32
    %c0_i32_1 = arith.constant 0 : i32
    return %arg0, %arg1, %c0_i32, %c0_i32_0 : i32, i32, i32, i32
  }
  func.func @transform_1(%arg0: i32, %arg1: i32) -> (i32, i32, i32, i32) {
    %c8_i32 = arith.constant 8 : i32
    %0 = arith.muli %arg1, %c8_i32 : i32
    %c1_i32 = arith.constant 1 : i32
    %1 = arith.subi %0, %c1_i32 : i32
    %c0_i32 = arith.constant 0 : i32
    %2 = arith.maxsi %1, %c0_i32 : i32
    %c0_i32_0 = arith.constant 0 : i32
    %c0_i32_1 = arith.constant 0 : i32
    %c0_i32_2 = arith.constant 0 : i32
    return %arg0, %2, %c0_i32_0, %c0_i32_1 : i32, i32, i32, i32
  }
  func.func @transform_2(%arg0: i32, %arg1: i32) -> (i32, i32, i32, i32) {
    %c8_i32 = arith.constant 8 : i32
    %0 = arith.muli %arg1, %c8_i32 : i32
    %c8_i32_0 = arith.constant 8 : i32
    %1 = arith.addi %0, %c8_i32_0 : i32
    %c15_i32 = arith.constant 15 : i32
    %2 = arith.minsi %1, %c15_i32 : i32
    %c0_i32 = arith.constant 0 : i32
    %c0_i32_1 = arith.constant 0 : i32
    %c0_i32_2 = arith.constant 0 : i32
    return %arg0, %2, %c0_i32, %c0_i32_1 : i32, i32, i32, i32
  }
  func.func @transform_3(%arg0: i32, %arg1: i32) -> (i32, i32) {
    %c0_i32 = arith.constant 0 : i32
    %c0_i32_0 = arith.constant 0 : i32
    %c0_i32_1 = arith.constant 0 : i32
    return %c0_i32, %c0_i32_0 : i32, i32
  }
  func.func @transform_4(%arg0: i32, %arg1: i32) -> (i32, i32) {
    %c0_i32 = arith.constant 0 : i32
    %c0_i32_0 = arith.constant 0 : i32
    %c0_i32_1 = arith.constant 0 : i32
    return %c0_i32, %c0_i32_0 : i32, i32
  }
  func.func @transform_5(%arg0: i32, %arg1: i32) -> (i32, i32, i32) {
    %c0_i32 = arith.constant 0 : i32
    %c0_i32_0 = arith.constant 0 : i32
    %c0_i32_1 = arith.constant 0 : i32
    %c0_i32_2 = arith.constant 0 : i32
    return %c0_i32, %c0_i32_0, %c0_i32_1 : i32, i32, i32
  }
  func.func @transform_6(%arg0: i32, %arg1: i32) -> (i32, i32, i32, i32) {
    %c0_i32 = arith.constant 0 : i32
    %c0_i32_0 = arith.constant 0 : i32
    %c0_i32_1 = arith.constant 0 : i32
    return %arg0, %arg1, %c0_i32, %c0_i32_0 : i32, i32, i32, i32
  }
  func.func @transform_7(%arg0: i32, %arg1: i32) -> (i32, i32, i32, i32) {
    %c0_i32 = arith.constant 0 : i32
    %c0_i32_0 = arith.constant 0 : i32
    %c0_i32_1 = arith.constant 0 : i32
    return %arg0, %arg1, %c0_i32, %c0_i32_0 : i32, i32, i32, i32
  }
}

module attributes {stable_mosaic.version = 11 : i64} {
  func.func @_bn_relu_kernel(%arg0: i32, %arg1: memref<16x128xf32, #tpu.memory_space<vmem>>, %arg2: memref<1x128xf32, #tpu.memory_space<vmem>>, %arg3: memref<1x128xf32, #tpu.memory_space<vmem>>, %arg4: memref<16x128xf32, #tpu.memory_space<vmem>>) attributes {dimension_semantics = [#tpu.dimension_semantics<parallel>], iteration_bounds = array<i64: 2>, scalar_prefetch = 0 : i64, scratch_operands = 0 : i64, tpu.core_type = #tpu.core_type<tc>, window_params = [{transform_indices = @transform_0, window_bounds = array<i64: 16, 128>}, {pipeline_mode = #tpu.pipeline_mode<synchronous>, transform_indices = @transform_1, window_bounds = array<i64: 1, 128>}, {pipeline_mode = #tpu.pipeline_mode<synchronous>, transform_indices = @transform_2, window_bounds = array<i64: 1, 128>}, {transform_indices = @transform_3, window_bounds = array<i64: 16, 128>}]} {
    %c0 = arith.constant 0 : index
    %c0_0 = arith.constant 0 : index
    %0 = vector.load %arg1[%c0, %c0_0] : memref<16x128xf32, #tpu.memory_space<vmem>>, vector<16x128xf32>
    %c0_1 = arith.constant 0 : index
    %c0_2 = arith.constant 0 : index
    %1 = vector.load %arg2[%c0_1, %c0_2] : memref<1x128xf32, #tpu.memory_space<vmem>>, vector<1x128xf32>
    %2 = vector.broadcast %1 : vector<1x128xf32> to vector<16x128xf32>
    %3 = arith.mulf %0, %2 : vector<16x128xf32>
    %c0_3 = arith.constant 0 : index
    %c0_4 = arith.constant 0 : index
    %4 = vector.load %arg3[%c0_3, %c0_4] : memref<1x128xf32, #tpu.memory_space<vmem>>, vector<1x128xf32>
    %5 = vector.broadcast %4 : vector<1x128xf32> to vector<16x128xf32>
    %6 = arith.addf %3, %5 : vector<16x128xf32>
    %cst = arith.constant 0.000000e+00 : f32
    %7 = vector.broadcast %cst : f32 to vector<16x128xf32>
    %8 = arith.maximumf %6, %7 : vector<16x128xf32>
    %c0_5 = arith.constant 0 : index
    %c0_6 = arith.constant 0 : index
    %9 = vector.load %arg4[%c0_5, %c0_6] : memref<16x128xf32, #tpu.memory_space<vmem>>, vector<16x128xf32>
    tpu.vector_store %arg4[%c0_5, %c0_6], %8 {strides = array<i32>} : memref<16x128xf32, #tpu.memory_space<vmem>>, vector<16x128xf32>,
    return
  }
  func.func @transform_0(%arg0: i32) -> (i32, i32) {
    %c0_i32 = arith.constant 0 : i32
    %c0_i32_0 = arith.constant 0 : i32
    return %arg0, %c0_i32 : i32, i32
  }
  func.func @transform_1(%arg0: i32) -> (i32, i32) {
    %c0_i32 = arith.constant 0 : i32
    %c0_i32_0 = arith.constant 0 : i32
    %c0_i32_1 = arith.constant 0 : i32
    return %c0_i32, %c0_i32_0 : i32, i32
  }
  func.func @transform_2(%arg0: i32) -> (i32, i32) {
    %c0_i32 = arith.constant 0 : i32
    %c0_i32_0 = arith.constant 0 : i32
    %c0_i32_1 = arith.constant 0 : i32
    return %c0_i32, %c0_i32_0 : i32, i32
  }
  func.func @transform_3(%arg0: i32) -> (i32, i32) {
    %c0_i32 = arith.constant 0 : i32
    %c0_i32_0 = arith.constant 0 : i32
    return %arg0, %c0_i32 : i32, i32
  }
}

module attributes {stable_mosaic.version = 11 : i64} {
  func.func @_conv1_kernel(%arg0: i32, %arg1: i32, %arg2: memref<1x8x16x4xf32, #tpu.memory_space<vmem>>, %arg3: memref<1x1x16x4xf32, #tpu.memory_space<vmem>>, %arg4: memref<1x1x16x4xf32, #tpu.memory_space<vmem>>, %arg5: memref<3x12x8xf32, #tpu.memory_space<vmem>>, %arg6: memref<1x8x16x8xf32, #tpu.memory_space<vmem>>, %arg7: memref<1x1x2x8xf32, #tpu.memory_space<vmem>>, %arg8: memref<10x25x4xf32, #tpu.memory_space<vmem>>) attributes {dimension_semantics = [#tpu.dimension_semantics<parallel>, #tpu.dimension_semantics<parallel>], iteration_bounds = array<i64: 2, 2>, scalar_prefetch = 0 : i64, scratch_operands = 1 : i64, tpu.core_type = #tpu.core_type<tc>, window_params = [{transform_indices = @transform_0, window_bounds = array<i64: 1, 8, 16, 4>}, {transform_indices = @transform_1, window_bounds = array<i64: 1, 1, 16, 4>}, {transform_indices = @transform_2, window_bounds = array<i64: 1, 1, 16, 4>}, {pipeline_mode = #tpu.pipeline_mode<synchronous>, transform_indices = @transform_3, window_bounds = array<i64: 3, 12, 8>}, {transform_indices = @transform_4, window_bounds = array<i64: 1, 8, 16, 8>}, {transform_indices = @transform_5, window_bounds = array<i64: 1, 1, 2, 8>}]} {
    %c0_i32 = arith.constant 0 : i32
    %0 = arith.cmpi sgt, %arg1, %c0_i32 : i32
    %1 = arith.extui %0 : i1 to i32
    %2 = arith.sitofp %1 : i32 to f32
    %c1_i32 = arith.constant 1 : i32
    %3 = arith.cmpi slt, %arg1, %c1_i32 : i32
    %4 = arith.extui %3 : i1 to i32
    %5 = arith.sitofp %4 : i32 to f32
    %cst = arith.constant 0.000000e+00 : f32
    %6 = vector.broadcast %cst : f32 to vector<10x1x4xf32>
    %c0 = arith.constant 0 : index
    %c7 = arith.constant 7 : index
    %c0_0 = arith.constant 0 : index
    %7 = vector.load %arg8[%c0, %c7, %c0_0] : memref<10x25x4xf32, #tpu.memory_space<vmem>>, vector<10x1x4xf32>
    tpu.vector_store %arg8[%c0, %c7, %c0_0], %6 {strides = array<i32>} : memref<10x25x4xf32, #tpu.memory_space<vmem>>, vector<10x1x4xf32>,
    %cst_1 = arith.constant 0.000000e+00 : f32
    %8 = vector.broadcast %cst_1 : f32 to vector<10x1x4xf32>
    %c0_2 = arith.constant 0 : index
    %c24 = arith.constant 24 : index
    %c0_3 = arith.constant 0 : index
    %9 = vector.load %arg8[%c0_2, %c24, %c0_3] : memref<10x25x4xf32, #tpu.memory_space<vmem>>, vector<10x1x4xf32>
    tpu.vector_store %arg8[%c0_2, %c24, %c0_3], %8 {strides = array<i32>} : memref<10x25x4xf32, #tpu.memory_space<vmem>>, vector<10x1x4xf32>,
    %c0_4 = arith.constant 0 : index
    %c0_5 = arith.constant 0 : index
    %c0_6 = arith.constant 0 : index
    %c0_7 = arith.constant 0 : index
    %10 = vector.load %arg3[%c0_4, %c0_5, %c0_6, %c0_7] : memref<1x1x16x4xf32, #tpu.memory_space<vmem>>, vector<1x1x16x4xf32>
    %11 = vector.shape_cast %10 : vector<1x1x16x4xf32> to vector<1x16x4xf32>
    %12 = vector.broadcast %2 : f32 to vector<1x16x4xf32>
    %13 = arith.mulf %11, %12 : vector<1x16x4xf32>
    %c0_8 = arith.constant 0 : index
    %c8 = arith.constant 8 : index
    %c0_9 = arith.constant 0 : index
    %14 = vector.load %arg8[%c0_8, %c8, %c0_9] : memref<10x25x4xf32, #tpu.memory_space<vmem>>, vector<1x16x4xf32>
    tpu.vector_store %arg8[%c0_8, %c8, %c0_9], %13 {strides = array<i32>} : memref<10x25x4xf32, #tpu.memory_space<vmem>>, vector<1x16x4xf32>,
    %c0_10 = arith.constant 0 : index
    %c0_11 = arith.constant 0 : index
    %c0_12 = arith.constant 0 : index
    %c0_13 = arith.constant 0 : index
    %15 = vector.load %arg4[%c0_10, %c0_11, %c0_12, %c0_13] : memref<1x1x16x4xf32, #tpu.memory_space<vmem>>, vector<1x1x16x4xf32>
    %16 = vector.shape_cast %15 : vector<1x1x16x4xf32> to vector<1x16x4xf32>
    %17 = vector.broadcast %5 : f32 to vector<1x16x4xf32>
    %18 = arith.mulf %16, %17 : vector<1x16x4xf32>
    %c9 = arith.constant 9 : index
    %c8_14 = arith.constant 8 : index
    %c0_15 = arith.constant 0 : index
    %19 = vector.load %arg8[%c9, %c8_14, %c0_15] : memref<10x25x4xf32, #tpu.memory_space<vmem>>, vector<1x16x4xf32>
    tpu.vector_store %arg8[%c9, %c8_14, %c0_15], %18 {strides = array<i32>} : memref<10x25x4xf32, #tpu.memory_space<vmem>>, vector<1x16x4xf32>,
    %c0_16 = arith.constant 0 : index
    %c0_17 = arith.constant 0 : index
    %c0_18 = arith.constant 0 : index
    %c0_19 = arith.constant 0 : index
    %20 = vector.load %arg2[%c0_16, %c0_17, %c0_18, %c0_19] : memref<1x8x16x4xf32, #tpu.memory_space<vmem>>, vector<1x8x16x4xf32>
    %21 = vector.shape_cast %20 : vector<1x8x16x4xf32> to vector<8x16x4xf32>
    %c1 = arith.constant 1 : index
    %c8_20 = arith.constant 8 : index
    %c0_21 = arith.constant 0 : index
    %22 = vector.load %arg8[%c1, %c8_20, %c0_21] : memref<10x25x4xf32, #tpu.memory_space<vmem>>, vector<8x16x4xf32>
    tpu.vector_store %arg8[%c1, %c8_20, %c0_21], %21 {strides = array<i32>} : memref<10x25x4xf32, #tpu.memory_space<vmem>>, vector<8x16x4xf32>,
    %c0_22 = arith.constant 0 : index
    %c7_23 = arith.constant 7 : index
    %c0_24 = arith.constant 0 : index
    %23 = vector.load %arg8[%c0_22, %c7_23, %c0_24] : memref<10x25x4xf32, #tpu.memory_space<vmem>>, vector<8x16x4xf32>
    %c0_25 = arith.constant 0 : index
    %c8_26 = arith.constant 8 : index
    %c0_27 = arith.constant 0 : index
    %24 = vector.load %arg8[%c0_25, %c8_26, %c0_27] : memref<10x25x4xf32, #tpu.memory_space<vmem>>, vector<8x16x4xf32>
    %c0_28 = arith.constant 0 : index
    %c9_29 = arith.constant 9 : index
    %c0_30 = arith.constant 0 : index
    %25 = vector.load %arg8[%c0_28, %c9_29, %c0_30] : memref<10x25x4xf32, #tpu.memory_space<vmem>>, vector<8x16x4xf32>
    %26 = tpu.concatenate %23, %24, %25 in 2 : vector<8x16x4xf32>, vector<8x16x4xf32>, vector<8x16x4xf32> -> vector<8x16x12xf32>
    %27 = vector.shape_cast %26 : vector<8x16x12xf32> to vector<128x12xf32>
    %c0_31 = arith.constant 0 : index
    %c0_32 = arith.constant 0 : index
    %c0_33 = arith.constant 0 : index
    %28 = vector.load %arg5[%c0_31, %c0_32, %c0_33] : memref<3x12x8xf32, #tpu.memory_space<vmem>>, vector<1x12x8xf32>
    %29 = vector.shape_cast %28 : vector<1x12x8xf32> to vector<12x8xf32>
    %cst_34 = arith.constant dense<0.000000e+00> : vector<128x8xf32>
    %30 = tpu.matmul %27, %29, %cst_34 {dimension_numbers = #tpu.dot_dimension_numbers<[1], [0], [0], [1], [0, 0, 1, 1], [], []>} : vector<128x12xf32>, vector<12x8xf32>, vector<128x8xf32> -> vector<128x8xf32>
    %c1_35 = arith.constant 1 : index
    %c7_36 = arith.constant 7 : index
    %c0_37 = arith.constant 0 : index
    %31 = vector.load %arg8[%c1_35, %c7_36, %c0_37] : memref<10x25x4xf32, #tpu.memory_space<vmem>>, vector<8x16x4xf32>
    %c1_38 = arith.constant 1 : index
    %c8_39 = arith.constant 8 : index
    %c0_40 = arith.constant 0 : index
    %32 = vector.load %arg8[%c1_38, %c8_39, %c0_40] : memref<10x25x4xf32, #tpu.memory_space<vmem>>, vector<8x16x4xf32>
    %c1_41 = arith.constant 1 : index
    %c9_42 = arith.constant 9 : index
    %c0_43 = arith.constant 0 : index
    %33 = vector.load %arg8[%c1_41, %c9_42, %c0_43] : memref<10x25x4xf32, #tpu.memory_space<vmem>>, vector<8x16x4xf32>
    %34 = tpu.concatenate %31, %32, %33 in 2 : vector<8x16x4xf32>, vector<8x16x4xf32>, vector<8x16x4xf32> -> vector<8x16x12xf32>
    %35 = vector.shape_cast %34 : vector<8x16x12xf32> to vector<128x12xf32>
    %c1_44 = arith.constant 1 : index
    %c0_45 = arith.constant 0 : index
    %c0_46 = arith.constant 0 : index
    %36 = vector.load %arg5[%c1_44, %c0_45, %c0_46] : memref<3x12x8xf32, #tpu.memory_space<vmem>>, vector<1x12x8xf32>
    %37 = vector.shape_cast %36 : vector<1x12x8xf32> to vector<12x8xf32>
    %cst_47 = arith.constant dense<0.000000e+00> : vector<128x8xf32>
    %38 = tpu.matmul %35, %37, %cst_47 {dimension_numbers = #tpu.dot_dimension_numbers<[1], [0], [0], [1], [0, 0, 1, 1], [], []>} : vector<128x12xf32>, vector<12x8xf32>, vector<128x8xf32> -> vector<128x8xf32>
    %39 = arith.addf %30, %38 : vector<128x8xf32>
    %c2 = arith.constant 2 : index
    %c7_48 = arith.constant 7 : index
    %c0_49 = arith.constant 0 : index
    %40 = vector.load %arg8[%c2, %c7_48, %c0_49] : memref<10x25x4xf32, #tpu.memory_space<vmem>>, vector<8x16x4xf32>
    %c2_50 = arith.constant 2 : index
    %c8_51 = arith.constant 8 : index
    %c0_52 = arith.constant 0 : index
    %41 = vector.load %arg8[%c2_50, %c8_51, %c0_52] : memref<10x25x4xf32, #tpu.memory_space<vmem>>, vector<8x16x4xf32>
    %c2_53 = arith.constant 2 : index
    %c9_54 = arith.constant 9 : index
    %c0_55 = arith.constant 0 : index
    %42 = vector.load %arg8[%c2_53, %c9_54, %c0_55] : memref<10x25x4xf32, #tpu.memory_space<vmem>>, vector<8x16x4xf32>
    %43 = tpu.concatenate %40, %41, %42 in 2 : vector<8x16x4xf32>, vector<8x16x4xf32>, vector<8x16x4xf32> -> vector<8x16x12xf32>
    %44 = vector.shape_cast %43 : vector<8x16x12xf32> to vector<128x12xf32>
    %c2_56 = arith.constant 2 : index
    %c0_57 = arith.constant 0 : index
    %c0_58 = arith.constant 0 : index
    %45 = vector.load %arg5[%c2_56, %c0_57, %c0_58] : memref<3x12x8xf32, #tpu.memory_space<vmem>>, vector<1x12x8xf32>
    %46 = vector.shape_cast %45 : vector<1x12x8xf32> to vector<12x8xf32>
    %cst_59 = arith.constant dense<0.000000e+00> : vector<128x8xf32>
    %47 = tpu.matmul %44, %46, %cst_59 {dimension_numbers = #tpu.dot_dimension_numbers<[1], [0], [0], [1], [0, 0, 1, 1], [], []>} : vector<128x12xf32>, vector<12x8xf32>, vector<128x8xf32> -> vector<128x8xf32>
    %48 = arith.addf %39, %47 : vector<128x8xf32>
    %cst_60 = arith.constant dense<0.000000e+00> : vector<8xf32>
    %49 = vector.multi_reduction <add>, %48, %cst_60 [0] : vector<128x8xf32> to vector<8xf32>
    %50 = vector.shape_cast %49 : vector<8xf32> to vector<1x8xf32>
    %51 = arith.mulf %48, %48 : vector<128x8xf32>
    %cst_61 = arith.constant dense<0.000000e+00> : vector<8xf32>
    %52 = vector.multi_reduction <add>, %51, %cst_61 [0] : vector<128x8xf32> to vector<8xf32>
    %53 = vector.shape_cast %52 : vector<8xf32> to vector<1x8xf32>
    %54 = vector.shape_cast %48 : vector<128x8xf32> to vector<1x8x16x8xf32>
    %c0_62 = arith.constant 0 : index
    %c0_63 = arith.constant 0 : index
    %c0_64 = arith.constant 0 : index
    %c0_65 = arith.constant 0 : index
    %55 = vector.load %arg6[%c0_62, %c0_63, %c0_64, %c0_65] : memref<1x8x16x8xf32, #tpu.memory_space<vmem>>, vector<1x8x16x8xf32>
    tpu.vector_store %arg6[%c0_62, %c0_63, %c0_64, %c0_65], %54 {strides = array<i32>} : memref<1x8x16x8xf32, #tpu.memory_space<vmem>>, vector<1x8x16x8xf32>,
    %56 = tpu.concatenate %50, %53 in 0 : vector<1x8xf32>, vector<1x8xf32> -> vector<2x8xf32>
    %57 = vector.shape_cast %56 : vector<2x8xf32> to vector<1x1x2x8xf32>
    %c0_66 = arith.constant 0 : index
    %c0_67 = arith.constant 0 : index
    %c0_68 = arith.constant 0 : index
    %c0_69 = arith.constant 0 : index
    %58 = vector.load %arg7[%c0_66, %c0_67, %c0_68, %c0_69] : memref<1x1x2x8xf32, #tpu.memory_space<vmem>>, vector<1x1x2x8xf32>
    tpu.vector_store %arg7[%c0_66, %c0_67, %c0_68, %c0_69], %57 {strides = array<i32>} : memref<1x1x2x8xf32, #tpu.memory_space<vmem>>, vector<1x1x2x8xf32>,
    return
  }
  func.func @transform_0(%arg0: i32, %arg1: i32) -> (i32, i32, i32, i32) {
    %c0_i32 = arith.constant 0 : i32
    %c0_i32_0 = arith.constant 0 : i32
    %c0_i32_1 = arith.constant 0 : i32
    return %arg0, %arg1, %c0_i32, %c0_i32_0 : i32, i32, i32, i32
  }
  func.func @transform_1(%arg0: i32, %arg1: i32) -> (i32, i32, i32, i32) {
    %c8_i32 = arith.constant 8 : i32
    %0 = arith.muli %arg1, %c8_i32 : i32
    %c1_i32 = arith.constant 1 : i32
    %1 = arith.subi %0, %c1_i32 : i32
    %c0_i32 = arith.constant 0 : i32
    %2 = arith.maxsi %1, %c0_i32 : i32
    %c0_i32_0 = arith.constant 0 : i32
    %c0_i32_1 = arith.constant 0 : i32
    %c0_i32_2 = arith.constant 0 : i32
    return %arg0, %2, %c0_i32_0, %c0_i32_1 : i32, i32, i32, i32
  }
  func.func @transform_2(%arg0: i32, %arg1: i32) -> (i32, i32, i32, i32) {
    %c8_i32 = arith.constant 8 : i32
    %0 = arith.muli %arg1, %c8_i32 : i32
    %c8_i32_0 = arith.constant 8 : i32
    %1 = arith.addi %0, %c8_i32_0 : i32
    %c15_i32 = arith.constant 15 : i32
    %2 = arith.minsi %1, %c15_i32 : i32
    %c0_i32 = arith.constant 0 : i32
    %c0_i32_1 = arith.constant 0 : i32
    %c0_i32_2 = arith.constant 0 : i32
    return %arg0, %2, %c0_i32, %c0_i32_1 : i32, i32, i32, i32
  }
  func.func @transform_3(%arg0: i32, %arg1: i32) -> (i32, i32, i32) {
    %c0_i32 = arith.constant 0 : i32
    %c0_i32_0 = arith.constant 0 : i32
    %c0_i32_1 = arith.constant 0 : i32
    %c0_i32_2 = arith.constant 0 : i32
    return %c0_i32, %c0_i32_0, %c0_i32_1 : i32, i32, i32
  }
  func.func @transform_4(%arg0: i32, %arg1: i32) -> (i32, i32, i32, i32) {
    %c0_i32 = arith.constant 0 : i32
    %c0_i32_0 = arith.constant 0 : i32
    %c0_i32_1 = arith.constant 0 : i32
    return %arg0, %arg1, %c0_i32, %c0_i32_0 : i32, i32, i32, i32
  }
  func.func @transform_5(%arg0: i32, %arg1: i32) -> (i32, i32, i32, i32) {
    %c0_i32 = arith.constant 0 : i32
    %c0_i32_0 = arith.constant 0 : i32
    %c0_i32_1 = arith.constant 0 : i32
    return %arg0, %arg1, %c0_i32, %c0_i32_0 : i32, i32, i32, i32
  }
}

module attributes {stable_mosaic.version = 11 : i64} {
  func.func @_conv2_kernel(%arg0: i32, %arg1: i32, %arg2: memref<1x8x16x8xf32, #tpu.memory_space<vmem>>, %arg3: memref<1x1x16x8xf32, #tpu.memory_space<vmem>>, %arg4: memref<1x1x16x8xf32, #tpu.memory_space<vmem>>, %arg5: memref<1x8xf32, #tpu.memory_space<vmem>>, %arg6: memref<1x8xf32, #tpu.memory_space<vmem>>, %arg7: memref<3x24x8xf32, #tpu.memory_space<vmem>>, %arg8: memref<1x8x16x8xf32, #tpu.memory_space<vmem>>, %arg9: memref<1x1x2x8xf32, #tpu.memory_space<vmem>>, %arg10: memref<10x25x8xf32, #tpu.memory_space<vmem>>) attributes {dimension_semantics = [#tpu.dimension_semantics<parallel>, #tpu.dimension_semantics<parallel>], iteration_bounds = array<i64: 2, 2>, scalar_prefetch = 0 : i64, scratch_operands = 1 : i64, tpu.core_type = #tpu.core_type<tc>, window_params = [{transform_indices = @transform_0, window_bounds = array<i64: 1, 8, 16, 8>}, {transform_indices = @transform_1, window_bounds = array<i64: 1, 1, 16, 8>}, {transform_indices = @transform_2, window_bounds = array<i64: 1, 1, 16, 8>}, {pipeline_mode = #tpu.pipeline_mode<synchronous>, transform_indices = @transform_3, window_bounds = array<i64: 1, 8>}, {pipeline_mode = #tpu.pipeline_mode<synchronous>, transform_indices = @transform_4, window_bounds = array<i64: 1, 8>}, {pipeline_mode = #tpu.pipeline_mode<synchronous>, transform_indices = @transform_5, window_bounds = array<i64: 3, 24, 8>}, {transform_indices = @transform_6, window_bounds = array<i64: 1, 8, 16, 8>}, {transform_indices = @transform_7, window_bounds = array<i64: 1, 1, 2, 8>}]} {
    %c0_i32 = arith.constant 0 : i32
    %0 = arith.cmpi sgt, %arg1, %c0_i32 : i32
    %1 = arith.extui %0 : i1 to i32
    %2 = arith.sitofp %1 : i32 to f32
    %c1_i32 = arith.constant 1 : i32
    %3 = arith.cmpi slt, %arg1, %c1_i32 : i32
    %4 = arith.extui %3 : i1 to i32
    %5 = arith.sitofp %4 : i32 to f32
    %c0 = arith.constant 0 : index
    %c0_0 = arith.constant 0 : index
    %6 = vector.load %arg5[%c0, %c0_0] : memref<1x8xf32, #tpu.memory_space<vmem>>, vector<1x8xf32>
    %7 = vector.shape_cast %6 : vector<1x8xf32> to vector<1x1x8xf32>
    %c0_1 = arith.constant 0 : index
    %c0_2 = arith.constant 0 : index
    %8 = vector.load %arg6[%c0_1, %c0_2] : memref<1x8xf32, #tpu.memory_space<vmem>>, vector<1x8xf32>
    %9 = vector.shape_cast %8 : vector<1x8xf32> to vector<1x1x8xf32>
    %cst = arith.constant 0.000000e+00 : f32
    %10 = vector.broadcast %cst : f32 to vector<10x1x8xf32>
    %c0_3 = arith.constant 0 : index
    %c7 = arith.constant 7 : index
    %c0_4 = arith.constant 0 : index
    %11 = vector.load %arg10[%c0_3, %c7, %c0_4] : memref<10x25x8xf32, #tpu.memory_space<vmem>>, vector<10x1x8xf32>
    tpu.vector_store %arg10[%c0_3, %c7, %c0_4], %10 {strides = array<i32>} : memref<10x25x8xf32, #tpu.memory_space<vmem>>, vector<10x1x8xf32>,
    %cst_5 = arith.constant 0.000000e+00 : f32
    %12 = vector.broadcast %cst_5 : f32 to vector<10x1x8xf32>
    %c0_6 = arith.constant 0 : index
    %c24 = arith.constant 24 : index
    %c0_7 = arith.constant 0 : index
    %13 = vector.load %arg10[%c0_6, %c24, %c0_7] : memref<10x25x8xf32, #tpu.memory_space<vmem>>, vector<10x1x8xf32>
    tpu.vector_store %arg10[%c0_6, %c24, %c0_7], %12 {strides = array<i32>} : memref<10x25x8xf32, #tpu.memory_space<vmem>>, vector<10x1x8xf32>,
    %c0_8 = arith.constant 0 : index
    %c0_9 = arith.constant 0 : index
    %c0_10 = arith.constant 0 : index
    %c0_11 = arith.constant 0 : index
    %14 = vector.load %arg3[%c0_8, %c0_9, %c0_10, %c0_11] : memref<1x1x16x8xf32, #tpu.memory_space<vmem>>, vector<1x1x16x8xf32>
    %15 = vector.shape_cast %14 : vector<1x1x16x8xf32> to vector<1x16x8xf32>
    %16 = vector.broadcast %7 : vector<1x1x8xf32> to vector<1x16x8xf32>
    %17 = arith.mulf %15, %16 : vector<1x16x8xf32>
    %18 = vector.broadcast %9 : vector<1x1x8xf32> to vector<1x16x8xf32>
    %19 = arith.addf %17, %18 : vector<1x16x8xf32>
    %cst_12 = arith.constant 0.000000e+00 : f32
    %20 = vector.broadcast %cst_12 : f32 to vector<1x16x8xf32>
    %21 = arith.maximumf %19, %20 : vector<1x16x8xf32>
    %22 = vector.broadcast %2 : f32 to vector<1x16x8xf32>
    %23 = arith.mulf %21, %22 : vector<1x16x8xf32>
    %c0_13 = arith.constant 0 : index
    %c8 = arith.constant 8 : index
    %c0_14 = arith.constant 0 : index
    %24 = vector.load %arg10[%c0_13, %c8, %c0_14] : memref<10x25x8xf32, #tpu.memory_space<vmem>>, vector<1x16x8xf32>
    tpu.vector_store %arg10[%c0_13, %c8, %c0_14], %23 {strides = array<i32>} : memref<10x25x8xf32, #tpu.memory_space<vmem>>, vector<1x16x8xf32>,
    %c0_15 = arith.constant 0 : index
    %c0_16 = arith.constant 0 : index
    %c0_17 = arith.constant 0 : index
    %c0_18 = arith.constant 0 : index
    %25 = vector.load %arg4[%c0_15, %c0_16, %c0_17, %c0_18] : memref<1x1x16x8xf32, #tpu.memory_space<vmem>>, vector<1x1x16x8xf32>
    %26 = vector.shape_cast %25 : vector<1x1x16x8xf32> to vector<1x16x8xf32>
    %27 = vector.broadcast %7 : vector<1x1x8xf32> to vector<1x16x8xf32>
    %28 = arith.mulf %26, %27 : vector<1x16x8xf32>
    %29 = vector.broadcast %9 : vector<1x1x8xf32> to vector<1x16x8xf32>
    %30 = arith.addf %28, %29 : vector<1x16x8xf32>
    %cst_19 = arith.constant 0.000000e+00 : f32
    %31 = vector.broadcast %cst_19 : f32 to vector<1x16x8xf32>
    %32 = arith.maximumf %30, %31 : vector<1x16x8xf32>
    %33 = vector.broadcast %5 : f32 to vector<1x16x8xf32>
    %34 = arith.mulf %32, %33 : vector<1x16x8xf32>
    %c9 = arith.constant 9 : index
    %c8_20 = arith.constant 8 : index
    %c0_21 = arith.constant 0 : index
    %35 = vector.load %arg10[%c9, %c8_20, %c0_21] : memref<10x25x8xf32, #tpu.memory_space<vmem>>, vector<1x16x8xf32>
    tpu.vector_store %arg10[%c9, %c8_20, %c0_21], %34 {strides = array<i32>} : memref<10x25x8xf32, #tpu.memory_space<vmem>>, vector<1x16x8xf32>,
    %c0_22 = arith.constant 0 : index
    %c0_23 = arith.constant 0 : index
    %c0_24 = arith.constant 0 : index
    %c0_25 = arith.constant 0 : index
    %36 = vector.load %arg2[%c0_22, %c0_23, %c0_24, %c0_25] : memref<1x8x16x8xf32, #tpu.memory_space<vmem>>, vector<1x8x16x8xf32>
    %37 = vector.shape_cast %36 : vector<1x8x16x8xf32> to vector<8x16x8xf32>
    %38 = vector.broadcast %7 : vector<1x1x8xf32> to vector<8x16x8xf32>
    %39 = arith.mulf %37, %38 : vector<8x16x8xf32>
    %40 = vector.broadcast %9 : vector<1x1x8xf32> to vector<8x16x8xf32>
    %41 = arith.addf %39, %40 : vector<8x16x8xf32>
    %cst_26 = arith.constant 0.000000e+00 : f32
    %42 = vector.broadcast %cst_26 : f32 to vector<8x16x8xf32>
    %43 = arith.maximumf %41, %42 : vector<8x16x8xf32>
    %c1 = arith.constant 1 : index
    %c8_27 = arith.constant 8 : index
    %c0_28 = arith.constant 0 : index
    %44 = vector.load %arg10[%c1, %c8_27, %c0_28] : memref<10x25x8xf32, #tpu.memory_space<vmem>>, vector<8x16x8xf32>
    tpu.vector_store %arg10[%c1, %c8_27, %c0_28], %43 {strides = array<i32>} : memref<10x25x8xf32, #tpu.memory_space<vmem>>, vector<8x16x8xf32>,
    %c0_29 = arith.constant 0 : index
    %c7_30 = arith.constant 7 : index
    %c0_31 = arith.constant 0 : index
    %45 = vector.load %arg10[%c0_29, %c7_30, %c0_31] : memref<10x25x8xf32, #tpu.memory_space<vmem>>, vector<8x16x8xf32>
    %c0_32 = arith.constant 0 : index
    %c8_33 = arith.constant 8 : index
    %c0_34 = arith.constant 0 : index
    %46 = vector.load %arg10[%c0_32, %c8_33, %c0_34] : memref<10x25x8xf32, #tpu.memory_space<vmem>>, vector<8x16x8xf32>
    %c0_35 = arith.constant 0 : index
    %c9_36 = arith.constant 9 : index
    %c0_37 = arith.constant 0 : index
    %47 = vector.load %arg10[%c0_35, %c9_36, %c0_37] : memref<10x25x8xf32, #tpu.memory_space<vmem>>, vector<8x16x8xf32>
    %48 = tpu.concatenate %45, %46, %47 in 2 : vector<8x16x8xf32>, vector<8x16x8xf32>, vector<8x16x8xf32> -> vector<8x16x24xf32>
    %49 = vector.shape_cast %48 : vector<8x16x24xf32> to vector<128x24xf32>
    %c0_38 = arith.constant 0 : index
    %c0_39 = arith.constant 0 : index
    %c0_40 = arith.constant 0 : index
    %50 = vector.load %arg7[%c0_38, %c0_39, %c0_40] : memref<3x24x8xf32, #tpu.memory_space<vmem>>, vector<1x24x8xf32>
    %51 = vector.shape_cast %50 : vector<1x24x8xf32> to vector<24x8xf32>
    %cst_41 = arith.constant dense<0.000000e+00> : vector<128x8xf32>
    %52 = tpu.matmul %49, %51, %cst_41 {dimension_numbers = #tpu.dot_dimension_numbers<[1], [0], [0], [1], [0, 0, 1, 1], [], []>} : vector<128x24xf32>, vector<24x8xf32>, vector<128x8xf32> -> vector<128x8xf32>
    %c1_42 = arith.constant 1 : index
    %c7_43 = arith.constant 7 : index
    %c0_44 = arith.constant 0 : index
    %53 = vector.load %arg10[%c1_42, %c7_43, %c0_44] : memref<10x25x8xf32, #tpu.memory_space<vmem>>, vector<8x16x8xf32>
    %c1_45 = arith.constant 1 : index
    %c8_46 = arith.constant 8 : index
    %c0_47 = arith.constant 0 : index
    %54 = vector.load %arg10[%c1_45, %c8_46, %c0_47] : memref<10x25x8xf32, #tpu.memory_space<vmem>>, vector<8x16x8xf32>
    %c1_48 = arith.constant 1 : index
    %c9_49 = arith.constant 9 : index
    %c0_50 = arith.constant 0 : index
    %55 = vector.load %arg10[%c1_48, %c9_49, %c0_50] : memref<10x25x8xf32, #tpu.memory_space<vmem>>, vector<8x16x8xf32>
    %56 = tpu.concatenate %53, %54, %55 in 2 : vector<8x16x8xf32>, vector<8x16x8xf32>, vector<8x16x8xf32> -> vector<8x16x24xf32>
    %57 = vector.shape_cast %56 : vector<8x16x24xf32> to vector<128x24xf32>
    %c1_51 = arith.constant 1 : index
    %c0_52 = arith.constant 0 : index
    %c0_53 = arith.constant 0 : index
    %58 = vector.load %arg7[%c1_51, %c0_52, %c0_53] : memref<3x24x8xf32, #tpu.memory_space<vmem>>, vector<1x24x8xf32>
    %59 = vector.shape_cast %58 : vector<1x24x8xf32> to vector<24x8xf32>
    %cst_54 = arith.constant dense<0.000000e+00> : vector<128x8xf32>
    %60 = tpu.matmul %57, %59, %cst_54 {dimension_numbers = #tpu.dot_dimension_numbers<[1], [0], [0], [1], [0, 0, 1, 1], [], []>} : vector<128x24xf32>, vector<24x8xf32>, vector<128x8xf32> -> vector<128x8xf32>
    %61 = arith.addf %52, %60 : vector<128x8xf32>
    %c2 = arith.constant 2 : index
    %c7_55 = arith.constant 7 : index
    %c0_56 = arith.constant 0 : index
    %62 = vector.load %arg10[%c2, %c7_55, %c0_56] : memref<10x25x8xf32, #tpu.memory_space<vmem>>, vector<8x16x8xf32>
    %c2_57 = arith.constant 2 : index
    %c8_58 = arith.constant 8 : index
    %c0_59 = arith.constant 0 : index
    %63 = vector.load %arg10[%c2_57, %c8_58, %c0_59] : memref<10x25x8xf32, #tpu.memory_space<vmem>>, vector<8x16x8xf32>
    %c2_60 = arith.constant 2 : index
    %c9_61 = arith.constant 9 : index
    %c0_62 = arith.constant 0 : index
    %64 = vector.load %arg10[%c2_60, %c9_61, %c0_62] : memref<10x25x8xf32, #tpu.memory_space<vmem>>, vector<8x16x8xf32>
    %65 = tpu.concatenate %62, %63, %64 in 2 : vector<8x16x8xf32>, vector<8x16x8xf32>, vector<8x16x8xf32> -> vector<8x16x24xf32>
    %66 = vector.shape_cast %65 : vector<8x16x24xf32> to vector<128x24xf32>
    %c2_63 = arith.constant 2 : index
    %c0_64 = arith.constant 0 : index
    %c0_65 = arith.constant 0 : index
    %67 = vector.load %arg7[%c2_63, %c0_64, %c0_65] : memref<3x24x8xf32, #tpu.memory_space<vmem>>, vector<1x24x8xf32>
    %68 = vector.shape_cast %67 : vector<1x24x8xf32> to vector<24x8xf32>
    %cst_66 = arith.constant dense<0.000000e+00> : vector<128x8xf32>
    %69 = tpu.matmul %66, %68, %cst_66 {dimension_numbers = #tpu.dot_dimension_numbers<[1], [0], [0], [1], [0, 0, 1, 1], [], []>} : vector<128x24xf32>, vector<24x8xf32>, vector<128x8xf32> -> vector<128x8xf32>
    %70 = arith.addf %61, %69 : vector<128x8xf32>
    %cst_67 = arith.constant dense<0.000000e+00> : vector<8xf32>
    %71 = vector.multi_reduction <add>, %70, %cst_67 [0] : vector<128x8xf32> to vector<8xf32>
    %72 = vector.shape_cast %71 : vector<8xf32> to vector<1x8xf32>
    %73 = arith.mulf %70, %70 : vector<128x8xf32>
    %cst_68 = arith.constant dense<0.000000e+00> : vector<8xf32>
    %74 = vector.multi_reduction <add>, %73, %cst_68 [0] : vector<128x8xf32> to vector<8xf32>
    %75 = vector.shape_cast %74 : vector<8xf32> to vector<1x8xf32>
    %76 = vector.shape_cast %70 : vector<128x8xf32> to vector<1x8x16x8xf32>
    %c0_69 = arith.constant 0 : index
    %c0_70 = arith.constant 0 : index
    %c0_71 = arith.constant 0 : index
    %c0_72 = arith.constant 0 : index
    %77 = vector.load %arg8[%c0_69, %c0_70, %c0_71, %c0_72] : memref<1x8x16x8xf32, #tpu.memory_space<vmem>>, vector<1x8x16x8xf32>
    tpu.vector_store %arg8[%c0_69, %c0_70, %c0_71, %c0_72], %76 {strides = array<i32>} : memref<1x8x16x8xf32, #tpu.memory_space<vmem>>, vector<1x8x16x8xf32>,
    %78 = tpu.concatenate %72, %75 in 0 : vector<1x8xf32>, vector<1x8xf32> -> vector<2x8xf32>
    %79 = vector.shape_cast %78 : vector<2x8xf32> to vector<1x1x2x8xf32>
    %c0_73 = arith.constant 0 : index
    %c0_74 = arith.constant 0 : index
    %c0_75 = arith.constant 0 : index
    %c0_76 = arith.constant 0 : index
    %80 = vector.load %arg9[%c0_73, %c0_74, %c0_75, %c0_76] : memref<1x1x2x8xf32, #tpu.memory_space<vmem>>, vector<1x1x2x8xf32>
    tpu.vector_store %arg9[%c0_73, %c0_74, %c0_75, %c0_76], %79 {strides = array<i32>} : memref<1x1x2x8xf32, #tpu.memory_space<vmem>>, vector<1x1x2x8xf32>,
    return
  }
  func.func @transform_0(%arg0: i32, %arg1: i32) -> (i32, i32, i32, i32) {
    %c0_i32 = arith.constant 0 : i32
    %c0_i32_0 = arith.constant 0 : i32
    %c0_i32_1 = arith.constant 0 : i32
    return %arg0, %arg1, %c0_i32, %c0_i32_0 : i32, i32, i32, i32
  }
  func.func @transform_1(%arg0: i32, %arg1: i32) -> (i32, i32, i32, i32) {
    %c8_i32 = arith.constant 8 : i32
    %0 = arith.muli %arg1, %c8_i32 : i32
    %c1_i32 = arith.constant 1 : i32
    %1 = arith.subi %0, %c1_i32 : i32
    %c0_i32 = arith.constant 0 : i32
    %2 = arith.maxsi %1, %c0_i32 : i32
    %c0_i32_0 = arith.constant 0 : i32
    %c0_i32_1 = arith.constant 0 : i32
    %c0_i32_2 = arith.constant 0 : i32
    return %arg0, %2, %c0_i32_0, %c0_i32_1 : i32, i32, i32, i32
  }
  func.func @transform_2(%arg0: i32, %arg1: i32) -> (i32, i32, i32, i32) {
    %c8_i32 = arith.constant 8 : i32
    %0 = arith.muli %arg1, %c8_i32 : i32
    %c8_i32_0 = arith.constant 8 : i32
    %1 = arith.addi %0, %c8_i32_0 : i32
    %c15_i32 = arith.constant 15 : i32
    %2 = arith.minsi %1, %c15_i32 : i32
    %c0_i32 = arith.constant 0 : i32
    %c0_i32_1 = arith.constant 0 : i32
    %c0_i32_2 = arith.constant 0 : i32
    return %arg0, %2, %c0_i32, %c0_i32_1 : i32, i32, i32, i32
  }
  func.func @transform_3(%arg0: i32, %arg1: i32) -> (i32, i32) {
    %c0_i32 = arith.constant 0 : i32
    %c0_i32_0 = arith.constant 0 : i32
    %c0_i32_1 = arith.constant 0 : i32
    return %c0_i32, %c0_i32_0 : i32, i32
  }
  func.func @transform_4(%arg0: i32, %arg1: i32) -> (i32, i32) {
    %c0_i32 = arith.constant 0 : i32
    %c0_i32_0 = arith.constant 0 : i32
    %c0_i32_1 = arith.constant 0 : i32
    return %c0_i32, %c0_i32_0 : i32, i32
  }
  func.func @transform_5(%arg0: i32, %arg1: i32) -> (i32, i32, i32) {
    %c0_i32 = arith.constant 0 : i32
    %c0_i32_0 = arith.constant 0 : i32
    %c0_i32_1 = arith.constant 0 : i32
    %c0_i32_2 = arith.constant 0 : i32
    return %c0_i32, %c0_i32_0, %c0_i32_1 : i32, i32, i32
  }
  func.func @transform_6(%arg0: i32, %arg1: i32) -> (i32, i32, i32, i32) {
    %c0_i32 = arith.constant 0 : i32
    %c0_i32_0 = arith.constant 0 : i32
    %c0_i32_1 = arith.constant 0 : i32
    return %arg0, %arg1, %c0_i32, %c0_i32_0 : i32, i32, i32, i32
  }
  func.func @transform_7(%arg0: i32, %arg1: i32) -> (i32, i32, i32, i32) {
    %c0_i32 = arith.constant 0 : i32
    %c0_i32_0 = arith.constant 0 : i32
    %c0_i32_1 = arith.constant 0 : i32
    return %arg0, %arg1, %c0_i32, %c0_i32_0 : i32, i32, i32, i32
  }
}

module attributes {stable_mosaic.version = 11 : i64} {
  func.func @_bn_relu_kernel(%arg0: i32, %arg1: memref<16x128xf32, #tpu.memory_space<vmem>>, %arg2: memref<1x128xf32, #tpu.memory_space<vmem>>, %arg3: memref<1x128xf32, #tpu.memory_space<vmem>>, %arg4: memref<16x128xf32, #tpu.memory_space<vmem>>) attributes {dimension_semantics = [#tpu.dimension_semantics<parallel>], iteration_bounds = array<i64: 2>, scalar_prefetch = 0 : i64, scratch_operands = 0 : i64, tpu.core_type = #tpu.core_type<tc>, window_params = [{transform_indices = @transform_0, window_bounds = array<i64: 16, 128>}, {pipeline_mode = #tpu.pipeline_mode<synchronous>, transform_indices = @transform_1, window_bounds = array<i64: 1, 128>}, {pipeline_mode = #tpu.pipeline_mode<synchronous>, transform_indices = @transform_2, window_bounds = array<i64: 1, 128>}, {transform_indices = @transform_3, window_bounds = array<i64: 16, 128>}]} {
    %c0 = arith.constant 0 : index
    %c0_0 = arith.constant 0 : index
    %0 = vector.load %arg1[%c0, %c0_0] : memref<16x128xf32, #tpu.memory_space<vmem>>, vector<16x128xf32>
    %c0_1 = arith.constant 0 : index
    %c0_2 = arith.constant 0 : index
    %1 = vector.load %arg2[%c0_1, %c0_2] : memref<1x128xf32, #tpu.memory_space<vmem>>, vector<1x128xf32>
    %2 = vector.broadcast %1 : vector<1x128xf32> to vector<16x128xf32>
    %3 = arith.mulf %0, %2 : vector<16x128xf32>
    %c0_3 = arith.constant 0 : index
    %c0_4 = arith.constant 0 : index
    %4 = vector.load %arg3[%c0_3, %c0_4] : memref<1x128xf32, #tpu.memory_space<vmem>>, vector<1x128xf32>
    %5 = vector.broadcast %4 : vector<1x128xf32> to vector<16x128xf32>
    %6 = arith.addf %3, %5 : vector<16x128xf32>
    %cst = arith.constant 0.000000e+00 : f32
    %7 = vector.broadcast %cst : f32 to vector<16x128xf32>
    %8 = arith.maximumf %6, %7 : vector<16x128xf32>
    %c0_5 = arith.constant 0 : index
    %c0_6 = arith.constant 0 : index
    %9 = vector.load %arg4[%c0_5, %c0_6] : memref<16x128xf32, #tpu.memory_space<vmem>>, vector<16x128xf32>
    tpu.vector_store %arg4[%c0_5, %c0_6], %8 {strides = array<i32>} : memref<16x128xf32, #tpu.memory_space<vmem>>, vector<16x128xf32>,
    return
  }
  func.func @transform_0(%arg0: i32) -> (i32, i32) {
    %c0_i32 = arith.constant 0 : i32
    %c0_i32_0 = arith.constant 0 : i32
    return %arg0, %c0_i32 : i32, i32
  }
  func.func @transform_1(%arg0: i32) -> (i32, i32) {
    %c0_i32 = arith.constant 0 : i32
    %c0_i32_0 = arith.constant 0 : i32
    %c0_i32_1 = arith.constant 0 : i32
    return %c0_i32, %c0_i32_0 : i32, i32
  }
  func.func @transform_2(%arg0: i32) -> (i32, i32) {
    %c0_i32 = arith.constant 0 : i32
    %c0_i32_0 = arith.constant 0 : i32
    %c0_i32_1 = arith.constant 0 : i32
    return %c0_i32, %c0_i32_0 : i32, i32
  }
  func.func @transform_3(%arg0: i32) -> (i32, i32) {
    %c0_i32 = arith.constant 0 : i32
    %c0_i32_0 = arith.constant 0 : i32
    return %arg0, %c0_i32 : i32, i32
  }
}

</mosaic_0001>

<llo_original>
// kernel: tile.14
$region0: #{tile.14}
  #allocation0 [shape = 's32[1]{0}', space=sflag, size = 0x4, scoped, tag = 'scoped memory for tile.14']
  %s0 = inlined_call_operand.vmem [shape: f32[8], index: 0, kind: input, shape index: {}]
  %s1 = inlined_call_operand.vmem [shape: f32[16,8], index: 1, kind: output, shape index: {}]
  // Predicated region
  $region2: #{tile.14} parent=0 // pred_check
    _
  $region3: #{tile.14} parent=0 // pred_check_branch
    %3 = sbr.rel (0) target = $region5
  $region4: #{tile.14} parent=0 // pred_region
    _
  $region5: #{tile.14} parent=0 // pred_fallthru
    _
  %v4 = vld [vmem:[%s0] ss:$0 sm:$0xff]
  %5 = vst [vmem:[%s1] sm:$0xff] %v4
  %s6 = scalar_lea.vmem %s1, 8
  %7 = vst [vmem:[%s6] sm:$0xff] %v4

// kernel: tile.15
$region0: #{tile.15}
  %s0 = inlined_call_operand.vmem [shape: f32[16,8], index: 0, kind: input, shape index: {}]
  %s1 = inlined_call_operand.vmem [shape: f32[1,128], index: 1, kind: output, shape index: {}]
  $region1: #{tile.15} parent=0
    #allocation0 [shape = 'u8[4096]{0}', space=vmem, size = 0x1000, scoped, tag = 'scoped mem for output reshape']
    %v2 = vld [vmem:[%s0] sm:$0x1]
    %vm3 = vcmask 64512
    %4 = vst.msk [vmem:[#allocation0] sm:$0x1] %vm3, %v2
    %s5 = scalar_lea.vmem %s0, 15
    %v6 = vld [vmem:[%s5] sm:$0x1]
    %7 = vrot.lane.b32.xlu0 %v6, 120
    %v8 = vpop.permute.xlu0 %7
    %vm9 = vcmask 1048512
    %10 = vst.msk [vmem:[#allocation0] sm:$0x1] %vm9, %v8
    %s11 = scalar_lea.vmem %s0, 14
    %v12 = vld [vmem:[%s11] sm:$0x1]
    %13 = vrot.lane.b32.xlu0 %v12, 112
    %v14 = vpop.permute.xlu0 %13
    %vm15 = vcmask 982912
    %16 = vst.msk [vmem:[#allocation0] sm:$0x1] %vm15, %v14
    %s17 = scalar_lea.vmem %s0, 13
    %v18 = vld [vmem:[%s17] sm:$0x1]
    %19 = vrot.lane.b32.xlu0 %v18, 104
    %v20 = vpop.permute.xlu0 %19
    %vm21 = vcmask 917312
    %22 = vst.msk [vmem:[#allocation0] sm:$0x1] %vm21, %v20
    %s23 = scalar_lea.vmem %s0, 12
    %v24 = vld [vmem:[%s23] sm:$0x1]
    %25 = vrot.lane.b32.xlu0 %v24, 96
    %v26 = vpop.permute.xlu0 %25
    %vm27 = vcmask 851712
    %28 = vst.msk [vmem:[#allocation0] sm:$0x1] %vm27, %v26
    %s29 = scalar_lea.vmem %s0, 11
    %v30 = vld [vmem:[%s29] sm:$0x1]
    %31 = vrot.lane.b32.xlu0 %v30, 88
    %v32 = vpop.permute.xlu0 %31
    %vm33 = vcmask 786112
    %34 = vst.msk [vmem:[#allocation0] sm:$0x1] %vm33, %v32
    %s35 = scalar_lea.vmem %s0, 10
    %v36 = vld [vmem:[%s35] sm:$0x1]
    %37 = vrot.lane.b32.xlu0 %v36, 80
    %v38 = vpop.permute.xlu0 %37
    %vm39 = vcmask 720512
    %40 = vst.msk [vmem:[#allocation0] sm:$0x1] %vm39, %v38
    %s41 = scalar_lea.vmem %s0, 9
    %v42 = vld [vmem:[%s41] sm:$0x1]
    %43 = vrot.lane.b32.xlu0 %v42, 72
    %v44 = vpop.permute.xlu0 %43
    %vm45 = vcmask 654912
    %46 = vst.msk [vmem:[#allocation0] sm:$0x1] %vm45, %v44
    %s47 = scalar_lea.vmem %s0, 8
    %v48 = vld [vmem:[%s47] sm:$0x1]
    %49 = vrot.lane.b32.xlu0 %v48, 64
    %v50 = vpop.permute.xlu0 %49
    %vm51 = vcmask 589312
    %52 = vst.msk [vmem:[#allocation0] sm:$0x1] %vm51, %v50
    %s53 = scalar_lea.vmem %s0, 7
    %v54 = vld [vmem:[%s53] sm:$0x1]
    %55 = vrot.lane.b32.xlu0 %v54, 56
    %v56 = vpop.permute.xlu0 %55
    %vm57 = vcmask 523712
    %58 = vst.msk [vmem:[#allocation0] sm:$0x1] %vm57, %v56
    %s59 = scalar_lea.vmem %s0, 6
    %v60 = vld [vmem:[%s59] sm:$0x1]
    %61 = vrot.lane.b32.xlu0 %v60, 48
    %v62 = vpop.permute.xlu0 %61
    %vm63 = vcmask 458112
    %64 = vst.msk [vmem:[#allocation0] sm:$0x1] %vm63, %v62
    %s65 = scalar_lea.vmem %s0, 5
    %v66 = vld [vmem:[%s65] sm:$0x1]
    %67 = vrot.lane.b32.xlu0 %v66, 40
    %v68 = vpop.permute.xlu0 %67
    %vm69 = vcmask 392512
    %70 = vst.msk [vmem:[#allocation0] sm:$0x1] %vm69, %v68
    %s71 = scalar_lea.vmem %s0, 4
    %v72 = vld [vmem:[%s71] sm:$0x1]
    %73 = vrot.lane.b32.xlu0 %v72, 32
    %v74 = vpop.permute.xlu0 %73
    %vm75 = vcmask 326912
    %76 = vst.msk [vmem:[#allocation0] sm:$0x1] %vm75, %v74
    %s77 = scalar_lea.vmem %s0, 3
    %v78 = vld [vmem:[%s77] sm:$0x1]
    %79 = vrot.lane.b32.xlu0 %v78, 24
    %v80 = vpop.permute.xlu0 %79
    %vm81 = vcmask 261312
    %82 = vst.msk [vmem:[#allocation0] sm:$0x1] %vm81, %v80
    %s83 = scalar_lea.vmem %s0, 2
    %v84 = vld [vmem:[%s83] sm:$0x1]
    %85 = vrot.lane.b32.xlu0 %v84, 16
    %v86 = vpop.permute.xlu0 %85
    %vm87 = vcmask 195712
    %88 = vst.msk [vmem:[#allocation0] sm:$0x1] %vm87, %v86
    %s89 = scalar_lea.vmem %s0, 1
    %v90 = vld [vmem:[%s89] sm:$0x1]
    %91 = vrot.lane.b32.xlu0 %v90, 8
    %v92 = vpop.permute.xlu0 %91
    %vm93 = vcmask 130112
    %94 = vst.msk [vmem:[#allocation0] sm:$0x1] %vm93, %v92
    %s96 = sshllo.u32 0, 1
    %v98 = vld [vmem:[#allocation0] sm:%s96]
    %s99 = sshllo.u32 0, 1
    %100 = vst [vmem:[%s1] sm:%s99] %v98

// kernel: _bdouble_conv_impl.5
$region0: #{_bdouble_conv_impl.5}
  #allocation0 [shape = 'u32[]', space=smem, size = 0x4, offset = 0x4, fixed_abs, tag = 'smem constant byte address 0x4 - core index']
  #allocation1 [shape = 'u32[144,128]{1,0:T(1,128)}', space=vmem, size = 0x12000, scoped, tag = 'internal scratch']
  %s0 = inlined_call_operand.vmem [shape: f32[32,128], index: 0, kind: input, shape index: {}]
  %s1 = inlined_call_operand.vmem [shape: f32[1,128], index: 1, kind: input, shape index: {}]
  %s2 = inlined_call_operand.vmem [shape: f32[1,128], index: 2, kind: input, shape index: {}]
  %s3 = inlined_call_operand.vmem [shape: f32[32,128], index: 3, kind: output, shape index: {}]
  %s4 = sld [smem:[#allocation0]]
  $region45: #{_bdouble_conv_impl.5} parent=0
    _
  %s6 = ssub.s32 1, %s4
  %s7 = scalar_select 0, %s6, %s4
  loop: start=0, step=1, limit=4
  $region2: #{_bdouble_conv_impl.5} parent=0 // loop_pre_header
    _
  $region3: #{_bdouble_conv_impl.5} parent=0 // loop_header
    %s9 = sphi 0, %s13
    %p10 = scmp.ge.s32.totalorder %s9, 4
    %s19 = sphi 0, %s21
    %s22 = sphi 0, %s19
    %s23 = sphi 0, %s22
    %s39 = sphi 0, %s23
    %s43 = sphi 0, %s43
    %s45 = sphi 0, %s43
    %s46 = sphi 0, %s45
    %s60 = sphi 0, %s46
    %s64 = sphi 0, %s64
    %s66 = sphi 0, %s64
    %s67 = sphi 0, %s66
    %s81 = sphi 0, %s67
    %s87 = sphi 0, %s89
    %s90 = sphi 0, %s87
    %s91 = sphi 0, %s90
    %s107 = sphi 0, %s91
  $region4: #{_bdouble_conv_impl.5} parent=0 // loop_header_branch
    %12 = sbr.rel (%p10) target = $region8
  $region5: #{_bdouble_conv_impl.5} parent=0 // loop_body
    %s14 = ssub.s32 %s9, 1
    %s15 = ssub.s32 %s9, 2
    %s16 = sadd.s32 %s9, 1
    %s17 = ssub.s32 %s9, %s16
    %p18 = scmp.eq.s32.totalorder %s17, 0
    %s20 = sadd.s32 %s19, 1
    %s21 = scalar_select %p18, %s19, %s20
    %p24 = pneg %p18
    %p25 = scmp.eq.s32.totalorder %s9, 1
    %p26 = por %p24, %p25
    %p27 = scmp.ne.s32.totalorder %s19, %s22
    %p28 = scmp.eq.s32.totalorder %s9, 0
    %p29 = por %p27, %p28
    %p30 = scmp.ne.s32.totalorder %s19, %s22
    %p31 = scmp.eq.s32.totalorder %s14, 1
    %p32 = por %p30, %p31
    %p33 = scmp.ne.s32.totalorder %s22, %s23
    %p34 = scmp.eq.s32.totalorder %s14, 0
    %p35 = por %p33, %p34
    %p36 = scmp.ne.s32.totalorder %s22, %s23
    %p37 = scmp.eq.s32.totalorder %s15, 1
    %p38 = por %p36, %p37
    %p40 = scmp.ne.s32.totalorder %s23, %s39
    %p41 = scmp.eq.s32.totalorder %s15, 0
    %p42 = por %p40, %p41
    %s44 = sadd.s32 %s43, 1
    %p47 = scmp.eq.s32.totalorder %s9, 1
    %p48 = scmp.ne.s32.totalorder %s43, %s45
    %p49 = scmp.eq.s32.totalorder %s9, 0
    %p50 = por %p48, %p49
    %p51 = scmp.ne.s32.totalorder %s43, %s45
    %p52 = scmp.eq.s32.totalorder %s14, 1
    %p53 = por %p51, %p52
    %p54 = scmp.ne.s32.totalorder %s45, %s46
    %p55 = scmp.eq.s32.totalorder %s14, 0
    %p56 = por %p54, %p55
    %p57 = scmp.ne.s32.totalorder %s45, %s46
    %p58 = scmp.eq.s32.totalorder %s15, 1
    %p59 = por %p57, %p58
    %p61 = scmp.ne.s32.totalorder %s46, %s60
    %p62 = scmp.eq.s32.totalorder %s15, 0
    %p63 = por %p61, %p62
    %s65 = sadd.s32 %s64, 1
    %p68 = scmp.eq.s32.totalorder %s9, 1
    %p69 = scmp.ne.s32.totalorder %s64, %s66
    %p70 = scmp.eq.s32.totalorder %s9, 0
    %p71 = por %p69, %p70
    %p72 = scmp.ne.s32.totalorder %s64, %s66
    %p73 = scmp.eq.s32.totalorder %s14, 1
    %p74 = por %p72, %p73
    %p75 = scmp.ne.s32.totalorder %s66, %s67
    %p76 = scmp.eq.s32.totalorder %s14, 0
    %p77 = por %p75, %p76
    %p78 = scmp.ne.s32.totalorder %s66, %s67
    %p79 = scmp.eq.s32.totalorder %s15, 1
    %p80 = por %p78, %p79
    %p82 = scmp.ne.s32.totalorder %s67, %s81
    %p83 = scmp.eq.s32.totalorder %s15, 0
    %p84 = por %p82, %p83
    %s85 = ssub.s32 %s9, %s16
    %p86 = scmp.eq.s32.totalorder %s85, 0
    %s88 = sadd.s32 %s87, 1
    %s89 = scalar_select %p86, %s87, %s88
    %p92 = pneg %p86
    %p93 = scmp.eq.s32.totalorder %s9, 1
    %p94 = por %p92, %p93
    %p95 = scmp.ne.s32.totalorder %s87, %s90
    %p96 = scmp.eq.s32.totalorder %s9, 0
    %p97 = por %p95, %p96
    %p98 = scmp.ne.s32.totalorder %s87, %s90
    %p99 = scmp.eq.s32.totalorder %s14, 1
    %p100 = por %p98, %p99
    %p101 = scmp.ne.s32.totalorder %s90, %s91
    %p102 = scmp.eq.s32.totalorder %s14, 0
    %p103 = por %p101, %p102
    %p104 = scmp.ne.s32.totalorder %s90, %s91
    %p105 = scmp.eq.s32.totalorder %s15, 1
    %p106 = por %p104, %p105
    %p108 = scmp.ne.s32.totalorder %s91, %s107
    %p109 = scmp.eq.s32.totalorder %s15, 0
    %p110 = por %p108, %p109
    %p111 = scmp.le.s32.totalorder 1, %s9
    %p112 = scmp.lt.s32.totalorder %s9, 3
    %p113 = pnand %p111, %p112
    %p114 = pneg %p113
    // Predicated region
    $region9: #{_bdouble_conv_impl.5} parent=5 // pred_check
      _
    $region10: #{_bdouble_conv_impl.5} parent=5 // pred_check_branch
      %116 = sbr.rel (%p113) target = $region12
    $region11: #{_bdouble_conv_impl.5} parent=5 // pred_region
      %s117 = ssub.s32 %s9, 1
      // Predicated region
      $region13: #{_bdouble_conv_impl.5} parent=11 // pred_check
        %p118 = pneg %p56
      $region14: #{_bdouble_conv_impl.5} parent=11 // pred_check_branch
        %120 = sbr.rel (%p118) target = $region16
      $region15: #{_bdouble_conv_impl.5} parent=11 // pred_region
        _
      $region16: #{_bdouble_conv_impl.5} parent=11 // pred_fallthru
        _
      // Predicated region
      $region17: #{_bdouble_conv_impl.5} parent=11 // pred_check
        %p121 = pneg %p77
      $region18: #{_bdouble_conv_impl.5} parent=11 // pred_check_branch
        %123 = sbr.rel (%p121) target = $region20
      $region19: #{_bdouble_conv_impl.5} parent=11 // pred_region
        _
      $region20: #{_bdouble_conv_impl.5} parent=11 // pred_fallthru
        _
    $region12: #{_bdouble_conv_impl.5} parent=5 // pred_fallthru
      _
    %p124 = scmp.lt.s32.totalorder %s9, 2
    // Predicated region
    $region21: #{_bdouble_conv_impl.5} parent=5 // pred_check
      %p125 = pneg %p124
    $region22: #{_bdouble_conv_impl.5} parent=5 // pred_check_branch
      %127 = sbr.rel (%p125) target = $region24
    $region23: #{_bdouble_conv_impl.5} parent=5 // pred_region
      // Predicated region
      $region25: #{_bdouble_conv_impl.5} parent=23 // pred_check
        %p128 = pneg %p29
      $region26: #{_bdouble_conv_impl.5} parent=23 // pred_check_branch
        %130 = sbr.rel (%p128) target = $region28
      $region27: #{_bdouble_conv_impl.5} parent=23 // pred_region
        %s131 = smul.u32 2, %s9
        %p132 = scmp.lt.s32.totalorder %s131, 3
        %s133 = scalar_select %p132, %s131, 3
        %s134 = smul.addr %s133, 8
        %s135 = scalar_lea.vmem %s0, %s134
        %s136 = smul.u32 2, %s9
      $region28: #{_bdouble_conv_impl.5} parent=23 // pred_fallthru
        _
    $region24: #{_bdouble_conv_impl.5} parent=5 // pred_fallthru
      _
    %p137 = scmp.le.s32.totalorder 1, %s9
    %p138 = scmp.lt.s32.totalorder %s9, 3
    %p139 = pnand %p137, %p138
    %p140 = pneg %p139
    // Predicated region
    $region29: #{_bdouble_conv_impl.5} parent=5 // pred_check
      _
    $region30: #{_bdouble_conv_impl.5} parent=5 // pred_check_branch
      %142 = sbr.rel (%p139) target = $region32
    $region31: #{_bdouble_conv_impl.5} parent=5 // pred_region
      %s143 = ssub.s32 %s9, 1
      %s144 = smul.u32 2, %s14
      %p145 = scmp.lt.s32.totalorder %s144, 3
      %s146 = scalar_select %p145, %s144, 3
      %s147 = smul.addr %s146, 8
      %s148 = scalar_lea.vmem %s0, %s147
      %p149 = pneg %p35
      %p150 = pneg %p32
      %p151 = pneg %p56
      %p152 = pneg %p53
      %p153 = pneg %p77
      %p154 = pneg %p74
      %p155 = pneg %p103
      %p156 = pneg %p100
      %s157 = smul.u32 2, %s14
      %p158 = scmp.lt.s32.totalorder %s157, 3
      %s159 = scalar_select %p158, %s157, 3
      %s160 = smul.addr %s159, 8
      %s161 = scalar_lea.vmem %s3, %s160
      %s162 = smul.u32 2, %s14
      %p163 = scmp.lt.s32.totalorder %s162, 3
      %s164 = scalar_select %p163, %s162, 3
      %s165 = smul.addr %s164, 8
      %s166 = scalar_lea.vmem %s0, %s165
      %s167 = smul.u32 2, %s14
      %s168 = smul.u32 2, %s14
      %p169 = scmp.lt.s32.totalorder %s168, 3
      %s170 = scalar_select %p169, %s168, 3
      %s171 = smul.addr %s170, 8
      %s172 = scalar_lea.vmem %s3, %s171
      %s173 = smul.u32 2, %s14
      %v174 = vld [vmem:[%s166] sm:$0xff]
      %v175 = vld [vmem:[%s166 + $0x8] sm:$0xff]
      %v176 = vld [vmem:[%s1] sm:$0x1]
      %v178 = vlaneseq
      %v179 = vshrl.u32 %v178, 7
      %v180 = vsub.s32 0, %v179
      %v181 = vrot.slane %v176, %v180
      %v183 = vmul.f32 %v174, %v181
      %v184 = vmul.f32 %v175, %v181
      %v185 = vld [vmem:[%s2] sm:$0x1]
      %v187 = vlaneseq
      %v188 = vshrl.u32 %v187, 7
      %v189 = vsub.s32 0, %v188
      %v190 = vrot.slane %v185, %v189
      %v192 = vadd.f32 %v183, %v190
      %v193 = vadd.f32 %v184, %v190
      %v194 = vmax.f32 %v192, 0.0
      %v195 = vmax.f32 %v193, 0.0
      %196 = vst [vmem:[%s172] sm:$0xff] %v194
      %197 = vst [vmem:[%s172 + $0x8] sm:$0xff] %v195
      %s198 = smul.u32 2, %s14
      %p199 = scmp.lt.s32.totalorder %s198, 3
      %s200 = scalar_select %p199, %s198, 3
      %s201 = smul.addr %s200, 8
      %s202 = scalar_lea.vmem %s3, %s201
      // Predicated region
      $region33: #{_bdouble_conv_impl.5} parent=31 // pred_check
        %p203 = pneg %p100
      $region34: #{_bdouble_conv_impl.5} parent=31 // pred_check_branch
        %205 = sbr.rel (%p203) target = $region36
      $region35: #{_bdouble_conv_impl.5} parent=31 // pred_region
        %s206 = smul.u32 2, %s14
      $region36: #{_bdouble_conv_impl.5} parent=31 // pred_fallthru
        _
    $region32: #{_bdouble_conv_impl.5} parent=5 // pred_fallthru
      _
    %p207 = scmp.le.s32.totalorder 2, %s9
    // Predicated region
    $region37: #{_bdouble_conv_impl.5} parent=5 // pred_check
      %p208 = pneg %p207
    $region38: #{_bdouble_conv_impl.5} parent=5 // pred_check_branch
      %210 = sbr.rel (%p208) target = $region40
    $region39: #{_bdouble_conv_impl.5} parent=5 // pred_region
      %s211 = ssub.s32 %s9, 2
      // Predicated region
      $region41: #{_bdouble_conv_impl.5} parent=39 // pred_check
        %p212 = pneg %p106
      $region42: #{_bdouble_conv_impl.5} parent=39 // pred_check_branch
        %214 = sbr.rel (%p212) target = $region44
      $region43: #{_bdouble_conv_impl.5} parent=39 // pred_region
        %s215 = smul.u32 2, %s15
        %p216 = scmp.lt.s32.totalorder %s215, 3
        %s217 = scalar_select %p216, %s215, 3
        %s218 = smul.addr %s217, 8
        %s219 = scalar_lea.vmem %s3, %s218
      $region44: #{_bdouble_conv_impl.5} parent=39 // pred_fallthru
        _
    $region40: #{_bdouble_conv_impl.5} parent=5 // pred_fallthru
      _
  $region6: #{_bdouble_conv_impl.5} parent=0 // loop_footer
    %s13 = sadd.s32 1, %s9
  $region7: #{_bdouble_conv_impl.5} parent=0 // loop_footer_branch
    %8 = sbr.rel target = $region3
  $region8: #{_bdouble_conv_impl.5} parent=0 // loop_exit
    _

// kernel: _bdouble_conv_impl.3
$region0: #{_bdouble_conv_impl.3}
  #allocation0 [shape = 'u32[]', space=smem, size = 0x4, offset = 0x4, fixed_abs, tag = 'smem constant byte address 0x4 - core index']
  #allocation1 [shape = 'u32[144,128]{1,0:T(1,128)}', space=vmem, size = 0x12000, scoped, tag = 'internal scratch']
  #allocation2 [shape = 'f32[10,25,4]{2,1,0:T(8,128)}', space=vmem, size = 0x28000, scoped, tag = 'scratch operand']
  %s0 = inlined_call_operand.vmem [shape: f32[2,16,16,4], index: 0, kind: input, shape index: {}, may-alias: {0,1,2}]
  %s1 = inlined_call_operand.vmem [shape: f32[2,16,16,4], index: 1, kind: input, shape index: {}, may-alias: {0,1,2}]
  %s2 = inlined_call_operand.vmem [shape: f32[2,16,16,4], index: 2, kind: input, shape index: {}, may-alias: {0,1,2}]
  %s3 = inlined_call_operand.vmem [shape: f32[3,12,8], index: 3, kind: input, shape index: {}]
  %s4 = inlined_call_operand.vmem [shape: f32[2,16,16,8], index: 4, kind: output, shape index: {0}]
  %s5 = inlined_call_operand.vmem [shape: f32[2,2,2,8], index: 5, kind: output, shape index: {1}]
  %6 = xla_tuple %s4, %s5
  %s7 = sld [smem:[#allocation0]]
  $region57: #{_bdouble_conv_impl.3} parent=0
    _
  %s9 = ssub.s32 1, %s7
  %s10 = scalar_select 0, %s9, %s7
  loop: start=0, step=1, limit=6
  $region2: #{_bdouble_conv_impl.3} parent=0 // loop_pre_header
    _
  $region3: #{_bdouble_conv_impl.3} parent=0 // loop_header
    %s12 = sphi 0, %s16
    %p13 = scmp.ge.s32.totalorder %s12, 6
    %s19 = sphi 0, %s31
    %s20 = sphi 0, %s27
    %s21 = sphi 0, %s19
    %s22 = sphi 0, %s20
    %s23 = sphi 0, %s21
    %s24 = sphi 0, %s22
    %s36 = sphi 0, %s38
    %s39 = sphi 0, %s36
    %s40 = sphi 0, %s39
    %s56 = sphi 0, %s40
    %s72 = sphi 0, %s74
    %s75 = sphi 0, %s72
    %s76 = sphi 0, %s75
    %s92 = sphi 0, %s76
    %s108 = sphi 0, %s110
    %s111 = sphi 0, %s108
    %s112 = sphi 0, %s111
    %s128 = sphi 0, %s112
    %s132 = sphi 0, %s132
    %s134 = sphi 0, %s132
    %s135 = sphi 0, %s134
    %s149 = sphi 0, %s135
    %s157 = sphi 0, %s159
    %s160 = sphi 0, %s157
    %s161 = sphi 0, %s160
    %s177 = sphi 0, %s161
    %s185 = sphi 0, %s187
    %s188 = sphi 0, %s185
    %s189 = sphi 0, %s188
    %s205 = sphi 0, %s189
  $region4: #{_bdouble_conv_impl.3} parent=0 // loop_header_branch
    %15 = sbr.rel (%p13) target = $region8
  $region5: #{_bdouble_conv_impl.3} parent=0 // loop_body
    %s17 = ssub.s32 %s12, 1
    %s18 = ssub.s32 %s12, 2
    %s25 = sadd.s32 1, %s20
    %p26 = scmp.ge.s32.totalorder %s25, 2
    %s27 = scalar_select %p26, 0, %s25
    %s28 = sadd.s32 1, %s19
    %s29 = scalar_select %p26, %s28, %s19
    %p30 = scmp.ge.s32.totalorder %s29, 2
    %s31 = scalar_select %p30, 0, %s29
    %s32 = ssub.s32 %s19, %s31
    %s33 = ssub.s32 %s20, %s27
    %s34 = sor.u32 %s32, %s33
    %p35 = scmp.eq.s32.totalorder %s34, 0
    %s37 = sadd.s32 %s36, 1
    %s38 = scalar_select %p35, %s36, %s37
    %p41 = pneg %p35
    %p42 = scmp.eq.s32.totalorder %s12, 3
    %p43 = por %p41, %p42
    %p44 = scmp.ne.s32.totalorder %s36, %s39
    %p45 = scmp.eq.s32.totalorder %s12, 0
    %p46 = por %p44, %p45
    %p47 = scmp.ne.s32.totalorder %s36, %s39
    %p48 = scmp.eq.s32.totalorder %s17, 3
    %p49 = por %p47, %p48
    %p50 = scmp.ne.s32.totalorder %s39, %s40
    %p51 = scmp.eq.s32.totalorder %s17, 0
    %p52 = por %p50, %p51
    %p53 = scmp.ne.s32.totalorder %s39, %s40
    %p54 = scmp.eq.s32.totalorder %s18, 3
    %p55 = por %p53, %p54
    %p57 = scmp.ne.s32.totalorder %s40, %s56
    %p58 = scmp.eq.s32.totalorder %s18, 0
    %p59 = por %p57, %p58
    %s60 = smul.u32 %s20, 8
    %s61 = ssub.s32 %s60, 1
    %p62 = scmp.gt.s32.totalorder %s61, 0
    %s63 = scalar_select %p62, %s61, 0
    %s64 = smul.u32 %s27, 8
    %s65 = ssub.s32 %s64, 1
    %p66 = scmp.gt.s32.totalorder %s65, 0
    %s67 = scalar_select %p66, %s65, 0
    %s68 = ssub.s32 %s19, %s31
    %s69 = ssub.s32 %s63, %s67
    %s70 = sor.u32 %s68, %s69
    %p71 = scmp.eq.s32.totalorder %s70, 0
    %s73 = sadd.s32 %s72, 1
    %s74 = scalar_select %p71, %s72, %s73
    %p77 = pneg %p71
    %p78 = scmp.eq.s32.totalorder %s12, 3
    %p79 = por %p77, %p78
    %p80 = scmp.ne.s32.totalorder %s72, %s75
    %p81 = scmp.eq.s32.totalorder %s12, 0
    %p82 = por %p80, %p81
    %p83 = scmp.ne.s32.totalorder %s72, %s75
    %p84 = scmp.eq.s32.totalorder %s17, 3
    %p85 = por %p83, %p84
    %p86 = scmp.ne.s32.totalorder %s75, %s76
    %p87 = scmp.eq.s32.totalorder %s17, 0
    %p88 = por %p86, %p87
    %p89 = scmp.ne.s32.totalorder %s75, %s76
    %p90 = scmp.eq.s32.totalorder %s18, 3
    %p91 = por %p89, %p90
    %p93 = scmp.ne.s32.totalorder %s76, %s92
    %p94 = scmp.eq.s32.totalorder %s18, 0
    %p95 = por %p93, %p94
    %s96 = smul.u32 %s20, 8
    %s97 = sadd.s32 %s96, 8
    %p98 = scmp.lt.s32.totalorder %s97, 15
    %s99 = scalar_select %p98, %s97, 15
    %s100 = smul.u32 %s27, 8
    %s101 = sadd.s32 %s100, 8
    %p102 = scmp.lt.s32.totalorder %s101, 15
    %s103 = scalar_select %p102, %s101, 15
    %s104 = ssub.s32 %s19, %s31
    %s105 = ssub.s32 %s99, %s103
    %s106 = sor.u32 %s104, %s105
    %p107 = scmp.eq.s32.totalorder %s106, 0
    %s109 = sadd.s32 %s108, 1
    %s110 = scalar_select %p107, %s108, %s109
    %p113 = pneg %p107
    %p114 = scmp.eq.s32.totalorder %s12, 3
    %p115 = por %p113, %p114
    %p116 = scmp.ne.s32.totalorder %s108, %s111
    %p117 = scmp.eq.s32.totalorder %s12, 0
    %p118 = por %p116, %p117
    %p119 = scmp.ne.s32.totalorder %s108, %s111
    %p120 = scmp.eq.s32.totalorder %s17, 3
    %p121 = por %p119, %p120
    %p122 = scmp.ne.s32.totalorder %s111, %s112
    %p123 = scmp.eq.s32.totalorder %s17, 0
    %p124 = por %p122, %p123
    %p125 = scmp.ne.s32.totalorder %s111, %s112
    %p126 = scmp.eq.s32.totalorder %s18, 3
    %p127 = por %p125, %p126
    %p129 = scmp.ne.s32.totalorder %s112, %s128
    %p130 = scmp.eq.s32.totalorder %s18, 0
    %p131 = por %p129, %p130
    %s133 = sadd.s32 %s132, 1
    %p136 = scmp.eq.s32.totalorder %s12, 3
    %p137 = scmp.ne.s32.totalorder %s132, %s134
    %p138 = scmp.eq.s32.totalorder %s12, 0
    %p139 = por %p137, %p138
    %p140 = scmp.ne.s32.totalorder %s132, %s134
    %p141 = scmp.eq.s32.totalorder %s17, 3
    %p142 = por %p140, %p141
    %p143 = scmp.ne.s32.totalorder %s134, %s135
    %p144 = scmp.eq.s32.totalorder %s17, 0
    %p145 = por %p143, %p144
    %p146 = scmp.ne.s32.totalorder %s134, %s135
    %p147 = scmp.eq.s32.totalorder %s18, 3
    %p148 = por %p146, %p147
    %p150 = scmp.ne.s32.totalorder %s135, %s149
    %p151 = scmp.eq.s32.totalorder %s18, 0
    %p152 = por %p150, %p151
    %s153 = ssub.s32 %s19, %s31
    %s154 = ssub.s32 %s20, %s27
    %s155 = sor.u32 %s153, %s154
    %p156 = scmp.eq.s32.totalorder %s155, 0
    %s158 = sadd.s32 %s157, 1
    %s159 = scalar_select %p156, %s157, %s158
    %p162 = pneg %p156
    %p163 = scmp.eq.s32.totalorder %s12, 3
    %p164 = por %p162, %p163
    %p165 = scmp.ne.s32.totalorder %s157, %s160
    %p166 = scmp.eq.s32.totalorder %s12, 0
    %p167 = por %p165, %p166
    %p168 = scmp.ne.s32.totalorder %s157, %s160
    %p169 = scmp.eq.s32.totalorder %s17, 3
    %p170 = por %p168, %p169
    %p171 = scmp.ne.s32.totalorder %s160, %s161
    %p172 = scmp.eq.s32.totalorder %s17, 0
    %p173 = por %p171, %p172
    %p174 = scmp.ne.s32.totalorder %s160, %s161
    %p175 = scmp.eq.s32.totalorder %s18, 3
    %p176 = por %p174, %p175
    %p178 = scmp.ne.s32.totalorder %s161, %s177
    %p179 = scmp.eq.s32.totalorder %s18, 0
    %p180 = por %p178, %p179
    %s181 = ssub.s32 %s19, %s31
    %s182 = ssub.s32 %s20, %s27
    %s183 = sor.u32 %s181, %s182
    %p184 = scmp.eq.s32.totalorder %s183, 0
    %s186 = sadd.s32 %s185, 1
    %s187 = scalar_select %p184, %s185, %s186
    %p190 = pneg %p184
    %p191 = scmp.eq.s32.totalorder %s12, 3
    %p192 = por %p190, %p191
    %p193 = scmp.ne.s32.totalorder %s185, %s188
    %p194 = scmp.eq.s32.totalorder %s12, 0
    %p195 = por %p193, %p194
    %p196 = scmp.ne.s32.totalorder %s185, %s188
    %p197 = scmp.eq.s32.totalorder %s17, 3
    %p198 = por %p196, %p197
    %p199 = scmp.ne.s32.totalorder %s188, %s189
    %p200 = scmp.eq.s32.totalorder %s17, 0
    %p201 = por %p199, %p200
    %p202 = scmp.ne.s32.totalorder %s188, %s189
    %p203 = scmp.eq.s32.totalorder %s18, 3
    %p204 = por %p202, %p203
    %p206 = scmp.ne.s32.totalorder %s189, %s205
    %p207 = scmp.eq.s32.totalorder %s18, 0
    %p208 = por %p206, %p207
    %p209 = scmp.le.s32.totalorder 1, %s12
    %p210 = scmp.lt.s32.totalorder %s12, 5
    %p211 = pnand %p209, %p210
    %p212 = pneg %p211
    // Predicated region
    $region9: #{_bdouble_conv_impl.3} parent=5 // pred_check
      _
    $region10: #{_bdouble_conv_impl.3} parent=5 // pred_check_branch
      %214 = sbr.rel (%p211) target = $region12
    $region11: #{_bdouble_conv_impl.3} parent=5 // pred_region
      %s215 = ssub.s32 %s12, 1
      // Predicated region
      $region13: #{_bdouble_conv_impl.3} parent=11 // pred_check
        %p216 = pneg %p145
      $region14: #{_bdouble_conv_impl.3} parent=11 // pred_check_branch
        %218 = sbr.rel (%p216) target = $region16
      $region15: #{_bdouble_conv_impl.3} parent=11 // pred_region
        _
      $region16: #{_bdouble_conv_impl.3} parent=11 // pred_fallthru
        _
    $region12: #{_bdouble_conv_impl.3} parent=5 // pred_fallthru
      _
    %p219 = scmp.lt.s32.totalorder %s12, 4
    // Predicated region
    $region17: #{_bdouble_conv_impl.3} parent=5 // pred_check
      %p220 = pneg %p219
    $region18: #{_bdouble_conv_impl.3} parent=5 // pred_check_branch
      %222 = sbr.rel (%p220) target = $region20
    $region19: #{_bdouble_conv_impl.3} parent=5 // pred_region
      // Predicated region
      $region21: #{_bdouble_conv_impl.3} parent=19 // pred_check
        %p223 = pneg %p46
      $region22: #{_bdouble_conv_impl.3} parent=19 // pred_check_branch
        %225 = sbr.rel (%p223) target = $region24
      $region23: #{_bdouble_conv_impl.3} parent=19 // pred_region
        %s226 = smul.u32 8, %s20
        %p227 = scmp.lt.s32.totalorder %s19, 1
        %s228 = scalar_select %p227, %s19, 1
        %p229 = scmp.lt.s32.totalorder %s226, 15
        %s230 = scalar_select %p229, %s226, 15
        %s231 = smul.addr %s230, 2
        %s232 = smul.addr %s228, 32
        %s233 = sadd.s32 %s231, %s232
        %s234 = smul.addr %s233, 8
        %s235 = scalar_lea.vmem %s0, %s234
        %s236 = smul.u32 8, %s20
      $region24: #{_bdouble_conv_impl.3} parent=19 // pred_fallthru
        _
      // Predicated region
      $region25: #{_bdouble_conv_impl.3} parent=19 // pred_check
        %p237 = pneg %p82
      $region26: #{_bdouble_conv_impl.3} parent=19 // pred_check_branch
        %239 = sbr.rel (%p237) target = $region28
      $region27: #{_bdouble_conv_impl.3} parent=19 // pred_region
        %s240 = smul.u32 %s20, 8
        %s241 = ssub.s32 %s240, 1
        %p242 = scmp.gt.s32.totalorder %s241, 0
        %s243 = scalar_select %p242, %s241, 0
        %p244 = scmp.lt.s32.totalorder %s19, 1
        %s245 = scalar_select %p244, %s19, 1
        %p246 = scmp.lt.s32.totalorder %s243, 15
        %s247 = scalar_select %p246, %s243, 15
        %s248 = smul.addr %s247, 2
        %s249 = smul.addr %s245, 32
        %s250 = sadd.s32 %s248, %s249
        %s251 = smul.addr %s250, 8
        %s252 = scalar_lea.vmem %s1, %s251
        %s253 = smul.u32 %s20, 8
        %s254 = ssub.s32 %s253, 1
        %p255 = scmp.gt.s32.totalorder %s254, 0
        %s256 = scalar_select %p255, %s254, 0
      $region28: #{_bdouble_conv_impl.3} parent=19 // pred_fallthru
        _
      // Predicated region
      $region29: #{_bdouble_conv_impl.3} parent=19 // pred_check
        %p257 = pneg %p118
      $region30: #{_bdouble_conv_impl.3} parent=19 // pred_check_branch
        %259 = sbr.rel (%p257) target = $region32
      $region31: #{_bdouble_conv_impl.3} parent=19 // pred_region
        %s260 = smul.u32 %s20, 8
        %s261 = sadd.s32 %s260, 8
        %p262 = scmp.lt.s32.totalorder %s261, 15
        %s263 = scalar_select %p262, %s261, 15
        %p264 = scmp.lt.s32.totalorder %s19, 1
        %s265 = scalar_select %p264, %s19, 1
        %p266 = scmp.lt.s32.totalorder %s263, 15
        %s267 = scalar_select %p266, %s263, 15
        %s268 = smul.addr %s267, 2
        %s269 = smul.addr %s265, 32
        %s270 = sadd.s32 %s268, %s269
        %s271 = smul.addr %s270, 8
        %s272 = scalar_lea.vmem %s2, %s271
        %s273 = smul.u32 %s20, 8
        %s274 = sadd.s32 %s273, 8
        %p275 = scmp.lt.s32.totalorder %s274, 15
        %s276 = scalar_select %p275, %s274, 15
      $region32: #{_bdouble_conv_impl.3} parent=19 // pred_fallthru
        _
    $region20: #{_bdouble_conv_impl.3} parent=5 // pred_fallthru
      _
    %p277 = scmp.le.s32.totalorder 1, %s12
    %p278 = scmp.lt.s32.totalorder %s12, 5
    %p279 = pnand %p277, %p278
    %p280 = pneg %p279
    // Predicated region
    $region33: #{_bdouble_conv_impl.3} parent=5 // pred_check
      _
    $region34: #{_bdouble_conv_impl.3} parent=5 // pred_check_branch
      %282 = sbr.rel (%p279) target = $region36
    $region35: #{_bdouble_conv_impl.3} parent=5 // pred_region
      %s283 = ssub.s32 %s12, 1
      %s284 = smul.u32 8, %s22
      %p285 = scmp.lt.s32.totalorder %s21, 1
      %s286 = scalar_select %p285, %s21, 1
      %p287 = scmp.lt.s32.totalorder %s284, 15
      %s288 = scalar_select %p287, %s284, 15
      %s289 = smul.addr %s288, 2
      %s290 = smul.addr %s286, 32
      %s291 = sadd.s32 %s289, %s290
      %s292 = smul.addr %s291, 8
      %s293 = scalar_lea.vmem %s0, %s292
      %p294 = pneg %p52
      %p295 = pneg %p49
      %s296 = smul.u32 %s22, 8
      %s297 = ssub.s32 %s296, 1
      %p298 = scmp.gt.s32.totalorder %s297, 0
      %s299 = scalar_select %p298, %s297, 0
      %p300 = scmp.lt.s32.totalorder %s21, 1
      %s301 = scalar_select %p300, %s21, 1
      %p302 = scmp.lt.s32.totalorder %s299, 15
      %s303 = scalar_select %p302, %s299, 15
      %s304 = smul.addr %s303, 2
      %s305 = smul.addr %s301, 32
      %s306 = sadd.s32 %s304, %s305
      %s307 = smul.addr %s306, 8
      %s308 = scalar_lea.vmem %s1, %s307
      %p309 = pneg %p88
      %p310 = pneg %p85
      %s311 = smul.u32 %s22, 8
      %s312 = sadd.s32 %s311, 8
      %p313 = scmp.lt.s32.totalorder %s312, 15
      %s314 = scalar_select %p313, %s312, 15
      %p315 = scmp.lt.s32.totalorder %s21, 1
      %s316 = scalar_select %p315, %s21, 1
      %p317 = scmp.lt.s32.totalorder %s314, 15
      %s318 = scalar_select %p317, %s314, 15
      %s319 = smul.addr %s318, 2
      %s320 = smul.addr %s316, 32
      %s321 = sadd.s32 %s319, %s320
      %s322 = smul.addr %s321, 8
      %s323 = scalar_lea.vmem %s2, %s322
      %p324 = pneg %p124
      %p325 = pneg %p121
      %p326 = pneg %p145
      %p327 = pneg %p142
      %p328 = pneg %p173
      %p329 = pneg %p170
      %s330 = smul.u32 8, %s22
      %p331 = scmp.lt.s32.totalorder %s21, 1
      %s332 = scalar_select %p331, %s21, 1
      %p333 = scmp.lt.s32.totalorder %s330, 15
      %s334 = scalar_select %p333, %s330, 15
      %s335 = smul.addr %s334, 2
      %s336 = smul.addr %s332, 32
      %s337 = sadd.s32 %s335, %s336
      %s338 = smul.addr %s337, 8
      %s339 = scalar_lea.vmem %s4, %s338
      %p340 = pneg %p201
      %p341 = pneg %p198
      %p342 = scmp.lt.s32.totalorder %s21, 1
      %s343 = scalar_select %p342, %s21, 1
      %p344 = scmp.lt.s32.totalorder %s22, 1
      %s345 = scalar_select %p344, %s22, 1
      %s346 = smul.addr %s343, 2
      %s347 = sadd.s32 %s345, %s346
      %s348 = smul.addr %s347, 2
      %s349 = scalar_lea.vmem %s5, %s348
      %s350 = smul.u32 8, %s22
      %p351 = scmp.lt.s32.totalorder %s21, 1
      %s352 = scalar_select %p351, %s21, 1
      %p353 = scmp.lt.s32.totalorder %s350, 15
      %s354 = scalar_select %p353, %s350, 15
      %s355 = smul.addr %s354, 2
      %s356 = smul.addr %s352, 32
      %s357 = sadd.s32 %s355, %s356
      %s358 = smul.addr %s357, 8
      %s359 = scalar_lea.vmem %s0, %s358
      %s360 = smul.u32 8, %s22
      %s361 = smul.u32 %s22, 8
      %s362 = ssub.s32 %s361, 1
      %p363 = scmp.gt.s32.totalorder %s362, 0
      %s364 = scalar_select %p363, %s362, 0
      %p365 = scmp.lt.s32.totalorder %s21, 1
      %s366 = scalar_select %p365, %s21, 1
      %p367 = scmp.lt.s32.totalorder %s364, 15
      %s368 = scalar_select %p367, %s364, 15
      %s369 = smul.addr %s368, 2
      %s370 = smul.addr %s366, 32
      %s371 = sadd.s32 %s369, %s370
      %s372 = smul.addr %s371, 8
      %s373 = scalar_lea.vmem %s1, %s372
      %s374 = smul.u32 %s22, 8
      %s375 = ssub.s32 %s374, 1
      %p376 = scmp.gt.s32.totalorder %s375, 0
      %s377 = scalar_select %p376, %s375, 0
      %s378 = smul.u32 %s22, 8
      %s379 = sadd.s32 %s378, 8
      %p380 = scmp.lt.s32.totalorder %s379, 15
      %s381 = scalar_select %p380, %s379, 15
      %p382 = scmp.lt.s32.totalorder %s21, 1
      %s383 = scalar_select %p382, %s21, 1
      %p384 = scmp.lt.s32.totalorder %s381, 15
      %s385 = scalar_select %p384, %s381, 15
      %s386 = smul.addr %s385, 2
      %s387 = smul.addr %s383, 32
      %s388 = sadd.s32 %s386, %s387
      %s389 = smul.addr %s388, 8
      %s390 = scalar_lea.vmem %s2, %s389
      %s391 = smul.u32 %s22, 8
      %s392 = sadd.s32 %s391, 8
      %p393 = scmp.lt.s32.totalorder %s392, 15
      %s394 = scalar_select %p393, %s392, 15
      %s395 = smul.u32 8, %s22
      %p396 = scmp.lt.s32.totalorder %s21, 1
      %s397 = scalar_select %p396, %s21, 1
      %p398 = scmp.lt.s32.totalorder %s395, 15
      %s399 = scalar_select %p398, %s395, 15
      %s400 = smul.addr %s399, 2
      %s401 = smul.addr %s397, 32
      %s402 = sadd.s32 %s400, %s401
      %s403 = smul.addr %s402, 8
      %s404 = scalar_lea.vmem %s4, %s403
      %s405 = smul.u32 8, %s22
      %p406 = scmp.lt.s32.totalorder %s21, 1
      %s407 = scalar_select %p406, %s21, 1
      %p408 = scmp.lt.s32.totalorder %s22, 1
      %s409 = scalar_select %p408, %s22, 1
      %s410 = smul.addr %s407, 2
      %s411 = sadd.s32 %s409, %s410
      %s412 = smul.addr %s411, 2
      %s413 = scalar_lea.vmem %s5, %s412
      %p414 = scmp.gt.s32.totalorder %s22, 0
      %s415 = scalar_select %p414, 1, 0
      %s416 = scvt.s32.f32 %s415
      %p417 = scmp.lt.s32.totalorder %s22, 1
      %s418 = scalar_select %p417, 1, 0
      %s419 = scvt.s32.f32 %s418
      %vm420 = vcmask 24576
      %421 = vst.msk [vmem:[#allocation2 + $0x7] sm:$0x1] %vm420, 0.0
      %422 = vst.msk [vmem:[#allocation2 + $0x27] sm:$0x1] %vm420, 0.0
      %423 = vst.msk [vmem:[#allocation2 + $0x47] sm:$0x1] %vm420, 0.0
      %424 = vst.msk [vmem:[#allocation2 + $0x67] sm:$0x1] %vm420, 0.0
      %425 = vst.msk [vmem:[#allocation2 + $0x87] sm:$0x1] %vm420, 0.0
      %426 = vst.msk [vmem:[#allocation2 + $0xa7] sm:$0x1] %vm420, 0.0
      %427 = vst.msk [vmem:[#allocation2 + $0xc7] sm:$0x1] %vm420, 0.0
      %428 = vst.msk [vmem:[#allocation2 + $0xe7] sm:$0x1] %vm420, 0.0
      %429 = vst.msk [vmem:[#allocation2 + $0x107] sm:$0x1] %vm420, 0.0
      %430 = vst.msk [vmem:[#allocation2 + $0x127] sm:$0x1] %vm420, 0.0
      %431 = vst.msk [vmem:[#allocation2 + $0x18] sm:$0x1] %vm420, 0.0
      %432 = vst.msk [vmem:[#allocation2 + $0x38] sm:$0x1] %vm420, 0.0
      %433 = vst.msk [vmem:[#allocation2 + $0x58] sm:$0x1] %vm420, 0.0
      %434 = vst.msk [vmem:[#allocation2 + $0x78] sm:$0x1] %vm420, 0.0
      %435 = vst.msk [vmem:[#allocation2 + $0x98] sm:$0x1] %vm420, 0.0
      %436 = vst.msk [vmem:[#allocation2 + $0xb8] sm:$0x1] %vm420, 0.0
      %437 = vst.msk [vmem:[#allocation2 + $0xd8] sm:$0x1] %vm420, 0.0
      %438 = vst.msk [vmem:[#allocation2 + $0xf8] sm:$0x1] %vm420, 0.0
      %439 = vst.msk [vmem:[#allocation2 + $0x118] sm:$0x1] %vm420, 0.0
      %440 = vst.msk [vmem:[#allocation2 + $0x138] sm:$0x1] %vm420, 0.0
      %v441 = vld [vmem:[%s373] sm:$0xff]
      %v442 = vld [vmem:[%s373 + $0x8] sm:$0xff]
      %v443 = vstv %s416
      %v444 = vmul.f32 %v441, %v443
      %v445 = vmul.f32 %v442, %v443
      %vm446 = vcmask 31744
      %447 = vst.msk [vmem:[#allocation2 + $0x8] sm:$0xff] %vm446, %v444
      %448 = vst.msk [vmem:[#allocation2 + $0x10] sm:$0xff] %vm446, %v445
      %v449 = vld [vmem:[%s390] sm:$0xff]
      %v450 = vld [vmem:[%s390 + $0x8] sm:$0xff]
      %v451 = vstv %s419
      %v452 = vmul.f32 %v449, %v451
      %v453 = vmul.f32 %v450, %v451
      %s454 = scalar_lea.vmem [#allocation2], 288
      %455 = vst.msk [vmem:[%s454 + $0x8] sm:$0xff] %vm446, %v452
      %456 = vst.msk [vmem:[%s454 + $0x10] sm:$0xff] %vm446, %v453
      %v457 = vld [vmem:[%s359] sm:$0xff]
      %v458 = vld [vmem:[%s359 + $0x8] sm:$0xff]
      %v459 = vld [vmem:[%s359 + $0x10] sm:$0xff]
      %v460 = vld [vmem:[%s359 + $0x18] sm:$0xff]
      %v461 = vld [vmem:[%s359 + $0x20] sm:$0xff]
      %v462 = vld [vmem:[%s359 + $0x28] sm:$0xff]
      %v463 = vld [vmem:[%s359 + $0x30] sm:$0xff]
      %v464 = vld [vmem:[%s359 + $0x38] sm:$0xff]
      %v465 = vld [vmem:[%s359 + $0x40] sm:$0xff]
      %v466 = vld [vmem:[%s359 + $0x48] sm:$0xff]
      %v467 = vld [vmem:[%s359 + $0x50] sm:$0xff]
      %v468 = vld [vmem:[%s359 + $0x58] sm:$0xff]
      %v469 = vld [vmem:[%s359 + $0x60] sm:$0xff]
      %v470 = vld [vmem:[%s359 + $0x68] sm:$0xff]
      %v471 = vld [vmem:[%s359 + $0x70] sm:$0xff]
      %v472 = vld [vmem:[%s359 + $0x78] sm:$0xff]
      %s473 = scalar_lea.vmem [#allocation2], 32
      %474 = vst.msk [vmem:[%s473 + $0x8] sm:$0xff] %vm446, %v457
      %475 = vst.msk [vmem:[%s473 + $0x10] sm:$0xff] %vm446, %v458
      %476 = vst.msk [vmem:[%s473 + $0x28] sm:$0xff] %vm446, %v459
      %477 = vst.msk [vmem:[%s473 + $0x30] sm:$0xff] %vm446, %v460
      %478 = vst.msk [vmem:[%s473 + $0x48] sm:$0xff] %vm446, %v461
      %479 = vst.msk [vmem:[%s473 + $0x50] sm:$0xff] %vm446, %v462
      %480 = vst.msk [vmem:[%s473 + $0x68] sm:$0xff] %vm446, %v463
      %481 = vst.msk [vmem:[%s473 + $0x70] sm:$0xff] %vm446, %v464
      %482 = vst.msk [vmem:[%s473 + $0x88] sm:$0xff] %vm446, %v465
      %483 = vst.msk [vmem:[%s473 + $0x90] sm:$0xff] %vm446, %v466
      %484 = vst.msk [vmem:[%s473 + $0xa8] sm:$0xff] %vm446, %v467
      %485 = vst.msk [vmem:[%s473 + $0xb0] sm:$0xff] %vm446, %v468
      %486 = vst.msk [vmem:[%s473 + $0xc8] sm:$0xff] %vm446, %v469
      %487 = vst.msk [vmem:[%s473 + $0xd0] sm:$0xff] %vm446, %v470
      %488 = vst.msk [vmem:[%s473 + $0xe8] sm:$0xff] %vm446, %v471
      %489 = vst.msk [vmem:[%s473 + $0xf0] sm:$0xff] %vm446, %v472
      %v490 = vld [vmem:[#allocation2 + $0x7] sm:$0xff]
      %v491 = vld [vmem:[#allocation2 + $0xf] sm:$0xff]
      %v492 = vld [vmem:[#allocation2 + $0x27] sm:$0xff]
      %v493 = vld [vmem:[#allocation2 + $0x2f] sm:$0xff]
      %v494 = vld [vmem:[#allocation2 + $0x47] sm:$0xff]
      %v495 = vld [vmem:[#allocation2 + $0x4f] sm:$0xff]
      %v496 = vld [vmem:[#allocation2 + $0x67] sm:$0xff]
      %v497 = vld [vmem:[#allocation2 + $0x6f] sm:$0xff]
      %v498 = vld [vmem:[#allocation2 + $0x87] sm:$0xff]
      %v499 = vld [vmem:[#allocation2 + $0x8f] sm:$0xff]
      %v500 = vld [vmem:[#allocation2 + $0xa7] sm:$0xff]
      %v501 = vld [vmem:[#allocation2 + $0xaf] sm:$0xff]
      %v502 = vld [vmem:[#allocation2 + $0xc7] sm:$0xff]
      %v503 = vld [vmem:[#allocation2 + $0xcf] sm:$0xff]
      %v504 = vld [vmem:[#allocation2 + $0xe7] sm:$0xff]
      %v505 = vld [vmem:[#allocation2 + $0xef] sm:$0xff]
      %v506 = vld [vmem:[#allocation2 + $0x8] sm:$0xff]
      %v507 = vld [vmem:[#allocation2 + $0x10] sm:$0xff]
      %v508 = vld [vmem:[#allocation2 + $0x28] sm:$0xff]
      %v509 = vld [vmem:[#allocation2 + $0x30] sm:$0xff]
      %v510 = vld [vmem:[#allocation2 + $0x48] sm:$0xff]
      %v511 = vld [vmem:[#allocation2 + $0x50] sm:$0xff]
      %v512 = vld [vmem:[#allocation2 + $0x68] sm:$0xff]
      %v513 = vld [vmem:[#allocation2 + $0x70] sm:$0xff]
      %v514 = vld [vmem:[#allocation2 + $0x88] sm:$0xff]
      %v515 = vld [vmem:[#allocation2 + $0x90] sm:$0xff]
      %v516 = vld [vmem:[#allocation2 + $0xa8] sm:$0xff]
      %v517 = vld [vmem:[#allocation2 + $0xb0] sm:$0xff]
      %v518 = vld [vmem:[#allocation2 + $0xc8] sm:$0xff]
      %v519 = vld [vmem:[#allocation2 + $0xd0] sm:$0xff]
      %v520 = vld [vmem:[#allocation2 + $0xe8] sm:$0xff]
      %v521 = vld [vmem:[#allocation2 + $0xf0] sm:$0xff]
      %v522 = vld [vmem:[#allocation2 + $0x9] sm:$0xff]
      %v523 = vld [vmem:[#allocation2 + $0x11] sm:$0xff]
      %v524 = vld [vmem:[#allocation2 + $0x29] sm:$0xff]
      %v525 = vld [vmem:[#allocation2 + $0x31] sm:$0xff]
      %v526 = vld [vmem:[#allocation2 + $0x49] sm:$0xff]
      %v527 = vld [vmem:[#allocation2 + $0x51] sm:$0xff]
      %v528 = vld [vmem:[#allocation2 + $0x69] sm:$0xff]
      %v529 = vld [vmem:[#allocation2 + $0x71] sm:$0xff]
      %v530 = vld [vmem:[#allocation2 + $0x89] sm:$0xff]
      %v531 = vld [vmem:[#allocation2 + $0x91] sm:$0xff]
      %v532 = vld [vmem:[#allocation2 + $0xa9] sm:$0xff]
      %v533 = vld [vmem:[#allocation2 + $0xb1] sm:$0xff]
      %v534 = vld [vmem:[#allocation2 + $0xc9] sm:$0xff]
      %v535 = vld [vmem:[#allocation2 + $0xd1] sm:$0xff]
      %v536 = vld [vmem:[#allocation2 + $0xe9] sm:$0xff]
      %v537 = vld [vmem:[#allocation2 + $0xf1] sm:$0xff]
      %554 = vrot.lane.b32.xlu0 %v506, 4
      %v555 = vpop.permute.xlu0 %554
      %556 = vrot.lane.b32.xlu0 %v507, 4
      %v557 = vpop.permute.xlu0 %556
      %558 = vrot.lane.b32.xlu0 %v508, 4
      %v559 = vpop.permute.xlu0 %558
      %560 = vrot.lane.b32.xlu0 %v509, 4
      %v561 = vpop.permute.xlu0 %560
      %562 = vrot.lane.b32.xlu0 %v510, 4
      %v563 = vpop.permute.xlu0 %562
      %564 = vrot.lane.b32.xlu0 %v511, 4
      %v565 = vpop.permute.xlu0 %564
      %566 = vrot.lane.b32.xlu0 %v512, 4
      %v567 = vpop.permute.xlu0 %566
      %568 = vrot.lane.b32.xlu0 %v513, 4
      %v569 = vpop.permute.xlu0 %568
      %570 = vrot.lane.b32.xlu0 %v514, 4
      %v571 = vpop.permute.xlu0 %570
      %572 = vrot.lane.b32.xlu0 %v515, 4
      %v573 = vpop.permute.xlu0 %572
      %574 = vrot.lane.b32.xlu0 %v516, 4
      %v575 = vpop.permute.xlu0 %574
      %576 = vrot.lane.b32.xlu0 %v517, 4
      %v577 = vpop.permute.xlu0 %576
      %578 = vrot.lane.b32.xlu0 %v518, 4
      %v579 = vpop.permute.xlu0 %578
      %580 = vrot.lane.b32.xlu0 %v519, 4
      %v581 = vpop.permute.xlu0 %580
      %582 = vrot.lane.b32.xlu0 %v520, 4
      %v583 = vpop.permute.xlu0 %582
      %584 = vrot.lane.b32.xlu0 %v521, 4
      %v585 = vpop.permute.xlu0 %584
      %618 = vrot.lane.b32.xlu0 %v522, 8
      %v619 = vpop.permute.xlu0 %618
      %620 = vrot.lane.b32.xlu0 %v523, 8
      %v621 = vpop.permute.xlu0 %620
      %622 = vrot.lane.b32.xlu0 %v524, 8
      %v623 = vpop.permute.xlu0 %622
      %624 = vrot.lane.b32.xlu0 %v525, 8
      %v625 = vpop.permute.xlu0 %624
      %626 = vrot.lane.b32.xlu0 %v526, 8
      %v627 = vpop.permute.xlu0 %626
      %628 = vrot.lane.b32.xlu0 %v527, 8
      %v629 = vpop.permute.xlu0 %628
      %630 = vrot.lane.b32.xlu0 %v528, 8
      %v631 = vpop.permute.xlu0 %630
      %632 = vrot.lane.b32.xlu0 %v529, 8
      %v633 = vpop.permute.xlu0 %632
      %634 = vrot.lane.b32.xlu0 %v530, 8
      %v635 = vpop.permute.xlu0 %634
      %636 = vrot.lane.b32.xlu0 %v531, 8
      %v637 = vpop.permute.xlu0 %636
      %638 = vrot.lane.b32.xlu0 %v532, 8
      %v639 = vpop.permute.xlu0 %638
      %640 = vrot.lane.b32.xlu0 %v533, 8
      %v641 = vpop.permute.xlu0 %640
      %642 = vrot.lane.b32.xlu0 %v534, 8
      %v643 = vpop.permute.xlu0 %642
      %644 = vrot.lane.b32.xlu0 %v535, 8
      %v645 = vpop.permute.xlu0 %644
      %646 = vrot.lane.b32.xlu0 %v536, 8
      %v647 = vpop.permute.xlu0 %646
      %648 = vrot.lane.b32.xlu0 %v537, 8
      %v649 = vpop.permute.xlu0 %648
      %v666 = vsel %vm446, %v490, %v555
      %v667 = vsel %vm446, %v491, %v557
      %v668 = vsel %vm446, %v492, %v559
      %v669 = vsel %vm446, %v493, %v561
      %v670 = vsel %vm446, %v494, %v563
      %v671 = vsel %vm446, %v495, %v565
      %v672 = vsel %vm446, %v496, %v567
      %v673 = vsel %vm446, %v497, %v569
      %v674 = vsel %vm446, %v498, %v571
      %v675 = vsel %vm446, %v499, %v573
      %v676 = vsel %vm446, %v500, %v575
      %v677 = vsel %vm446, %v501, %v577
      %v678 = vsel %vm446, %v502, %v579
      %v679 = vsel %vm446, %v503, %v581
      %v680 = vsel %vm446, %v504, %v583
      %v681 = vsel %vm446, %v505, %v585
      %vm682 = vcmask 64512
      %v683 = vsel %vm682, %v666, %v619
      %v684 = vsel %vm682, %v667, %v621
      %v685 = vsel %vm682, %v668, %v623
      %v686 = vsel %vm682, %v669, %v625
      %v687 = vsel %vm682, %v670, %v627
      %v688 = vsel %vm682, %v671, %v629
      %v689 = vsel %vm682, %v672, %v631
      %v690 = vsel %vm682, %v673, %v633
      %v691 = vsel %vm682, %v674, %v635
      %v692 = vsel %vm682, %v675, %v637
      %v693 = vsel %vm682, %v676, %v639
      %v694 = vsel %vm682, %v677, %v641
      %v695 = vsel %vm682, %v678, %v643
      %v696 = vsel %vm682, %v679, %v645
      %v697 = vsel %vm682, %v680, %v647
      %v698 = vsel %vm682, %v681, %v649
      %v699 = vld [vmem:[%s3] sm:$0xff]
      %v700 = vld [vmem:[%s3 + $0x8] sm:$0xf]
      %v701 = vld [vmem:[%s473 + $0x7] sm:$0xff]
      %v702 = vld [vmem:[%s473 + $0xf] sm:$0xff]
      %v703 = vld [vmem:[%s473 + $0x27] sm:$0xff]
      %v704 = vld [vmem:[%s473 + $0x2f] sm:$0xff]
      %v705 = vld [vmem:[%s473 + $0x47] sm:$0xff]
      %v706 = vld [vmem:[%s473 + $0x4f] sm:$0xff]
      %v707 = vld [vmem:[%s473 + $0x67] sm:$0xff]
      %v708 = vld [vmem:[%s473 + $0x6f] sm:$0xff]
      %v709 = vld [vmem:[%s473 + $0x87] sm:$0xff]
      %v710 = vld [vmem:[%s473 + $0x8f] sm:$0xff]
      %v711 = vld [vmem:[%s473 + $0xa7] sm:$0xff]
      %v712 = vld [vmem:[%s473 + $0xaf] sm:$0xff]
      %v713 = vld [vmem:[%s473 + $0xc7] sm:$0xff]
      %v714 = vld [vmem:[%s473 + $0xcf] sm:$0xff]
      %v715 = vld [vmem:[%s473 + $0xe7] sm:$0xff]
      %v716 = vld [vmem:[%s473 + $0xef] sm:$0xff]
      %v717 = vld [vmem:[%s473 + $0x8] sm:$0xff]
      %v718 = vld [vmem:[%s473 + $0x10] sm:$0xff]
      %v719 = vld [vmem:[%s473 + $0x28] sm:$0xff]
      %v720 = vld [vmem:[%s473 + $0x30] sm:$0xff]
      %v721 = vld [vmem:[%s473 + $0x48] sm:$0xff]
      %v722 = vld [vmem:[%s473 + $0x50] sm:$0xff]
      %v723 = vld [vmem:[%s473 + $0x68] sm:$0xff]
      %v724 = vld [vmem:[%s473 + $0x70] sm:$0xff]
      %v725 = vld [vmem:[%s473 + $0x88] sm:$0xff]
      %v726 = vld [vmem:[%s473 + $0x90] sm:$0xff]
      %v727 = vld [vmem:[%s473 + $0xa8] sm:$0xff]
      %v728 = vld [vmem:[%s473 + $0xb0] sm:$0xff]
      %v729 = vld [vmem:[%s473 + $0xc8] sm:$0xff]
      %v730 = vld [vmem:[%s473 + $0xd0] sm:$0xff]
      %v731 = vld [vmem:[%s473 + $0xe8] sm:$0xff]
      %v732 = vld [vmem:[%s473 + $0xf0] sm:$0xff]
      %v733 = vld [vmem:[%s473 + $0x9] sm:$0xff]
      %v734 = vld [vmem:[%s473 + $0x11] sm:$0xff]
      %v735 = vld [vmem:[%s473 + $0x29] sm:$0xff]
      %v736 = vld [vmem:[%s473 + $0x31] sm:$0xff]
      %v737 = vld [vmem:[%s473 + $0x49] sm:$0xff]
      %v738 = vld [vmem:[%s473 + $0x51] sm:$0xff]
      %v739 = vld [vmem:[%s473 + $0x69] sm:$0xff]
      %v740 = vld [vmem:[%s473 + $0x71] sm:$0xff]
      %v741 = vld [vmem:[%s473 + $0x89] sm:$0xff]
      %v742 = vld [vmem:[%s473 + $0x91] sm:$0xff]
      %v743 = vld [vmem:[%s473 + $0xa9] sm:$0xff]
      %v744 = vld [vmem:[%s473 + $0xb1] sm:$0xff]
      %v745 = vld [vmem:[%s473 + $0xc9] sm:$0xff]
      %v746 = vld [vmem:[%s473 + $0xd1] sm:$0xff]
      %v747 = vld [vmem:[%s473 + $0xe9] sm:$0xff]
      %v748 = vld [vmem:[%s473 + $0xf1] sm:$0xff]
      %765 = vrot.lane.b32.xlu0 %v717, 4
      %v766 = vpop.permute.xlu0 %765
      %767 = vrot.lane.b32.xlu0 %v718, 4
      %v768 = vpop.permute.xlu0 %767
      %769 = vrot.lane.b32.xlu0 %v719, 4
      %v770 = vpop.permute.xlu0 %769
      %771 = vrot.lane.b32.xlu0 %v720, 4
      %v772 = vpop.permute.xlu0 %771
      %773 = vrot.lane.b32.xlu0 %v721, 4
      %v774 = vpop.permute.xlu0 %773
      %775 = vrot.lane.b32.xlu0 %v722, 4
      %v776 = vpop.permute.xlu0 %775
      %777 = vrot.lane.b32.xlu0 %v723, 4
      %v778 = vpop.permute.xlu0 %777
      %779 = vrot.lane.b32.xlu0 %v724, 4
      %v780 = vpop.permute.xlu0 %779
      %781 = vrot.lane.b32.xlu0 %v725, 4
      %v782 = vpop.permute.xlu0 %781
      %783 = vrot.lane.b32.xlu0 %v726, 4
      %v784 = vpop.permute.xlu0 %783
      %785 = vrot.lane.b32.xlu0 %v727, 4
      %v786 = vpop.permute.xlu0 %785
      %787 = vrot.lane.b32.xlu0 %v728, 4
      %v788 = vpop.permute.xlu0 %787
      %789 = vrot.lane.b32.xlu0 %v729, 4
      %v790 = vpop.permute.xlu0 %789
      %791 = vrot.lane.b32.xlu0 %v730, 4
      %v792 = vpop.permute.xlu0 %791
      %793 = vrot.lane.b32.xlu0 %v731, 4
      %v794 = vpop.permute.xlu0 %793
      %795 = vrot.lane.b32.xlu0 %v732, 4
      %v796 = vpop.permute.xlu0 %795
      %829 = vrot.lane.b32.xlu0 %v733, 8
      %v830 = vpop.permute.xlu0 %829
      %831 = vrot.lane.b32.xlu0 %v734, 8
      %v832 = vpop.permute.xlu0 %831
      %833 = vrot.lane.b32.xlu0 %v735, 8
      %v834 = vpop.permute.xlu0 %833
      %835 = vrot.lane.b32.xlu0 %v736, 8
      %v836 = vpop.permute.xlu0 %835
      %837 = vrot.lane.b32.xlu0 %v737, 8
      %v838 = vpop.permute.xlu0 %837
      %839 = vrot.lane.b32.xlu0 %v738, 8
      %v840 = vpop.permute.xlu0 %839
      %841 = vrot.lane.b32.xlu0 %v739, 8
      %v842 = vpop.permute.xlu0 %841
      %843 = vrot.lane.b32.xlu0 %v740, 8
      %v844 = vpop.permute.xlu0 %843
      %845 = vrot.lane.b32.xlu0 %v741, 8
      %v846 = vpop.permute.xlu0 %845
      %847 = vrot.lane.b32.xlu0 %v742, 8
      %v848 = vpop.permute.xlu0 %847
      %849 = vrot.lane.b32.xlu0 %v743, 8
      %v850 = vpop.permute.xlu0 %849
      %851 = vrot.lane.b32.xlu0 %v744, 8
      %v852 = vpop.permute.xlu0 %851
      %853 = vrot.lane.b32.xlu0 %v745, 8
      %v854 = vpop.permute.xlu0 %853
      %855 = vrot.lane.b32.xlu0 %v746, 8
      %v856 = vpop.permute.xlu0 %855
      %857 = vrot.lane.b32.xlu0 %v747, 8
      %v858 = vpop.permute.xlu0 %857
      %859 = vrot.lane.b32.xlu0 %v748, 8
      %v860 = vpop.permute.xlu0 %859
      %v877 = vsel %vm446, %v701, %v766
      %v878 = vsel %vm446, %v702, %v768
      %v879 = vsel %vm446, %v703, %v770
      %v880 = vsel %vm446, %v704, %v772
      %v881 = vsel %vm446, %v705, %v774
      %v882 = vsel %vm446, %v706, %v776
      %v883 = vsel %vm446, %v707, %v778
      %v884 = vsel %vm446, %v708, %v780
      %v885 = vsel %vm446, %v709, %v782
      %v886 = vsel %vm446, %v710, %v784
      %v887 = vsel %vm446, %v711, %v786
      %v888 = vsel %vm446, %v712, %v788
      %v889 = vsel %vm446, %v713, %v790
      %v890 = vsel %vm446, %v714, %v792
      %v891 = vsel %vm446, %v715, %v794
      %v892 = vsel %vm446, %v716, %v796
      %v893 = vsel %vm682, %v877, %v830
      %v894 = vsel %vm682, %v878, %v832
      %v895 = vsel %vm682, %v879, %v834
      %v896 = vsel %vm682, %v880, %v836
      %v897 = vsel %vm682, %v881, %v838
      %v898 = vsel %vm682, %v882, %v840
      %v899 = vsel %vm682, %v883, %v842
      %v900 = vsel %vm682, %v884, %v844
      %v901 = vsel %vm682, %v885, %v846
      %v902 = vsel %vm682, %v886, %v848
      %v903 = vsel %vm682, %v887, %v850
      %v904 = vsel %vm682, %v888, %v852
      %v905 = vsel %vm682, %v889, %v854
      %v906 = vsel %vm682, %v890, %v856
      %v907 = vsel %vm682, %v891, %v858
      %v908 = vsel %vm682, %v892, %v860
      %s909 = scalar_lea.vmem %s3, 16
      %v910 = vld [vmem:[%s909] sm:$0xff]
      %v911 = vld [vmem:[%s909 + $0x8] sm:$0xf]
      %vm912 = vcmask 97280
      %v914 = vsel %vm912, %v893, 0
      %v917 = vsel %vm912, %v894, 0
      %v920 = vsel %vm912, %v895, 0
      %v923 = vsel %vm912, %v896, 0
      %v926 = vsel %vm912, %v897, 0
      %v929 = vsel %vm912, %v898, 0
      %v932 = vsel %vm912, %v899, 0
      %v935 = vsel %vm912, %v900, 0
      %v938 = vsel %vm912, %v901, 0
      %v941 = vsel %vm912, %v902, 0
      %v944 = vsel %vm912, %v903, 0
      %v947 = vsel %vm912, %v904, 0
      %v950 = vsel %vm912, %v905, 0
      %v953 = vsel %vm912, %v906, 0
      %v956 = vsel %vm912, %v907, 0
      %v959 = vsel %vm912, %v908, 0
      %vm961 = vcmask 1043456
      %v963 = vsel %vm961, %v911, 0
      %965 = vmatprep.subr.mxu0 0.0
      %966 = vmatpush1.msra.mxu0 %v910
      %967 = vmatprep.subr.mxu0 0.0
      %968 = vmatpush1.msra.mxu0 %v963
      %969 = vmatprep.subr.mxu0 0.0
      %970 = vmatpush1.msra.mxu0 0.0
      %971 = vmatprep.subr.mxu0 0.0
      %972 = vmatpush1.msra.mxu0 0.0
      %973 = vmatprep.subr.mxu0 0.0
      %974 = vmatpush1.msra.mxu0 0.0
      %975 = vmatprep.subr.mxu0 0.0
      %976 = vmatpush1.msra.mxu0 0.0
      %977 = vmatprep.subr.mxu0 0.0
      %978 = vmatpush1.msra.mxu0 0.0
      %979 = vmatprep.subr.mxu0 0.0
      %980 = vmatpush1.msra.mxu0 0.0
      %981 = vmatprep.subr.mxu0 0.0
      %982 = vmatpush1.msra.mxu0 0.0
      %983 = vmatprep.subr.mxu0 0.0
      %984 = vmatpush1.msra.mxu0 0.0
      %985 = vmatprep.subr.mxu0 0.0
      %986 = vmatpush1.msra.mxu0 0.0
      %987 = vmatprep.subr.mxu0 0.0
      %988 = vmatpush1.msra.mxu0 0.0
      %989 = vmatprep.subr.mxu0 0.0
      %990 = vmatpush1.msra.mxu0 0.0
      %991 = vmatprep.subr.mxu0 0.0
      %992 = vmatpush1.msra.mxu0 0.0
      %993 = vmatprep.subr.mxu0 0.0
      %994 = vmatpush1.msra.mxu0 0.0
      %995 = vmatprep.subr.mxu0 0.0
      %996 = vmatpush1.msra.mxu0 0.0
      %997 = vmatprep.subr.mxu0 0.0
      %998 = vmatpush1.msra.mxu0 0.0
      %999 = vmatprep.subr.mxu0 0.0
      %1000 = vmatpush1.msra.mxu0 0.0
      %1001 = vmatprep.subr.mxu0 0.0
      %1002 = vmatpush1.msra.mxu0 0.0
      %1003 = vmatprep.subr.mxu0 0.0
      %1004 = vmatpush1.msra.mxu0 0.0
      %1005 = vmatprep.subr.mxu0 0.0
      %1006 = vmatpush1.msra.mxu0 0.0
      %1007 = vmatprep.subr.mxu0 0.0
      %1008 = vmatpush1.msra.mxu0 0.0
      %1009 = vmatprep.subr.mxu0 0.0
      %1010 = vmatpush1.msra.mxu0 0.0
      %1011 = vmatprep.subr.mxu0 0.0
      %1012 = vmatpush1.msra.mxu0 0.0
      %1013 = vmatprep.subr.mxu0 0.0
      %1014 = vmatpush1.msra.mxu0 0.0
      %1015 = vmatprep.subr.mxu0 0.0
      %1016 = vmatpush1.msra.mxu0 0.0
      %1017 = vmatprep.subr.mxu0 0.0
      %1018 = vmatpush1.msra.mxu0 0.0
      %1019 = vmatprep.subr.mxu0 0.0
      %1020 = vmatpush1.msra.mxu0 0.0
      %1021 = vmatprep.subr.mxu0 0.0
      %1022 = vmatpush1.msra.mxu0 0.0
      %1023 = vmatprep.subr.mxu0 0.0
      %1024 = vmatpush1.msra.mxu0 0.0
      %1025 = vmatprep.subr.mxu0 0.0
      %1026 = vmatpush1.msra.mxu0 0.0
      %1027 = vmatprep.subr.mxu0 0.0
      %1028 = vmatpush1.msra.mxu0 0.0
      %1029 = vmatprep.mubr.f32.mxu0 0.0
      %1030 = vmatmul.mubr.f32.gmra.mrb[0].mxu0 %v914
      %v1031 = vpop.f32.mrb[0].mxu0
      %v1032 = vadd.f32 0.0, %v1031
      %v1033 = vpop.f32.mrb[0].mxu0
      %1034 = vmatprep.mubr.f32.mxu0 0.0
      %1035 = vmatmul.mubr.f32.gmra.mrb[0].mxu0 %v917
      %v1036 = vpop.f32.mrb[0].mxu0
      %v1037 = vadd.f32 0.0, %v1036
      %v1038 = vpop.f32.mrb[0].mxu0
      %1039 = vmatprep.mubr.f32.mxu0 0.0
      %1040 = vmatmul.mubr.f32.gmra.mrb[0].mxu0 %v920
      %v1041 = vpop.f32.mrb[0].mxu0
      %v1042 = vadd.f32 0.0, %v1041
      %v1043 = vpop.f32.mrb[0].mxu0
      %1044 = vmatprep.mubr.f32.mxu0 0.0
      %1045 = vmatmul.mubr.f32.gmra.mrb[0].mxu0 %v923
      %v1046 = vpop.f32.mrb[0].mxu0
      %v1047 = vadd.f32 0.0, %v1046
      %v1048 = vpop.f32.mrb[0].mxu0
      %1049 = vmatprep.mubr.f32.mxu0 0.0
      %1050 = vmatmul.mubr.f32.gmra.mrb[0].mxu0 %v926
      %v1051 = vpop.f32.mrb[0].mxu0
      %v1052 = vadd.f32 0.0, %v1051
      %v1053 = vpop.f32.mrb[0].mxu0
      %1054 = vmatprep.mubr.f32.mxu0 0.0
      %1055 = vmatmul.mubr.f32.gmra.mrb[0].mxu0 %v929
      %v1056 = vpop.f32.mrb[0].mxu0
      %v1057 = vadd.f32 0.0, %v1056
      %v1058 = vpop.f32.mrb[0].mxu0
      %1059 = vmatprep.mubr.f32.mxu0 0.0
      %1060 = vmatmul.mubr.f32.gmra.mrb[0].mxu0 %v932
      %v1061 = vpop.f32.mrb[0].mxu0
      %v1062 = vadd.f32 0.0, %v1061
      %v1063 = vpop.f32.mrb[0].mxu0
      %1064 = vmatprep.mubr.f32.mxu0 0.0
      %1065 = vmatmul.mubr.f32.gmra.mrb[0].mxu0 %v935
      %v1066 = vpop.f32.mrb[0].mxu0
      %v1067 = vadd.f32 0.0, %v1066
      %v1068 = vpop.f32.mrb[0].mxu0
      %1069 = vmatprep.mubr.f32.mxu0 0.0
      %1070 = vmatmul.mubr.f32.gmra.mrb[0].mxu0 %v938
      %v1071 = vpop.f32.mrb[0].mxu0
      %v1072 = vadd.f32 0.0, %v1071
      %v1073 = vpop.f32.mrb[0].mxu0
      %1074 = vmatprep.mubr.f32.mxu0 0.0
      %1075 = vmatmul.mubr.f32.gmra.mrb[0].mxu0 %v941
      %v1076 = vpop.f32.mrb[0].mxu0
      %v1077 = vadd.f32 0.0, %v1076
      %v1078 = vpop.f32.mrb[0].mxu0
      %1079 = vmatprep.mubr.f32.mxu0 0.0
      %1080 = vmatmul.mubr.f32.gmra.mrb[0].mxu0 %v944
      %v1081 = vpop.f32.mrb[0].mxu0
      %v1082 = vadd.f32 0.0, %v1081
      %v1083 = vpop.f32.mrb[0].mxu0
      %1084 = vmatprep.mubr.f32.mxu0 0.0
      %1085 = vmatmul.mubr.f32.gmra.mrb[0].mxu0 %v947
      %v1086 = vpop.f32.mrb[0].mxu0
      %v1087 = vadd.f32 0.0, %v1086
      %v1088 = vpop.f32.mrb[0].mxu0
      %1089 = vmatprep.mubr.f32.mxu0 0.0
      %1090 = vmatmul.mubr.f32.gmra.mrb[0].mxu0 %v950
      %v1091 = vpop.f32.mrb[0].mxu0
      %v1092 = vadd.f32 0.0, %v1091
      %v1093 = vpop.f32.mrb[0].mxu0
      %1094 = vmatprep.mubr.f32.mxu0 0.0
      %1095 = vmatmul.mubr.f32.gmra.mrb[0].mxu0 %v953
      %v1096 = vpop.f32.mrb[0].mxu0
      %v1097 = vadd.f32 0.0, %v1096
      %v1098 = vpop.f32.mrb[0].mxu0
      %1099 = vmatprep.mubr.f32.mxu0 0.0
      %1100 = vmatmul.mubr.f32.gmra.mrb[0].mxu0 %v956
      %v1101 = vpop.f32.mrb[0].mxu0
      %v1102 = vadd.f32 0.0, %v1101
      %v1103 = vpop.f32.mrb[0].mxu0
      %1104 = vmatprep.mubr.f32.mxu0 0.0
      %1105 = vmatmul.mubr.f32.gmra.mrb[0].mxu0 %v959
      %v1106 = vpop.f32.mrb[0].mxu0
      %v1107 = vadd.f32 0.0, %v1106
      %v1108 = vpop.f32.mrb[0].mxu0
      %1109 = vdwg.mxu0
      %v1111 = vsel %vm912, %v683, 0
      %v1114 = vsel %vm912, %v684, 0
      %v1117 = vsel %vm912, %v685, 0
      %v1120 = vsel %vm912, %v686, 0
      %v1123 = vsel %vm912, %v687, 0
      %v1126 = vsel %vm912, %v688, 0
      %v1129 = vsel %vm912, %v689, 0
      %v1132 = vsel %vm912, %v690, 0
      %v1135 = vsel %vm912, %v691, 0
      %v1138 = vsel %vm912, %v692, 0
      %v1141 = vsel %vm912, %v693, 0
      %v1144 = vsel %vm912, %v694, 0
      %v1147 = vsel %vm912, %v695, 0
      %v1150 = vsel %vm912, %v696, 0
      %v1153 = vsel %vm912, %v697, 0
      %v1156 = vsel %vm912, %v698, 0
      %v1159 = vsel %vm961, %v700, 0
      %1161 = vmatprep.subr.mxu0 0.0
      %1162 = vmatpush1.msra.mxu0 %v699
      %1163 = vmatprep.subr.mxu0 0.0
      %1164 = vmatpush1.msra.mxu0 %v1159
      %1165 = vmatprep.subr.mxu0 0.0
      %1166 = vmatpush1.msra.mxu0 0.0
      %1167 = vmatprep.subr.mxu0 0.0
      %1168 = vmatpush1.msra.mxu0 0.0
      %1169 = vmatprep.subr.mxu0 0.0
      %1170 = vmatpush1.msra.mxu0 0.0
      %1171 = vmatprep.subr.mxu0 0.0
      %1172 = vmatpush1.msra.mxu0 0.0
      %1173 = vmatprep.subr.mxu0 0.0
      %1174 = vmatpush1.msra.mxu0 0.0
      %1175 = vmatprep.subr.mxu0 0.0
      %1176 = vmatpush1.msra.mxu0 0.0
      %1177 = vmatprep.subr.mxu0 0.0
      %1178 = vmatpush1.msra.mxu0 0.0
      %1179 = vmatprep.subr.mxu0 0.0
      %1180 = vmatpush1.msra.mxu0 0.0
      %1181 = vmatprep.subr.mxu0 0.0
      %1182 = vmatpush1.msra.mxu0 0.0
      %1183 = vmatprep.subr.mxu0 0.0
      %1184 = vmatpush1.msra.mxu0 0.0
      %1185 = vmatprep.subr.mxu0 0.0
      %1186 = vmatpush1.msra.mxu0 0.0
      %1187 = vmatprep.subr.mxu0 0.0
      %1188 = vmatpush1.msra.mxu0 0.0
      %1189 = vmatprep.subr.mxu0 0.0
      %1190 = vmatpush1.msra.mxu0 0.0
      %1191 = vmatprep.subr.mxu0 0.0
      %1192 = vmatpush1.msra.mxu0 0.0
      %1193 = vmatprep.subr.mxu0 0.0
      %1194 = vmatpush1.msra.mxu0 0.0
      %1195 = vmatprep.subr.mxu0 0.0
      %1196 = vmatpush1.msra.mxu0 0.0
      %1197 = vmatprep.subr.mxu0 0.0
      %1198 = vmatpush1.msra.mxu0 0.0
      %1199 = vmatprep.subr.mxu0 0.0
      %1200 = vmatpush1.msra.mxu0 0.0
      %1201 = vmatprep.subr.mxu0 0.0
      %1202 = vmatpush1.msra.mxu0 0.0
      %1203 = vmatprep.subr.mxu0 0.0
      %1204 = vmatpush1.msra.mxu0 0.0
      %1205 = vmatprep.subr.mxu0 0.0
      %1206 = vmatpush1.msra.mxu0 0.0
      %1207 = vmatprep.subr.mxu0 0.0
      %1208 = vmatpush1.msra.mxu0 0.0
      %1209 = vmatprep.subr.mxu0 0.0
      %1210 = vmatpush1.msra.mxu0 0.0
      %1211 = vmatprep.subr.mxu0 0.0
      %1212 = vmatpush1.msra.mxu0 0.0
      %1213 = vmatprep.subr.mxu0 0.0
      %1214 = vmatpush1.msra.mxu0 0.0
      %1215 = vmatprep.subr.mxu0 0.0
      %1216 = vmatpush1.msra.mxu0 0.0
      %1217 = vmatprep.subr.mxu0 0.0
      %1218 = vmatpush1.msra.mxu0 0.0
      %1219 = vmatprep.subr.mxu0 0.0
      %1220 = vmatpush1.msra.mxu0 0.0
      %1221 = vmatprep.subr.mxu0 0.0
      %1222 = vmatpush1.msra.mxu0 0.0
      %1223 = vmatprep.subr.mxu0 0.0
      %1224 = vmatpush1.msra.mxu0 0.0
      %1225 = vmatprep.mubr.f32.mxu0 0.0
      %1226 = vmatmul.mubr.f32.gmra.mrb[0].mxu0 %v1111
      %v1227 = vpop.f32.mrb[0].mxu0
      %v1228 = vadd.f32 %v1032, %v1227
      %v1229 = vpop.f32.mrb[0].mxu0
      %1230 = vmatprep.mubr.f32.mxu0 0.0
      %1231 = vmatmul.mubr.f32.gmra.mrb[0].mxu0 %v1114
      %v1232 = vpop.f32.mrb[0].mxu0
      %v1233 = vadd.f32 %v1037, %v1232
      %v1234 = vpop.f32.mrb[0].mxu0
      %1235 = vmatprep.mubr.f32.mxu0 0.0
      %1236 = vmatmul.mubr.f32.gmra.mrb[0].mxu0 %v1117
      %v1237 = vpop.f32.mrb[0].mxu0
      %v1238 = vadd.f32 %v1042, %v1237
      %v1239 = vpop.f32.mrb[0].mxu0
      %1240 = vmatprep.mubr.f32.mxu0 0.0
      %1241 = vmatmul.mubr.f32.gmra.mrb[0].mxu0 %v1120
      %v1242 = vpop.f32.mrb[0].mxu0
      %v1243 = vadd.f32 %v1047, %v1242
      %v1244 = vpop.f32.mrb[0].mxu0
      %1245 = vmatprep.mubr.f32.mxu0 0.0
      %1246 = vmatmul.mubr.f32.gmra.mrb[0].mxu0 %v1123
      %v1247 = vpop.f32.mrb[0].mxu0
      %v1248 = vadd.f32 %v1052, %v1247
      %v1249 = vpop.f32.mrb[0].mxu0
      %1250 = vmatprep.mubr.f32.mxu0 0.0
      %1251 = vmatmul.mubr.f32.gmra.mrb[0].mxu0 %v1126
      %v1252 = vpop.f32.mrb[0].mxu0
      %v1253 = vadd.f32 %v1057, %v1252
      %v1254 = vpop.f32.mrb[0].mxu0
      %1255 = vmatprep.mubr.f32.mxu0 0.0
      %1256 = vmatmul.mubr.f32.gmra.mrb[0].mxu0 %v1129
      %v1257 = vpop.f32.mrb[0].mxu0
      %v1258 = vadd.f32 %v1062, %v1257
      %v1259 = vpop.f32.mrb[0].mxu0
      %1260 = vmatprep.mubr.f32.mxu0 0.0
      %1261 = vmatmul.mubr.f32.gmra.mrb[0].mxu0 %v1132
      %v1262 = vpop.f32.mrb[0].mxu0
      %v1263 = vadd.f32 %v1067, %v1262
      %v1264 = vpop.f32.mrb[0].mxu0
      %1265 = vmatprep.mubr.f32.mxu0 0.0
      %1266 = vmatmul.mubr.f32.gmra.mrb[0].mxu0 %v1135
      %v1267 = vpop.f32.mrb[0].mxu0
      %v1268 = vadd.f32 %v1072, %v1267
      %v1269 = vpop.f32.mrb[0].mxu0
      %1270 = vmatprep.mubr.f32.mxu0 0.0
      %1271 = vmatmul.mubr.f32.gmra.mrb[0].mxu0 %v1138
      %v1272 = vpop.f32.mrb[0].mxu0
      %v1273 = vadd.f32 %v1077, %v1272
      %v1274 = vpop.f32.mrb[0].mxu0
      %1275 = vmatprep.mubr.f32.mxu0 0.0
      %1276 = vmatmul.mubr.f32.gmra.mrb[0].mxu0 %v1141
      %v1277 = vpop.f32.mrb[0].mxu0
      %v1278 = vadd.f32 %v1082, %v1277
      %v1279 = vpop.f32.mrb[0].mxu0
      %1280 = vmatprep.mubr.f32.mxu0 0.0
      %1281 = vmatmul.mubr.f32.gmra.mrb[0].mxu0 %v1144
      %v1282 = vpop.f32.mrb[0].mxu0
      %v1283 = vadd.f32 %v1087, %v1282
      %v1284 = vpop.f32.mrb[0].mxu0
      %1285 = vmatprep.mubr.f32.mxu0 0.0
      %1286 = vmatmul.mubr.f32.gmra.mrb[0].mxu0 %v1147
      %v1287 = vpop.f32.mrb[0].mxu0
      %v1288 = vadd.f32 %v1092, %v1287
      %v1289 = vpop.f32.mrb[0].mxu0
      %1290 = vmatprep.mubr.f32.mxu0 0.0
      %1291 = vmatmul.mubr.f32.gmra.mrb[0].mxu0 %v1150
      %v1292 = vpop.f32.mrb[0].mxu0
      %v1293 = vadd.f32 %v1097, %v1292
      %v1294 = vpop.f32.mrb[0].mxu0
      %1295 = vmatprep.mubr.f32.mxu0 0.0
      %1296 = vmatmul.mubr.f32.gmra.mrb[0].mxu0 %v1153
      %v1297 = vpop.f32.mrb[0].mxu0
      %v1298 = vadd.f32 %v1102, %v1297
      %v1299 = vpop.f32.mrb[0].mxu0
      %1300 = vmatprep.mubr.f32.mxu0 0.0
      %1301 = vmatmul.mubr.f32.gmra.mrb[0].mxu0 %v1156
      %v1302 = vpop.f32.mrb[0].mxu0
      %v1303 = vadd.f32 %v1107, %v1302
      %v1304 = vpop.f32.mrb[0].mxu0
      %1305 = vdwg.mxu0
      %s1306 = scalar_lea.vmem [#allocation2], 64
      %v1307 = vld [vmem:[%s1306 + $0x7] sm:$0xff]
      %v1308 = vld [vmem:[%s1306 + $0xf] sm:$0xff]
      %v1309 = vld [vmem:[%s1306 + $0x27] sm:$0xff]
      %v1310 = vld [vmem:[%s1306 + $0x2f] sm:$0xff]
      %v1311 = vld [vmem:[%s1306 + $0x47] sm:$0xff]
      %v1312 = vld [vmem:[%s1306 + $0x4f] sm:$0xff]
      %v1313 = vld [vmem:[%s1306 + $0x67] sm:$0xff]
      %v1314 = vld [vmem:[%s1306 + $0x6f] sm:$0xff]
      %v1315 = vld [vmem:[%s1306 + $0x87] sm:$0xff]
      %v1316 = vld [vmem:[%s1306 + $0x8f] sm:$0xff]
      %v1317 = vld [vmem:[%s1306 + $0xa7] sm:$0xff]
      %v1318 = vld [vmem:[%s1306 + $0xaf] sm:$0xff]
      %v1319 = vld [vmem:[%s1306 + $0xc7] sm:$0xff]
      %v1320 = vld [vmem:[%s1306 + $0xcf] sm:$0xff]
      %v1321 = vld [vmem:[%s1306 + $0xe7] sm:$0xff]
      %v1322 = vld [vmem:[%s1306 + $0xef] sm:$0xff]
      %v1323 = vld [vmem:[%s1306 + $0x8] sm:$0xff]
      %v1324 = vld [vmem:[%s1306 + $0x10] sm:$0xff]
      %v1325 = vld [vmem:[%s1306 + $0x28] sm:$0xff]
      %v1326 = vld [vmem:[%s1306 + $0x30] sm:$0xff]
      %v1327 = vld [vmem:[%s1306 + $0x48] sm:$0xff]
      %v1328 = vld [vmem:[%s1306 + $0x50] sm:$0xff]
      %v1329 = vld [vmem:[%s1306 + $0x68] sm:$0xff]
      %v1330 = vld [vmem:[%s1306 + $0x70] sm:$0xff]
      %v1331 = vld [vmem:[%s1306 + $0x88] sm:$0xff]
      %v1332 = vld [vmem:[%s1306 + $0x90] sm:$0xff]
      %v1333 = vld [vmem:[%s1306 + $0xa8] sm:$0xff]
      %v1334 = vld [vmem:[%s1306 + $0xb0] sm:$0xff]
      %v1335 = vld [vmem:[%s1306 + $0xc8] sm:$0xff]
      %v1336 = vld [vmem:[%s1306 + $0xd0] sm:$0xff]
      %v1337 = vld [vmem:[%s1306 + $0xe8] sm:$0xff]
      %v1338 = vld [vmem:[%s1306 + $0xf0] sm:$0xff]
      %v1339 = vld [vmem:[%s1306 + $0x9] sm:$0xff]
      %v1340 = vld [vmem:[%s1306 + $0x11] sm:$0xff]
      %v1341 = vld [vmem:[%s1306 + $0x29] sm:$0xff]
      %v1342 = vld [vmem:[%s1306 + $0x31] sm:$0xff]
      %v1343 = vld [vmem:[%s1306 + $0x49] sm:$0xff]
      %v1344 = vld [vmem:[%s1306 + $0x51] sm:$0xff]
      %v1345 = vld [vmem:[%s1306 + $0x69] sm:$0xff]
      %v1346 = vld [vmem:[%s1306 + $0x71] sm:$0xff]
      %v1347 = vld [vmem:[%s1306 + $0x89] sm:$0xff]
      %v1348 = vld [vmem:[%s1306 + $0x91] sm:$0xff]
      %v1349 = vld [vmem:[%s1306 + $0xa9] sm:$0xff]
      %v1350 = vld [vmem:[%s1306 + $0xb1] sm:$0xff]
      %v1351 = vld [vmem:[%s1306 + $0xc9] sm:$0xff]
      %v1352 = vld [vmem:[%s1306 + $0xd1] sm:$0xff]
      %v1353 = vld [vmem:[%s1306 + $0xe9] sm:$0xff]
      %v1354 = vld [vmem:[%s1306 + $0xf1] sm:$0xff]
      %1371 = vrot.lane.b32.xlu0 %v1323, 4
      %v1372 = vpop.permute.xlu0 %1371
      %1373 = vrot.lane.b32.xlu0 %v1324, 4
      %v1374 = vpop.permute.xlu0 %1373
      %1375 = vrot.lane.b32.xlu0 %v1325, 4
      %v1376 = vpop.permute.xlu0 %1375
      %1377 = vrot.lane.b32.xlu0 %v1326, 4
      %v1378 = vpop.permute.xlu0 %1377
      %1379 = vrot.lane.b32.xlu0 %v1327, 4
      %v1380 = vpop.permute.xlu0 %1379
      %1381 = vrot.lane.b32.xlu0 %v1328, 4
      %v1382 = vpop.permute.xlu0 %1381
      %1383 = vrot.lane.b32.xlu0 %v1329, 4
      %v1384 = vpop.permute.xlu0 %1383
      %1385 = vrot.lane.b32.xlu0 %v1330, 4
      %v1386 = vpop.permute.xlu0 %1385
      %1387 = vrot.lane.b32.xlu0 %v1331, 4
      %v1388 = vpop.permute.xlu0 %1387
      %1389 = vrot.lane.b32.xlu0 %v1332, 4
      %v1390 = vpop.permute.xlu0 %1389
      %1391 = vrot.lane.b32.xlu0 %v1333, 4
      %v1392 = vpop.permute.xlu0 %1391
      %1393 = vrot.lane.b32.xlu0 %v1334, 4
      %v1394 = vpop.permute.xlu0 %1393
      %1395 = vrot.lane.b32.xlu0 %v1335, 4
      %v1396 = vpop.permute.xlu0 %1395
      %1397 = vrot.lane.b32.xlu0 %v1336, 4
      %v1398 = vpop.permute.xlu0 %1397
      %1399 = vrot.lane.b32.xlu0 %v1337, 4
      %v1400 = vpop.permute.xlu0 %1399
      %1401 = vrot.lane.b32.xlu0 %v1338, 4
      %v1402 = vpop.permute.xlu0 %1401
      %1435 = vrot.lane.b32.xlu0 %v1339, 8
      %v1436 = vpop.permute.xlu0 %1435
      %1437 = vrot.lane.b32.xlu0 %v1340, 8
      %v1438 = vpop.permute.xlu0 %1437
      %1439 = vrot.lane.b32.xlu0 %v1341, 8
      %v1440 = vpop.permute.xlu0 %1439
      %1441 = vrot.lane.b32.xlu0 %v1342, 8
      %v1442 = vpop.permute.xlu0 %1441
      %1443 = vrot.lane.b32.xlu0 %v1343, 8
      %v1444 = vpop.permute.xlu0 %1443
      %1445 = vrot.lane.b32.xlu0 %v1344, 8
      %v1446 = vpop.permute.xlu0 %1445
      %1447 = vrot.lane.b32.xlu0 %v1345, 8
      %v1448 = vpop.permute.xlu0 %1447
      %1449 = vrot.lane.b32.xlu0 %v1346, 8
      %v1450 = vpop.permute.xlu0 %1449
      %1451 = vrot.lane.b32.xlu0 %v1347, 8
      %v1452 = vpop.permute.xlu0 %1451
      %1453 = vrot.lane.b32.xlu0 %v1348, 8
      %v1454 = vpop.permute.xlu0 %1453
      %1455 = vrot.lane.b32.xlu0 %v1349, 8
      %v1456 = vpop.permute.xlu0 %1455
      %1457 = vrot.lane.b32.xlu0 %v1350, 8
      %v1458 = vpop.permute.xlu0 %1457
      %1459 = vrot.lane.b32.xlu0 %v1351, 8
      %v1460 = vpop.permute.xlu0 %1459
      %1461 = vrot.lane.b32.xlu0 %v1352, 8
      %v1462 = vpop.permute.xlu0 %1461
      %1463 = vrot.lane.b32.xlu0 %v1353, 8
      %v1464 = vpop.permute.xlu0 %1463
      %1465 = vrot.lane.b32.xlu0 %v1354, 8
      %v1466 = vpop.permute.xlu0 %1465
      %v1483 = vsel %vm446, %v1307, %v1372
      %v1484 = vsel %vm446, %v1308, %v1374
      %v1485 = vsel %vm446, %v1309, %v1376
      %v1486 = vsel %vm446, %v1310, %v1378
      %v1487 = vsel %vm446, %v1311, %v1380
      %v1488 = vsel %vm446, %v1312, %v1382
      %v1489 = vsel %vm446, %v1313, %v1384
      %v1490 = vsel %vm446, %v1314, %v1386
      %v1491 = vsel %vm446, %v1315, %v1388
      %v1492 = vsel %vm446, %v1316, %v1390
      %v1493 = vsel %vm446, %v1317, %v1392
      %v1494 = vsel %vm446, %v1318, %v1394
      %v1495 = vsel %vm446, %v1319, %v1396
      %v1496 = vsel %vm446, %v1320, %v1398
      %v1497 = vsel %vm446, %v1321, %v1400
      %v1498 = vsel %vm446, %v1322, %v1402
      %v1499 = vsel %vm682, %v1483, %v1436
      %v1500 = vsel %vm682, %v1484, %v1438
      %v1501 = vsel %vm682, %v1485, %v1440
      %v1502 = vsel %vm682, %v1486, %v1442
      %v1503 = vsel %vm682, %v1487, %v1444
      %v1504 = vsel %vm682, %v1488, %v1446
      %v1505 = vsel %vm682, %v1489, %v1448
      %v1506 = vsel %vm682, %v1490, %v1450
      %v1507 = vsel %vm682, %v1491, %v1452
      %v1508 = vsel %vm682, %v1492, %v1454
      %v1509 = vsel %vm682, %v1493, %v1456
      %v1510 = vsel %vm682, %v1494, %v1458
      %v1511 = vsel %vm682, %v1495, %v1460
      %v1512 = vsel %vm682, %v1496, %v1462
      %v1513 = vsel %vm682, %v1497, %v1464
      %v1514 = vsel %vm682, %v1498, %v1466
      %s1515 = scalar_lea.vmem %s3, 32
      %v1516 = vld [vmem:[%s1515] sm:$0xff]
      %v1517 = vld [vmem:[%s1515 + $0x8] sm:$0xf]
      %v1519 = vsel %vm912, %v1499, 0
      %v1522 = vsel %vm912, %v1500, 0
      %v1525 = vsel %vm912, %v1501, 0
      %v1528 = vsel %vm912, %v1502, 0
      %v1531 = vsel %vm912, %v1503, 0
      %v1534 = vsel %vm912, %v1504, 0
      %v1537 = vsel %vm912, %v1505, 0
      %v1540 = vsel %vm912, %v1506, 0
      %v1543 = vsel %vm912, %v1507, 0
      %v1546 = vsel %vm912, %v1508, 0
      %v1549 = vsel %vm912, %v1509, 0
      %v1552 = vsel %vm912, %v1510, 0
      %v1555 = vsel %vm912, %v1511, 0
      %v1558 = vsel %vm912, %v1512, 0
      %v1561 = vsel %vm912, %v1513, 0
      %v1564 = vsel %vm912, %v1514, 0
      %v1567 = vsel %vm961, %v1517, 0
      %1569 = vmatprep.subr.mxu0 0.0
      %1570 = vmatpush1.msra.mxu0 %v1516
      %1571 = vmatprep.subr.mxu0 0.0
      %1572 = vmatpush1.msra.mxu0 %v1567
      %1573 = vmatprep.subr.mxu0 0.0
      %1574 = vmatpush1.msra.mxu0 0.0
      %1575 = vmatprep.subr.mxu0 0.0
      %1576 = vmatpush1.msra.mxu0 0.0
      %1577 = vmatprep.subr.mxu0 0.0
      %1578 = vmatpush1.msra.mxu0 0.0
      %1579 = vmatprep.subr.mxu0 0.0
      %1580 = vmatpush1.msra.mxu0 0.0
      %1581 = vmatprep.subr.mxu0 0.0
      %1582 = vmatpush1.msra.mxu0 0.0
      %1583 = vmatprep.subr.mxu0 0.0
      %1584 = vmatpush1.msra.mxu0 0.0
      %1585 = vmatprep.subr.mxu0 0.0
      %1586 = vmatpush1.msra.mxu0 0.0
      %1587 = vmatprep.subr.mxu0 0.0
      %1588 = vmatpush1.msra.mxu0 0.0
      %1589 = vmatprep.subr.mxu0 0.0
      %1590 = vmatpush1.msra.mxu0 0.0
      %1591 = vmatprep.subr.mxu0 0.0
      %1592 = vmatpush1.msra.mxu0 0.0
      %1593 = vmatprep.subr.mxu0 0.0
      %1594 = vmatpush1.msra.mxu0 0.0
      %1595 = vmatprep.subr.mxu0 0.0
      %1596 = vmatpush1.msra.mxu0 0.0
      %1597 = vmatprep.subr.mxu0 0.0
      %1598 = vmatpush1.msra.mxu0 0.0
      %1599 = vmatprep.subr.mxu0 0.0
      %1600 = vmatpush1.msra.mxu0 0.0
      %1601 = vmatprep.subr.mxu0 0.0
      %1602 = vmatpush1.msra.mxu0 0.0
      %1603 = vmatprep.subr.mxu0 0.0
      %1604 = vmatpush1.msra.mxu0 0.0
      %1605 = vmatprep.subr.mxu0 0.0
      %1606 = vmatpush1.msra.mxu0 0.0
      %1607 = vmatprep.subr.mxu0 0.0
      %1608 = vmatpush1.msra.mxu0 0.0
      %1609 = vmatprep.subr.mxu0 0.0
      %1610 = vmatpush1.msra.mxu0 0.0
      %1611 = vmatprep.subr.mxu0 0.0
      %1612 = vmatpush1.msra.mxu0 0.0
      %1613 = vmatprep.subr.mxu0 0.0
      %1614 = vmatpush1.msra.mxu0 0.0
      %1615 = vmatprep.subr.mxu0 0.0
      %1616 = vmatpush1.msra.mxu0 0.0
      %1617 = vmatprep.subr.mxu0 0.0
      %1618 = vmatpush1.msra.mxu0 0.0
      %1619 = vmatprep.subr.mxu0 0.0
      %1620 = vmatpush1.msra.mxu0 0.0
      %1621 = vmatprep.subr.mxu0 0.0
      %1622 = vmatpush1.msra.mxu0 0.0
      %1623 = vmatprep.subr.mxu0 0.0
      %1624 = vmatpush1.msra.mxu0 0.0
      %1625 = vmatprep.subr.mxu0 0.0
      %1626 = vmatpush1.msra.mxu0 0.0
      %1627 = vmatprep.subr.mxu0 0.0
      %1628 = vmatpush1.msra.mxu0 0.0
      %1629 = vmatprep.subr.mxu0 0.0
      %1630 = vmatpush1.msra.mxu0 0.0
      %1631 = vmatprep.subr.mxu0 0.0
      %1632 = vmatpush1.msra.mxu0 0.0
      %1633 = vmatprep.mubr.f32.mxu0 0.0
      %1634 = vmatmul.mubr.f32.gmra.mrb[0].mxu0 %v1519
      %v1635 = vpop.f32.mrb[0].mxu0
      %v1636 = vadd.f32 0.0, %v1635
      %v1637 = vpop.f32.mrb[0].mxu0
      %1638 = vmatprep.mubr.f32.mxu0 0.0
      %1639 = vmatmul.mubr.f32.gmra.mrb[0].mxu0 %v1522
      %v1640 = vpop.f32.mrb[0].mxu0
      %v1641 = vadd.f32 0.0, %v1640
      %v1642 = vpop.f32.mrb[0].mxu0
      %1643 = vmatprep.mubr.f32.mxu0 0.0
      %1644 = vmatmul.mubr.f32.gmra.mrb[0].mxu0 %v1525
      %v1645 = vpop.f32.mrb[0].mxu0
      %v1646 = vadd.f32 0.0, %v1645
      %v1647 = vpop.f32.mrb[0].mxu0
      %1648 = vmatprep.mubr.f32.mxu0 0.0
      %1649 = vmatmul.mubr.f32.gmra.mrb[0].mxu0 %v1528
      %v1650 = vpop.f32.mrb[0].mxu0
      %v1651 = vadd.f32 0.0, %v1650
      %v1652 = vpop.f32.mrb[0].mxu0
      %1653 = vmatprep.mubr.f32.mxu0 0.0
      %1654 = vmatmul.mubr.f32.gmra.mrb[0].mxu0 %v1531
      %v1655 = vpop.f32.mrb[0].mxu0
      %v1656 = vadd.f32 0.0, %v1655
      %v1657 = vpop.f32.mrb[0].mxu0
      %1658 = vmatprep.mubr.f32.mxu0 0.0
      %1659 = vmatmul.mubr.f32.gmra.mrb[0].mxu0 %v1534
      %v1660 = vpop.f32.mrb[0].mxu0
      %v1661 = vadd.f32 0.0, %v1660
      %v1662 = vpop.f32.mrb[0].mxu0
      %1663 = vmatprep.mubr.f32.mxu0 0.0
      %1664 = vmatmul.mubr.f32.gmra.mrb[0].mxu0 %v1537
      %v1665 = vpop.f32.mrb[0].mxu0
      %v1666 = vadd.f32 0.0, %v1665
      %v1667 = vpop.f32.mrb[0].mxu0
      %1668 = vmatprep.mubr.f32.mxu0 0.0
      %1669 = vmatmul.mubr.f32.gmra.mrb[0].mxu0 %v1540
      %v1670 = vpop.f32.mrb[0].mxu0
      %v1671 = vadd.f32 0.0, %v1670
      %v1672 = vpop.f32.mrb[0].mxu0
      %1673 = vmatprep.mubr.f32.mxu0 0.0
      %1674 = vmatmul.mubr.f32.gmra.mrb[0].mxu0 %v1543
      %v1675 = vpop.f32.mrb[0].mxu0
      %v1676 = vadd.f32 0.0, %v1675
      %v1677 = vpop.f32.mrb[0].mxu0
      %1678 = vmatprep.mubr.f32.mxu0 0.0
      %1679 = vmatmul.mubr.f32.gmra.mrb[0].mxu0 %v1546
      %v1680 = vpop.f32.mrb[0].mxu0
      %v1681 = vadd.f32 0.0, %v1680
      %v1682 = vpop.f32.mrb[0].mxu0
      %1683 = vmatprep.mubr.f32.mxu0 0.0
      %1684 = vmatmul.mubr.f32.gmra.mrb[0].mxu0 %v1549
      %v1685 = vpop.f32.mrb[0].mxu0
      %v1686 = vadd.f32 0.0, %v1685
      %v1687 = vpop.f32.mrb[0].mxu0
      %1688 = vmatprep.mubr.f32.mxu0 0.0
      %1689 = vmatmul.mubr.f32.gmra.mrb[0].mxu0 %v1552
      %v1690 = vpop.f32.mrb[0].mxu0
      %v1691 = vadd.f32 0.0, %v1690
      %v1692 = vpop.f32.mrb[0].mxu0
      %1693 = vmatprep.mubr.f32.mxu0 0.0
      %1694 = vmatmul.mubr.f32.gmra.mrb[0].mxu0 %v1555
      %v1695 = vpop.f32.mrb[0].mxu0
      %v1696 = vadd.f32 0.0, %v1695
      %v1697 = vpop.f32.mrb[0].mxu0
      %1698 = vmatprep.mubr.f32.mxu0 0.0
      %1699 = vmatmul.mubr.f32.gmra.mrb[0].mxu0 %v1558
      %v1700 = vpop.f32.mrb[0].mxu0
      %v1701 = vadd.f32 0.0, %v1700
      %v1702 = vpop.f32.mrb[0].mxu0
      %1703 = vmatprep.mubr.f32.mxu0 0.0
      %1704 = vmatmul.mubr.f32.gmra.mrb[0].mxu0 %v1561
      %v1705 = vpop.f32.mrb[0].mxu0
      %v1706 = vadd.f32 0.0, %v1705
      %v1707 = vpop.f32.mrb[0].mxu0
      %1708 = vmatprep.mubr.f32.mxu0 0.0
      %1709 = vmatmul.mubr.f32.gmra.mrb[0].mxu0 %v1564
      %v1710 = vpop.f32.mrb[0].mxu0
      %v1711 = vadd.f32 0.0, %v1710
      %v1712 = vpop.f32.mrb[0].mxu0
      %1713 = vdwg.mxu0
      %v1714 = vadd.f32 %v1228, %v1636
      %v1715 = vadd.f32 %v1233, %v1641
      %v1716 = vadd.f32 %v1238, %v1646
      %v1717 = vadd.f32 %v1243, %v1651
      %v1718 = vadd.f32 %v1248, %v1656
      %v1719 = vadd.f32 %v1253, %v1661
      %v1720 = vadd.f32 %v1258, %v1666
      %v1721 = vadd.f32 %v1263, %v1671
      %v1722 = vadd.f32 %v1268, %v1676
      %v1723 = vadd.f32 %v1273, %v1681
      %v1724 = vadd.f32 %v1278, %v1686
      %v1725 = vadd.f32 %v1283, %v1691
      %v1726 = vadd.f32 %v1288, %v1696
      %v1727 = vadd.f32 %v1293, %v1701
      %v1728 = vadd.f32 %v1298, %v1706
      %v1729 = vadd.f32 %v1303, %v1711
      %v1730 = vsel %vm682, %v1714, 0.0
      %v1731 = vsel %vm682, %v1715, 0.0
      %v1732 = vadd.f32 %v1730, %v1731
      %v1733 = vsel %vm682, %v1716, 0.0
      %v1734 = vadd.f32 %v1732, %v1733
      %v1735 = vsel %vm682, %v1717, 0.0
      %v1736 = vadd.f32 %v1734, %v1735
      %v1737 = vsel %vm682, %v1718, 0.0
      %v1738 = vadd.f32 %v1736, %v1737
      %v1739 = vsel %vm682, %v1719, 0.0
      %v1740 = vadd.f32 %v1738, %v1739
      %v1741 = vsel %vm682, %v1720, 0.0
      %v1742 = vadd.f32 %v1740, %v1741
      %v1743 = vsel %vm682, %v1721, 0.0
      %v1744 = vadd.f32 %v1742, %v1743
      %v1745 = vsel %vm682, %v1722, 0.0
      %v1746 = vadd.f32 %v1744, %v1745
      %v1747 = vsel %vm682, %v1723, 0.0
      %v1748 = vadd.f32 %v1746, %v1747
      %v1749 = vsel %vm682, %v1724, 0.0
      %v1750 = vadd.f32 %v1748, %v1749
      %v1751 = vsel %vm682, %v1725, 0.0
      %v1752 = vadd.f32 %v1750, %v1751
      %v1753 = vsel %vm682, %v1726, 0.0
      %v1754 = vadd.f32 %v1752, %v1753
      %v1755 = vsel %vm682, %v1727, 0.0
      %v1756 = vadd.f32 %v1754, %v1755
      %v1757 = vsel %vm682, %v1728, 0.0
      %v1758 = vadd.f32 %v1756, %v1757
      %v1759 = vsel %vm682, %v1729, 0.0
      %v1760 = vadd.f32 %v1758, %v1759
      %v1761 = vrot.slane %v1760, 4
      %v1762 = vadd.f32 %v1760, %v1761
      %v1763 = vrot.slane %v1762, 2
      %v1764 = vadd.f32 %v1762, %v1763
      %v1765 = vrot.slane %v1764, 1
      %v1766 = vadd.f32 %v1764, %v1765
      %v1767 = vmul.f32 %v1714, %v1714
      %v1768 = vmul.f32 %v1715, %v1715
      %v1769 = vmul.f32 %v1716, %v1716
      %v1770 = vmul.f32 %v1717, %v1717
      %v1771 = vmul.f32 %v1718, %v1718
      %v1772 = vmul.f32 %v1719, %v1719
      %v1773 = vmul.f32 %v1720, %v1720
      %v1774 = vmul.f32 %v1721, %v1721
      %v1775 = vmul.f32 %v1722, %v1722
      %v1776 = vmul.f32 %v1723, %v1723
      %v1777 = vmul.f32 %v1724, %v1724
      %v1778 = vmul.f32 %v1725, %v1725
      %v1779 = vmul.f32 %v1726, %v1726
      %v1780 = vmul.f32 %v1727, %v1727
      %v1781 = vmul.f32 %v1728, %v1728
      %v1782 = vmul.f32 %v1729, %v1729
      %v1783 = vsel %vm682, %v1767, 0.0
      %v1784 = vsel %vm682, %v1768, 0.0
      %v1785 = vadd.f32 %v1783, %v1784
      %v1786 = vsel %vm682, %v1769, 0.0
      %v1787 = vadd.f32 %v1785, %v1786
      %v1788 = vsel %vm682, %v1770, 0.0
      %v1789 = vadd.f32 %v1787, %v1788
      %v1790 = vsel %vm682, %v1771, 0.0
      %v1791 = vadd.f32 %v1789, %v1790
      %v1792 = vsel %vm682, %v1772, 0.0
      %v1793 = vadd.f32 %v1791, %v1792
      %v1794 = vsel %vm682, %v1773, 0.0
      %v1795 = vadd.f32 %v1793, %v1794
      %v1796 = vsel %vm682, %v1774, 0.0
      %v1797 = vadd.f32 %v1795, %v1796
      %v1798 = vsel %vm682, %v1775, 0.0
      %v1799 = vadd.f32 %v1797, %v1798
      %v1800 = vsel %vm682, %v1776, 0.0
      %v1801 = vadd.f32 %v1799, %v1800
      %v1802 = vsel %vm682, %v1777, 0.0
      %v1803 = vadd.f32 %v1801, %v1802
      %v1804 = vsel %vm682, %v1778, 0.0
      %v1805 = vadd.f32 %v1803, %v1804
      %v1806 = vsel %vm682, %v1779, 0.0
      %v1807 = vadd.f32 %v1805, %v1806
      %v1808 = vsel %vm682, %v1780, 0.0
      %v1809 = vadd.f32 %v1807, %v1808
      %v1810 = vsel %vm682, %v1781, 0.0
      %v1811 = vadd.f32 %v1809, %v1810
      %v1812 = vsel %vm682, %v1782, 0.0
      %v1813 = vadd.f32 %v1811, %v1812
      %v1814 = vrot.slane %v1813, 4
      %v1815 = vadd.f32 %v1813, %v1814
      %v1816 = vrot.slane %v1815, 2
      %v1817 = vadd.f32 %v1815, %v1816
      %v1818 = vrot.slane %v1817, 1
      %v1819 = vadd.f32 %v1817, %v1818
      %1820 = vst.msk [vmem:[%s404] sm:$0xff] %vm682, %v1714
      %1821 = vst.msk [vmem:[%s404 + $0x8] sm:$0xff] %vm682, %v1715
      %1822 = vst.msk [vmem:[%s404 + $0x10] sm:$0xff] %vm682, %v1716
      %1823 = vst.msk [vmem:[%s404 + $0x18] sm:$0xff] %vm682, %v1717
      %1824 = vst.msk [vmem:[%s404 + $0x20] sm:$0xff] %vm682, %v1718
      %1825 = vst.msk [vmem:[%s404 + $0x28] sm:$0xff] %vm682, %v1719
      %1826 = vst.msk [vmem:[%s404 + $0x30] sm:$0xff] %vm682, %v1720
      %1827 = vst.msk [vmem:[%s404 + $0x38] sm:$0xff] %vm682, %v1721
      %1828 = vst.msk [vmem:[%s404 + $0x40] sm:$0xff] %vm682, %v1722
      %1829 = vst.msk [vmem:[%s404 + $0x48] sm:$0xff] %vm682, %v1723
      %1830 = vst.msk [vmem:[%s404 + $0x50] sm:$0xff] %vm682, %v1724
      %1831 = vst.msk [vmem:[%s404 + $0x58] sm:$0xff] %vm682, %v1725
      %1832 = vst.msk [vmem:[%s404 + $0x60] sm:$0xff] %vm682, %v1726
      %1833 = vst.msk [vmem:[%s404 + $0x68] sm:$0xff] %vm682, %v1727
      %1834 = vst.msk [vmem:[%s404 + $0x70] sm:$0xff] %vm682, %v1728
      %1835 = vst.msk [vmem:[%s404 + $0x78] sm:$0xff] %vm682, %v1729
      %vm1836 = vcmask 1040384
      %v1837 = vsel %vm1836, %v1766, %v1819
      %vm1838 = vcmask 58368
      %1839 = vst.msk [vmem:[%s413] sm:$0x3] %vm1838, %v1837
      %s1840 = smul.u32 8, %s22
      %p1841 = scmp.lt.s32.totalorder %s21, 1
      %s1842 = scalar_select %p1841, %s21, 1
      %p1843 = scmp.lt.s32.totalorder %s1840, 15
      %s1844 = scalar_select %p1843, %s1840, 15
      %s1845 = smul.addr %s1844, 2
      %s1846 = smul.addr %s1842, 32
      %s1847 = sadd.s32 %s1845, %s1846
      %s1848 = smul.addr %s1847, 8
      %s1849 = scalar_lea.vmem %s4, %s1848
      %p1850 = scmp.lt.s32.totalorder %s21, 1
      %s1851 = scalar_select %p1850, %s21, 1
      %p1852 = scmp.lt.s32.totalorder %s22, 1
      %s1853 = scalar_select %p1852, %s22, 1
      %s1854 = smul.addr %s1851, 2
      %s1855 = sadd.s32 %s1853, %s1854
      %s1856 = smul.addr %s1855, 2
      %s1857 = scalar_lea.vmem %s5, %s1856
      // Predicated region
      $region37: #{_bdouble_conv_impl.3} parent=35 // pred_check
        %p1858 = pneg %p170
      $region38: #{_bdouble_conv_impl.3} parent=35 // pred_check_branch
        %1860 = sbr.rel (%p1858) target = $region40
      $region39: #{_bdouble_conv_impl.3} parent=35 // pred_region
        %s1861 = smul.u32 8, %s22
      $region40: #{_bdouble_conv_impl.3} parent=35 // pred_fallthru
        _
      // Predicated region
      $region41: #{_bdouble_conv_impl.3} parent=35 // pred_check
        %p1862 = pneg %p198
      $region42: #{_bdouble_conv_impl.3} parent=35 // pred_check_branch
        %1864 = sbr.rel (%p1862) target = $region44
      $region43: #{_bdouble_conv_impl.3} parent=35 // pred_region
        _
      $region44: #{_bdouble_conv_impl.3} parent=35 // pred_fallthru
        _
    $region36: #{_bdouble_conv_impl.3} parent=5 // pred_fallthru
      _
    %p1865 = scmp.le.s32.totalorder 2, %s12
    // Predicated region
    $region45: #{_bdouble_conv_impl.3} parent=5 // pred_check
      %p1866 = pneg %p1865
    $region46: #{_bdouble_conv_impl.3} parent=5 // pred_check_branch
      %1868 = sbr.rel (%p1866) target = $region48
    $region47: #{_bdouble_conv_impl.3} parent=5 // pred_region
      %s1869 = ssub.s32 %s12, 2
      // Predicated region
      $region49: #{_bdouble_conv_impl.3} parent=47 // pred_check
        %p1870 = pneg %p176
      $region50: #{_bdouble_conv_impl.3} parent=47 // pred_check_branch
        %1872 = sbr.rel (%p1870) target = $region52
      $region51: #{_bdouble_conv_impl.3} parent=47 // pred_region
        %s1873 = smul.u32 8, %s24
        %p1874 = scmp.lt.s32.totalorder %s23, 1
        %s1875 = scalar_select %p1874, %s23, 1
        %p1876 = scmp.lt.s32.totalorder %s1873, 15
        %s1877 = scalar_select %p1876, %s1873, 15
        %s1878 = smul.addr %s1877, 2
        %s1879 = smul.addr %s1875, 32
        %s1880 = sadd.s32 %s1878, %s1879
        %s1881 = smul.addr %s1880, 8
        %s1882 = scalar_lea.vmem %s4, %s1881
      $region52: #{_bdouble_conv_impl.3} parent=47 // pred_fallthru
        _
      // Predicated region
      $region53: #{_bdouble_conv_impl.3} parent=47 // pred_check
        %p1883 = pneg %p204
      $region54: #{_bdouble_conv_impl.3} parent=47 // pred_check_branch
        %1885 = sbr.rel (%p1883) target = $region56
      $region55: #{_bdouble_conv_impl.3} parent=47 // pred_region
        %p1886 = scmp.lt.s32.totalorder %s23, 1
        %s1887 = scalar_select %p1886, %s23, 1
        %p1888 = scmp.lt.s32.totalorder %s24, 1
        %s1889 = scalar_select %p1888, %s24, 1
        %s1890 = smul.addr %s1887, 2
        %s1891 = sadd.s32 %s1889, %s1890
        %s1892 = smul.addr %s1891, 2
        %s1893 = scalar_lea.vmem %s5, %s1892
      $region56: #{_bdouble_conv_impl.3} parent=47 // pred_fallthru
        _
    $region48: #{_bdouble_conv_impl.3} parent=5 // pred_fallthru
      _
  $region6: #{_bdouble_conv_impl.3} parent=0 // loop_footer
    %s16 = sadd.s32 1, %s12
  $region7: #{_bdouble_conv_impl.3} parent=0 // loop_footer_branch
    %11 = sbr.rel target = $region3
  $region8: #{_bdouble_conv_impl.3} parent=0 // loop_exit
    _

// kernel: _bdouble_conv_impl.4
$region0: #{_bdouble_conv_impl.4}
  #allocation0 [shape = 'u32[]', space=smem, size = 0x4, offset = 0x4, fixed_abs, tag = 'smem constant byte address 0x4 - core index']
  #allocation1 [shape = 'u32[144,128]{1,0:T(1,128)}', space=vmem, size = 0x12000, scoped, tag = 'internal scratch']
  #allocation2 [shape = 'f32[10,25,8]{2,1,0:T(8,128)}', space=vmem, size = 0x28000, scoped, tag = 'scratch operand']
  %s0 = inlined_call_operand.vmem [shape: f32[2,16,16,8], index: 0, kind: input, shape index: {}, may-alias: {0,1,2}]
  %s1 = inlined_call_operand.vmem [shape: f32[2,16,16,8], index: 1, kind: input, shape index: {}, may-alias: {0,1,2}]
  %s2 = inlined_call_operand.vmem [shape: f32[2,16,16,8], index: 2, kind: input, shape index: {}, may-alias: {0,1,2}]
  %s3 = inlined_call_operand.vmem [shape: f32[1,8], index: 3, kind: input, shape index: {}]
  %s4 = inlined_call_operand.vmem [shape: f32[1,8], index: 4, kind: input, shape index: {}]
  %s5 = inlined_call_operand.vmem [shape: f32[3,24,8], index: 5, kind: input, shape index: {}]
  %s6 = inlined_call_operand.vmem [shape: f32[2,16,16,8], index: 6, kind: output, shape index: {0}]
  %s7 = inlined_call_operand.vmem [shape: f32[2,2,2,8], index: 7, kind: output, shape index: {1}]
  %8 = xla_tuple %s6, %s7
  %s9 = sld [smem:[#allocation0]]
  $region65: #{_bdouble_conv_impl.4} parent=0
    _
  %s11 = ssub.s32 1, %s9
  %s12 = scalar_select 0, %s11, %s9
  loop: start=0, step=1, limit=6
  $region2: #{_bdouble_conv_impl.4} parent=0 // loop_pre_header
    _
  $region3: #{_bdouble_conv_impl.4} parent=0 // loop_header
    %s14 = sphi 0, %s18
    %p15 = scmp.ge.s32.totalorder %s14, 6
    %s21 = sphi 0, %s33
    %s22 = sphi 0, %s29
    %s23 = sphi 0, %s21
    %s24 = sphi 0, %s22
    %s25 = sphi 0, %s23
    %s26 = sphi 0, %s24
    %s38 = sphi 0, %s40
    %s41 = sphi 0, %s38
    %s42 = sphi 0, %s41
    %s58 = sphi 0, %s42
    %s74 = sphi 0, %s76
    %s77 = sphi 0, %s74
    %s78 = sphi 0, %s77
    %s94 = sphi 0, %s78
    %s110 = sphi 0, %s112
    %s113 = sphi 0, %s110
    %s114 = sphi 0, %s113
    %s130 = sphi 0, %s114
    %s134 = sphi 0, %s134
    %s136 = sphi 0, %s134
    %s137 = sphi 0, %s136
    %s151 = sphi 0, %s137
    %s155 = sphi 0, %s155
    %s157 = sphi 0, %s155
    %s158 = sphi 0, %s157
    %s172 = sphi 0, %s158
    %s176 = sphi 0, %s176
    %s178 = sphi 0, %s176
    %s179 = sphi 0, %s178
    %s193 = sphi 0, %s179
    %s201 = sphi 0, %s203
    %s204 = sphi 0, %s201
    %s205 = sphi 0, %s204
    %s221 = sphi 0, %s205
    %s229 = sphi 0, %s231
    %s232 = sphi 0, %s229
    %s233 = sphi 0, %s232
    %s249 = sphi 0, %s233
  $region4: #{_bdouble_conv_impl.4} parent=0 // loop_header_branch
    %17 = sbr.rel (%p15) target = $region8
  $region5: #{_bdouble_conv_impl.4} parent=0 // loop_body
    %s19 = ssub.s32 %s14, 1
    %s20 = ssub.s32 %s14, 2
    %s27 = sadd.s32 1, %s22
    %p28 = scmp.ge.s32.totalorder %s27, 2
    %s29 = scalar_select %p28, 0, %s27
    %s30 = sadd.s32 1, %s21
    %s31 = scalar_select %p28, %s30, %s21
    %p32 = scmp.ge.s32.totalorder %s31, 2
    %s33 = scalar_select %p32, 0, %s31
    %s34 = ssub.s32 %s21, %s33
    %s35 = ssub.s32 %s22, %s29
    %s36 = sor.u32 %s34, %s35
    %p37 = scmp.eq.s32.totalorder %s36, 0
    %s39 = sadd.s32 %s38, 1
    %s40 = scalar_select %p37, %s38, %s39
    %p43 = pneg %p37
    %p44 = scmp.eq.s32.totalorder %s14, 3
    %p45 = por %p43, %p44
    %p46 = scmp.ne.s32.totalorder %s38, %s41
    %p47 = scmp.eq.s32.totalorder %s14, 0
    %p48 = por %p46, %p47
    %p49 = scmp.ne.s32.totalorder %s38, %s41
    %p50 = scmp.eq.s32.totalorder %s19, 3
    %p51 = por %p49, %p50
    %p52 = scmp.ne.s32.totalorder %s41, %s42
    %p53 = scmp.eq.s32.totalorder %s19, 0
    %p54 = por %p52, %p53
    %p55 = scmp.ne.s32.totalorder %s41, %s42
    %p56 = scmp.eq.s32.totalorder %s20, 3
    %p57 = por %p55, %p56
    %p59 = scmp.ne.s32.totalorder %s42, %s58
    %p60 = scmp.eq.s32.totalorder %s20, 0
    %p61 = por %p59, %p60
    %s62 = smul.u32 %s22, 8
    %s63 = ssub.s32 %s62, 1
    %p64 = scmp.gt.s32.totalorder %s63, 0
    %s65 = scalar_select %p64, %s63, 0
    %s66 = smul.u32 %s29, 8
    %s67 = ssub.s32 %s66, 1
    %p68 = scmp.gt.s32.totalorder %s67, 0
    %s69 = scalar_select %p68, %s67, 0
    %s70 = ssub.s32 %s21, %s33
    %s71 = ssub.s32 %s65, %s69
    %s72 = sor.u32 %s70, %s71
    %p73 = scmp.eq.s32.totalorder %s72, 0
    %s75 = sadd.s32 %s74, 1
    %s76 = scalar_select %p73, %s74, %s75
    %p79 = pneg %p73
    %p80 = scmp.eq.s32.totalorder %s14, 3
    %p81 = por %p79, %p80
    %p82 = scmp.ne.s32.totalorder %s74, %s77
    %p83 = scmp.eq.s32.totalorder %s14, 0
    %p84 = por %p82, %p83
    %p85 = scmp.ne.s32.totalorder %s74, %s77
    %p86 = scmp.eq.s32.totalorder %s19, 3
    %p87 = por %p85, %p86
    %p88 = scmp.ne.s32.totalorder %s77, %s78
    %p89 = scmp.eq.s32.totalorder %s19, 0
    %p90 = por %p88, %p89
    %p91 = scmp.ne.s32.totalorder %s77, %s78
    %p92 = scmp.eq.s32.totalorder %s20, 3
    %p93 = por %p91, %p92
    %p95 = scmp.ne.s32.totalorder %s78, %s94
    %p96 = scmp.eq.s32.totalorder %s20, 0
    %p97 = por %p95, %p96
    %s98 = smul.u32 %s22, 8
    %s99 = sadd.s32 %s98, 8
    %p100 = scmp.lt.s32.totalorder %s99, 15
    %s101 = scalar_select %p100, %s99, 15
    %s102 = smul.u32 %s29, 8
    %s103 = sadd.s32 %s102, 8
    %p104 = scmp.lt.s32.totalorder %s103, 15
    %s105 = scalar_select %p104, %s103, 15
    %s106 = ssub.s32 %s21, %s33
    %s107 = ssub.s32 %s101, %s105
    %s108 = sor.u32 %s106, %s107
    %p109 = scmp.eq.s32.totalorder %s108, 0
    %s111 = sadd.s32 %s110, 1
    %s112 = scalar_select %p109, %s110, %s111
    %p115 = pneg %p109
    %p116 = scmp.eq.s32.totalorder %s14, 3
    %p117 = por %p115, %p116
    %p118 = scmp.ne.s32.totalorder %s110, %s113
    %p119 = scmp.eq.s32.totalorder %s14, 0
    %p120 = por %p118, %p119
    %p121 = scmp.ne.s32.totalorder %s110, %s113
    %p122 = scmp.eq.s32.totalorder %s19, 3
    %p123 = por %p121, %p122
    %p124 = scmp.ne.s32.totalorder %s113, %s114
    %p125 = scmp.eq.s32.totalorder %s19, 0
    %p126 = por %p124, %p125
    %p127 = scmp.ne.s32.totalorder %s113, %s114
    %p128 = scmp.eq.s32.totalorder %s20, 3
    %p129 = por %p127, %p128
    %p131 = scmp.ne.s32.totalorder %s114, %s130
    %p132 = scmp.eq.s32.totalorder %s20, 0
    %p133 = por %p131, %p132
    %s135 = sadd.s32 %s134, 1
    %p138 = scmp.eq.s32.totalorder %s14, 3
    %p139 = scmp.ne.s32.totalorder %s134, %s136
    %p140 = scmp.eq.s32.totalorder %s14, 0
    %p141 = por %p139, %p140
    %p142 = scmp.ne.s32.totalorder %s134, %s136
    %p143 = scmp.eq.s32.totalorder %s19, 3
    %p144 = por %p142, %p143
    %p145 = scmp.ne.s32.totalorder %s136, %s137
    %p146 = scmp.eq.s32.totalorder %s19, 0
    %p147 = por %p145, %p146
    %p148 = scmp.ne.s32.totalorder %s136, %s137
    %p149 = scmp.eq.s32.totalorder %s20, 3
    %p150 = por %p148, %p149
    %p152 = scmp.ne.s32.totalorder %s137, %s151
    %p153 = scmp.eq.s32.totalorder %s20, 0
    %p154 = por %p152, %p153
    %s156 = sadd.s32 %s155, 1
    %p159 = scmp.eq.s32.totalorder %s14, 3
    %p160 = scmp.ne.s32.totalorder %s155, %s157
    %p161 = scmp.eq.s32.totalorder %s14, 0
    %p162 = por %p160, %p161
    %p163 = scmp.ne.s32.totalorder %s155, %s157
    %p164 = scmp.eq.s32.totalorder %s19, 3
    %p165 = por %p163, %p164
    %p166 = scmp.ne.s32.totalorder %s157, %s158
    %p167 = scmp.eq.s32.totalorder %s19, 0
    %p168 = por %p166, %p167
    %p169 = scmp.ne.s32.totalorder %s157, %s158
    %p170 = scmp.eq.s32.totalorder %s20, 3
    %p171 = por %p169, %p170
    %p173 = scmp.ne.s32.totalorder %s158, %s172
    %p174 = scmp.eq.s32.totalorder %s20, 0
    %p175 = por %p173, %p174
    %s177 = sadd.s32 %s176, 1
    %p180 = scmp.eq.s32.totalorder %s14, 3
    %p181 = scmp.ne.s32.totalorder %s176, %s178
    %p182 = scmp.eq.s32.totalorder %s14, 0
    %p183 = por %p181, %p182
    %p184 = scmp.ne.s32.totalorder %s176, %s178
    %p185 = scmp.eq.s32.totalorder %s19, 3
    %p186 = por %p184, %p185
    %p187 = scmp.ne.s32.totalorder %s178, %s179
    %p188 = scmp.eq.s32.totalorder %s19, 0
    %p189 = por %p187, %p188
    %p190 = scmp.ne.s32.totalorder %s178, %s179
    %p191 = scmp.eq.s32.totalorder %s20, 3
    %p192 = por %p190, %p191
    %p194 = scmp.ne.s32.totalorder %s179, %s193
    %p195 = scmp.eq.s32.totalorder %s20, 0
    %p196 = por %p194, %p195
    %s197 = ssub.s32 %s21, %s33
    %s198 = ssub.s32 %s22, %s29
    %s199 = sor.u32 %s197, %s198
    %p200 = scmp.eq.s32.totalorder %s199, 0
    %s202 = sadd.s32 %s201, 1
    %s203 = scalar_select %p200, %s201, %s202
    %p206 = pneg %p200
    %p207 = scmp.eq.s32.totalorder %s14, 3
    %p208 = por %p206, %p207
    %p209 = scmp.ne.s32.totalorder %s201, %s204
    %p210 = scmp.eq.s32.totalorder %s14, 0
    %p211 = por %p209, %p210
    %p212 = scmp.ne.s32.totalorder %s201, %s204
    %p213 = scmp.eq.s32.totalorder %s19, 3
    %p214 = por %p212, %p213
    %p215 = scmp.ne.s32.totalorder %s204, %s205
    %p216 = scmp.eq.s32.totalorder %s19, 0
    %p217 = por %p215, %p216
    %p218 = scmp.ne.s32.totalorder %s204, %s205
    %p219 = scmp.eq.s32.totalorder %s20, 3
    %p220 = por %p218, %p219
    %p222 = scmp.ne.s32.totalorder %s205, %s221
    %p223 = scmp.eq.s32.totalorder %s20, 0
    %p224 = por %p222, %p223
    %s225 = ssub.s32 %s21, %s33
    %s226 = ssub.s32 %s22, %s29
    %s227 = sor.u32 %s225, %s226
    %p228 = scmp.eq.s32.totalorder %s227, 0
    %s230 = sadd.s32 %s229, 1
    %s231 = scalar_select %p228, %s229, %s230
    %p234 = pneg %p228
    %p235 = scmp.eq.s32.totalorder %s14, 3
    %p236 = por %p234, %p235
    %p237 = scmp.ne.s32.totalorder %s229, %s232
    %p238 = scmp.eq.s32.totalorder %s14, 0
    %p239 = por %p237, %p238
    %p240 = scmp.ne.s32.totalorder %s229, %s232
    %p241 = scmp.eq.s32.totalorder %s19, 3
    %p242 = por %p240, %p241
    %p243 = scmp.ne.s32.totalorder %s232, %s233
    %p244 = scmp.eq.s32.totalorder %s19, 0
    %p245 = por %p243, %p244
    %p246 = scmp.ne.s32.totalorder %s232, %s233
    %p247 = scmp.eq.s32.totalorder %s20, 3
    %p248 = por %p246, %p247
    %p250 = scmp.ne.s32.totalorder %s233, %s249
    %p251 = scmp.eq.s32.totalorder %s20, 0
    %p252 = por %p250, %p251
    %p253 = scmp.le.s32.totalorder 1, %s14
    %p254 = scmp.lt.s32.totalorder %s14, 5
    %p255 = pnand %p253, %p254
    %p256 = pneg %p255
    // Predicated region
    $region9: #{_bdouble_conv_impl.4} parent=5 // pred_check
      _
    $region10: #{_bdouble_conv_impl.4} parent=5 // pred_check_branch
      %258 = sbr.rel (%p255) target = $region12
    $region11: #{_bdouble_conv_impl.4} parent=5 // pred_region
      %s259 = ssub.s32 %s14, 1
      // Predicated region
      $region13: #{_bdouble_conv_impl.4} parent=11 // pred_check
        %p260 = pneg %p147
      $region14: #{_bdouble_conv_impl.4} parent=11 // pred_check_branch
        %262 = sbr.rel (%p260) target = $region16
      $region15: #{_bdouble_conv_impl.4} parent=11 // pred_region
        _
      $region16: #{_bdouble_conv_impl.4} parent=11 // pred_fallthru
        _
      // Predicated region
      $region17: #{_bdouble_conv_impl.4} parent=11 // pred_check
        %p263 = pneg %p168
      $region18: #{_bdouble_conv_impl.4} parent=11 // pred_check_branch
        %265 = sbr.rel (%p263) target = $region20
      $region19: #{_bdouble_conv_impl.4} parent=11 // pred_region
        _
      $region20: #{_bdouble_conv_impl.4} parent=11 // pred_fallthru
        _
      // Predicated region
      $region21: #{_bdouble_conv_impl.4} parent=11 // pred_check
        %p266 = pneg %p189
      $region22: #{_bdouble_conv_impl.4} parent=11 // pred_check_branch
        %268 = sbr.rel (%p266) target = $region24
      $region23: #{_bdouble_conv_impl.4} parent=11 // pred_region
        _
      $region24: #{_bdouble_conv_impl.4} parent=11 // pred_fallthru
        _
    $region12: #{_bdouble_conv_impl.4} parent=5 // pred_fallthru
      _
    %p269 = scmp.lt.s32.totalorder %s14, 4
    // Predicated region
    $region25: #{_bdouble_conv_impl.4} parent=5 // pred_check
      %p270 = pneg %p269
    $region26: #{_bdouble_conv_impl.4} parent=5 // pred_check_branch
      %272 = sbr.rel (%p270) target = $region28
    $region27: #{_bdouble_conv_impl.4} parent=5 // pred_region
      // Predicated region
      $region29: #{_bdouble_conv_impl.4} parent=27 // pred_check
        %p273 = pneg %p48
      $region30: #{_bdouble_conv_impl.4} parent=27 // pred_check_branch
        %275 = sbr.rel (%p273) target = $region32
      $region31: #{_bdouble_conv_impl.4} parent=27 // pred_region
        %s276 = smul.u32 8, %s22
        %p277 = scmp.lt.s32.totalorder %s21, 1
        %s278 = scalar_select %p277, %s21, 1
        %p279 = scmp.lt.s32.totalorder %s276, 15
        %s280 = scalar_select %p279, %s276, 15
        %s281 = smul.addr %s280, 2
        %s282 = smul.addr %s278, 32
        %s283 = sadd.s32 %s281, %s282
        %s284 = smul.addr %s283, 8
        %s285 = scalar_lea.vmem %s0, %s284
        %s286 = smul.u32 8, %s22
      $region32: #{_bdouble_conv_impl.4} parent=27 // pred_fallthru
        _
      // Predicated region
      $region33: #{_bdouble_conv_impl.4} parent=27 // pred_check
        %p287 = pneg %p84
      $region34: #{_bdouble_conv_impl.4} parent=27 // pred_check_branch
        %289 = sbr.rel (%p287) target = $region36
      $region35: #{_bdouble_conv_impl.4} parent=27 // pred_region
        %s290 = smul.u32 %s22, 8
        %s291 = ssub.s32 %s290, 1
        %p292 = scmp.gt.s32.totalorder %s291, 0
        %s293 = scalar_select %p292, %s291, 0
        %p294 = scmp.lt.s32.totalorder %s21, 1
        %s295 = scalar_select %p294, %s21, 1
        %p296 = scmp.lt.s32.totalorder %s293, 15
        %s297 = scalar_select %p296, %s293, 15
        %s298 = smul.addr %s297, 2
        %s299 = smul.addr %s295, 32
        %s300 = sadd.s32 %s298, %s299
        %s301 = smul.addr %s300, 8
        %s302 = scalar_lea.vmem %s1, %s301
        %s303 = smul.u32 %s22, 8
        %s304 = ssub.s32 %s303, 1
        %p305 = scmp.gt.s32.totalorder %s304, 0
        %s306 = scalar_select %p305, %s304, 0
      $region36: #{_bdouble_conv_impl.4} parent=27 // pred_fallthru
        _
      // Predicated region
      $region37: #{_bdouble_conv_impl.4} parent=27 // pred_check
        %p307 = pneg %p120
      $region38: #{_bdouble_conv_impl.4} parent=27 // pred_check_branch
        %309 = sbr.rel (%p307) target = $region40
      $region39: #{_bdouble_conv_impl.4} parent=27 // pred_region
        %s310 = smul.u32 %s22, 8
        %s311 = sadd.s32 %s310, 8
        %p312 = scmp.lt.s32.totalorder %s311, 15
        %s313 = scalar_select %p312, %s311, 15
        %p314 = scmp.lt.s32.totalorder %s21, 1
        %s315 = scalar_select %p314, %s21, 1
        %p316 = scmp.lt.s32.totalorder %s313, 15
        %s317 = scalar_select %p316, %s313, 15
        %s318 = smul.addr %s317, 2
        %s319 = smul.addr %s315, 32
        %s320 = sadd.s32 %s318, %s319
        %s321 = smul.addr %s320, 8
        %s322 = scalar_lea.vmem %s2, %s321
        %s323 = smul.u32 %s22, 8
        %s324 = sadd.s32 %s323, 8
        %p325 = scmp.lt.s32.totalorder %s324, 15
        %s326 = scalar_select %p325, %s324, 15
      $region40: #{_bdouble_conv_impl.4} parent=27 // pred_fallthru
        _
    $region28: #{_bdouble_conv_impl.4} parent=5 // pred_fallthru
      _
    %p327 = scmp.le.s32.totalorder 1, %s14
    %p328 = scmp.lt.s32.totalorder %s14, 5
    %p329 = pnand %p327, %p328
    %p330 = pneg %p329
    // Predicated region
    $region41: #{_bdouble_conv_impl.4} parent=5 // pred_check
      _
    $region42: #{_bdouble_conv_impl.4} parent=5 // pred_check_branch
      %332 = sbr.rel (%p329) target = $region44
    $region43: #{_bdouble_conv_impl.4} parent=5 // pred_region
      %s333 = ssub.s32 %s14, 1
      %s334 = smul.u32 8, %s24
      %p335 = scmp.lt.s32.totalorder %s23, 1
      %s336 = scalar_select %p335, %s23, 1
      %p337 = scmp.lt.s32.totalorder %s334, 15
      %s338 = scalar_select %p337, %s334, 15
      %s339 = smul.addr %s338, 2
      %s340 = smul.addr %s336, 32
      %s341 = sadd.s32 %s339, %s340
      %s342 = smul.addr %s341, 8
      %s343 = scalar_lea.vmem %s0, %s342
      %p344 = pneg %p54
      %p345 = pneg %p51
      %s346 = smul.u32 %s24, 8
      %s347 = ssub.s32 %s346, 1
      %p348 = scmp.gt.s32.totalorder %s347, 0
      %s349 = scalar_select %p348, %s347, 0
      %p350 = scmp.lt.s32.totalorder %s23, 1
      %s351 = scalar_select %p350, %s23, 1
      %p352 = scmp.lt.s32.totalorder %s349, 15
      %s353 = scalar_select %p352, %s349, 15
      %s354 = smul.addr %s353, 2
      %s355 = smul.addr %s351, 32
      %s356 = sadd.s32 %s354, %s355
      %s357 = smul.addr %s356, 8
      %s358 = scalar_lea.vmem %s1, %s357
      %p359 = pneg %p90
      %p360 = pneg %p87
      %s361 = smul.u32 %s24, 8
      %s362 = sadd.s32 %s361, 8
      %p363 = scmp.lt.s32.totalorder %s362, 15
      %s364 = scalar_select %p363, %s362, 15
      %p365 = scmp.lt.s32.totalorder %s23, 1
      %s366 = scalar_select %p365, %s23, 1
      %p367 = scmp.lt.s32.totalorder %s364, 15
      %s368 = scalar_select %p367, %s364, 15
      %s369 = smul.addr %s368, 2
      %s370 = smul.addr %s366, 32
      %s371 = sadd.s32 %s369, %s370
      %s372 = smul.addr %s371, 8
      %s373 = scalar_lea.vmem %s2, %s372
      %p374 = pneg %p126
      %p375 = pneg %p123
      %p376 = pneg %p147
      %p377 = pneg %p144
      %p378 = pneg %p168
      %p379 = pneg %p165
      %p380 = pneg %p189
      %p381 = pneg %p186
      %p382 = pneg %p217
      %p383 = pneg %p214
      %s384 = smul.u32 8, %s24
      %p385 = scmp.lt.s32.totalorder %s23, 1
      %s386 = scalar_select %p385, %s23, 1
      %p387 = scmp.lt.s32.totalorder %s384, 15
      %s388 = scalar_select %p387, %s384, 15
      %s389 = smul.addr %s388, 2
      %s390 = smul.addr %s386, 32
      %s391 = sadd.s32 %s389, %s390
      %s392 = smul.addr %s391, 8
      %s393 = scalar_lea.vmem %s6, %s392
      %p394 = pneg %p245
      %p395 = pneg %p242
      %p396 = scmp.lt.s32.totalorder %s23, 1
      %s397 = scalar_select %p396, %s23, 1
      %p398 = scmp.lt.s32.totalorder %s24, 1
      %s399 = scalar_select %p398, %s24, 1
      %s400 = smul.addr %s397, 2
      %s401 = sadd.s32 %s399, %s400
      %s402 = smul.addr %s401, 2
      %s403 = scalar_lea.vmem %s7, %s402
      %s404 = smul.u32 8, %s24
      %p405 = scmp.lt.s32.totalorder %s23, 1
      %s406 = scalar_select %p405, %s23, 1
      %p407 = scmp.lt.s32.totalorder %s404, 15
      %s408 = scalar_select %p407, %s404, 15
      %s409 = smul.addr %s408, 2
      %s410 = smul.addr %s406, 32
      %s411 = sadd.s32 %s409, %s410
      %s412 = smul.addr %s411, 8
      %s413 = scalar_lea.vmem %s0, %s412
      %s414 = smul.u32 8, %s24
      %s415 = smul.u32 %s24, 8
      %s416 = ssub.s32 %s415, 1
      %p417 = scmp.gt.s32.totalorder %s416, 0
      %s418 = scalar_select %p417, %s416, 0
      %p419 = scmp.lt.s32.totalorder %s23, 1
      %s420 = scalar_select %p419, %s23, 1
      %p421 = scmp.lt.s32.totalorder %s418, 15
      %s422 = scalar_select %p421, %s418, 15
      %s423 = smul.addr %s422, 2
      %s424 = smul.addr %s420, 32
      %s425 = sadd.s32 %s423, %s424
      %s426 = smul.addr %s425, 8
      %s427 = scalar_lea.vmem %s1, %s426
      %s428 = smul.u32 %s24, 8
      %s429 = ssub.s32 %s428, 1
      %p430 = scmp.gt.s32.totalorder %s429, 0
      %s431 = scalar_select %p430, %s429, 0
      %s432 = smul.u32 %s24, 8
      %s433 = sadd.s32 %s432, 8
      %p434 = scmp.lt.s32.totalorder %s433, 15
      %s435 = scalar_select %p434, %s433, 15
      %p436 = scmp.lt.s32.totalorder %s23, 1
      %s437 = scalar_select %p436, %s23, 1
      %p438 = scmp.lt.s32.totalorder %s435, 15
      %s439 = scalar_select %p438, %s435, 15
      %s440 = smul.addr %s439, 2
      %s441 = smul.addr %s437, 32
      %s442 = sadd.s32 %s440, %s441
      %s443 = smul.addr %s442, 8
      %s444 = scalar_lea.vmem %s2, %s443
      %s445 = smul.u32 %s24, 8
      %s446 = sadd.s32 %s445, 8
      %p447 = scmp.lt.s32.totalorder %s446, 15
      %s448 = scalar_select %p447, %s446, 15
      %s449 = smul.u32 8, %s24
      %p450 = scmp.lt.s32.totalorder %s23, 1
      %s451 = scalar_select %p450, %s23, 1
      %p452 = scmp.lt.s32.totalorder %s449, 15
      %s453 = scalar_select %p452, %s449, 15
      %s454 = smul.addr %s453, 2
      %s455 = smul.addr %s451, 32
      %s456 = sadd.s32 %s454, %s455
      %s457 = smul.addr %s456, 8
      %s458 = scalar_lea.vmem %s6, %s457
      %s459 = smul.u32 8, %s24
      %p460 = scmp.lt.s32.totalorder %s23, 1
      %s461 = scalar_select %p460, %s23, 1
      %p462 = scmp.lt.s32.totalorder %s24, 1
      %s463 = scalar_select %p462, %s24, 1
      %s464 = smul.addr %s461, 2
      %s465 = sadd.s32 %s463, %s464
      %s466 = smul.addr %s465, 2
      %s467 = scalar_lea.vmem %s7, %s466
      %p468 = scmp.gt.s32.totalorder %s24, 0
      %s469 = scalar_select %p468, 1, 0
      %s470 = scvt.s32.f32 %s469
      %p471 = scmp.lt.s32.totalorder %s24, 1
      %s472 = scalar_select %p471, 1, 0
      %s473 = scvt.s32.f32 %s472
      %v474 = vld [vmem:[%s3] sm:$0x1]
      %v475 = vld [vmem:[%s4] sm:$0x1]
      %vm476 = vcmask 57344
      %477 = vst.msk [vmem:[#allocation2 + $0x7] sm:$0x1] %vm476, 0.0
      %478 = vst.msk [vmem:[#allocation2 + $0x27] sm:$0x1] %vm476, 0.0
      %479 = vst.msk [vmem:[#allocation2 + $0x47] sm:$0x1] %vm476, 0.0
      %480 = vst.msk [vmem:[#allocation2 + $0x67] sm:$0x1] %vm476, 0.0
      %481 = vst.msk [vmem:[#allocation2 + $0x87] sm:$0x1] %vm476, 0.0
      %482 = vst.msk [vmem:[#allocation2 + $0xa7] sm:$0x1] %vm476, 0.0
      %483 = vst.msk [vmem:[#allocation2 + $0xc7] sm:$0x1] %vm476, 0.0
      %484 = vst.msk [vmem:[#allocation2 + $0xe7] sm:$0x1] %vm476, 0.0
      %485 = vst.msk [vmem:[#allocation2 + $0x107] sm:$0x1] %vm476, 0.0
      %486 = vst.msk [vmem:[#allocation2 + $0x127] sm:$0x1] %vm476, 0.0
      %487 = vst.msk [vmem:[#allocation2 + $0x18] sm:$0x1] %vm476, 0.0
      %488 = vst.msk [vmem:[#allocation2 + $0x38] sm:$0x1] %vm476, 0.0
      %489 = vst.msk [vmem:[#allocation2 + $0x58] sm:$0x1] %vm476, 0.0
      %490 = vst.msk [vmem:[#allocation2 + $0x78] sm:$0x1] %vm476, 0.0
      %491 = vst.msk [vmem:[#allocation2 + $0x98] sm:$0x1] %vm476, 0.0
      %492 = vst.msk [vmem:[#allocation2 + $0xb8] sm:$0x1] %vm476, 0.0
      %493 = vst.msk [vmem:[#allocation2 + $0xd8] sm:$0x1] %vm476, 0.0
      %494 = vst.msk [vmem:[#allocation2 + $0xf8] sm:$0x1] %vm476, 0.0
      %495 = vst.msk [vmem:[#allocation2 + $0x118] sm:$0x1] %vm476, 0.0
      %496 = vst.msk [vmem:[#allocation2 + $0x138] sm:$0x1] %vm476, 0.0
      %v497 = vld [vmem:[%s427] sm:$0xff]
      %v498 = vld [vmem:[%s427 + $0x8] sm:$0xff]
      %v500 = vlaneseq
      %v501 = vshrl.u32 %v500, 7
      %v502 = vsub.s32 0, %v501
      %v503 = vrot.slane %v474, %v502
      %v505 = vmul.f32 %v497, %v503
      %v506 = vmul.f32 %v498, %v503
      %v508 = vlaneseq
      %v509 = vshrl.u32 %v508, 7
      %v510 = vsub.s32 0, %v509
      %v511 = vrot.slane %v475, %v510
      %v513 = vadd.f32 %v505, %v511
      %v514 = vadd.f32 %v506, %v511
      %v515 = vmax.f32 %v513, 0.0
      %v516 = vmax.f32 %v514, 0.0
      %v517 = vstv %s470
      %v518 = vmul.f32 %v515, %v517
      %v519 = vmul.f32 %v516, %v517
      %vm520 = vcmask 64512
      %521 = vst.msk [vmem:[#allocation2 + $0x8] sm:$0xff] %vm520, %v518
      %522 = vst.msk [vmem:[#allocation2 + $0x10] sm:$0xff] %vm520, %v519
      %v523 = vld [vmem:[%s444] sm:$0xff]
      %v524 = vld [vmem:[%s444 + $0x8] sm:$0xff]
      %v525 = vmul.f32 %v523, %v503
      %v526 = vmul.f32 %v524, %v503
      %v527 = vadd.f32 %v525, %v511
      %v528 = vadd.f32 %v526, %v511
      %v529 = vmax.f32 %v527, 0.0
      %v530 = vmax.f32 %v528, 0.0
      %v531 = vstv %s473
      %v532 = vmul.f32 %v529, %v531
      %v533 = vmul.f32 %v530, %v531
      %s534 = scalar_lea.vmem [#allocation2], 288
      %535 = vst.msk [vmem:[%s534 + $0x8] sm:$0xff] %vm520, %v532
      %536 = vst.msk [vmem:[%s534 + $0x10] sm:$0xff] %vm520, %v533
      %v537 = vld [vmem:[%s413] sm:$0xff]
      %v538 = vld [vmem:[%s413 + $0x8] sm:$0xff]
      %v539 = vld [vmem:[%s413 + $0x10] sm:$0xff]
      %v540 = vld [vmem:[%s413 + $0x18] sm:$0xff]
      %v541 = vld [vmem:[%s413 + $0x20] sm:$0xff]
      %v542 = vld [vmem:[%s413 + $0x28] sm:$0xff]
      %v543 = vld [vmem:[%s413 + $0x30] sm:$0xff]
      %v544 = vld [vmem:[%s413 + $0x38] sm:$0xff]
      %v545 = vld [vmem:[%s413 + $0x40] sm:$0xff]
      %v546 = vld [vmem:[%s413 + $0x48] sm:$0xff]
      %v547 = vld [vmem:[%s413 + $0x50] sm:$0xff]
      %v548 = vld [vmem:[%s413 + $0x58] sm:$0xff]
      %v549 = vld [vmem:[%s413 + $0x60] sm:$0xff]
      %v550 = vld [vmem:[%s413 + $0x68] sm:$0xff]
      %v551 = vld [vmem:[%s413 + $0x70] sm:$0xff]
      %v552 = vld [vmem:[%s413 + $0x78] sm:$0xff]
      %v553 = vmul.f32 %v537, %v503
      %v554 = vmul.f32 %v538, %v503
      %v555 = vmul.f32 %v539, %v503
      %v556 = vmul.f32 %v540, %v503
      %v557 = vmul.f32 %v541, %v503
      %v558 = vmul.f32 %v542, %v503
      %v559 = vmul.f32 %v543, %v503
      %v560 = vmul.f32 %v544, %v503
      %v561 = vmul.f32 %v545, %v503
      %v562 = vmul.f32 %v546, %v503
      %v563 = vmul.f32 %v547, %v503
      %v564 = vmul.f32 %v548, %v503
      %v565 = vmul.f32 %v549, %v503
      %v566 = vmul.f32 %v550, %v503
      %v567 = vmul.f32 %v551, %v503
      %v568 = vmul.f32 %v552, %v503
      %v569 = vadd.f32 %v553, %v511
      %v570 = vadd.f32 %v554, %v511
      %v571 = vadd.f32 %v555, %v511
      %v572 = vadd.f32 %v556, %v511
      %v573 = vadd.f32 %v557, %v511
      %v574 = vadd.f32 %v558, %v511
      %v575 = vadd.f32 %v559, %v511
      %v576 = vadd.f32 %v560, %v511
      %v577 = vadd.f32 %v561, %v511
      %v578 = vadd.f32 %v562, %v511
      %v579 = vadd.f32 %v563, %v511
      %v580 = vadd.f32 %v564, %v511
      %v581 = vadd.f32 %v565, %v511
      %v582 = vadd.f32 %v566, %v511
      %v583 = vadd.f32 %v567, %v511
      %v584 = vadd.f32 %v568, %v511
      %v585 = vmax.f32 %v569, 0.0
      %v586 = vmax.f32 %v570, 0.0
      %v587 = vmax.f32 %v571, 0.0
      %v588 = vmax.f32 %v572, 0.0
      %v589 = vmax.f32 %v573, 0.0
      %v590 = vmax.f32 %v574, 0.0
      %v591 = vmax.f32 %v575, 0.0
      %v592 = vmax.f32 %v576, 0.0
      %v593 = vmax.f32 %v577, 0.0
      %v594 = vmax.f32 %v578, 0.0
      %v595 = vmax.f32 %v579, 0.0
      %v596 = vmax.f32 %v580, 0.0
      %v597 = vmax.f32 %v581, 0.0
      %v598 = vmax.f32 %v582, 0.0
      %v599 = vmax.f32 %v583, 0.0
      %v600 = vmax.f32 %v584, 0.0
      %s601 = scalar_lea.vmem [#allocation2], 32
      %602 = vst.msk [vmem:[%s601 + $0x8] sm:$0xff] %vm520, %v585
      %603 = vst.msk [vmem:[%s601 + $0x10] sm:$0xff] %vm520, %v586
      %604 = vst.msk [vmem:[%s601 + $0x28] sm:$0xff] %vm520, %v587
      %605 = vst.msk [vmem:[%s601 + $0x30] sm:$0xff] %vm520, %v588
      %606 = vst.msk [vmem:[%s601 + $0x48] sm:$0xff] %vm520, %v589
      %607 = vst.msk [vmem:[%s601 + $0x50] sm:$0xff] %vm520, %v590
      %608 = vst.msk [vmem:[%s601 + $0x68] sm:$0xff] %vm520, %v591
      %609 = vst.msk [vmem:[%s601 + $0x70] sm:$0xff] %vm520, %v592
      %610 = vst.msk [vmem:[%s601 + $0x88] sm:$0xff] %vm520, %v593
      %611 = vst.msk [vmem:[%s601 + $0x90] sm:$0xff] %vm520, %v594
      %612 = vst.msk [vmem:[%s601 + $0xa8] sm:$0xff] %vm520, %v595
      %613 = vst.msk [vmem:[%s601 + $0xb0] sm:$0xff] %vm520, %v596
      %614 = vst.msk [vmem:[%s601 + $0xc8] sm:$0xff] %vm520, %v597
      %615 = vst.msk [vmem:[%s601 + $0xd0] sm:$0xff] %vm520, %v598
      %616 = vst.msk [vmem:[%s601 + $0xe8] sm:$0xff] %vm520, %v599
      %617 = vst.msk [vmem:[%s601 + $0xf0] sm:$0xff] %vm520, %v600
      %v618 = vld [vmem:[#allocation2 + $0x7] sm:$0xff]
      %v619 = vld [vmem:[#allocation2 + $0xf] sm:$0xff]
      %v620 = vld [vmem:[#allocation2 + $0x27] sm:$0xff]
      %v621 = vld [vmem:[#allocation2 + $0x2f] sm:$0xff]
      %v622 = vld [vmem:[#allocation2 + $0x47] sm:$0xff]
      %v623 = vld [vmem:[#allocation2 + $0x4f] sm:$0xff]
      %v624 = vld [vmem:[#allocation2 + $0x67] sm:$0xff]
      %v625 = vld [vmem:[#allocation2 + $0x6f] sm:$0xff]
      %v626 = vld [vmem:[#allocation2 + $0x87] sm:$0xff]
      %v627 = vld [vmem:[#allocation2 + $0x8f] sm:$0xff]
      %v628 = vld [vmem:[#allocation2 + $0xa7] sm:$0xff]
      %v629 = vld [vmem:[#allocation2 + $0xaf] sm:$0xff]
      %v630 = vld [vmem:[#allocation2 + $0xc7] sm:$0xff]
      %v631 = vld [vmem:[#allocation2 + $0xcf] sm:$0xff]
      %v632 = vld [vmem:[#allocation2 + $0xe7] sm:$0xff]
      %v633 = vld [vmem:[#allocation2 + $0xef] sm:$0xff]
      %v634 = vld [vmem:[#allocation2 + $0x8] sm:$0xff]
      %v635 = vld [vmem:[#allocation2 + $0x10] sm:$0xff]
      %v636 = vld [vmem:[#allocation2 + $0x28] sm:$0xff]
      %v637 = vld [vmem:[#allocation2 + $0x30] sm:$0xff]
      %v638 = vld [vmem:[#allocation2 + $0x48] sm:$0xff]
      %v639 = vld [vmem:[#allocation2 + $0x50] sm:$0xff]
      %v640 = vld [vmem:[#allocation2 + $0x68] sm:$0xff]
      %v641 = vld [vmem:[#allocation2 + $0x70] sm:$0xff]
      %v642 = vld [vmem:[#allocation2 + $0x88] sm:$0xff]
      %v643 = vld [vmem:[#allocation2 + $0x90] sm:$0xff]
      %v644 = vld [vmem:[#allocation2 + $0xa8] sm:$0xff]
      %v645 = vld [vmem:[#allocation2 + $0xb0] sm:$0xff]
      %v646 = vld [vmem:[#allocation2 + $0xc8] sm:$0xff]
      %v647 = vld [vmem:[#allocation2 + $0xd0] sm:$0xff]
      %v648 = vld [vmem:[#allocation2 + $0xe8] sm:$0xff]
      %v649 = vld [vmem:[#allocation2 + $0xf0] sm:$0xff]
      %v650 = vld [vmem:[#allocation2 + $0x9] sm:$0xff]
      %v651 = vld [vmem:[#allocation2 + $0x11] sm:$0xff]
      %v652 = vld [vmem:[#allocation2 + $0x29] sm:$0xff]
      %v653 = vld [vmem:[#allocation2 + $0x31] sm:$0xff]
      %v654 = vld [vmem:[#allocation2 + $0x49] sm:$0xff]
      %v655 = vld [vmem:[#allocation2 + $0x51] sm:$0xff]
      %v656 = vld [vmem:[#allocation2 + $0x69] sm:$0xff]
      %v657 = vld [vmem:[#allocation2 + $0x71] sm:$0xff]
      %v658 = vld [vmem:[#allocation2 + $0x89] sm:$0xff]
      %v659 = vld [vmem:[#allocation2 + $0x91] sm:$0xff]
      %v660 = vld [vmem:[#allocation2 + $0xa9] sm:$0xff]
      %v661 = vld [vmem:[#allocation2 + $0xb1] sm:$0xff]
      %v662 = vld [vmem:[#allocation2 + $0xc9] sm:$0xff]
      %v663 = vld [vmem:[#allocation2 + $0xd1] sm:$0xff]
      %v664 = vld [vmem:[#allocation2 + $0xe9] sm:$0xff]
      %v665 = vld [vmem:[#allocation2 + $0xf1] sm:$0xff]
      %682 = vrot.lane.b32.xlu0 %v634, 8
      %v683 = vpop.permute.xlu0 %682
      %684 = vrot.lane.b32.xlu0 %v635, 8
      %v685 = vpop.permute.xlu0 %684
      %686 = vrot.lane.b32.xlu0 %v636, 8
      %v687 = vpop.permute.xlu0 %686
      %688 = vrot.lane.b32.xlu0 %v637, 8
      %v689 = vpop.permute.xlu0 %688
      %690 = vrot.lane.b32.xlu0 %v638, 8
      %v691 = vpop.permute.xlu0 %690
      %692 = vrot.lane.b32.xlu0 %v639, 8
      %v693 = vpop.permute.xlu0 %692
      %694 = vrot.lane.b32.xlu0 %v640, 8
      %v695 = vpop.permute.xlu0 %694
      %696 = vrot.lane.b32.xlu0 %v641, 8
      %v697 = vpop.permute.xlu0 %696
      %698 = vrot.lane.b32.xlu0 %v642, 8
      %v699 = vpop.permute.xlu0 %698
      %700 = vrot.lane.b32.xlu0 %v643, 8
      %v701 = vpop.permute.xlu0 %700
      %702 = vrot.lane.b32.xlu0 %v644, 8
      %v703 = vpop.permute.xlu0 %702
      %704 = vrot.lane.b32.xlu0 %v645, 8
      %v705 = vpop.permute.xlu0 %704
      %706 = vrot.lane.b32.xlu0 %v646, 8
      %v707 = vpop.permute.xlu0 %706
      %708 = vrot.lane.b32.xlu0 %v647, 8
      %v709 = vpop.permute.xlu0 %708
      %710 = vrot.lane.b32.xlu0 %v648, 8
      %v711 = vpop.permute.xlu0 %710
      %712 = vrot.lane.b32.xlu0 %v649, 8
      %v713 = vpop.permute.xlu0 %712
      %746 = vrot.lane.b32.xlu0 %v650, 16
      %v747 = vpop.permute.xlu0 %746
      %748 = vrot.lane.b32.xlu0 %v651, 16
      %v749 = vpop.permute.xlu0 %748
      %750 = vrot.lane.b32.xlu0 %v652, 16
      %v751 = vpop.permute.xlu0 %750
      %752 = vrot.lane.b32.xlu0 %v653, 16
      %v753 = vpop.permute.xlu0 %752
      %754 = vrot.lane.b32.xlu0 %v654, 16
      %v755 = vpop.permute.xlu0 %754
      %756 = vrot.lane.b32.xlu0 %v655, 16
      %v757 = vpop.permute.xlu0 %756
      %758 = vrot.lane.b32.xlu0 %v656, 16
      %v759 = vpop.permute.xlu0 %758
      %760 = vrot.lane.b32.xlu0 %v657, 16
      %v761 = vpop.permute.xlu0 %760
      %762 = vrot.lane.b32.xlu0 %v658, 16
      %v763 = vpop.permute.xlu0 %762
      %764 = vrot.lane.b32.xlu0 %v659, 16
      %v765 = vpop.permute.xlu0 %764
      %766 = vrot.lane.b32.xlu0 %v660, 16
      %v767 = vpop.permute.xlu0 %766
      %768 = vrot.lane.b32.xlu0 %v661, 16
      %v769 = vpop.permute.xlu0 %768
      %770 = vrot.lane.b32.xlu0 %v662, 16
      %v771 = vpop.permute.xlu0 %770
      %772 = vrot.lane.b32.xlu0 %v663, 16
      %v773 = vpop.permute.xlu0 %772
      %774 = vrot.lane.b32.xlu0 %v664, 16
      %v775 = vpop.permute.xlu0 %774
      %776 = vrot.lane.b32.xlu0 %v665, 16
      %v777 = vpop.permute.xlu0 %776
      %v794 = vsel %vm520, %v618, %v683
      %v795 = vsel %vm520, %v619, %v685
      %v796 = vsel %vm520, %v620, %v687
      %v797 = vsel %vm520, %v621, %v689
      %v798 = vsel %vm520, %v622, %v691
      %v799 = vsel %vm520, %v623, %v693
      %v800 = vsel %vm520, %v624, %v695
      %v801 = vsel %vm520, %v625, %v697
      %v802 = vsel %vm520, %v626, %v699
      %v803 = vsel %vm520, %v627, %v701
      %v804 = vsel %vm520, %v628, %v703
      %v805 = vsel %vm520, %v629, %v705
      %v806 = vsel %vm520, %v630, %v707
      %v807 = vsel %vm520, %v631, %v709
      %v808 = vsel %vm520, %v632, %v711
      %v809 = vsel %vm520, %v633, %v713
      %vm810 = vcmask 130048
      %v811 = vsel %vm810, %v794, %v747
      %v812 = vsel %vm810, %v795, %v749
      %v813 = vsel %vm810, %v796, %v751
      %v814 = vsel %vm810, %v797, %v753
      %v815 = vsel %vm810, %v798, %v755
      %v816 = vsel %vm810, %v799, %v757
      %v817 = vsel %vm810, %v800, %v759
      %v818 = vsel %vm810, %v801, %v761
      %v819 = vsel %vm810, %v802, %v763
      %v820 = vsel %vm810, %v803, %v765
      %v821 = vsel %vm810, %v804, %v767
      %v822 = vsel %vm810, %v805, %v769
      %v823 = vsel %vm810, %v806, %v771
      %v824 = vsel %vm810, %v807, %v773
      %v825 = vsel %vm810, %v808, %v775
      %v826 = vsel %vm810, %v809, %v777
      %v827 = vld [vmem:[%s5] sm:$0xff]
      %v828 = vld [vmem:[%s5 + $0x8] sm:$0xff]
      %v829 = vld [vmem:[%s5 + $0x10] sm:$0xff]
      %v830 = vld [vmem:[%s601 + $0x7] sm:$0xff]
      %v831 = vld [vmem:[%s601 + $0xf] sm:$0xff]
      %v832 = vld [vmem:[%s601 + $0x27] sm:$0xff]
      %v833 = vld [vmem:[%s601 + $0x2f] sm:$0xff]
      %v834 = vld [vmem:[%s601 + $0x47] sm:$0xff]
      %v835 = vld [vmem:[%s601 + $0x4f] sm:$0xff]
      %v836 = vld [vmem:[%s601 + $0x67] sm:$0xff]
      %v837 = vld [vmem:[%s601 + $0x6f] sm:$0xff]
      %v838 = vld [vmem:[%s601 + $0x87] sm:$0xff]
      %v839 = vld [vmem:[%s601 + $0x8f] sm:$0xff]
      %v840 = vld [vmem:[%s601 + $0xa7] sm:$0xff]
      %v841 = vld [vmem:[%s601 + $0xaf] sm:$0xff]
      %v842 = vld [vmem:[%s601 + $0xc7] sm:$0xff]
      %v843 = vld [vmem:[%s601 + $0xcf] sm:$0xff]
      %v844 = vld [vmem:[%s601 + $0xe7] sm:$0xff]
      %v845 = vld [vmem:[%s601 + $0xef] sm:$0xff]
      %v846 = vld [vmem:[%s601 + $0x8] sm:$0xff]
      %v847 = vld [vmem:[%s601 + $0x10] sm:$0xff]
      %v848 = vld [vmem:[%s601 + $0x28] sm:$0xff]
      %v849 = vld [vmem:[%s601 + $0x30] sm:$0xff]
      %v850 = vld [vmem:[%s601 + $0x48] sm:$0xff]
      %v851 = vld [vmem:[%s601 + $0x50] sm:$0xff]
      %v852 = vld [vmem:[%s601 + $0x68] sm:$0xff]
      %v853 = vld [vmem:[%s601 + $0x70] sm:$0xff]
      %v854 = vld [vmem:[%s601 + $0x88] sm:$0xff]
      %v855 = vld [vmem:[%s601 + $0x90] sm:$0xff]
      %v856 = vld [vmem:[%s601 + $0xa8] sm:$0xff]
      %v857 = vld [vmem:[%s601 + $0xb0] sm:$0xff]
      %v858 = vld [vmem:[%s601 + $0xc8] sm:$0xff]
      %v859 = vld [vmem:[%s601 + $0xd0] sm:$0xff]
      %v860 = vld [vmem:[%s601 + $0xe8] sm:$0xff]
      %v861 = vld [vmem:[%s601 + $0xf0] sm:$0xff]
      %v862 = vld [vmem:[%s601 + $0x9] sm:$0xff]
      %v863 = vld [vmem:[%s601 + $0x11] sm:$0xff]
      %v864 = vld [vmem:[%s601 + $0x29] sm:$0xff]
      %v865 = vld [vmem:[%s601 + $0x31] sm:$0xff]
      %v866 = vld [vmem:[%s601 + $0x49] sm:$0xff]
      %v867 = vld [vmem:[%s601 + $0x51] sm:$0xff]
      %v868 = vld [vmem:[%s601 + $0x69] sm:$0xff]
      %v869 = vld [vmem:[%s601 + $0x71] sm:$0xff]
      %v870 = vld [vmem:[%s601 + $0x89] sm:$0xff]
      %v871 = vld [vmem:[%s601 + $0x91] sm:$0xff]
      %v872 = vld [vmem:[%s601 + $0xa9] sm:$0xff]
      %v873 = vld [vmem:[%s601 + $0xb1] sm:$0xff]
      %v874 = vld [vmem:[%s601 + $0xc9] sm:$0xff]
      %v875 = vld [vmem:[%s601 + $0xd1] sm:$0xff]
      %v876 = vld [vmem:[%s601 + $0xe9] sm:$0xff]
      %v877 = vld [vmem:[%s601 + $0xf1] sm:$0xff]
      %894 = vrot.lane.b32.xlu0 %v846, 8
      %v895 = vpop.permute.xlu0 %894
      %896 = vrot.lane.b32.xlu0 %v847, 8
      %v897 = vpop.permute.xlu0 %896
      %898 = vrot.lane.b32.xlu0 %v848, 8
      %v899 = vpop.permute.xlu0 %898
      %900 = vrot.lane.b32.xlu0 %v849, 8
      %v901 = vpop.permute.xlu0 %900
      %902 = vrot.lane.b32.xlu0 %v850, 8
      %v903 = vpop.permute.xlu0 %902
      %904 = vrot.lane.b32.xlu0 %v851, 8
      %v905 = vpop.permute.xlu0 %904
      %906 = vrot.lane.b32.xlu0 %v852, 8
      %v907 = vpop.permute.xlu0 %906
      %908 = vrot.lane.b32.xlu0 %v853, 8
      %v909 = vpop.permute.xlu0 %908
      %910 = vrot.lane.b32.xlu0 %v854, 8
      %v911 = vpop.permute.xlu0 %910
      %912 = vrot.lane.b32.xlu0 %v855, 8
      %v913 = vpop.permute.xlu0 %912
      %914 = vrot.lane.b32.xlu0 %v856, 8
      %v915 = vpop.permute.xlu0 %914
      %916 = vrot.lane.b32.xlu0 %v857, 8
      %v917 = vpop.permute.xlu0 %916
      %918 = vrot.lane.b32.xlu0 %v858, 8
      %v919 = vpop.permute.xlu0 %918
      %920 = vrot.lane.b32.xlu0 %v859, 8
      %v921 = vpop.permute.xlu0 %920
      %922 = vrot.lane.b32.xlu0 %v860, 8
      %v923 = vpop.permute.xlu0 %922
      %924 = vrot.lane.b32.xlu0 %v861, 8
      %v925 = vpop.permute.xlu0 %924
      %958 = vrot.lane.b32.xlu0 %v862, 16
      %v959 = vpop.permute.xlu0 %958
      %960 = vrot.lane.b32.xlu0 %v863, 16
      %v961 = vpop.permute.xlu0 %960
      %962 = vrot.lane.b32.xlu0 %v864, 16
      %v963 = vpop.permute.xlu0 %962
      %964 = vrot.lane.b32.xlu0 %v865, 16
      %v965 = vpop.permute.xlu0 %964
      %966 = vrot.lane.b32.xlu0 %v866, 16
      %v967 = vpop.permute.xlu0 %966
      %968 = vrot.lane.b32.xlu0 %v867, 16
      %v969 = vpop.permute.xlu0 %968
      %970 = vrot.lane.b32.xlu0 %v868, 16
      %v971 = vpop.permute.xlu0 %970
      %972 = vrot.lane.b32.xlu0 %v869, 16
      %v973 = vpop.permute.xlu0 %972
      %974 = vrot.lane.b32.xlu0 %v870, 16
      %v975 = vpop.permute.xlu0 %974
      %976 = vrot.lane.b32.xlu0 %v871, 16
      %v977 = vpop.permute.xlu0 %976
      %978 = vrot.lane.b32.xlu0 %v872, 16
      %v979 = vpop.permute.xlu0 %978
      %980 = vrot.lane.b32.xlu0 %v873, 16
      %v981 = vpop.permute.xlu0 %980
      %982 = vrot.lane.b32.xlu0 %v874, 16
      %v983 = vpop.permute.xlu0 %982
      %984 = vrot.lane.b32.xlu0 %v875, 16
      %v985 = vpop.permute.xlu0 %984
      %986 = vrot.lane.b32.xlu0 %v876, 16
      %v987 = vpop.permute.xlu0 %986
      %988 = vrot.lane.b32.xlu0 %v877, 16
      %v989 = vpop.permute.xlu0 %988
      %v1006 = vsel %vm520, %v830, %v895
      %v1007 = vsel %vm520, %v831, %v897
      %v1008 = vsel %vm520, %v832, %v899
      %v1009 = vsel %vm520, %v833, %v901
      %v1010 = vsel %vm520, %v834, %v903
      %v1011 = vsel %vm520, %v835, %v905
      %v1012 = vsel %vm520, %v836, %v907
      %v1013 = vsel %vm520, %v837, %v909
      %v1014 = vsel %vm520, %v838, %v911
      %v1015 = vsel %vm520, %v839, %v913
      %v1016 = vsel %vm520, %v840, %v915
      %v1017 = vsel %vm520, %v841, %v917
      %v1018 = vsel %vm520, %v842, %v919
      %v1019 = vsel %vm520, %v843, %v921
      %v1020 = vsel %vm520, %v844, %v923
      %v1021 = vsel %vm520, %v845, %v925
      %v1022 = vsel %vm810, %v1006, %v959
      %v1023 = vsel %vm810, %v1007, %v961
      %v1024 = vsel %vm810, %v1008, %v963
      %v1025 = vsel %vm810, %v1009, %v965
      %v1026 = vsel %vm810, %v1010, %v967
      %v1027 = vsel %vm810, %v1011, %v969
      %v1028 = vsel %vm810, %v1012, %v971
      %v1029 = vsel %vm810, %v1013, %v973
      %v1030 = vsel %vm810, %v1014, %v975
      %v1031 = vsel %vm810, %v1015, %v977
      %v1032 = vsel %vm810, %v1016, %v979
      %v1033 = vsel %vm810, %v1017, %v981
      %v1034 = vsel %vm810, %v1018, %v983
      %v1035 = vsel %vm810, %v1019, %v985
      %v1036 = vsel %vm810, %v1020, %v987
      %v1037 = vsel %vm810, %v1021, %v989
      %s1038 = scalar_lea.vmem %s5, 24
      %v1039 = vld [vmem:[%s1038] sm:$0xff]
      %v1040 = vld [vmem:[%s1038 + $0x8] sm:$0xff]
      %v1041 = vld [vmem:[%s1038 + $0x10] sm:$0xff]
      %vm1042 = vcmask 195584
      %v1044 = vsel %vm1042, %v1022, 0
      %v1047 = vsel %vm1042, %v1023, 0
      %v1050 = vsel %vm1042, %v1024, 0
      %v1053 = vsel %vm1042, %v1025, 0
      %v1056 = vsel %vm1042, %v1026, 0
      %v1059 = vsel %vm1042, %v1027, 0
      %v1062 = vsel %vm1042, %v1028, 0
      %v1065 = vsel %vm1042, %v1029, 0
      %v1068 = vsel %vm1042, %v1030, 0
      %v1071 = vsel %vm1042, %v1031, 0
      %v1074 = vsel %vm1042, %v1032, 0
      %v1077 = vsel %vm1042, %v1033, 0
      %v1080 = vsel %vm1042, %v1034, 0
      %v1083 = vsel %vm1042, %v1035, 0
      %v1086 = vsel %vm1042, %v1036, 0
      %v1089 = vsel %vm1042, %v1037, 0
      %1091 = vmatprep.subr.mxu0 0.0
      %1092 = vmatpush1.msra.mxu0 %v1039
      %1093 = vmatprep.subr.mxu0 0.0
      %1094 = vmatpush1.msra.mxu0 %v1040
      %1095 = vmatprep.subr.mxu0 0.0
      %1096 = vmatpush1.msra.mxu0 %v1041
      %1097 = vmatprep.subr.mxu0 0.0
      %1098 = vmatpush1.msra.mxu0 0.0
      %1099 = vmatprep.subr.mxu0 0.0
      %1100 = vmatpush1.msra.mxu0 0.0
      %1101 = vmatprep.subr.mxu0 0.0
      %1102 = vmatpush1.msra.mxu0 0.0
      %1103 = vmatprep.subr.mxu0 0.0
      %1104 = vmatpush1.msra.mxu0 0.0
      %1105 = vmatprep.subr.mxu0 0.0
      %1106 = vmatpush1.msra.mxu0 0.0
      %1107 = vmatprep.subr.mxu0 0.0
      %1108 = vmatpush1.msra.mxu0 0.0
      %1109 = vmatprep.subr.mxu0 0.0
      %1110 = vmatpush1.msra.mxu0 0.0
      %1111 = vmatprep.subr.mxu0 0.0
      %1112 = vmatpush1.msra.mxu0 0.0
      %1113 = vmatprep.subr.mxu0 0.0
      %1114 = vmatpush1.msra.mxu0 0.0
      %1115 = vmatprep.subr.mxu0 0.0
      %1116 = vmatpush1.msra.mxu0 0.0
      %1117 = vmatprep.subr.mxu0 0.0
      %1118 = vmatpush1.msra.mxu0 0.0
      %1119 = vmatprep.subr.mxu0 0.0
      %1120 = vmatpush1.msra.mxu0 0.0
      %1121 = vmatprep.subr.mxu0 0.0
      %1122 = vmatpush1.msra.mxu0 0.0
      %1123 = vmatprep.subr.mxu0 0.0
      %1124 = vmatpush1.msra.mxu0 0.0
      %1125 = vmatprep.subr.mxu0 0.0
      %1126 = vmatpush1.msra.mxu0 0.0
      %1127 = vmatprep.subr.mxu0 0.0
      %1128 = vmatpush1.msra.mxu0 0.0
      %1129 = vmatprep.subr.mxu0 0.0
      %1130 = vmatpush1.msra.mxu0 0.0
      %1131 = vmatprep.subr.mxu0 0.0
      %1132 = vmatpush1.msra.mxu0 0.0
      %1133 = vmatprep.subr.mxu0 0.0
      %1134 = vmatpush1.msra.mxu0 0.0
      %1135 = vmatprep.subr.mxu0 0.0
      %1136 = vmatpush1.msra.mxu0 0.0
      %1137 = vmatprep.subr.mxu0 0.0
      %1138 = vmatpush1.msra.mxu0 0.0
      %1139 = vmatprep.subr.mxu0 0.0
      %1140 = vmatpush1.msra.mxu0 0.0
      %1141 = vmatprep.subr.mxu0 0.0
      %1142 = vmatpush1.msra.mxu0 0.0
      %1143 = vmatprep.subr.mxu0 0.0
      %1144 = vmatpush1.msra.mxu0 0.0
      %1145 = vmatprep.subr.mxu0 0.0
      %1146 = vmatpush1.msra.mxu0 0.0
      %1147 = vmatprep.subr.mxu0 0.0
      %1148 = vmatpush1.msra.mxu0 0.0
      %1149 = vmatprep.subr.mxu0 0.0
      %1150 = vmatpush1.msra.mxu0 0.0
      %1151 = vmatprep.subr.mxu0 0.0
      %1152 = vmatpush1.msra.mxu0 0.0
      %1153 = vmatprep.subr.mxu0 0.0
      %1154 = vmatpush1.msra.mxu0 0.0
      %1155 = vmatprep.mubr.f32.mxu0 0.0
      %1156 = vmatmul.mubr.f32.gmra.mrb[0].mxu0 %v1044
      %v1157 = vpop.f32.mrb[0].mxu0
      %v1158 = vadd.f32 0.0, %v1157
      %v1159 = vpop.f32.mrb[0].mxu0
      %1160 = vmatprep.mubr.f32.mxu0 0.0
      %1161 = vmatmul.mubr.f32.gmra.mrb[0].mxu0 %v1047
      %v1162 = vpop.f32.mrb[0].mxu0
      %v1163 = vadd.f32 0.0, %v1162
      %v1164 = vpop.f32.mrb[0].mxu0
      %1165 = vmatprep.mubr.f32.mxu0 0.0
      %1166 = vmatmul.mubr.f32.gmra.mrb[0].mxu0 %v1050
      %v1167 = vpop.f32.mrb[0].mxu0
      %v1168 = vadd.f32 0.0, %v1167
      %v1169 = vpop.f32.mrb[0].mxu0
      %1170 = vmatprep.mubr.f32.mxu0 0.0
      %1171 = vmatmul.mubr.f32.gmra.mrb[0].mxu0 %v1053
      %v1172 = vpop.f32.mrb[0].mxu0
      %v1173 = vadd.f32 0.0, %v1172
      %v1174 = vpop.f32.mrb[0].mxu0
      %1175 = vmatprep.mubr.f32.mxu0 0.0
      %1176 = vmatmul.mubr.f32.gmra.mrb[0].mxu0 %v1056
      %v1177 = vpop.f32.mrb[0].mxu0
      %v1178 = vadd.f32 0.0, %v1177
      %v1179 = vpop.f32.mrb[0].mxu0
      %1180 = vmatprep.mubr.f32.mxu0 0.0
      %1181 = vmatmul.mubr.f32.gmra.mrb[0].mxu0 %v1059
      %v1182 = vpop.f32.mrb[0].mxu0
      %v1183 = vadd.f32 0.0, %v1182
      %v1184 = vpop.f32.mrb[0].mxu0
      %1185 = vmatprep.mubr.f32.mxu0 0.0
      %1186 = vmatmul.mubr.f32.gmra.mrb[0].mxu0 %v1062
      %v1187 = vpop.f32.mrb[0].mxu0
      %v1188 = vadd.f32 0.0, %v1187
      %v1189 = vpop.f32.mrb[0].mxu0
      %1190 = vmatprep.mubr.f32.mxu0 0.0
      %1191 = vmatmul.mubr.f32.gmra.mrb[0].mxu0 %v1065
      %v1192 = vpop.f32.mrb[0].mxu0
      %v1193 = vadd.f32 0.0, %v1192
      %v1194 = vpop.f32.mrb[0].mxu0
      %1195 = vmatprep.mubr.f32.mxu0 0.0
      %1196 = vmatmul.mubr.f32.gmra.mrb[0].mxu0 %v1068
      %v1197 = vpop.f32.mrb[0].mxu0
      %v1198 = vadd.f32 0.0, %v1197
      %v1199 = vpop.f32.mrb[0].mxu0
      %1200 = vmatprep.mubr.f32.mxu0 0.0
      %1201 = vmatmul.mubr.f32.gmra.mrb[0].mxu0 %v1071
      %v1202 = vpop.f32.mrb[0].mxu0
      %v1203 = vadd.f32 0.0, %v1202
      %v1204 = vpop.f32.mrb[0].mxu0
      %1205 = vmatprep.mubr.f32.mxu0 0.0
      %1206 = vmatmul.mubr.f32.gmra.mrb[0].mxu0 %v1074
      %v1207 = vpop.f32.mrb[0].mxu0
      %v1208 = vadd.f32 0.0, %v1207
      %v1209 = vpop.f32.mrb[0].mxu0
      %1210 = vmatprep.mubr.f32.mxu0 0.0
      %1211 = vmatmul.mubr.f32.gmra.mrb[0].mxu0 %v1077
      %v1212 = vpop.f32.mrb[0].mxu0
      %v1213 = vadd.f32 0.0, %v1212
      %v1214 = vpop.f32.mrb[0].mxu0
      %1215 = vmatprep.mubr.f32.mxu0 0.0
      %1216 = vmatmul.mubr.f32.gmra.mrb[0].mxu0 %v1080
      %v1217 = vpop.f32.mrb[0].mxu0
      %v1218 = vadd.f32 0.0, %v1217
      %v1219 = vpop.f32.mrb[0].mxu0
      %1220 = vmatprep.mubr.f32.mxu0 0.0
      %1221 = vmatmul.mubr.f32.gmra.mrb[0].mxu0 %v1083
      %v1222 = vpop.f32.mrb[0].mxu0
      %v1223 = vadd.f32 0.0, %v1222
      %v1224 = vpop.f32.mrb[0].mxu0
      %1225 = vmatprep.mubr.f32.mxu0 0.0
      %1226 = vmatmul.mubr.f32.gmra.mrb[0].mxu0 %v1086
      %v1227 = vpop.f32.mrb[0].mxu0
      %v1228 = vadd.f32 0.0, %v1227
      %v1229 = vpop.f32.mrb[0].mxu0
      %1230 = vmatprep.mubr.f32.mxu0 0.0
      %1231 = vmatmul.mubr.f32.gmra.mrb[0].mxu0 %v1089
      %v1232 = vpop.f32.mrb[0].mxu0
      %v1233 = vadd.f32 0.0, %v1232
      %v1234 = vpop.f32.mrb[0].mxu0
      %1235 = vdwg.mxu0
      %v1237 = vsel %vm1042, %v811, 0
      %v1240 = vsel %vm1042, %v812, 0
      %v1243 = vsel %vm1042, %v813, 0
      %v1246 = vsel %vm1042, %v814, 0
      %v1249 = vsel %vm1042, %v815, 0
      %v1252 = vsel %vm1042, %v816, 0
      %v1255 = vsel %vm1042, %v817, 0
      %v1258 = vsel %vm1042, %v818, 0
      %v1261 = vsel %vm1042, %v819, 0
      %v1264 = vsel %vm1042, %v820, 0
      %v1267 = vsel %vm1042, %v821, 0
      %v1270 = vsel %vm1042, %v822, 0
      %v1273 = vsel %vm1042, %v823, 0
      %v1276 = vsel %vm1042, %v824, 0
      %v1279 = vsel %vm1042, %v825, 0
      %v1282 = vsel %vm1042, %v826, 0
      %1284 = vmatprep.subr.mxu0 0.0
      %1285 = vmatpush1.msra.mxu0 %v827
      %1286 = vmatprep.subr.mxu0 0.0
      %1287 = vmatpush1.msra.mxu0 %v828
      %1288 = vmatprep.subr.mxu0 0.0
      %1289 = vmatpush1.msra.mxu0 %v829
      %1290 = vmatprep.subr.mxu0 0.0
      %1291 = vmatpush1.msra.mxu0 0.0
      %1292 = vmatprep.subr.mxu0 0.0
      %1293 = vmatpush1.msra.mxu0 0.0
      %1294 = vmatprep.subr.mxu0 0.0
      %1295 = vmatpush1.msra.mxu0 0.0
      %1296 = vmatprep.subr.mxu0 0.0
      %1297 = vmatpush1.msra.mxu0 0.0
      %1298 = vmatprep.subr.mxu0 0.0
      %1299 = vmatpush1.msra.mxu0 0.0
      %1300 = vmatprep.subr.mxu0 0.0
      %1301 = vmatpush1.msra.mxu0 0.0
      %1302 = vmatprep.subr.mxu0 0.0
      %1303 = vmatpush1.msra.mxu0 0.0
      %1304 = vmatprep.subr.mxu0 0.0
      %1305 = vmatpush1.msra.mxu0 0.0
      %1306 = vmatprep.subr.mxu0 0.0
      %1307 = vmatpush1.msra.mxu0 0.0
      %1308 = vmatprep.subr.mxu0 0.0
      %1309 = vmatpush1.msra.mxu0 0.0
      %1310 = vmatprep.subr.mxu0 0.0
      %1311 = vmatpush1.msra.mxu0 0.0
      %1312 = vmatprep.subr.mxu0 0.0
      %1313 = vmatpush1.msra.mxu0 0.0
      %1314 = vmatprep.subr.mxu0 0.0
      %1315 = vmatpush1.msra.mxu0 0.0
      %1316 = vmatprep.subr.mxu0 0.0
      %1317 = vmatpush1.msra.mxu0 0.0
      %1318 = vmatprep.subr.mxu0 0.0
      %1319 = vmatpush1.msra.mxu0 0.0
      %1320 = vmatprep.subr.mxu0 0.0
      %1321 = vmatpush1.msra.mxu0 0.0
      %1322 = vmatprep.subr.mxu0 0.0
      %1323 = vmatpush1.msra.mxu0 0.0
      %1324 = vmatprep.subr.mxu0 0.0
      %1325 = vmatpush1.msra.mxu0 0.0
      %1326 = vmatprep.subr.mxu0 0.0
      %1327 = vmatpush1.msra.mxu0 0.0
      %1328 = vmatprep.subr.mxu0 0.0
      %1329 = vmatpush1.msra.mxu0 0.0
      %1330 = vmatprep.subr.mxu0 0.0
      %1331 = vmatpush1.msra.mxu0 0.0
      %1332 = vmatprep.subr.mxu0 0.0
      %1333 = vmatpush1.msra.mxu0 0.0
      %1334 = vmatprep.subr.mxu0 0.0
      %1335 = vmatpush1.msra.mxu0 0.0
      %1336 = vmatprep.subr.mxu0 0.0
      %1337 = vmatpush1.msra.mxu0 0.0
      %1338 = vmatprep.subr.mxu0 0.0
      %1339 = vmatpush1.msra.mxu0 0.0
      %1340 = vmatprep.subr.mxu0 0.0
      %1341 = vmatpush1.msra.mxu0 0.0
      %1342 = vmatprep.subr.mxu0 0.0
      %1343 = vmatpush1.msra.mxu0 0.0
      %1344 = vmatprep.subr.mxu0 0.0
      %1345 = vmatpush1.msra.mxu0 0.0
      %1346 = vmatprep.subr.mxu0 0.0
      %1347 = vmatpush1.msra.mxu0 0.0
      %1348 = vmatprep.mubr.f32.mxu0 0.0
      %1349 = vmatmul.mubr.f32.gmra.mrb[0].mxu0 %v1237
      %v1350 = vpop.f32.mrb[0].mxu0
      %v1351 = vadd.f32 %v1158, %v1350
      %v1352 = vpop.f32.mrb[0].mxu0
      %1353 = vmatprep.mubr.f32.mxu0 0.0
      %1354 = vmatmul.mubr.f32.gmra.mrb[0].mxu0 %v1240
      %v1355 = vpop.f32.mrb[0].mxu0
      %v1356 = vadd.f32 %v1163, %v1355
      %v1357 = vpop.f32.mrb[0].mxu0
      %1358 = vmatprep.mubr.f32.mxu0 0.0
      %1359 = vmatmul.mubr.f32.gmra.mrb[0].mxu0 %v1243
      %v1360 = vpop.f32.mrb[0].mxu0
      %v1361 = vadd.f32 %v1168, %v1360
      %v1362 = vpop.f32.mrb[0].mxu0
      %1363 = vmatprep.mubr.f32.mxu0 0.0
      %1364 = vmatmul.mubr.f32.gmra.mrb[0].mxu0 %v1246
      %v1365 = vpop.f32.mrb[0].mxu0
      %v1366 = vadd.f32 %v1173, %v1365
      %v1367 = vpop.f32.mrb[0].mxu0
      %1368 = vmatprep.mubr.f32.mxu0 0.0
      %1369 = vmatmul.mubr.f32.gmra.mrb[0].mxu0 %v1249
      %v1370 = vpop.f32.mrb[0].mxu0
      %v1371 = vadd.f32 %v1178, %v1370
      %v1372 = vpop.f32.mrb[0].mxu0
      %1373 = vmatprep.mubr.f32.mxu0 0.0
      %1374 = vmatmul.mubr.f32.gmra.mrb[0].mxu0 %v1252
      %v1375 = vpop.f32.mrb[0].mxu0
      %v1376 = vadd.f32 %v1183, %v1375
      %v1377 = vpop.f32.mrb[0].mxu0
      %1378 = vmatprep.mubr.f32.mxu0 0.0
      %1379 = vmatmul.mubr.f32.gmra.mrb[0].mxu0 %v1255
      %v1380 = vpop.f32.mrb[0].mxu0
      %v1381 = vadd.f32 %v1188, %v1380
      %v1382 = vpop.f32.mrb[0].mxu0
      %1383 = vmatprep.mubr.f32.mxu0 0.0
      %1384 = vmatmul.mubr.f32.gmra.mrb[0].mxu0 %v1258
      %v1385 = vpop.f32.mrb[0].mxu0
      %v1386 = vadd.f32 %v1193, %v1385
      %v1387 = vpop.f32.mrb[0].mxu0
      %1388 = vmatprep.mubr.f32.mxu0 0.0
      %1389 = vmatmul.mubr.f32.gmra.mrb[0].mxu0 %v1261
      %v1390 = vpop.f32.mrb[0].mxu0
      %v1391 = vadd.f32 %v1198, %v1390
      %v1392 = vpop.f32.mrb[0].mxu0
      %1393 = vmatprep.mubr.f32.mxu0 0.0
      %1394 = vmatmul.mubr.f32.gmra.mrb[0].mxu0 %v1264
      %v1395 = vpop.f32.mrb[0].mxu0
      %v1396 = vadd.f32 %v1203, %v1395
      %v1397 = vpop.f32.mrb[0].mxu0
      %1398 = vmatprep.mubr.f32.mxu0 0.0
      %1399 = vmatmul.mubr.f32.gmra.mrb[0].mxu0 %v1267
      %v1400 = vpop.f32.mrb[0].mxu0
      %v1401 = vadd.f32 %v1208, %v1400
      %v1402 = vpop.f32.mrb[0].mxu0
      %1403 = vmatprep.mubr.f32.mxu0 0.0
      %1404 = vmatmul.mubr.f32.gmra.mrb[0].mxu0 %v1270
      %v1405 = vpop.f32.mrb[0].mxu0
      %v1406 = vadd.f32 %v1213, %v1405
      %v1407 = vpop.f32.mrb[0].mxu0
      %1408 = vmatprep.mubr.f32.mxu0 0.0
      %1409 = vmatmul.mubr.f32.gmra.mrb[0].mxu0 %v1273
      %v1410 = vpop.f32.mrb[0].mxu0
      %v1411 = vadd.f32 %v1218, %v1410
      %v1412 = vpop.f32.mrb[0].mxu0
      %1413 = vmatprep.mubr.f32.mxu0 0.0
      %1414 = vmatmul.mubr.f32.gmra.mrb[0].mxu0 %v1276
      %v1415 = vpop.f32.mrb[0].mxu0
      %v1416 = vadd.f32 %v1223, %v1415
      %v1417 = vpop.f32.mrb[0].mxu0
      %1418 = vmatprep.mubr.f32.mxu0 0.0
      %1419 = vmatmul.mubr.f32.gmra.mrb[0].mxu0 %v1279
      %v1420 = vpop.f32.mrb[0].mxu0
      %v1421 = vadd.f32 %v1228, %v1420
      %v1422 = vpop.f32.mrb[0].mxu0
      %1423 = vmatprep.mubr.f32.mxu0 0.0
      %1424 = vmatmul.mubr.f32.gmra.mrb[0].mxu0 %v1282
      %v1425 = vpop.f32.mrb[0].mxu0
      %v1426 = vadd.f32 %v1233, %v1425
      %v1427 = vpop.f32.mrb[0].mxu0
      %1428 = vdwg.mxu0
      %s1429 = scalar_lea.vmem [#allocation2], 64
      %v1430 = vld [vmem:[%s1429 + $0x7] sm:$0xff]
      %v1431 = vld [vmem:[%s1429 + $0xf] sm:$0xff]
      %v1432 = vld [vmem:[%s1429 + $0x27] sm:$0xff]
      %v1433 = vld [vmem:[%s1429 + $0x2f] sm:$0xff]
      %v1434 = vld [vmem:[%s1429 + $0x47] sm:$0xff]
      %v1435 = vld [vmem:[%s1429 + $0x4f] sm:$0xff]
      %v1436 = vld [vmem:[%s1429 + $0x67] sm:$0xff]
      %v1437 = vld [vmem:[%s1429 + $0x6f] sm:$0xff]
      %v1438 = vld [vmem:[%s1429 + $0x87] sm:$0xff]
      %v1439 = vld [vmem:[%s1429 + $0x8f] sm:$0xff]
      %v1440 = vld [vmem:[%s1429 + $0xa7] sm:$0xff]
      %v1441 = vld [vmem:[%s1429 + $0xaf] sm:$0xff]
      %v1442 = vld [vmem:[%s1429 + $0xc7] sm:$0xff]
      %v1443 = vld [vmem:[%s1429 + $0xcf] sm:$0xff]
      %v1444 = vld [vmem:[%s1429 + $0xe7] sm:$0xff]
      %v1445 = vld [vmem:[%s1429 + $0xef] sm:$0xff]
      %v1446 = vld [vmem:[%s1429 + $0x8] sm:$0xff]
      %v1447 = vld [vmem:[%s1429 + $0x10] sm:$0xff]
      %v1448 = vld [vmem:[%s1429 + $0x28] sm:$0xff]
      %v1449 = vld [vmem:[%s1429 + $0x30] sm:$0xff]
      %v1450 = vld [vmem:[%s1429 + $0x48] sm:$0xff]
      %v1451 = vld [vmem:[%s1429 + $0x50] sm:$0xff]
      %v1452 = vld [vmem:[%s1429 + $0x68] sm:$0xff]
      %v1453 = vld [vmem:[%s1429 + $0x70] sm:$0xff]
      %v1454 = vld [vmem:[%s1429 + $0x88] sm:$0xff]
      %v1455 = vld [vmem:[%s1429 + $0x90] sm:$0xff]
      %v1456 = vld [vmem:[%s1429 + $0xa8] sm:$0xff]
      %v1457 = vld [vmem:[%s1429 + $0xb0] sm:$0xff]
      %v1458 = vld [vmem:[%s1429 + $0xc8] sm:$0xff]
      %v1459 = vld [vmem:[%s1429 + $0xd0] sm:$0xff]
      %v1460 = vld [vmem:[%s1429 + $0xe8] sm:$0xff]
      %v1461 = vld [vmem:[%s1429 + $0xf0] sm:$0xff]
      %v1462 = vld [vmem:[%s1429 + $0x9] sm:$0xff]
      %v1463 = vld [vmem:[%s1429 + $0x11] sm:$0xff]
      %v1464 = vld [vmem:[%s1429 + $0x29] sm:$0xff]
      %v1465 = vld [vmem:[%s1429 + $0x31] sm:$0xff]
      %v1466 = vld [vmem:[%s1429 + $0x49] sm:$0xff]
      %v1467 = vld [vmem:[%s1429 + $0x51] sm:$0xff]
      %v1468 = vld [vmem:[%s1429 + $0x69] sm:$0xff]
      %v1469 = vld [vmem:[%s1429 + $0x71] sm:$0xff]
      %v1470 = vld [vmem:[%s1429 + $0x89] sm:$0xff]
      %v1471 = vld [vmem:[%s1429 + $0x91] sm:$0xff]
      %v1472 = vld [vmem:[%s1429 + $0xa9] sm:$0xff]
      %v1473 = vld [vmem:[%s1429 + $0xb1] sm:$0xff]
      %v1474 = vld [vmem:[%s1429 + $0xc9] sm:$0xff]
      %v1475 = vld [vmem:[%s1429 + $0xd1] sm:$0xff]
      %v1476 = vld [vmem:[%s1429 + $0xe9] sm:$0xff]
      %v1477 = vld [vmem:[%s1429 + $0xf1] sm:$0xff]
      %1494 = vrot.lane.b32.xlu0 %v1446, 8
      %v1495 = vpop.permute.xlu0 %1494
      %1496 = vrot.lane.b32.xlu0 %v1447, 8
      %v1497 = vpop.permute.xlu0 %1496
      %1498 = vrot.lane.b32.xlu0 %v1448, 8
      %v1499 = vpop.permute.xlu0 %1498
      %1500 = vrot.lane.b32.xlu0 %v1449, 8
      %v1501 = vpop.permute.xlu0 %1500
      %1502 = vrot.lane.b32.xlu0 %v1450, 8
      %v1503 = vpop.permute.xlu0 %1502
      %1504 = vrot.lane.b32.xlu0 %v1451, 8
      %v1505 = vpop.permute.xlu0 %1504
      %1506 = vrot.lane.b32.xlu0 %v1452, 8
      %v1507 = vpop.permute.xlu0 %1506
      %1508 = vrot.lane.b32.xlu0 %v1453, 8
      %v1509 = vpop.permute.xlu0 %1508
      %1510 = vrot.lane.b32.xlu0 %v1454, 8
      %v1511 = vpop.permute.xlu0 %1510
      %1512 = vrot.lane.b32.xlu0 %v1455, 8
      %v1513 = vpop.permute.xlu0 %1512
      %1514 = vrot.lane.b32.xlu0 %v1456, 8
      %v1515 = vpop.permute.xlu0 %1514
      %1516 = vrot.lane.b32.xlu0 %v1457, 8
      %v1517 = vpop.permute.xlu0 %1516
      %1518 = vrot.lane.b32.xlu0 %v1458, 8
      %v1519 = vpop.permute.xlu0 %1518
      %1520 = vrot.lane.b32.xlu0 %v1459, 8
      %v1521 = vpop.permute.xlu0 %1520
      %1522 = vrot.lane.b32.xlu0 %v1460, 8
      %v1523 = vpop.permute.xlu0 %1522
      %1524 = vrot.lane.b32.xlu0 %v1461, 8
      %v1525 = vpop.permute.xlu0 %1524
      %1558 = vrot.lane.b32.xlu0 %v1462, 16
      %v1559 = vpop.permute.xlu0 %1558
      %1560 = vrot.lane.b32.xlu0 %v1463, 16
      %v1561 = vpop.permute.xlu0 %1560
      %1562 = vrot.lane.b32.xlu0 %v1464, 16
      %v1563 = vpop.permute.xlu0 %1562
      %1564 = vrot.lane.b32.xlu0 %v1465, 16
      %v1565 = vpop.permute.xlu0 %1564
      %1566 = vrot.lane.b32.xlu0 %v1466, 16
      %v1567 = vpop.permute.xlu0 %1566
      %1568 = vrot.lane.b32.xlu0 %v1467, 16
      %v1569 = vpop.permute.xlu0 %1568
      %1570 = vrot.lane.b32.xlu0 %v1468, 16
      %v1571 = vpop.permute.xlu0 %1570
      %1572 = vrot.lane.b32.xlu0 %v1469, 16
      %v1573 = vpop.permute.xlu0 %1572
      %1574 = vrot.lane.b32.xlu0 %v1470, 16
      %v1575 = vpop.permute.xlu0 %1574
      %1576 = vrot.lane.b32.xlu0 %v1471, 16
      %v1577 = vpop.permute.xlu0 %1576
      %1578 = vrot.lane.b32.xlu0 %v1472, 16
      %v1579 = vpop.permute.xlu0 %1578
      %1580 = vrot.lane.b32.xlu0 %v1473, 16
      %v1581 = vpop.permute.xlu0 %1580
      %1582 = vrot.lane.b32.xlu0 %v1474, 16
      %v1583 = vpop.permute.xlu0 %1582
      %1584 = vrot.lane.b32.xlu0 %v1475, 16
      %v1585 = vpop.permute.xlu0 %1584
      %1586 = vrot.lane.b32.xlu0 %v1476, 16
      %v1587 = vpop.permute.xlu0 %1586
      %1588 = vrot.lane.b32.xlu0 %v1477, 16
      %v1589 = vpop.permute.xlu0 %1588
      %v1606 = vsel %vm520, %v1430, %v1495
      %v1607 = vsel %vm520, %v1431, %v1497
      %v1608 = vsel %vm520, %v1432, %v1499
      %v1609 = vsel %vm520, %v1433, %v1501
      %v1610 = vsel %vm520, %v1434, %v1503
      %v1611 = vsel %vm520, %v1435, %v1505
      %v1612 = vsel %vm520, %v1436, %v1507
      %v1613 = vsel %vm520, %v1437, %v1509
      %v1614 = vsel %vm520, %v1438, %v1511
      %v1615 = vsel %vm520, %v1439, %v1513
      %v1616 = vsel %vm520, %v1440, %v1515
      %v1617 = vsel %vm520, %v1441, %v1517
      %v1618 = vsel %vm520, %v1442, %v1519
      %v1619 = vsel %vm520, %v1443, %v1521
      %v1620 = vsel %vm520, %v1444, %v1523
      %v1621 = vsel %vm520, %v1445, %v1525
      %v1622 = vsel %vm810, %v1606, %v1559
      %v1623 = vsel %vm810, %v1607, %v1561
      %v1624 = vsel %vm810, %v1608, %v1563
      %v1625 = vsel %vm810, %v1609, %v1565
      %v1626 = vsel %vm810, %v1610, %v1567
      %v1627 = vsel %vm810, %v1611, %v1569
      %v1628 = vsel %vm810, %v1612, %v1571
      %v1629 = vsel %vm810, %v1613, %v1573
      %v1630 = vsel %vm810, %v1614, %v1575
      %v1631 = vsel %vm810, %v1615, %v1577
      %v1632 = vsel %vm810, %v1616, %v1579
      %v1633 = vsel %vm810, %v1617, %v1581
      %v1634 = vsel %vm810, %v1618, %v1583
      %v1635 = vsel %vm810, %v1619, %v1585
      %v1636 = vsel %vm810, %v1620, %v1587
      %v1637 = vsel %vm810, %v1621, %v1589
      %s1638 = scalar_lea.vmem %s5, 48
      %v1639 = vld [vmem:[%s1638] sm:$0xff]
      %v1640 = vld [vmem:[%s1638 + $0x8] sm:$0xff]
      %v1641 = vld [vmem:[%s1638 + $0x10] sm:$0xff]
      %v1643 = vsel %vm1042, %v1622, 0
      %v1646 = vsel %vm1042, %v1623, 0
      %v1649 = vsel %vm1042, %v1624, 0
      %v1652 = vsel %vm1042, %v1625, 0
      %v1655 = vsel %vm1042, %v1626, 0
      %v1658 = vsel %vm1042, %v1627, 0
      %v1661 = vsel %vm1042, %v1628, 0
      %v1664 = vsel %vm1042, %v1629, 0
      %v1667 = vsel %vm1042, %v1630, 0
      %v1670 = vsel %vm1042, %v1631, 0
      %v1673 = vsel %vm1042, %v1632, 0
      %v1676 = vsel %vm1042, %v1633, 0
      %v1679 = vsel %vm1042, %v1634, 0
      %v1682 = vsel %vm1042, %v1635, 0
      %v1685 = vsel %vm1042, %v1636, 0
      %v1688 = vsel %vm1042, %v1637, 0
      %1690 = vmatprep.subr.mxu0 0.0
      %1691 = vmatpush1.msra.mxu0 %v1639
      %1692 = vmatprep.subr.mxu0 0.0
      %1693 = vmatpush1.msra.mxu0 %v1640
      %1694 = vmatprep.subr.mxu0 0.0
      %1695 = vmatpush1.msra.mxu0 %v1641
      %1696 = vmatprep.subr.mxu0 0.0
      %1697 = vmatpush1.msra.mxu0 0.0
      %1698 = vmatprep.subr.mxu0 0.0
      %1699 = vmatpush1.msra.mxu0 0.0
      %1700 = vmatprep.subr.mxu0 0.0
      %1701 = vmatpush1.msra.mxu0 0.0
      %1702 = vmatprep.subr.mxu0 0.0
      %1703 = vmatpush1.msra.mxu0 0.0
      %1704 = vmatprep.subr.mxu0 0.0
      %1705 = vmatpush1.msra.mxu0 0.0
      %1706 = vmatprep.subr.mxu0 0.0
      %1707 = vmatpush1.msra.mxu0 0.0
      %1708 = vmatprep.subr.mxu0 0.0
      %1709 = vmatpush1.msra.mxu0 0.0
      %1710 = vmatprep.subr.mxu0 0.0
      %1711 = vmatpush1.msra.mxu0 0.0
      %1712 = vmatprep.subr.mxu0 0.0
      %1713 = vmatpush1.msra.mxu0 0.0
      %1714 = vmatprep.subr.mxu0 0.0
      %1715 = vmatpush1.msra.mxu0 0.0
      %1716 = vmatprep.subr.mxu0 0.0
      %1717 = vmatpush1.msra.mxu0 0.0
      %1718 = vmatprep.subr.mxu0 0.0
      %1719 = vmatpush1.msra.mxu0 0.0
      %1720 = vmatprep.subr.mxu0 0.0
      %1721 = vmatpush1.msra.mxu0 0.0
      %1722 = vmatprep.subr.mxu0 0.0
      %1723 = vmatpush1.msra.mxu0 0.0
      %1724 = vmatprep.subr.mxu0 0.0
      %1725 = vmatpush1.msra.mxu0 0.0
      %1726 = vmatprep.subr.mxu0 0.0
      %1727 = vmatpush1.msra.mxu0 0.0
      %1728 = vmatprep.subr.mxu0 0.0
      %1729 = vmatpush1.msra.mxu0 0.0
      %1730 = vmatprep.subr.mxu0 0.0
      %1731 = vmatpush1.msra.mxu0 0.0
      %1732 = vmatprep.subr.mxu0 0.0
      %1733 = vmatpush1.msra.mxu0 0.0
      %1734 = vmatprep.subr.mxu0 0.0
      %1735 = vmatpush1.msra.mxu0 0.0
      %1736 = vmatprep.subr.mxu0 0.0
      %1737 = vmatpush1.msra.mxu0 0.0
      %1738 = vmatprep.subr.mxu0 0.0
      %1739 = vmatpush1.msra.mxu0 0.0
      %1740 = vmatprep.subr.mxu0 0.0
      %1741 = vmatpush1.msra.mxu0 0.0
      %1742 = vmatprep.subr.mxu0 0.0
      %1743 = vmatpush1.msra.mxu0 0.0
      %1744 = vmatprep.subr.mxu0 0.0
      %1745 = vmatpush1.msra.mxu0 0.0
      %1746 = vmatprep.subr.mxu0 0.0
      %1747 = vmatpush1.msra.mxu0 0.0
      %1748 = vmatprep.subr.mxu0 0.0
      %1749 = vmatpush1.msra.mxu0 0.0
      %1750 = vmatprep.subr.mxu0 0.0
      %1751 = vmatpush1.msra.mxu0 0.0
      %1752 = vmatprep.subr.mxu0 0.0
      %1753 = vmatpush1.msra.mxu0 0.0
      %1754 = vmatprep.mubr.f32.mxu0 0.0
      %1755 = vmatmul.mubr.f32.gmra.mrb[0].mxu0 %v1643
      %v1756 = vpop.f32.mrb[0].mxu0
      %v1757 = vadd.f32 0.0, %v1756
      %v1758 = vpop.f32.mrb[0].mxu0
      %1759 = vmatprep.mubr.f32.mxu0 0.0
      %1760 = vmatmul.mubr.f32.gmra.mrb[0].mxu0 %v1646
      %v1761 = vpop.f32.mrb[0].mxu0
      %v1762 = vadd.f32 0.0, %v1761
      %v1763 = vpop.f32.mrb[0].mxu0
      %1764 = vmatprep.mubr.f32.mxu0 0.0
      %1765 = vmatmul.mubr.f32.gmra.mrb[0].mxu0 %v1649
      %v1766 = vpop.f32.mrb[0].mxu0
      %v1767 = vadd.f32 0.0, %v1766
      %v1768 = vpop.f32.mrb[0].mxu0
      %1769 = vmatprep.mubr.f32.mxu0 0.0
      %1770 = vmatmul.mubr.f32.gmra.mrb[0].mxu0 %v1652
      %v1771 = vpop.f32.mrb[0].mxu0
      %v1772 = vadd.f32 0.0, %v1771
      %v1773 = vpop.f32.mrb[0].mxu0
      %1774 = vmatprep.mubr.f32.mxu0 0.0
      %1775 = vmatmul.mubr.f32.gmra.mrb[0].mxu0 %v1655
      %v1776 = vpop.f32.mrb[0].mxu0
      %v1777 = vadd.f32 0.0, %v1776
      %v1778 = vpop.f32.mrb[0].mxu0
      %1779 = vmatprep.mubr.f32.mxu0 0.0
      %1780 = vmatmul.mubr.f32.gmra.mrb[0].mxu0 %v1658
      %v1781 = vpop.f32.mrb[0].mxu0
      %v1782 = vadd.f32 0.0, %v1781
      %v1783 = vpop.f32.mrb[0].mxu0
      %1784 = vmatprep.mubr.f32.mxu0 0.0
      %1785 = vmatmul.mubr.f32.gmra.mrb[0].mxu0 %v1661
      %v1786 = vpop.f32.mrb[0].mxu0
      %v1787 = vadd.f32 0.0, %v1786
      %v1788 = vpop.f32.mrb[0].mxu0
      %1789 = vmatprep.mubr.f32.mxu0 0.0
      %1790 = vmatmul.mubr.f32.gmra.mrb[0].mxu0 %v1664
      %v1791 = vpop.f32.mrb[0].mxu0
      %v1792 = vadd.f32 0.0, %v1791
      %v1793 = vpop.f32.mrb[0].mxu0
      %1794 = vmatprep.mubr.f32.mxu0 0.0
      %1795 = vmatmul.mubr.f32.gmra.mrb[0].mxu0 %v1667
      %v1796 = vpop.f32.mrb[0].mxu0
      %v1797 = vadd.f32 0.0, %v1796
      %v1798 = vpop.f32.mrb[0].mxu0
      %1799 = vmatprep.mubr.f32.mxu0 0.0
      %1800 = vmatmul.mubr.f32.gmra.mrb[0].mxu0 %v1670
      %v1801 = vpop.f32.mrb[0].mxu0
      %v1802 = vadd.f32 0.0, %v1801
      %v1803 = vpop.f32.mrb[0].mxu0
      %1804 = vmatprep.mubr.f32.mxu0 0.0
      %1805 = vmatmul.mubr.f32.gmra.mrb[0].mxu0 %v1673
      %v1806 = vpop.f32.mrb[0].mxu0
      %v1807 = vadd.f32 0.0, %v1806
      %v1808 = vpop.f32.mrb[0].mxu0
      %1809 = vmatprep.mubr.f32.mxu0 0.0
      %1810 = vmatmul.mubr.f32.gmra.mrb[0].mxu0 %v1676
      %v1811 = vpop.f32.mrb[0].mxu0
      %v1812 = vadd.f32 0.0, %v1811
      %v1813 = vpop.f32.mrb[0].mxu0
      %1814 = vmatprep.mubr.f32.mxu0 0.0
      %1815 = vmatmul.mubr.f32.gmra.mrb[0].mxu0 %v1679
      %v1816 = vpop.f32.mrb[0].mxu0
      %v1817 = vadd.f32 0.0, %v1816
      %v1818 = vpop.f32.mrb[0].mxu0
      %1819 = vmatprep.mubr.f32.mxu0 0.0
      %1820 = vmatmul.mubr.f32.gmra.mrb[0].mxu0 %v1682
      %v1821 = vpop.f32.mrb[0].mxu0
      %v1822 = vadd.f32 0.0, %v1821
      %v1823 = vpop.f32.mrb[0].mxu0
      %1824 = vmatprep.mubr.f32.mxu0 0.0
      %1825 = vmatmul.mubr.f32.gmra.mrb[0].mxu0 %v1685
      %v1826 = vpop.f32.mrb[0].mxu0
      %v1827 = vadd.f32 0.0, %v1826
      %v1828 = vpop.f32.mrb[0].mxu0
      %1829 = vmatprep.mubr.f32.mxu0 0.0
      %1830 = vmatmul.mubr.f32.gmra.mrb[0].mxu0 %v1688
      %v1831 = vpop.f32.mrb[0].mxu0
      %v1832 = vadd.f32 0.0, %v1831
      %v1833 = vpop.f32.mrb[0].mxu0
      %1834 = vdwg.mxu0
      %v1835 = vadd.f32 %v1351, %v1757
      %v1836 = vadd.f32 %v1356, %v1762
      %v1837 = vadd.f32 %v1361, %v1767
      %v1838 = vadd.f32 %v1366, %v1772
      %v1839 = vadd.f32 %v1371, %v1777
      %v1840 = vadd.f32 %v1376, %v1782
      %v1841 = vadd.f32 %v1381, %v1787
      %v1842 = vadd.f32 %v1386, %v1792
      %v1843 = vadd.f32 %v1391, %v1797
      %v1844 = vadd.f32 %v1396, %v1802
      %v1845 = vadd.f32 %v1401, %v1807
      %v1846 = vadd.f32 %v1406, %v1812
      %v1847 = vadd.f32 %v1411, %v1817
      %v1848 = vadd.f32 %v1416, %v1822
      %v1849 = vadd.f32 %v1421, %v1827
      %v1850 = vadd.f32 %v1426, %v1832
      %v1851 = vsel %vm520, %v1835, 0.0
      %v1852 = vsel %vm520, %v1836, 0.0
      %v1853 = vadd.f32 %v1851, %v1852
      %v1854 = vsel %vm520, %v1837, 0.0
      %v1855 = vadd.f32 %v1853, %v1854
      %v1856 = vsel %vm520, %v1838, 0.0
      %v1857 = vadd.f32 %v1855, %v1856
      %v1858 = vsel %vm520, %v1839, 0.0
      %v1859 = vadd.f32 %v1857, %v1858
      %v1860 = vsel %vm520, %v1840, 0.0
      %v1861 = vadd.f32 %v1859, %v1860
      %v1862 = vsel %vm520, %v1841, 0.0
      %v1863 = vadd.f32 %v1861, %v1862
      %v1864 = vsel %vm520, %v1842, 0.0
      %v1865 = vadd.f32 %v1863, %v1864
      %v1866 = vsel %vm520, %v1843, 0.0
      %v1867 = vadd.f32 %v1865, %v1866
      %v1868 = vsel %vm520, %v1844, 0.0
      %v1869 = vadd.f32 %v1867, %v1868
      %v1870 = vsel %vm520, %v1845, 0.0
      %v1871 = vadd.f32 %v1869, %v1870
      %v1872 = vsel %vm520, %v1846, 0.0
      %v1873 = vadd.f32 %v1871, %v1872
      %v1874 = vsel %vm520, %v1847, 0.0
      %v1875 = vadd.f32 %v1873, %v1874
      %v1876 = vsel %vm520, %v1848, 0.0
      %v1877 = vadd.f32 %v1875, %v1876
      %v1878 = vsel %vm520, %v1849, 0.0
      %v1879 = vadd.f32 %v1877, %v1878
      %v1880 = vsel %vm520, %v1850, 0.0
      %v1881 = vadd.f32 %v1879, %v1880
      %v1882 = vrot.slane %v1881, 4
      %v1883 = vadd.f32 %v1881, %v1882
      %v1884 = vrot.slane %v1883, 2
      %v1885 = vadd.f32 %v1883, %v1884
      %v1886 = vrot.slane %v1885, 1
      %v1887 = vadd.f32 %v1885, %v1886
      %v1888 = vmul.f32 %v1835, %v1835
      %v1889 = vmul.f32 %v1836, %v1836
      %v1890 = vmul.f32 %v1837, %v1837
      %v1891 = vmul.f32 %v1838, %v1838
      %v1892 = vmul.f32 %v1839, %v1839
      %v1893 = vmul.f32 %v1840, %v1840
      %v1894 = vmul.f32 %v1841, %v1841
      %v1895 = vmul.f32 %v1842, %v1842
      %v1896 = vmul.f32 %v1843, %v1843
      %v1897 = vmul.f32 %v1844, %v1844
      %v1898 = vmul.f32 %v1845, %v1845
      %v1899 = vmul.f32 %v1846, %v1846
      %v1900 = vmul.f32 %v1847, %v1847
      %v1901 = vmul.f32 %v1848, %v1848
      %v1902 = vmul.f32 %v1849, %v1849
      %v1903 = vmul.f32 %v1850, %v1850
      %v1904 = vsel %vm520, %v1888, 0.0
      %v1905 = vsel %vm520, %v1889, 0.0
      %v1906 = vadd.f32 %v1904, %v1905
      %v1907 = vsel %vm520, %v1890, 0.0
      %v1908 = vadd.f32 %v1906, %v1907
      %v1909 = vsel %vm520, %v1891, 0.0
      %v1910 = vadd.f32 %v1908, %v1909
      %v1911 = vsel %vm520, %v1892, 0.0
      %v1912 = vadd.f32 %v1910, %v1911
      %v1913 = vsel %vm520, %v1893, 0.0
      %v1914 = vadd.f32 %v1912, %v1913
      %v1915 = vsel %vm520, %v1894, 0.0
      %v1916 = vadd.f32 %v1914, %v1915
      %v1917 = vsel %vm520, %v1895, 0.0
      %v1918 = vadd.f32 %v1916, %v1917
      %v1919 = vsel %vm520, %v1896, 0.0
      %v1920 = vadd.f32 %v1918, %v1919
      %v1921 = vsel %vm520, %v1897, 0.0
      %v1922 = vadd.f32 %v1920, %v1921
      %v1923 = vsel %vm520, %v1898, 0.0
      %v1924 = vadd.f32 %v1922, %v1923
      %v1925 = vsel %vm520, %v1899, 0.0
      %v1926 = vadd.f32 %v1924, %v1925
      %v1927 = vsel %vm520, %v1900, 0.0
      %v1928 = vadd.f32 %v1926, %v1927
      %v1929 = vsel %vm520, %v1901, 0.0
      %v1930 = vadd.f32 %v1928, %v1929
      %v1931 = vsel %vm520, %v1902, 0.0
      %v1932 = vadd.f32 %v1930, %v1931
      %v1933 = vsel %vm520, %v1903, 0.0
      %v1934 = vadd.f32 %v1932, %v1933
      %v1935 = vrot.slane %v1934, 4
      %v1936 = vadd.f32 %v1934, %v1935
      %v1937 = vrot.slane %v1936, 2
      %v1938 = vadd.f32 %v1936, %v1937
      %v1939 = vrot.slane %v1938, 1
      %v1940 = vadd.f32 %v1938, %v1939
      %1941 = vst.msk [vmem:[%s458] sm:$0xff] %vm520, %v1835
      %1942 = vst.msk [vmem:[%s458 + $0x8] sm:$0xff] %vm520, %v1836
      %1943 = vst.msk [vmem:[%s458 + $0x10] sm:$0xff] %vm520, %v1837
      %1944 = vst.msk [vmem:[%s458 + $0x18] sm:$0xff] %vm520, %v1838
      %1945 = vst.msk [vmem:[%s458 + $0x20] sm:$0xff] %vm520, %v1839
      %1946 = vst.msk [vmem:[%s458 + $0x28] sm:$0xff] %vm520, %v1840
      %1947 = vst.msk [vmem:[%s458 + $0x30] sm:$0xff] %vm520, %v1841
      %1948 = vst.msk [vmem:[%s458 + $0x38] sm:$0xff] %vm520, %v1842
      %1949 = vst.msk [vmem:[%s458 + $0x40] sm:$0xff] %vm520, %v1843
      %1950 = vst.msk [vmem:[%s458 + $0x48] sm:$0xff] %vm520, %v1844
      %1951 = vst.msk [vmem:[%s458 + $0x50] sm:$0xff] %vm520, %v1845
      %1952 = vst.msk [vmem:[%s458 + $0x58] sm:$0xff] %vm520, %v1846
      %1953 = vst.msk [vmem:[%s458 + $0x60] sm:$0xff] %vm520, %v1847
      %1954 = vst.msk [vmem:[%s458 + $0x68] sm:$0xff] %vm520, %v1848
      %1955 = vst.msk [vmem:[%s458 + $0x70] sm:$0xff] %vm520, %v1849
      %1956 = vst.msk [vmem:[%s458 + $0x78] sm:$0xff] %vm520, %v1850
      %vm1957 = vcmask 1040384
      %v1958 = vsel %vm1957, %v1887, %v1940
      %vm1959 = vcmask 58368
      %1960 = vst.msk [vmem:[%s467] sm:$0x3] %vm1959, %v1958
      %s1961 = smul.u32 8, %s24
      %p1962 = scmp.lt.s32.totalorder %s23, 1
      %s1963 = scalar_select %p1962, %s23, 1
      %p1964 = scmp.lt.s32.totalorder %s1961, 15
      %s1965 = scalar_select %p1964, %s1961, 15
      %s1966 = smul.addr %s1965, 2
      %s1967 = smul.addr %s1963, 32
      %s1968 = sadd.s32 %s1966, %s1967
      %s1969 = smul.addr %s1968, 8
      %s1970 = scalar_lea.vmem %s6, %s1969
      %p1971 = scmp.lt.s32.totalorder %s23, 1
      %s1972 = scalar_select %p1971, %s23, 1
      %p1973 = scmp.lt.s32.totalorder %s24, 1
      %s1974 = scalar_select %p1973, %s24, 1
      %s1975 = smul.addr %s1972, 2
      %s1976 = sadd.s32 %s1974, %s1975
      %s1977 = smul.addr %s1976, 2
      %s1978 = scalar_lea.vmem %s7, %s1977
      // Predicated region
      $region45: #{_bdouble_conv_impl.4} parent=43 // pred_check
        %p1979 = pneg %p214
      $region46: #{_bdouble_conv_impl.4} parent=43 // pred_check_branch
        %1981 = sbr.rel (%p1979) target = $region48
      $region47: #{_bdouble_conv_impl.4} parent=43 // pred_region
        %s1982 = smul.u32 8, %s24
      $region48: #{_bdouble_conv_impl.4} parent=43 // pred_fallthru
        _
      // Predicated region
      $region49: #{_bdouble_conv_impl.4} parent=43 // pred_check
        %p1983 = pneg %p242
      $region50: #{_bdouble_conv_impl.4} parent=43 // pred_check_branch
        %1985 = sbr.rel (%p1983) target = $region52
      $region51: #{_bdouble_conv_impl.4} parent=43 // pred_region
        _
      $region52: #{_bdouble_conv_impl.4} parent=43 // pred_fallthru
        _
    $region44: #{_bdouble_conv_impl.4} parent=5 // pred_fallthru
      _
    %p1986 = scmp.le.s32.totalorder 2, %s14
    // Predicated region
    $region53: #{_bdouble_conv_impl.4} parent=5 // pred_check
      %p1987 = pneg %p1986
    $region54: #{_bdouble_conv_impl.4} parent=5 // pred_check_branch
      %1989 = sbr.rel (%p1987) target = $region56
    $region55: #{_bdouble_conv_impl.4} parent=5 // pred_region
      %s1990 = ssub.s32 %s14, 2
      // Predicated region
      $region57: #{_bdouble_conv_impl.4} parent=55 // pred_check
        %p1991 = pneg %p220
      $region58: #{_bdouble_conv_impl.4} parent=55 // pred_check_branch
        %1993 = sbr.rel (%p1991) target = $region60
      $region59: #{_bdouble_conv_impl.4} parent=55 // pred_region
        %s1994 = smul.u32 8, %s26
        %p1995 = scmp.lt.s32.totalorder %s25, 1
        %s1996 = scalar_select %p1995, %s25, 1
        %p1997 = scmp.lt.s32.totalorder %s1994, 15
        %s1998 = scalar_select %p1997, %s1994, 15
        %s1999 = smul.addr %s1998, 2
        %s2000 = smul.addr %s1996, 32
        %s2001 = sadd.s32 %s1999, %s2000
        %s2002 = smul.addr %s2001, 8
        %s2003 = scalar_lea.vmem %s6, %s2002
      $region60: #{_bdouble_conv_impl.4} parent=55 // pred_fallthru
        _
      // Predicated region
      $region61: #{_bdouble_conv_impl.4} parent=55 // pred_check
        %p2004 = pneg %p248
      $region62: #{_bdouble_conv_impl.4} parent=55 // pred_check_branch
        %2006 = sbr.rel (%p2004) target = $region64
      $region63: #{_bdouble_conv_impl.4} parent=55 // pred_region
        %p2007 = scmp.lt.s32.totalorder %s25, 1
        %s2008 = scalar_select %p2007, %s25, 1
        %p2009 = scmp.lt.s32.totalorder %s26, 1
        %s2010 = scalar_select %p2009, %s26, 1
        %s2011 = smul.addr %s2008, 2
        %s2012 = sadd.s32 %s2010, %s2011
        %s2013 = smul.addr %s2012, 2
        %s2014 = scalar_lea.vmem %s7, %s2013
      $region64: #{_bdouble_conv_impl.4} parent=55 // pred_fallthru
        _
    $region56: #{_bdouble_conv_impl.4} parent=5 // pred_fallthru
      _
  $region6: #{_bdouble_conv_impl.4} parent=0 // loop_footer
    %s18 = sadd.s32 1, %s14
  $region7: #{_bdouble_conv_impl.4} parent=0 // loop_footer_branch
    %13 = sbr.rel target = $region3
  $region8: #{_bdouble_conv_impl.4} parent=0 // loop_exit
    _

// kernel: tile.14
$region0: #{tile.14}
  #allocation0 [shape = 's32[1]{0}', space=sflag, size = 0x4, scoped, tag = 'scoped memory for tile.14']
  %s0 = inlined_call_operand.vmem [shape: f32[8], index: 0, kind: input, shape index: {}]
  %s1 = inlined_call_operand.vmem [shape: f32[16,8], index: 1, kind: output, shape index: {}]
  // Predicated region
  $region2: #{tile.14} parent=0 // pred_check
    _
  $region3: #{tile.14} parent=0 // pred_check_branch
    %3 = sbr.rel (0) target = $region5
  $region4: #{tile.14} parent=0 // pred_region
    _
  $region5: #{tile.14} parent=0 // pred_fallthru
    _
  %v4 = vld [vmem:[%s0] ss:$0 sm:$0xff]
  %5 = vst [vmem:[%s1] sm:$0xff] %v4
  %s6 = scalar_lea.vmem %s1, 8
  %7 = vst [vmem:[%s6] sm:$0xff] %v4

// kernel: tile.15
$region0: #{tile.15}
  %s0 = inlined_call_operand.vmem [shape: f32[16,8], index: 0, kind: input, shape index: {}]
  %s1 = inlined_call_operand.vmem [shape: f32[1,128], index: 1, kind: output, shape index: {}]
  $region1: #{tile.15} parent=0
    #allocation0 [shape = 'u8[4096]{0}', space=vmem, size = 0x1000, scoped, tag = 'scoped mem for output reshape']
    %v2 = vld [vmem:[%s0] sm:$0x1]
    %vm3 = vcmask 64512
    %4 = vst.msk [vmem:[#allocation0] sm:$0x1] %vm3, %v2
    %s5 = scalar_lea.vmem %s0, 15
    %v6 = vld [vmem:[%s5] sm:$0x1]
    %7 = vrot.lane.b32.xlu0 %v6, 120
    %v8 = vpop.permute.xlu0 %7
    %vm9 = vcmask 1048512
    %10 = vst.msk [vmem:[#allocation0] sm:$0x1] %vm9, %v8
    %s11 = scalar_lea.vmem %s0, 14
    %v12 = vld [vmem:[%s11] sm:$0x1]
    %13 = vrot.lane.b32.xlu0 %v12, 112
    %v14 = vpop.permute.xlu0 %13
    %vm15 = vcmask 982912
    %16 = vst.msk [vmem:[#allocation0] sm:$0x1] %vm15, %v14
    %s17 = scalar_lea.vmem %s0, 13
    %v18 = vld [vmem:[%s17] sm:$0x1]
    %19 = vrot.lane.b32.xlu0 %v18, 104
    %v20 = vpop.permute.xlu0 %19
    %vm21 = vcmask 917312
    %22 = vst.msk [vmem:[#allocation0] sm:$0x1] %vm21, %v20
    %s23 = scalar_lea.vmem %s0, 12
    %v24 = vld [vmem:[%s23] sm:$0x1]
    %25 = vrot.lane.b32.xlu0 %v24, 96
    %v26 = vpop.permute.xlu0 %25
    %vm27 = vcmask 851712
    %28 = vst.msk [vmem:[#allocation0] sm:$0x1] %vm27, %v26
    %s29 = scalar_lea.vmem %s0, 11
    %v30 = vld [vmem:[%s29] sm:$0x1]
    %31 = vrot.lane.b32.xlu0 %v30, 88
    %v32 = vpop.permute.xlu0 %31
    %vm33 = vcmask 786112
    %34 = vst.msk [vmem:[#allocation0] sm:$0x1] %vm33, %v32
    %s35 = scalar_lea.vmem %s0, 10
    %v36 = vld [vmem:[%s35] sm:$0x1]
    %37 = vrot.lane.b32.xlu0 %v36, 80
    %v38 = vpop.permute.xlu0 %37
    %vm39 = vcmask 720512
    %40 = vst.msk [vmem:[#allocation0] sm:$0x1] %vm39, %v38
    %s41 = scalar_lea.vmem %s0, 9
    %v42 = vld [vmem:[%s41] sm:$0x1]
    %43 = vrot.lane.b32.xlu0 %v42, 72
    %v44 = vpop.permute.xlu0 %43
    %vm45 = vcmask 654912
    %46 = vst.msk [vmem:[#allocation0] sm:$0x1] %vm45, %v44
    %s47 = scalar_lea.vmem %s0, 8
    %v48 = vld [vmem:[%s47] sm:$0x1]
    %49 = vrot.lane.b32.xlu0 %v48, 64
    %v50 = vpop.permute.xlu0 %49
    %vm51 = vcmask 589312
    %52 = vst.msk [vmem:[#allocation0] sm:$0x1] %vm51, %v50
    %s53 = scalar_lea.vmem %s0, 7
    %v54 = vld [vmem:[%s53] sm:$0x1]
    %55 = vrot.lane.b32.xlu0 %v54, 56
    %v56 = vpop.permute.xlu0 %55
    %vm57 = vcmask 523712
    %58 = vst.msk [vmem:[#allocation0] sm:$0x1] %vm57, %v56
    %s59 = scalar_lea.vmem %s0, 6
    %v60 = vld [vmem:[%s59] sm:$0x1]
    %61 = vrot.lane.b32.xlu0 %v60, 48
    %v62 = vpop.permute.xlu0 %61
    %vm63 = vcmask 458112
    %64 = vst.msk [vmem:[#allocation0] sm:$0x1] %vm63, %v62
    %s65 = scalar_lea.vmem %s0, 5
    %v66 = vld [vmem:[%s65] sm:$0x1]
    %67 = vrot.lane.b32.xlu0 %v66, 40
    %v68 = vpop.permute.xlu0 %67
    %vm69 = vcmask 392512
    %70 = vst.msk [vmem:[#allocation0] sm:$0x1] %vm69, %v68
    %s71 = scalar_lea.vmem %s0, 4
    %v72 = vld [vmem:[%s71] sm:$0x1]
    %73 = vrot.lane.b32.xlu0 %v72, 32
    %v74 = vpop.permute.xlu0 %73
    %vm75 = vcmask 326912
    %76 = vst.msk [vmem:[#allocation0] sm:$0x1] %vm75, %v74
    %s77 = scalar_lea.vmem %s0, 3
    %v78 = vld [vmem:[%s77] sm:$0x1]
    %79 = vrot.lane.b32.xlu0 %v78, 24
    %v80 = vpop.permute.xlu0 %79
    %vm81 = vcmask 261312
    %82 = vst.msk [vmem:[#allocation0] sm:$0x1] %vm81, %v80
    %s83 = scalar_lea.vmem %s0, 2
    %v84 = vld [vmem:[%s83] sm:$0x1]
    %85 = vrot.lane.b32.xlu0 %v84, 16
    %v86 = vpop.permute.xlu0 %85
    %vm87 = vcmask 195712
    %88 = vst.msk [vmem:[#allocation0] sm:$0x1] %vm87, %v86
    %s89 = scalar_lea.vmem %s0, 1
    %v90 = vld [vmem:[%s89] sm:$0x1]
    %91 = vrot.lane.b32.xlu0 %v90, 8
    %v92 = vpop.permute.xlu0 %91
    %vm93 = vcmask 130112
    %94 = vst.msk [vmem:[#allocation0] sm:$0x1] %vm93, %v92
    %s96 = sshllo.u32 0, 1
    %v98 = vld [vmem:[#allocation0] sm:%s96]
    %s99 = sshllo.u32 0, 1
    %100 = vst [vmem:[%s1] sm:%s99] %v98

// kernel: _bdouble_conv_impl.3
$region0: #{_bdouble_conv_impl.3}
  #allocation0 [shape = 'u32[]', space=smem, size = 0x4, offset = 0x4, fixed_abs, tag = 'smem constant byte address 0x4 - core index']
  #allocation1 [shape = 'u32[144,128]{1,0:T(1,128)}', space=vmem, size = 0x12000, scoped, tag = 'internal scratch']
  #allocation2 [shape = 'f32[10,25,4]{2,1,0:T(8,128)}', space=vmem, size = 0x28000, scoped, tag = 'scratch operand']
  %s0 = inlined_call_operand.vmem [shape: f32[2,16,16,4], index: 0, kind: input, shape index: {}, may-alias: {0,1,2}]
  %s1 = inlined_call_operand.vmem [shape: f32[2,16,16,4], index: 1, kind: input, shape index: {}, may-alias: {0,1,2}]
  %s2 = inlined_call_operand.vmem [shape: f32[2,16,16,4], index: 2, kind: input, shape index: {}, may-alias: {0,1,2}]
  %s3 = inlined_call_operand.vmem [shape: f32[3,12,8], index: 3, kind: input, shape index: {}]
  %s4 = inlined_call_operand.vmem [shape: f32[2,16,16,8], index: 4, kind: output, shape index: {0}]
  %s5 = inlined_call_operand.vmem [shape: f32[2,2,2,8], index: 5, kind: output, shape index: {1}]
  %6 = xla_tuple %s4, %s5
  %s7 = sld [smem:[#allocation0]]
  $region57: #{_bdouble_conv_impl.3} parent=0
    _
  %s9 = ssub.s32 1, %s7
  %s10 = scalar_select 0, %s9, %s7
  loop: start=0, step=1, limit=6
  $region2: #{_bdouble_conv_impl.3} parent=0 // loop_pre_header
    _
  $region3: #{_bdouble_conv_impl.3} parent=0 // loop_header
    %s12 = sphi 0, %s16
    %p13 = scmp.ge.s32.totalorder %s12, 6
    %s19 = sphi 0, %s31
    %s20 = sphi 0, %s27
    %s21 = sphi 0, %s19
    %s22 = sphi 0, %s20
    %s23 = sphi 0, %s21
    %s24 = sphi 0, %s22
    %s36 = sphi 0, %s38
    %s39 = sphi 0, %s36
    %s40 = sphi 0, %s39
    %s56 = sphi 0, %s40
    %s72 = sphi 0, %s74
    %s75 = sphi 0, %s72
    %s76 = sphi 0, %s75
    %s92 = sphi 0, %s76
    %s108 = sphi 0, %s110
    %s111 = sphi 0, %s108
    %s112 = sphi 0, %s111
    %s128 = sphi 0, %s112
    %s132 = sphi 0, %s132
    %s134 = sphi 0, %s132
    %s135 = sphi 0, %s134
    %s149 = sphi 0, %s135
    %s157 = sphi 0, %s159
    %s160 = sphi 0, %s157
    %s161 = sphi 0, %s160
    %s177 = sphi 0, %s161
    %s185 = sphi 0, %s187
    %s188 = sphi 0, %s185
    %s189 = sphi 0, %s188
    %s205 = sphi 0, %s189
  $region4: #{_bdouble_conv_impl.3} parent=0 // loop_header_branch
    %15 = sbr.rel (%p13) target = $region8
  $region5: #{_bdouble_conv_impl.3} parent=0 // loop_body
    %s17 = ssub.s32 %s12, 1
    %s18 = ssub.s32 %s12, 2
    %s25 = sadd.s32 1, %s20
    %p26 = scmp.ge.s32.totalorder %s25, 2
    %s27 = scalar_select %p26, 0, %s25
    %s28 = sadd.s32 1, %s19
    %s29 = scalar_select %p26, %s28, %s19
    %p30 = scmp.ge.s32.totalorder %s29, 2
    %s31 = scalar_select %p30, 0, %s29
    %s32 = ssub.s32 %s19, %s31
    %s33 = ssub.s32 %s20, %s27
    %s34 = sor.u32 %s32, %s33
    %p35 = scmp.eq.s32.totalorder %s34, 0
    %s37 = sadd.s32 %s36, 1
    %s38 = scalar_select %p35, %s36, %s37
    %p41 = pneg %p35
    %p42 = scmp.eq.s32.totalorder %s12, 3
    %p43 = por %p41, %p42
    %p44 = scmp.ne.s32.totalorder %s36, %s39
    %p45 = scmp.eq.s32.totalorder %s12, 0
    %p46 = por %p44, %p45
    %p47 = scmp.ne.s32.totalorder %s36, %s39
    %p48 = scmp.eq.s32.totalorder %s17, 3
    %p49 = por %p47, %p48
    %p50 = scmp.ne.s32.totalorder %s39, %s40
    %p51 = scmp.eq.s32.totalorder %s17, 0
    %p52 = por %p50, %p51
    %p53 = scmp.ne.s32.totalorder %s39, %s40
    %p54 = scmp.eq.s32.totalorder %s18, 3
    %p55 = por %p53, %p54
    %p57 = scmp.ne.s32.totalorder %s40, %s56
    %p58 = scmp.eq.s32.totalorder %s18, 0
    %p59 = por %p57, %p58
    %s60 = smul.u32 %s20, 8
    %s61 = ssub.s32 %s60, 1
    %p62 = scmp.gt.s32.totalorder %s61, 0
    %s63 = scalar_select %p62, %s61, 0
    %s64 = smul.u32 %s27, 8
    %s65 = ssub.s32 %s64, 1
    %p66 = scmp.gt.s32.totalorder %s65, 0
    %s67 = scalar_select %p66, %s65, 0
    %s68 = ssub.s32 %s19, %s31
    %s69 = ssub.s32 %s63, %s67
    %s70 = sor.u32 %s68, %s69
    %p71 = scmp.eq.s32.totalorder %s70, 0
    %s73 = sadd.s32 %s72, 1
    %s74 = scalar_select %p71, %s72, %s73
    %p77 = pneg %p71
    %p78 = scmp.eq.s32.totalorder %s12, 3
    %p79 = por %p77, %p78
    %p80 = scmp.ne.s32.totalorder %s72, %s75
    %p81 = scmp.eq.s32.totalorder %s12, 0
    %p82 = por %p80, %p81
    %p83 = scmp.ne.s32.totalorder %s72, %s75
    %p84 = scmp.eq.s32.totalorder %s17, 3
    %p85 = por %p83, %p84
    %p86 = scmp.ne.s32.totalorder %s75, %s76
    %p87 = scmp.eq.s32.totalorder %s17, 0
    %p88 = por %p86, %p87
    %p89 = scmp.ne.s32.totalorder %s75, %s76
    %p90 = scmp.eq.s32.totalorder %s18, 3
    %p91 = por %p89, %p90
    %p93 = scmp.ne.s32.totalorder %s76, %s92
    %p94 = scmp.eq.s32.totalorder %s18, 0
    %p95 = por %p93, %p94
    %s96 = smul.u32 %s20, 8
    %s97 = sadd.s32 %s96, 8
    %p98 = scmp.lt.s32.totalorder %s97, 15
    %s99 = scalar_select %p98, %s97, 15
    %s100 = smul.u32 %s27, 8
    %s101 = sadd.s32 %s100, 8
    %p102 = scmp.lt.s32.totalorder %s101, 15
    %s103 = scalar_select %p102, %s101, 15
    %s104 = ssub.s32 %s19, %s31
    %s105 = ssub.s32 %s99, %s103
    %s106 = sor.u32 %s104, %s105
    %p107 = scmp.eq.s32.totalorder %s106, 0
    %s109 = sadd.s32 %s108, 1
    %s110 = scalar_select %p107, %s108, %s109
    %p113 = pneg %p107
    %p114 = scmp.eq.s32.totalorder %s12, 3
    %p115 = por %p113, %p114
    %p116 = scmp.ne.s32.totalorder %s108, %s111
    %p117 = scmp.eq.s32.totalorder %s12, 0
    %p118 = por %p116, %p117
    %p119 = scmp.ne.s32.totalorder %s108, %s111
    %p120 = scmp.eq.s32.totalorder %s17, 3
    %p121 = por %p119, %p120
    %p122 = scmp.ne.s32.totalorder %s111, %s112
    %p123 = scmp.eq.s32.totalorder %s17, 0
    %p124 = por %p122, %p123
    %p125 = scmp.ne.s32.totalorder %s111, %s112
    %p126 = scmp.eq.s32.totalorder %s18, 3
    %p127 = por %p125, %p126
    %p129 = scmp.ne.s32.totalorder %s112, %s128
    %p130 = scmp.eq.s32.totalorder %s18, 0
    %p131 = por %p129, %p130
    %s133 = sadd.s32 %s132, 1
    %p136 = scmp.eq.s32.totalorder %s12, 3
    %p137 = scmp.ne.s32.totalorder %s132, %s134
    %p138 = scmp.eq.s32.totalorder %s12, 0
    %p139 = por %p137, %p138
    %p140 = scmp.ne.s32.totalorder %s132, %s134
    %p141 = scmp.eq.s32.totalorder %s17, 3
    %p142 = por %p140, %p141
    %p143 = scmp.ne.s32.totalorder %s134, %s135
    %p144 = scmp.eq.s32.totalorder %s17, 0
    %p145 = por %p143, %p144
    %p146 = scmp.ne.s32.totalorder %s134, %s135
    %p147 = scmp.eq.s32.totalorder %s18, 3
    %p148 = por %p146, %p147
    %p150 = scmp.ne.s32.totalorder %s135, %s149
    %p151 = scmp.eq.s32.totalorder %s18, 0
    %p152 = por %p150, %p151
    %s153 = ssub.s32 %s19, %s31
    %s154 = ssub.s32 %s20, %s27
    %s155 = sor.u32 %s153, %s154
    %p156 = scmp.eq.s32.totalorder %s155, 0
    %s158 = sadd.s32 %s157, 1
    %s159 = scalar_select %p156, %s157, %s158
    %p162 = pneg %p156
    %p163 = scmp.eq.s32.totalorder %s12, 3
    %p164 = por %p162, %p163
    %p165 = scmp.ne.s32.totalorder %s157, %s160
    %p166 = scmp.eq.s32.totalorder %s12, 0
    %p167 = por %p165, %p166
    %p168 = scmp.ne.s32.totalorder %s157, %s160
    %p169 = scmp.eq.s32.totalorder %s17, 3
    %p170 = por %p168, %p169
    %p171 = scmp.ne.s32.totalorder %s160, %s161
    %p172 = scmp.eq.s32.totalorder %s17, 0
    %p173 = por %p171, %p172
    %p174 = scmp.ne.s32.totalorder %s160, %s161
    %p175 = scmp.eq.s32.totalorder %s18, 3
    %p176 = por %p174, %p175
    %p178 = scmp.ne.s32.totalorder %s161, %s177
    %p179 = scmp.eq.s32.totalorder %s18, 0
    %p180 = por %p178, %p179
    %s181 = ssub.s32 %s19, %s31
    %s182 = ssub.s32 %s20, %s27
    %s183 = sor.u32 %s181, %s182
    %p184 = scmp.eq.s32.totalorder %s183, 0
    %s186 = sadd.s32 %s185, 1
    %s187 = scalar_select %p184, %s185, %s186
    %p190 = pneg %p184
    %p191 = scmp.eq.s32.totalorder %s12, 3
    %p192 = por %p190, %p191
    %p193 = scmp.ne.s32.totalorder %s185, %s188
    %p194 = scmp.eq.s32.totalorder %s12, 0
    %p195 = por %p193, %p194
    %p196 = scmp.ne.s32.totalorder %s185, %s188
    %p197 = scmp.eq.s32.totalorder %s17, 3
    %p198 = por %p196, %p197
    %p199 = scmp.ne.s32.totalorder %s188, %s189
    %p200 = scmp.eq.s32.totalorder %s17, 0
    %p201 = por %p199, %p200
    %p202 = scmp.ne.s32.totalorder %s188, %s189
    %p203 = scmp.eq.s32.totalorder %s18, 3
    %p204 = por %p202, %p203
    %p206 = scmp.ne.s32.totalorder %s189, %s205
    %p207 = scmp.eq.s32.totalorder %s18, 0
    %p208 = por %p206, %p207
    %p209 = scmp.le.s32.totalorder 1, %s12
    %p210 = scmp.lt.s32.totalorder %s12, 5
    %p211 = pnand %p209, %p210
    %p212 = pneg %p211
    // Predicated region
    $region9: #{_bdouble_conv_impl.3} parent=5 // pred_check
      _
    $region10: #{_bdouble_conv_impl.3} parent=5 // pred_check_branch
      %214 = sbr.rel (%p211) target = $region12
    $region11: #{_bdouble_conv_impl.3} parent=5 // pred_region
      %s215 = ssub.s32 %s12, 1
      // Predicated region
      $region13: #{_bdouble_conv_impl.3} parent=11 // pred_check
        %p216 = pneg %p145
      $region14: #{_bdouble_conv_impl.3} parent=11 // pred_check_branch
        %218 = sbr.rel (%p216) target = $region16
      $region15: #{_bdouble_conv_impl.3} parent=11 // pred_region
        _
      $region16: #{_bdouble_conv_impl.3} parent=11 // pred_fallthru
        _
    $region12: #{_bdouble_conv_impl.3} parent=5 // pred_fallthru
      _
    %p219 = scmp.lt.s32.totalorder %s12, 4
    // Predicated region
    $region17: #{_bdouble_conv_impl.3} parent=5 // pred_check
      %p220 = pneg %p219
    $region18: #{_bdouble_conv_impl.3} parent=5 // pred_check_branch
      %222 = sbr.rel (%p220) target = $region20
    $region19: #{_bdouble_conv_impl.3} parent=5 // pred_region
      // Predicated region
      $region21: #{_bdouble_conv_impl.3} parent=19 // pred_check
        %p223 = pneg %p46
      $region22: #{_bdouble_conv_impl.3} parent=19 // pred_check_branch
        %225 = sbr.rel (%p223) target = $region24
      $region23: #{_bdouble_conv_impl.3} parent=19 // pred_region
        %s226 = smul.u32 8, %s20
        %p227 = scmp.lt.s32.totalorder %s19, 1
        %s228 = scalar_select %p227, %s19, 1
        %p229 = scmp.lt.s32.totalorder %s226, 15
        %s230 = scalar_select %p229, %s226, 15
        %s231 = smul.addr %s230, 2
        %s232 = smul.addr %s228, 32
        %s233 = sadd.s32 %s231, %s232
        %s234 = smul.addr %s233, 8
        %s235 = scalar_lea.vmem %s0, %s234
        %s236 = smul.u32 8, %s20
      $region24: #{_bdouble_conv_impl.3} parent=19 // pred_fallthru
        _
      // Predicated region
      $region25: #{_bdouble_conv_impl.3} parent=19 // pred_check
        %p237 = pneg %p82
      $region26: #{_bdouble_conv_impl.3} parent=19 // pred_check_branch
        %239 = sbr.rel (%p237) target = $region28
      $region27: #{_bdouble_conv_impl.3} parent=19 // pred_region
        %s240 = smul.u32 %s20, 8
        %s241 = ssub.s32 %s240, 1
        %p242 = scmp.gt.s32.totalorder %s241, 0
        %s243 = scalar_select %p242, %s241, 0
        %p244 = scmp.lt.s32.totalorder %s19, 1
        %s245 = scalar_select %p244, %s19, 1
        %p246 = scmp.lt.s32.totalorder %s243, 15
        %s247 = scalar_select %p246, %s243, 15
        %s248 = smul.addr %s247, 2
        %s249 = smul.addr %s245, 32
        %s250 = sadd.s32 %s248, %s249
        %s251 = smul.addr %s250, 8
        %s252 = scalar_lea.vmem %s1, %s251
        %s253 = smul.u32 %s20, 8
        %s254 = ssub.s32 %s253, 1
        %p255 = scmp.gt.s32.totalorder %s254, 0
        %s256 = scalar_select %p255, %s254, 0
      $region28: #{_bdouble_conv_impl.3} parent=19 // pred_fallthru
        _
      // Predicated region
      $region29: #{_bdouble_conv_impl.3} parent=19 // pred_check
        %p257 = pneg %p118
      $region30: #{_bdouble_conv_impl.3} parent=19 // pred_check_branch
        %259 = sbr.rel (%p257) target = $region32
      $region31: #{_bdouble_conv_impl.3} parent=19 // pred_region
        %s260 = smul.u32 %s20, 8
        %s261 = sadd.s32 %s260, 8
        %p262 = scmp.lt.s32.totalorder %s261, 15
        %s263 = scalar_select %p262, %s261, 15
        %p264 = scmp.lt.s32.totalorder %s19, 1
        %s265 = scalar_select %p264, %s19, 1
        %p266 = scmp.lt.s32.totalorder %s263, 15
        %s267 = scalar_select %p266, %s263, 15
        %s268 = smul.addr %s267, 2
        %s269 = smul.addr %s265, 32
        %s270 = sadd.s32 %s268, %s269
        %s271 = smul.addr %s270, 8
        %s272 = scalar_lea.vmem %s2, %s271
        %s273 = smul.u32 %s20, 8
        %s274 = sadd.s32 %s273, 8
        %p275 = scmp.lt.s32.totalorder %s274, 15
        %s276 = scalar_select %p275, %s274, 15
      $region32: #{_bdouble_conv_impl.3} parent=19 // pred_fallthru
        _
    $region20: #{_bdouble_conv_impl.3} parent=5 // pred_fallthru
      _
    %p277 = scmp.le.s32.totalorder 1, %s12
    %p278 = scmp.lt.s32.totalorder %s12, 5
    %p279 = pnand %p277, %p278
    %p280 = pneg %p279
    // Predicated region
    $region33: #{_bdouble_conv_impl.3} parent=5 // pred_check
      _
    $region34: #{_bdouble_conv_impl.3} parent=5 // pred_check_branch
      %282 = sbr.rel (%p279) target = $region36
    $region35: #{_bdouble_conv_impl.3} parent=5 // pred_region
      %s283 = ssub.s32 %s12, 1
      %s284 = smul.u32 8, %s22
      %p285 = scmp.lt.s32.totalorder %s21, 1
      %s286 = scalar_select %p285, %s21, 1
      %p287 = scmp.lt.s32.totalorder %s284, 15
      %s288 = scalar_select %p287, %s284, 15
      %s289 = smul.addr %s288, 2
      %s290 = smul.addr %s286, 32
      %s291 = sadd.s32 %s289, %s290
      %s292 = smul.addr %s291, 8
      %s293 = scalar_lea.vmem %s0, %s292
      %p294 = pneg %p52
      %p295 = pneg %p49
      %s296 = smul.u32 %s22, 8
      %s297 = ssub.s32 %s296, 1
      %p298 = scmp.gt.s32.totalorder %s297, 0
      %s299 = scalar_select %p298, %s297, 0
      %p300 = scmp.lt.s32.totalorder %s21, 1
      %s301 = scalar_select %p300, %s21, 1
      %p302 = scmp.lt.s32.totalorder %s299, 15
      %s303 = scalar_select %p302, %s299, 15
      %s304 = smul.addr %s303, 2
      %s305 = smul.addr %s301, 32
      %s306 = sadd.s32 %s304, %s305
      %s307 = smul.addr %s306, 8
      %s308 = scalar_lea.vmem %s1, %s307
      %p309 = pneg %p88
      %p310 = pneg %p85
      %s311 = smul.u32 %s22, 8
      %s312 = sadd.s32 %s311, 8
      %p313 = scmp.lt.s32.totalorder %s312, 15
      %s314 = scalar_select %p313, %s312, 15
      %p315 = scmp.lt.s32.totalorder %s21, 1
      %s316 = scalar_select %p315, %s21, 1
      %p317 = scmp.lt.s32.totalorder %s314, 15
      %s318 = scalar_select %p317, %s314, 15
      %s319 = smul.addr %s318, 2
      %s320 = smul.addr %s316, 32
      %s321 = sadd.s32 %s319, %s320
      %s322 = smul.addr %s321, 8
      %s323 = scalar_lea.vmem %s2, %s322
      %p324 = pneg %p124
      %p325 = pneg %p121
      %p326 = pneg %p145
      %p327 = pneg %p142
      %p328 = pneg %p173
      %p329 = pneg %p170
      %s330 = smul.u32 8, %s22
      %p331 = scmp.lt.s32.totalorder %s21, 1
      %s332 = scalar_select %p331, %s21, 1
      %p333 = scmp.lt.s32.totalorder %s330, 15
      %s334 = scalar_select %p333, %s330, 15
      %s335 = smul.addr %s334, 2
      %s336 = smul.addr %s332, 32
      %s337 = sadd.s32 %s335, %s336
      %s338 = smul.addr %s337, 8
      %s339 = scalar_lea.vmem %s4, %s338
      %p340 = pneg %p201
      %p341 = pneg %p198
      %p342 = scmp.lt.s32.totalorder %s21, 1
      %s343 = scalar_select %p342, %s21, 1
      %p344 = scmp.lt.s32.totalorder %s22, 1
      %s345 = scalar_select %p344, %s22, 1
      %s346 = smul.addr %s343, 2
      %s347 = sadd.s32 %s345, %s346
      %s348 = smul.addr %s347, 2
      %s349 = scalar_lea.vmem %s5, %s348
      %s350 = smul.u32 8, %s22
      %p351 = scmp.lt.s32.totalorder %s21, 1
      %s352 = scalar_select %p351, %s21, 1
      %p353 = scmp.lt.s32.totalorder %s350, 15
      %s354 = scalar_select %p353, %s350, 15
      %s355 = smul.addr %s354, 2
      %s356 = smul.addr %s352, 32
      %s357 = sadd.s32 %s355, %s356
      %s358 = smul.addr %s357, 8
      %s359 = scalar_lea.vmem %s0, %s358
      %s360 = smul.u32 8, %s22
      %s361 = smul.u32 %s22, 8
      %s362 = ssub.s32 %s361, 1
      %p363 = scmp.gt.s32.totalorder %s362, 0
      %s364 = scalar_select %p363, %s362, 0
      %p365 = scmp.lt.s32.totalorder %s21, 1
      %s366 = scalar_select %p365, %s21, 1
      %p367 = scmp.lt.s32.totalorder %s364, 15
      %s368 = scalar_select %p367, %s364, 15
      %s369 = smul.addr %s368, 2
      %s370 = smul.addr %s366, 32
      %s371 = sadd.s32 %s369, %s370
      %s372 = smul.addr %s371, 8
      %s373 = scalar_lea.vmem %s1, %s372
      %s374 = smul.u32 %s22, 8
      %s375 = ssub.s32 %s374, 1
      %p376 = scmp.gt.s32.totalorder %s375, 0
      %s377 = scalar_select %p376, %s375, 0
      %s378 = smul.u32 %s22, 8
      %s379 = sadd.s32 %s378, 8
      %p380 = scmp.lt.s32.totalorder %s379, 15
      %s381 = scalar_select %p380, %s379, 15
      %p382 = scmp.lt.s32.totalorder %s21, 1
      %s383 = scalar_select %p382, %s21, 1
      %p384 = scmp.lt.s32.totalorder %s381, 15
      %s385 = scalar_select %p384, %s381, 15
      %s386 = smul.addr %s385, 2
      %s387 = smul.addr %s383, 32
      %s388 = sadd.s32 %s386, %s387
      %s389 = smul.addr %s388, 8
      %s390 = scalar_lea.vmem %s2, %s389
      %s391 = smul.u32 %s22, 8
      %s392 = sadd.s32 %s391, 8
      %p393 = scmp.lt.s32.totalorder %s392, 15
      %s394 = scalar_select %p393, %s392, 15
      %s395 = smul.u32 8, %s22
      %p396 = scmp.lt.s32.totalorder %s21, 1
      %s397 = scalar_select %p396, %s21, 1
      %p398 = scmp.lt.s32.totalorder %s395, 15
      %s399 = scalar_select %p398, %s395, 15
      %s400 = smul.addr %s399, 2
      %s401 = smul.addr %s397, 32
      %s402 = sadd.s32 %s400, %s401
      %s403 = smul.addr %s402, 8
      %s404 = scalar_lea.vmem %s4, %s403
      %s405 = smul.u32 8, %s22
      %p406 = scmp.lt.s32.totalorder %s21, 1
      %s407 = scalar_select %p406, %s21, 1
      %p408 = scmp.lt.s32.totalorder %s22, 1
      %s409 = scalar_select %p408, %s22, 1
      %s410 = smul.addr %s407, 2
      %s411 = sadd.s32 %s409, %s410
      %s412 = smul.addr %s411, 2
      %s413 = scalar_lea.vmem %s5, %s412
      %p414 = scmp.gt.s32.totalorder %s22, 0
      %s415 = scalar_select %p414, 1, 0
      %s416 = scvt.s32.f32 %s415
      %p417 = scmp.lt.s32.totalorder %s22, 1
      %s418 = scalar_select %p417, 1, 0
      %s419 = scvt.s32.f32 %s418
      %vm420 = vcmask 24576
      %421 = vst.msk [vmem:[#allocation2 + $0x7] sm:$0x1] %vm420, 0.0
      %422 = vst.msk [vmem:[#allocation2 + $0x27] sm:$0x1] %vm420, 0.0
      %423 = vst.msk [vmem:[#allocation2 + $0x47] sm:$0x1] %vm420, 0.0
      %424 = vst.msk [vmem:[#allocation2 + $0x67] sm:$0x1] %vm420, 0.0
      %425 = vst.msk [vmem:[#allocation2 + $0x87] sm:$0x1] %vm420, 0.0
      %426 = vst.msk [vmem:[#allocation2 + $0xa7] sm:$0x1] %vm420, 0.0
      %427 = vst.msk [vmem:[#allocation2 + $0xc7] sm:$0x1] %vm420, 0.0
      %428 = vst.msk [vmem:[#allocation2 + $0xe7] sm:$0x1] %vm420, 0.0
      %429 = vst.msk [vmem:[#allocation2 + $0x107] sm:$0x1] %vm420, 0.0
      %430 = vst.msk [vmem:[#allocation2 + $0x127] sm:$0x1] %vm420, 0.0
      %431 = vst.msk [vmem:[#allocation2 + $0x18] sm:$0x1] %vm420, 0.0
      %432 = vst.msk [vmem:[#allocation2 + $0x38] sm:$0x1] %vm420, 0.0
      %433 = vst.msk [vmem:[#allocation2 + $0x58] sm:$0x1] %vm420, 0.0
      %434 = vst.msk [vmem:[#allocation2 + $0x78] sm:$0x1] %vm420, 0.0
      %435 = vst.msk [vmem:[#allocation2 + $0x98] sm:$0x1] %vm420, 0.0
      %436 = vst.msk [vmem:[#allocation2 + $0xb8] sm:$0x1] %vm420, 0.0
      %437 = vst.msk [vmem:[#allocation2 + $0xd8] sm:$0x1] %vm420, 0.0
      %438 = vst.msk [vmem:[#allocation2 + $0xf8] sm:$0x1] %vm420, 0.0
      %439 = vst.msk [vmem:[#allocation2 + $0x118] sm:$0x1] %vm420, 0.0
      %440 = vst.msk [vmem:[#allocation2 + $0x138] sm:$0x1] %vm420, 0.0
      %v441 = vld [vmem:[%s373] sm:$0xff]
      %v442 = vld [vmem:[%s373 + $0x8] sm:$0xff]
      %v443 = vstv %s416
      %v444 = vmul.f32 %v441, %v443
      %v445 = vmul.f32 %v442, %v443
      %vm446 = vcmask 31744
      %447 = vst.msk [vmem:[#allocation2 + $0x8] sm:$0xff] %vm446, %v444
      %448 = vst.msk [vmem:[#allocation2 + $0x10] sm:$0xff] %vm446, %v445
      %v449 = vld [vmem:[%s390] sm:$0xff]
      %v450 = vld [vmem:[%s390 + $0x8] sm:$0xff]
      %v451 = vstv %s419
      %v452 = vmul.f32 %v449, %v451
      %v453 = vmul.f32 %v450, %v451
      %s454 = scalar_lea.vmem [#allocation2], 288
      %455 = vst.msk [vmem:[%s454 + $0x8] sm:$0xff] %vm446, %v452
      %456 = vst.msk [vmem:[%s454 + $0x10] sm:$0xff] %vm446, %v453
      %v457 = vld [vmem:[%s359] sm:$0xff]
      %v458 = vld [vmem:[%s359 + $0x8] sm:$0xff]
      %v459 = vld [vmem:[%s359 + $0x10] sm:$0xff]
      %v460 = vld [vmem:[%s359 + $0x18] sm:$0xff]
      %v461 = vld [vmem:[%s359 + $0x20] sm:$0xff]
      %v462 = vld [vmem:[%s359 + $0x28] sm:$0xff]
      %v463 = vld [vmem:[%s359 + $0x30] sm:$0xff]
      %v464 = vld [vmem:[%s359 + $0x38] sm:$0xff]
      %v465 = vld [vmem:[%s359 + $0x40] sm:$0xff]
      %v466 = vld [vmem:[%s359 + $0x48] sm:$0xff]
      %v467 = vld [vmem:[%s359 + $0x50] sm:$0xff]
      %v468 = vld [vmem:[%s359 + $0x58] sm:$0xff]
      %v469 = vld [vmem:[%s359 + $0x60] sm:$0xff]
      %v470 = vld [vmem:[%s359 + $0x68] sm:$0xff]
      %v471 = vld [vmem:[%s359 + $0x70] sm:$0xff]
      %v472 = vld [vmem:[%s359 + $0x78] sm:$0xff]
      %s473 = scalar_lea.vmem [#allocation2], 32
      %474 = vst.msk [vmem:[%s473 + $0x8] sm:$0xff] %vm446, %v457
      %475 = vst.msk [vmem:[%s473 + $0x10] sm:$0xff] %vm446, %v458
      %476 = vst.msk [vmem:[%s473 + $0x28] sm:$0xff] %vm446, %v459
      %477 = vst.msk [vmem:[%s473 + $0x30] sm:$0xff] %vm446, %v460
      %478 = vst.msk [vmem:[%s473 + $0x48] sm:$0xff] %vm446, %v461
      %479 = vst.msk [vmem:[%s473 + $0x50] sm:$0xff] %vm446, %v462
      %480 = vst.msk [vmem:[%s473 + $0x68] sm:$0xff] %vm446, %v463
      %481 = vst.msk [vmem:[%s473 + $0x70] sm:$0xff] %vm446, %v464
      %482 = vst.msk [vmem:[%s473 + $0x88] sm:$0xff] %vm446, %v465
      %483 = vst.msk [vmem:[%s473 + $0x90] sm:$0xff] %vm446, %v466
      %484 = vst.msk [vmem:[%s473 + $0xa8] sm:$0xff] %vm446, %v467
      %485 = vst.msk [vmem:[%s473 + $0xb0] sm:$0xff] %vm446, %v468
      %486 = vst.msk [vmem:[%s473 + $0xc8] sm:$0xff] %vm446, %v469
      %487 = vst.msk [vmem:[%s473 + $0xd0] sm:$0xff] %vm446, %v470
      %488 = vst.msk [vmem:[%s473 + $0xe8] sm:$0xff] %vm446, %v471
      %489 = vst.msk [vmem:[%s473 + $0xf0] sm:$0xff] %vm446, %v472
      %v490 = vld [vmem:[#allocation2 + $0x7] sm:$0xff]
      %v491 = vld [vmem:[#allocation2 + $0xf] sm:$0xff]
      %v492 = vld [vmem:[#allocation2 + $0x27] sm:$0xff]
      %v493 = vld [vmem:[#allocation2 + $0x2f] sm:$0xff]
      %v494 = vld [vmem:[#allocation2 + $0x47] sm:$0xff]
      %v495 = vld [vmem:[#allocation2 + $0x4f] sm:$0xff]
      %v496 = vld [vmem:[#allocation2 + $0x67] sm:$0xff]
      %v497 = vld [vmem:[#allocation2 + $0x6f] sm:$0xff]
      %v498 = vld [vmem:[#allocation2 + $0x87] sm:$0xff]
      %v499 = vld [vmem:[#allocation2 + $0x8f] sm:$0xff]
      %v500 = vld [vmem:[#allocation2 + $0xa7] sm:$0xff]
      %v501 = vld [vmem:[#allocation2 + $0xaf] sm:$0xff]
      %v502 = vld [vmem:[#allocation2 + $0xc7] sm:$0xff]
      %v503 = vld [vmem:[#allocation2 + $0xcf] sm:$0xff]
      %v504 = vld [vmem:[#allocation2 + $0xe7] sm:$0xff]
      %v505 = vld [vmem:[#allocation2 + $0xef] sm:$0xff]
      %v506 = vld [vmem:[#allocation2 + $0x8] sm:$0xff]
      %v507 = vld [vmem:[#allocation2 + $0x10] sm:$0xff]
      %v508 = vld [vmem:[#allocation2 + $0x28] sm:$0xff]
      %v509 = vld [vmem:[#allocation2 + $0x30] sm:$0xff]
      %v510 = vld [vmem:[#allocation2 + $0x48] sm:$0xff]
      %v511 = vld [vmem:[#allocation2 + $0x50] sm:$0xff]
      %v512 = vld [vmem:[#allocation2 + $0x68] sm:$0xff]
      %v513 = vld [vmem:[#allocation2 + $0x70] sm:$0xff]
      %v514 = vld [vmem:[#allocation2 + $0x88] sm:$0xff]
      %v515 = vld [vmem:[#allocation2 + $0x90] sm:$0xff]
      %v516 = vld [vmem:[#allocation2 + $0xa8] sm:$0xff]
      %v517 = vld [vmem:[#allocation2 + $0xb0] sm:$0xff]
      %v518 = vld [vmem:[#allocation2 + $0xc8] sm:$0xff]
      %v519 = vld [vmem:[#allocation2 + $0xd0] sm:$0xff]
      %v520 = vld [vmem:[#allocation2 + $0xe8] sm:$0xff]
      %v521 = vld [vmem:[#allocation2 + $0xf0] sm:$0xff]
      %v522 = vld [vmem:[#allocation2 + $0x9] sm:$0xff]
      %v523 = vld [vmem:[#allocation2 + $0x11] sm:$0xff]
      %v524 = vld [vmem:[#allocation2 + $0x29] sm:$0xff]
      %v525 = vld [vmem:[#allocation2 + $0x31] sm:$0xff]
      %v526 = vld [vmem:[#allocation2 + $0x49] sm:$0xff]
      %v527 = vld [vmem:[#allocation2 + $0x51] sm:$0xff]
      %v528 = vld [vmem:[#allocation2 + $0x69] sm:$0xff]
      %v529 = vld [vmem:[#allocation2 + $0x71] sm:$0xff]
      %v530 = vld [vmem:[#allocation2 + $0x89] sm:$0xff]
      %v531 = vld [vmem:[#allocation2 + $0x91] sm:$0xff]
      %v532 = vld [vmem:[#allocation2 + $0xa9] sm:$0xff]
      %v533 = vld [vmem:[#allocation2 + $0xb1] sm:$0xff]
      %v534 = vld [vmem:[#allocation2 + $0xc9] sm:$0xff]
      %v535 = vld [vmem:[#allocation2 + $0xd1] sm:$0xff]
      %v536 = vld [vmem:[#allocation2 + $0xe9] sm:$0xff]
      %v537 = vld [vmem:[#allocation2 + $0xf1] sm:$0xff]
      %554 = vrot.lane.b32.xlu0 %v506, 4
      %v555 = vpop.permute.xlu0 %554
      %556 = vrot.lane.b32.xlu0 %v507, 4
      %v557 = vpop.permute.xlu0 %556
      %558 = vrot.lane.b32.xlu0 %v508, 4
      %v559 = vpop.permute.xlu0 %558
      %560 = vrot.lane.b32.xlu0 %v509, 4
      %v561 = vpop.permute.xlu0 %560
      %562 = vrot.lane.b32.xlu0 %v510, 4
      %v563 = vpop.permute.xlu0 %562
      %564 = vrot.lane.b32.xlu0 %v511, 4
      %v565 = vpop.permute.xlu0 %564
      %566 = vrot.lane.b32.xlu0 %v512, 4
      %v567 = vpop.permute.xlu0 %566
      %568 = vrot.lane.b32.xlu0 %v513, 4
      %v569 = vpop.permute.xlu0 %568
      %570 = vrot.lane.b32.xlu0 %v514, 4
      %v571 = vpop.permute.xlu0 %570
      %572 = vrot.lane.b32.xlu0 %v515, 4
      %v573 = vpop.permute.xlu0 %572
      %574 = vrot.lane.b32.xlu0 %v516, 4
      %v575 = vpop.permute.xlu0 %574
      %576 = vrot.lane.b32.xlu0 %v517, 4
      %v577 = vpop.permute.xlu0 %576
      %578 = vrot.lane.b32.xlu0 %v518, 4
      %v579 = vpop.permute.xlu0 %578
      %580 = vrot.lane.b32.xlu0 %v519, 4
      %v581 = vpop.permute.xlu0 %580
      %582 = vrot.lane.b32.xlu0 %v520, 4
      %v583 = vpop.permute.xlu0 %582
      %584 = vrot.lane.b32.xlu0 %v521, 4
      %v585 = vpop.permute.xlu0 %584
      %618 = vrot.lane.b32.xlu0 %v522, 8
      %v619 = vpop.permute.xlu0 %618
      %620 = vrot.lane.b32.xlu0 %v523, 8
      %v621 = vpop.permute.xlu0 %620
      %622 = vrot.lane.b32.xlu0 %v524, 8
      %v623 = vpop.permute.xlu0 %622
      %624 = vrot.lane.b32.xlu0 %v525, 8
      %v625 = vpop.permute.xlu0 %624
      %626 = vrot.lane.b32.xlu0 %v526, 8
      %v627 = vpop.permute.xlu0 %626
      %628 = vrot.lane.b32.xlu0 %v527, 8
      %v629 = vpop.permute.xlu0 %628
      %630 = vrot.lane.b32.xlu0 %v528, 8
      %v631 = vpop.permute.xlu0 %630
      %632 = vrot.lane.b32.xlu0 %v529, 8
      %v633 = vpop.permute.xlu0 %632
      %634 = vrot.lane.b32.xlu0 %v530, 8
      %v635 = vpop.permute.xlu0 %634
      %636 = vrot.lane.b32.xlu0 %v531, 8
      %v637 = vpop.permute.xlu0 %636
      %638 = vrot.lane.b32.xlu0 %v532, 8
      %v639 = vpop.permute.xlu0 %638
      %640 = vrot.lane.b32.xlu0 %v533, 8
      %v641 = vpop.permute.xlu0 %640
      %642 = vrot.lane.b32.xlu0 %v534, 8
      %v643 = vpop.permute.xlu0 %642
      %644 = vrot.lane.b32.xlu0 %v535, 8
      %v645 = vpop.permute.xlu0 %644
      %646 = vrot.lane.b32.xlu0 %v536, 8
      %v647 = vpop.permute.xlu0 %646
      %648 = vrot.lane.b32.xlu0 %v537, 8
      %v649 = vpop.permute.xlu0 %648
      %v666 = vsel %vm446, %v490, %v555
      %v667 = vsel %vm446, %v491, %v557
      %v668 = vsel %vm446, %v492, %v559
      %v669 = vsel %vm446, %v493, %v561
      %v670 = vsel %vm446, %v494, %v563
      %v671 = vsel %vm446, %v495, %v565
      %v672 = vsel %vm446, %v496, %v567
      %v673 = vsel %vm446, %v497, %v569
      %v674 = vsel %vm446, %v498, %v571
      %v675 = vsel %vm446, %v499, %v573
      %v676 = vsel %vm446, %v500, %v575
      %v677 = vsel %vm446, %v501, %v577
      %v678 = vsel %vm446, %v502, %v579
      %v679 = vsel %vm446, %v503, %v581
      %v680 = vsel %vm446, %v504, %v583
      %v681 = vsel %vm446, %v505, %v585
      %vm682 = vcmask 64512
      %v683 = vsel %vm682, %v666, %v619
      %v684 = vsel %vm682, %v667, %v621
      %v685 = vsel %vm682, %v668, %v623
      %v686 = vsel %vm682, %v669, %v625
      %v687 = vsel %vm682, %v670, %v627
      %v688 = vsel %vm682, %v671, %v629
      %v689 = vsel %vm682, %v672, %v631
      %v690 = vsel %vm682, %v673, %v633
      %v691 = vsel %vm682, %v674, %v635
      %v692 = vsel %vm682, %v675, %v637
      %v693 = vsel %vm682, %v676, %v639
      %v694 = vsel %vm682, %v677, %v641
      %v695 = vsel %vm682, %v678, %v643
      %v696 = vsel %vm682, %v679, %v645
      %v697 = vsel %vm682, %v680, %v647
      %v698 = vsel %vm682, %v681, %v649
      %v699 = vld [vmem:[%s3] sm:$0xff]
      %v700 = vld [vmem:[%s3 + $0x8] sm:$0xf]
      %v701 = vld [vmem:[%s473 + $0x7] sm:$0xff]
      %v702 = vld [vmem:[%s473 + $0xf] sm:$0xff]
      %v703 = vld [vmem:[%s473 + $0x27] sm:$0xff]
      %v704 = vld [vmem:[%s473 + $0x2f] sm:$0xff]
      %v705 = vld [vmem:[%s473 + $0x47] sm:$0xff]
      %v706 = vld [vmem:[%s473 + $0x4f] sm:$0xff]
      %v707 = vld [vmem:[%s473 + $0x67] sm:$0xff]
      %v708 = vld [vmem:[%s473 + $0x6f] sm:$0xff]
      %v709 = vld [vmem:[%s473 + $0x87] sm:$0xff]
      %v710 = vld [vmem:[%s473 + $0x8f] sm:$0xff]
      %v711 = vld [vmem:[%s473 + $0xa7] sm:$0xff]
      %v712 = vld [vmem:[%s473 + $0xaf] sm:$0xff]
      %v713 = vld [vmem:[%s473 + $0xc7] sm:$0xff]
      %v714 = vld [vmem:[%s473 + $0xcf] sm:$0xff]
      %v715 = vld [vmem:[%s473 + $0xe7] sm:$0xff]
      %v716 = vld [vmem:[%s473 + $0xef] sm:$0xff]
      %v717 = vld [vmem:[%s473 + $0x8] sm:$0xff]
      %v718 = vld [vmem:[%s473 + $0x10] sm:$0xff]
      %v719 = vld [vmem:[%s473 + $0x28] sm:$0xff]
      %v720 = vld [vmem:[%s473 + $0x30] sm:$0xff]
      %v721 = vld [vmem:[%s473 + $0x48] sm:$0xff]
      %v722 = vld [vmem:[%s473 + $0x50] sm:$0xff]
      %v723 = vld [vmem:[%s473 + $0x68] sm:$0xff]
      %v724 = vld [vmem:[%s473 + $0x70] sm:$0xff]
      %v725 = vld [vmem:[%s473 + $0x88] sm:$0xff]
      %v726 = vld [vmem:[%s473 + $0x90] sm:$0xff]
      %v727 = vld [vmem:[%s473 + $0xa8] sm:$0xff]
      %v728 = vld [vmem:[%s473 + $0xb0] sm:$0xff]
      %v729 = vld [vmem:[%s473 + $0xc8] sm:$0xff]
      %v730 = vld [vmem:[%s473 + $0xd0] sm:$0xff]
      %v731 = vld [vmem:[%s473 + $0xe8] sm:$0xff]
      %v732 = vld [vmem:[%s473 + $0xf0] sm:$0xff]
      %v733 = vld [vmem:[%s473 + $0x9] sm:$0xff]
      %v734 = vld [vmem:[%s473 + $0x11] sm:$0xff]
      %v735 = vld [vmem:[%s473 + $0x29] sm:$0xff]
      %v736 = vld [vmem:[%s473 + $0x31] sm:$0xff]
      %v737 = vld [vmem:[%s473 + $0x49] sm:$0xff]
      %v738 = vld [vmem:[%s473 + $0x51] sm:$0xff]
      %v739 = vld [vmem:[%s473 + $0x69] sm:$0xff]
      %v740 = vld [vmem:[%s473 + $0x71] sm:$0xff]
      %v741 = vld [vmem:[%s473 + $0x89] sm:$0xff]
      %v742 = vld [vmem:[%s473 + $0x91] sm:$0xff]
      %v743 = vld [vmem:[%s473 + $0xa9] sm:$0xff]
      %v744 = vld [vmem:[%s473 + $0xb1] sm:$0xff]
      %v745 = vld [vmem:[%s473 + $0xc9] sm:$0xff]
      %v746 = vld [vmem:[%s473 + $0xd1] sm:$0xff]
      %v747 = vld [vmem:[%s473 + $0xe9] sm:$0xff]
      %v748 = vld [vmem:[%s473 + $0xf1] sm:$0xff]
      %765 = vrot.lane.b32.xlu0 %v717, 4
      %v766 = vpop.permute.xlu0 %765
      %767 = vrot.lane.b32.xlu0 %v718, 4
      %v768 = vpop.permute.xlu0 %767
      %769 = vrot.lane.b32.xlu0 %v719, 4
      %v770 = vpop.permute.xlu0 %769
      %771 = vrot.lane.b32.xlu0 %v720, 4
      %v772 = vpop.permute.xlu0 %771
      %773 = vrot.lane.b32.xlu0 %v721, 4
      %v774 = vpop.permute.xlu0 %773
      %775 = vrot.lane.b32.xlu0 %v722, 4
      %v776 = vpop.permute.xlu0 %775
      %777 = vrot.lane.b32.xlu0 %v723, 4
      %v778 = vpop.permute.xlu0 %777
      %779 = vrot.lane.b32.xlu0 %v724, 4
      %v780 = vpop.permute.xlu0 %779
      %781 = vrot.lane.b32.xlu0 %v725, 4
      %v782 = vpop.permute.xlu0 %781
      %783 = vrot.lane.b32.xlu0 %v726, 4
      %v784 = vpop.permute.xlu0 %783
      %785 = vrot.lane.b32.xlu0 %v727, 4
      %v786 = vpop.permute.xlu0 %785
      %787 = vrot.lane.b32.xlu0 %v728, 4
      %v788 = vpop.permute.xlu0 %787
      %789 = vrot.lane.b32.xlu0 %v729, 4
      %v790 = vpop.permute.xlu0 %789
      %791 = vrot.lane.b32.xlu0 %v730, 4
      %v792 = vpop.permute.xlu0 %791
      %793 = vrot.lane.b32.xlu0 %v731, 4
      %v794 = vpop.permute.xlu0 %793
      %795 = vrot.lane.b32.xlu0 %v732, 4
      %v796 = vpop.permute.xlu0 %795
      %829 = vrot.lane.b32.xlu0 %v733, 8
      %v830 = vpop.permute.xlu0 %829
      %831 = vrot.lane.b32.xlu0 %v734, 8
      %v832 = vpop.permute.xlu0 %831
      %833 = vrot.lane.b32.xlu0 %v735, 8
      %v834 = vpop.permute.xlu0 %833
      %835 = vrot.lane.b32.xlu0 %v736, 8
      %v836 = vpop.permute.xlu0 %835
      %837 = vrot.lane.b32.xlu0 %v737, 8
      %v838 = vpop.permute.xlu0 %837
      %839 = vrot.lane.b32.xlu0 %v738, 8
      %v840 = vpop.permute.xlu0 %839
      %841 = vrot.lane.b32.xlu0 %v739, 8
      %v842 = vpop.permute.xlu0 %841
      %843 = vrot.lane.b32.xlu0 %v740, 8
      %v844 = vpop.permute.xlu0 %843
      %845 = vrot.lane.b32.xlu0 %v741, 8
      %v846 = vpop.permute.xlu0 %845
      %847 = vrot.lane.b32.xlu0 %v742, 8
      %v848 = vpop.permute.xlu0 %847
      %849 = vrot.lane.b32.xlu0 %v743, 8
      %v850 = vpop.permute.xlu0 %849
      %851 = vrot.lane.b32.xlu0 %v744, 8
      %v852 = vpop.permute.xlu0 %851
      %853 = vrot.lane.b32.xlu0 %v745, 8
      %v854 = vpop.permute.xlu0 %853
      %855 = vrot.lane.b32.xlu0 %v746, 8
      %v856 = vpop.permute.xlu0 %855
      %857 = vrot.lane.b32.xlu0 %v747, 8
      %v858 = vpop.permute.xlu0 %857
      %859 = vrot.lane.b32.xlu0 %v748, 8
      %v860 = vpop.permute.xlu0 %859
      %v877 = vsel %vm446, %v701, %v766
      %v878 = vsel %vm446, %v702, %v768
      %v879 = vsel %vm446, %v703, %v770
      %v880 = vsel %vm446, %v704, %v772
      %v881 = vsel %vm446, %v705, %v774
      %v882 = vsel %vm446, %v706, %v776
      %v883 = vsel %vm446, %v707, %v778
      %v884 = vsel %vm446, %v708, %v780
      %v885 = vsel %vm446, %v709, %v782
      %v886 = vsel %vm446, %v710, %v784
      %v887 = vsel %vm446, %v711, %v786
      %v888 = vsel %vm446, %v712, %v788
      %v889 = vsel %vm446, %v713, %v790
      %v890 = vsel %vm446, %v714, %v792
      %v891 = vsel %vm446, %v715, %v794
      %v892 = vsel %vm446, %v716, %v796
      %v893 = vsel %vm682, %v877, %v830
      %v894 = vsel %vm682, %v878, %v832
      %v895 = vsel %vm682, %v879, %v834
      %v896 = vsel %vm682, %v880, %v836
      %v897 = vsel %vm682, %v881, %v838
      %v898 = vsel %vm682, %v882, %v840
      %v899 = vsel %vm682, %v883, %v842
      %v900 = vsel %vm682, %v884, %v844
      %v901 = vsel %vm682, %v885, %v846
      %v902 = vsel %vm682, %v886, %v848
      %v903 = vsel %vm682, %v887, %v850
      %v904 = vsel %vm682, %v888, %v852
      %v905 = vsel %vm682, %v889, %v854
      %v906 = vsel %vm682, %v890, %v856
      %v907 = vsel %vm682, %v891, %v858
      %v908 = vsel %vm682, %v892, %v860
      %s909 = scalar_lea.vmem %s3, 16
      %v910 = vld [vmem:[%s909] sm:$0xff]
      %v911 = vld [vmem:[%s909 + $0x8] sm:$0xf]
      %vm912 = vcmask 97280
      %v914 = vsel %vm912, %v893, 0
      %v917 = vsel %vm912, %v894, 0
      %v920 = vsel %vm912, %v895, 0
      %v923 = vsel %vm912, %v896, 0
      %v926 = vsel %vm912, %v897, 0
      %v929 = vsel %vm912, %v898, 0
      %v932 = vsel %vm912, %v899, 0
      %v935 = vsel %vm912, %v900, 0
      %v938 = vsel %vm912, %v901, 0
      %v941 = vsel %vm912, %v902, 0
      %v944 = vsel %vm912, %v903, 0
      %v947 = vsel %vm912, %v904, 0
      %v950 = vsel %vm912, %v905, 0
      %v953 = vsel %vm912, %v906, 0
      %v956 = vsel %vm912, %v907, 0
      %v959 = vsel %vm912, %v908, 0
      %vm961 = vcmask 1043456
      %v963 = vsel %vm961, %v911, 0
      %965 = vmatprep.subr.mxu0 0.0
      %966 = vmatpush1.msra.mxu0 %v910
      %967 = vmatprep.subr.mxu0 0.0
      %968 = vmatpush1.msra.mxu0 %v963
      %969 = vmatprep.subr.mxu0 0.0
      %970 = vmatpush1.msra.mxu0 0.0
      %971 = vmatprep.subr.mxu0 0.0
      %972 = vmatpush1.msra.mxu0 0.0
      %973 = vmatprep.subr.mxu0 0.0
      %974 = vmatpush1.msra.mxu0 0.0
      %975 = vmatprep.subr.mxu0 0.0
      %976 = vmatpush1.msra.mxu0 0.0
      %977 = vmatprep.subr.mxu0 0.0
      %978 = vmatpush1.msra.mxu0 0.0
      %979 = vmatprep.subr.mxu0 0.0
      %980 = vmatpush1.msra.mxu0 0.0
      %981 = vmatprep.subr.mxu0 0.0
      %982 = vmatpush1.msra.mxu0 0.0
      %983 = vmatprep.subr.mxu0 0.0
      %984 = vmatpush1.msra.mxu0 0.0
      %985 = vmatprep.subr.mxu0 0.0
      %986 = vmatpush1.msra.mxu0 0.0
      %987 = vmatprep.subr.mxu0 0.0
      %988 = vmatpush1.msra.mxu0 0.0
      %989 = vmatprep.subr.mxu0 0.0
      %990 = vmatpush1.msra.mxu0 0.0
      %991 = vmatprep.subr.mxu0 0.0
      %992 = vmatpush1.msra.mxu0 0.0
      %993 = vmatprep.subr.mxu0 0.0
      %994 = vmatpush1.msra.mxu0 0.0
      %995 = vmatprep.subr.mxu0 0.0
      %996 = vmatpush1.msra.mxu0 0.0
      %997 = vmatprep.subr.mxu0 0.0
      %998 = vmatpush1.msra.mxu0 0.0
      %999 = vmatprep.subr.mxu0 0.0
      %1000 = vmatpush1.msra.mxu0 0.0
      %1001 = vmatprep.subr.mxu0 0.0
      %1002 = vmatpush1.msra.mxu0 0.0
      %1003 = vmatprep.subr.mxu0 0.0
      %1004 = vmatpush1.msra.mxu0 0.0
      %1005 = vmatprep.subr.mxu0 0.0
      %1006 = vmatpush1.msra.mxu0 0.0
      %1007 = vmatprep.subr.mxu0 0.0
      %1008 = vmatpush1.msra.mxu0 0.0
      %1009 = vmatprep.subr.mxu0 0.0
      %1010 = vmatpush1.msra.mxu0 0.0
      %1011 = vmatprep.subr.mxu0 0.0
      %1012 = vmatpush1.msra.mxu0 0.0
      %1013 = vmatprep.subr.mxu0 0.0
      %1014 = vmatpush1.msra.mxu0 0.0
      %1015 = vmatprep.subr.mxu0 0.0
      %1016 = vmatpush1.msra.mxu0 0.0
      %1017 = vmatprep.subr.mxu0 0.0
      %1018 = vmatpush1.msra.mxu0 0.0
      %1019 = vmatprep.subr.mxu0 0.0
      %1020 = vmatpush1.msra.mxu0 0.0
      %1021 = vmatprep.subr.mxu0 0.0
      %1022 = vmatpush1.msra.mxu0 0.0
      %1023 = vmatprep.subr.mxu0 0.0
      %1024 = vmatpush1.msra.mxu0 0.0
      %1025 = vmatprep.subr.mxu0 0.0
      %1026 = vmatpush1.msra.mxu0 0.0
      %1027 = vmatprep.subr.mxu0 0.0
      %1028 = vmatpush1.msra.mxu0 0.0
      %1029 = vmatprep.mubr.f32.mxu0 0.0
      %1030 = vmatmul.mubr.f32.gmra.mrb[0].mxu0 %v914
      %v1031 = vpop.f32.mrb[0].mxu0
      %v1032 = vadd.f32 0.0, %v1031
      %v1033 = vpop.f32.mrb[0].mxu0
      %1034 = vmatprep.mubr.f32.mxu0 0.0
      %1035 = vmatmul.mubr.f32.gmra.mrb[0].mxu0 %v917
      %v1036 = vpop.f32.mrb[0].mxu0
      %v1037 = vadd.f32 0.0, %v1036
      %v1038 = vpop.f32.mrb[0].mxu0
      %1039 = vmatprep.mubr.f32.mxu0 0.0
      %1040 = vmatmul.mubr.f32.gmra.mrb[0].mxu0 %v920
      %v1041 = vpop.f32.mrb[0].mxu0
      %v1042 = vadd.f32 0.0, %v1041
      %v1043 = vpop.f32.mrb[0].mxu0
      %1044 = vmatprep.mubr.f32.mxu0 0.0
      %1045 = vmatmul.mubr.f32.gmra.mrb[0].mxu0 %v923
      %v1046 = vpop.f32.mrb[0].mxu0
      %v1047 = vadd.f32 0.0, %v1046
      %v1048 = vpop.f32.mrb[0].mxu0
      %1049 = vmatprep.mubr.f32.mxu0 0.0
      %1050 = vmatmul.mubr.f32.gmra.mrb[0].mxu0 %v926
      %v1051 = vpop.f32.mrb[0].mxu0
      %v1052 = vadd.f32 0.0, %v1051
      %v1053 = vpop.f32.mrb[0].mxu0
      %1054 = vmatprep.mubr.f32.mxu0 0.0
      %1055 = vmatmul.mubr.f32.gmra.mrb[0].mxu0 %v929
      %v1056 = vpop.f32.mrb[0].mxu0
      %v1057 = vadd.f32 0.0, %v1056
      %v1058 = vpop.f32.mrb[0].mxu0
      %1059 = vmatprep.mubr.f32.mxu0 0.0
      %1060 = vmatmul.mubr.f32.gmra.mrb[0].mxu0 %v932
      %v1061 = vpop.f32.mrb[0].mxu0
      %v1062 = vadd.f32 0.0, %v1061
      %v1063 = vpop.f32.mrb[0].mxu0
      %1064 = vmatprep.mubr.f32.mxu0 0.0
      %1065 = vmatmul.mubr.f32.gmra.mrb[0].mxu0 %v935
      %v1066 = vpop.f32.mrb[0].mxu0
      %v1067 = vadd.f32 0.0, %v1066
      %v1068 = vpop.f32.mrb[0].mxu0
      %1069 = vmatprep.mubr.f32.mxu0 0.0
      %1070 = vmatmul.mubr.f32.gmra.mrb[0].mxu0 %v938
      %v1071 = vpop.f32.mrb[0].mxu0
      %v1072 = vadd.f32 0.0, %v1071
      %v1073 = vpop.f32.mrb[0].mxu0
      %1074 = vmatprep.mubr.f32.mxu0 0.0
      %1075 = vmatmul.mubr.f32.gmra.mrb[0].mxu0 %v941
      %v1076 = vpop.f32.mrb[0].mxu0
      %v1077 = vadd.f32 0.0, %v1076
      %v1078 = vpop.f32.mrb[0].mxu0
      %1079 = vmatprep.mubr.f32.mxu0 0.0
      %1080 = vmatmul.mubr.f32.gmra.mrb[0].mxu0 %v944
      %v1081 = vpop.f32.mrb[0].mxu0
      %v1082 = vadd.f32 0.0, %v1081
      %v1083 = vpop.f32.mrb[0].mxu0
      %1084 = vmatprep.mubr.f32.mxu0 0.0
      %1085 = vmatmul.mubr.f32.gmra.mrb[0].mxu0 %v947
      %v1086 = vpop.f32.mrb[0].mxu0
      %v1087 = vadd.f32 0.0, %v1086
      %v1088 = vpop.f32.mrb[0].mxu0
      %1089 = vmatprep.mubr.f32.mxu0 0.0
      %1090 = vmatmul.mubr.f32.gmra.mrb[0].mxu0 %v950
      %v1091 = vpop.f32.mrb[0].mxu0
      %v1092 = vadd.f32 0.0, %v1091
      %v1093 = vpop.f32.mrb[0].mxu0
      %1094 = vmatprep.mubr.f32.mxu0 0.0
      %1095 = vmatmul.mubr.f32.gmra.mrb[0].mxu0 %v953
      %v1096 = vpop.f32.mrb[0].mxu0
      %v1097 = vadd.f32 0.0, %v1096
      %v1098 = vpop.f32.mrb[0].mxu0
      %1099 = vmatprep.mubr.f32.mxu0 0.0
      %1100 = vmatmul.mubr.f32.gmra.mrb[0].mxu0 %v956
      %v1101 = vpop.f32.mrb[0].mxu0
      %v1102 = vadd.f32 0.0, %v1101
      %v1103 = vpop.f32.mrb[0].mxu0
      %1104 = vmatprep.mubr.f32.mxu0 0.0
      %1105 = vmatmul.mubr.f32.gmra.mrb[0].mxu0 %v959
      %v1106 = vpop.f32.mrb[0].mxu0
      %v1107 = vadd.f32 0.0, %v1106
      %v1108 = vpop.f32.mrb[0].mxu0
      %1109 = vdwg.mxu0
      %v1111 = vsel %vm912, %v683, 0
      %v1114 = vsel %vm912, %v684, 0
      %v1117 = vsel %vm912, %v685, 0
      %v1120 = vsel %vm912, %v686, 0
      %v1123 = vsel %vm912, %v687, 0
      %v1126 = vsel %vm912, %v688, 0
      %v1129 = vsel %vm912, %v689, 0
      %v1132 = vsel %vm912, %v690, 0
      %v1135 = vsel %vm912, %v691, 0
      %v1138 = vsel %vm912, %v692, 0
      %v1141 = vsel %vm912, %v693, 0
      %v1144 = vsel %vm912, %v694, 0
      %v1147 = vsel %vm912, %v695, 0
      %v1150 = vsel %vm912, %v696, 0
      %v1153 = vsel %vm912, %v697, 0
      %v1156 = vsel %vm912, %v698, 0
      %v1159 = vsel %vm961, %v700, 0
      %1161 = vmatprep.subr.mxu0 0.0
      %1162 = vmatpush1.msra.mxu0 %v699
      %1163 = vmatprep.subr.mxu0 0.0
      %1164 = vmatpush1.msra.mxu0 %v1159
      %1165 = vmatprep.subr.mxu0 0.0
      %1166 = vmatpush1.msra.mxu0 0.0
      %1167 = vmatprep.subr.mxu0 0.0
      %1168 = vmatpush1.msra.mxu0 0.0
      %1169 = vmatprep.subr.mxu0 0.0
      %1170 = vmatpush1.msra.mxu0 0.0
      %1171 = vmatprep.subr.mxu0 0.0
      %1172 = vmatpush1.msra.mxu0 0.0
      %1173 = vmatprep.subr.mxu0 0.0
      %1174 = vmatpush1.msra.mxu0 0.0
      %1175 = vmatprep.subr.mxu0 0.0
      %1176 = vmatpush1.msra.mxu0 0.0
      %1177 = vmatprep.subr.mxu0 0.0
      %1178 = vmatpush1.msra.mxu0 0.0
      %1179 = vmatprep.subr.mxu0 0.0
      %1180 = vmatpush1.msra.mxu0 0.0
      %1181 = vmatprep.subr.mxu0 0.0
      %1182 = vmatpush1.msra.mxu0 0.0
      %1183 = vmatprep.subr.mxu0 0.0
      %1184 = vmatpush1.msra.mxu0 0.0
      %1185 = vmatprep.subr.mxu0 0.0
      %1186 = vmatpush1.msra.mxu0 0.0
      %1187 = vmatprep.subr.mxu0 0.0
      %1188 = vmatpush1.msra.mxu0 0.0
      %1189 = vmatprep.subr.mxu0 0.0
      %1190 = vmatpush1.msra.mxu0 0.0
      %1191 = vmatprep.subr.mxu0 0.0
      %1192 = vmatpush1.msra.mxu0 0.0
      %1193 = vmatprep.subr.mxu0 0.0
      %1194 = vmatpush1.msra.mxu0 0.0
      %1195 = vmatprep.subr.mxu0 0.0
      %1196 = vmatpush1.msra.mxu0 0.0
      %1197 = vmatprep.subr.mxu0 0.0
      %1198 = vmatpush1.msra.mxu0 0.0
      %1199 = vmatprep.subr.mxu0 0.0
      %1200 = vmatpush1.msra.mxu0 0.0
      %1201 = vmatprep.subr.mxu0 0.0
      %1202 = vmatpush1.msra.mxu0 0.0
      %1203 = vmatprep.subr.mxu0 0.0
      %1204 = vmatpush1.msra.mxu0 0.0
      %1205 = vmatprep.subr.mxu0 0.0
      %1206 = vmatpush1.msra.mxu0 0.0
      %1207 = vmatprep.subr.mxu0 0.0
      %1208 = vmatpush1.msra.mxu0 0.0
      %1209 = vmatprep.subr.mxu0 0.0
      %1210 = vmatpush1.msra.mxu0 0.0
      %1211 = vmatprep.subr.mxu0 0.0
      %1212 = vmatpush1.msra.mxu0 0.0
      %1213 = vmatprep.subr.mxu0 0.0
      %1214 = vmatpush1.msra.mxu0 0.0
      %1215 = vmatprep.subr.mxu0 0.0
      %1216 = vmatpush1.msra.mxu0 0.0
      %1217 = vmatprep.subr.mxu0 0.0
      %1218 = vmatpush1.msra.mxu0 0.0
      %1219 = vmatprep.subr.mxu0 0.0
      %1220 = vmatpush1.msra.mxu0 0.0
      %1221 = vmatprep.subr.mxu0 0.0
      %1222 = vmatpush1.msra.mxu0 0.0
      %1223 = vmatprep.subr.mxu0 0.0
      %1224 = vmatpush1.msra.mxu0 0.0
      %1225 = vmatprep.mubr.f32.mxu0 0.0
      %1226 = vmatmul.mubr.f32.gmra.mrb[0].mxu0 %v1111
      %v1227 = vpop.f32.mrb[0].mxu0
      %v1228 = vadd.f32 %v1032, %v1227
      %v1229 = vpop.f32.mrb[0].mxu0
      %1230 = vmatprep.mubr.f32.mxu0 0.0
      %1231 = vmatmul.mubr.f32.gmra.mrb[0].mxu0 %v1114
      %v1232 = vpop.f32.mrb[0].mxu0
      %v1233 = vadd.f32 %v1037, %v1232
      %v1234 = vpop.f32.mrb[0].mxu0
      %1235 = vmatprep.mubr.f32.mxu0 0.0
      %1236 = vmatmul.mubr.f32.gmra.mrb[0].mxu0 %v1117
      %v1237 = vpop.f32.mrb[0].mxu0
      %v1238 = vadd.f32 %v1042, %v1237
      %v1239 = vpop.f32.mrb[0].mxu0
      %1240 = vmatprep.mubr.f32.mxu0 0.0
      %1241 = vmatmul.mubr.f32.gmra.mrb[0].mxu0 %v1120
      %v1242 = vpop.f32.mrb[0].mxu0
      %v1243 = vadd.f32 %v1047, %v1242
      %v1244 = vpop.f32.mrb[0].mxu0
      %1245 = vmatprep.mubr.f32.mxu0 0.0
      %1246 = vmatmul.mubr.f32.gmra.mrb[0].mxu0 %v1123
      %v1247 = vpop.f32.mrb[0].mxu0
      %v1248 = vadd.f32 %v1052, %v1247
      %v1249 = vpop.f32.mrb[0].mxu0
      %1250 = vmatprep.mubr.f32.mxu0 0.0
      %1251 = vmatmul.mubr.f32.gmra.mrb[0].mxu0 %v1126
      %v1252 = vpop.f32.mrb[0].mxu0
      %v1253 = vadd.f32 %v1057, %v1252
      %v1254 = vpop.f32.mrb[0].mxu0
      %1255 = vmatprep.mubr.f32.mxu0 0.0
      %1256 = vmatmul.mubr.f32.gmra.mrb[0].mxu0 %v1129
      %v1257 = vpop.f32.mrb[0].mxu0
      %v1258 = vadd.f32 %v1062, %v1257
      %v1259 = vpop.f32.mrb[0].mxu0
      %1260 = vmatprep.mubr.f32.mxu0 0.0
      %1261 = vmatmul.mubr.f32.gmra.mrb[0].mxu0 %v1132
      %v1262 = vpop.f32.mrb[0].mxu0
      %v1263 = vadd.f32 %v1067, %v1262
      %v1264 = vpop.f32.mrb[0].mxu0
      %1265 = vmatprep.mubr.f32.mxu0 0.0
      %1266 = vmatmul.mubr.f32.gmra.mrb[0].mxu0 %v1135
      %v1267 = vpop.f32.mrb[0].mxu0
      %v1268 = vadd.f32 %v1072, %v1267
      %v1269 = vpop.f32.mrb[0].mxu0
      %1270 = vmatprep.mubr.f32.mxu0 0.0
      %1271 = vmatmul.mubr.f32.gmra.mrb[0].mxu0 %v1138
      %v1272 = vpop.f32.mrb[0].mxu0
      %v1273 = vadd.f32 %v1077, %v1272
      %v1274 = vpop.f32.mrb[0].mxu0
      %1275 = vmatprep.mubr.f32.mxu0 0.0
      %1276 = vmatmul.mubr.f32.gmra.mrb[0].mxu0 %v1141
      %v1277 = vpop.f32.mrb[0].mxu0
      %v1278 = vadd.f32 %v1082, %v1277
      %v1279 = vpop.f32.mrb[0].mxu0
      %1280 = vmatprep.mubr.f32.mxu0 0.0
      %1281 = vmatmul.mubr.f32.gmra.mrb[0].mxu0 %v1144
      %v1282 = vpop.f32.mrb[0].mxu0
      %v1283 = vadd.f32 %v1087, %v1282
      %v1284 = vpop.f32.mrb[0].mxu0
      %1285 = vmatprep.mubr.f32.mxu0 0.0
      %1286 = vmatmul.mubr.f32.gmra.mrb[0].mxu0 %v1147
      %v1287 = vpop.f32.mrb[0].mxu0
      %v1288 = vadd.f32 %v1092, %v1287
      %v1289 = vpop.f32.mrb[0].mxu0
      %1290 = vmatprep.mubr.f32.mxu0 0.0
      %1291 = vmatmul.mubr.f32.gmra.mrb[0].mxu0 %v1150
      %v1292 = vpop.f32.mrb[0].mxu0
      %v1293 = vadd.f32 %v1097, %v1292
      %v1294 = vpop.f32.mrb[0].mxu0
      %1295 = vmatprep.mubr.f32.mxu0 0.0
      %1296 = vmatmul.mubr.f32.gmra.mrb[0].mxu0 %v1153
      %v1297 = vpop.f32.mrb[0].mxu0
      %v1298 = vadd.f32 %v1102, %v1297
      %v1299 = vpop.f32.mrb[0].mxu0
      %1300 = vmatprep.mubr.f32.mxu0 0.0
      %1301 = vmatmul.mubr.f32.gmra.mrb[0].mxu0 %v1156
      %v1302 = vpop.f32.mrb[0].mxu0
      %v1303 = vadd.f32 %v1107, %v1302
      %v1304 = vpop.f32.mrb[0].mxu0
      %1305 = vdwg.mxu0
      %s1306 = scalar_lea.vmem [#allocation2], 64
      %v1307 = vld [vmem:[%s1306 + $0x7] sm:$0xff]
      %v1308 = vld [vmem:[%s1306 + $0xf] sm:$0xff]
      %v1309 = vld [vmem:[%s1306 + $0x27] sm:$0xff]
      %v1310 = vld [vmem:[%s1306 + $0x2f] sm:$0xff]
      %v1311 = vld [vmem:[%s1306 + $0x47] sm:$0xff]
      %v1312 = vld [vmem:[%s1306 + $0x4f] sm:$0xff]
      %v1313 = vld [vmem:[%s1306 + $0x67] sm:$0xff]
      %v1314 = vld [vmem:[%s1306 + $0x6f] sm:$0xff]
      %v1315 = vld [vmem:[%s1306 + $0x87] sm:$0xff]
      %v1316 = vld [vmem:[%s1306 + $0x8f] sm:$0xff]
      %v1317 = vld [vmem:[%s1306 + $0xa7] sm:$0xff]
      %v1318 = vld [vmem:[%s1306 + $0xaf] sm:$0xff]
      %v1319 = vld [vmem:[%s1306 + $0xc7] sm:$0xff]
      %v1320 = vld [vmem:[%s1306 + $0xcf] sm:$0xff]
      %v1321 = vld [vmem:[%s1306 + $0xe7] sm:$0xff]
      %v1322 = vld [vmem:[%s1306 + $0xef] sm:$0xff]
      %v1323 = vld [vmem:[%s1306 + $0x8] sm:$0xff]
      %v1324 = vld [vmem:[%s1306 + $0x10] sm:$0xff]
      %v1325 = vld [vmem:[%s1306 + $0x28] sm:$0xff]
      %v1326 = vld [vmem:[%s1306 + $0x30] sm:$0xff]
      %v1327 = vld [vmem:[%s1306 + $0x48] sm:$0xff]
      %v1328 = vld [vmem:[%s1306 + $0x50] sm:$0xff]
      %v1329 = vld [vmem:[%s1306 + $0x68] sm:$0xff]
      %v1330 = vld [vmem:[%s1306 + $0x70] sm:$0xff]
      %v1331 = vld [vmem:[%s1306 + $0x88] sm:$0xff]
      %v1332 = vld [vmem:[%s1306 + $0x90] sm:$0xff]
      %v1333 = vld [vmem:[%s1306 + $0xa8] sm:$0xff]
      %v1334 = vld [vmem:[%s1306 + $0xb0] sm:$0xff]
      %v1335 = vld [vmem:[%s1306 + $0xc8] sm:$0xff]
      %v1336 = vld [vmem:[%s1306 + $0xd0] sm:$0xff]
      %v1337 = vld [vmem:[%s1306 + $0xe8] sm:$0xff]
      %v1338 = vld [vmem:[%s1306 + $0xf0] sm:$0xff]
      %v1339 = vld [vmem:[%s1306 + $0x9] sm:$0xff]
      %v1340 = vld [vmem:[%s1306 + $0x11] sm:$0xff]
      %v1341 = vld [vmem:[%s1306 + $0x29] sm:$0xff]
      %v1342 = vld [vmem:[%s1306 + $0x31] sm:$0xff]
      %v1343 = vld [vmem:[%s1306 + $0x49] sm:$0xff]
      %v1344 = vld [vmem:[%s1306 + $0x51] sm:$0xff]
      %v1345 = vld [vmem:[%s1306 + $0x69] sm:$0xff]
      %v1346 = vld [vmem:[%s1306 + $0x71] sm:$0xff]
      %v1347 = vld [vmem:[%s1306 + $0x89] sm:$0xff]
      %v1348 = vld [vmem:[%s1306 + $0x91] sm:$0xff]
      %v1349 = vld [vmem:[%s1306 + $0xa9] sm:$0xff]
      %v1350 = vld [vmem:[%s1306 + $0xb1] sm:$0xff]
      %v1351 = vld [vmem:[%s1306 + $0xc9] sm:$0xff]
      %v1352 = vld [vmem:[%s1306 + $0xd1] sm:$0xff]
      %v1353 = vld [vmem:[%s1306 + $0xe9] sm:$0xff]
      %v1354 = vld [vmem:[%s1306 + $0xf1] sm:$0xff]
      %1371 = vrot.lane.b32.xlu0 %v1323, 4
      %v1372 = vpop.permute.xlu0 %1371
      %1373 = vrot.lane.b32.xlu0 %v1324, 4
      %v1374 = vpop.permute.xlu0 %1373
      %1375 = vrot.lane.b32.xlu0 %v1325, 4
      %v1376 = vpop.permute.xlu0 %1375
      %1377 = vrot.lane.b32.xlu0 %v1326, 4
      %v1378 = vpop.permute.xlu0 %1377
      %1379 = vrot.lane.b32.xlu0 %v1327, 4
      %v1380 = vpop.permute.xlu0 %1379
      %1381 = vrot.lane.b32.xlu0 %v1328, 4
      %v1382 = vpop.permute.xlu0 %1381
      %1383 = vrot.lane.b32.xlu0 %v1329, 4
      %v1384 = vpop.permute.xlu0 %1383
      %1385 = vrot.lane.b32.xlu0 %v1330, 4
      %v1386 = vpop.permute.xlu0 %1385
      %1387 = vrot.lane.b32.xlu0 %v1331, 4
      %v1388 = vpop.permute.xlu0 %1387
      %1389 = vrot.lane.b32.xlu0 %v1332, 4
      %v1390 = vpop.permute.xlu0 %1389
      %1391 = vrot.lane.b32.xlu0 %v1333, 4
      %v1392 = vpop.permute.xlu0 %1391
      %1393 = vrot.lane.b32.xlu0 %v1334, 4
      %v1394 = vpop.permute.xlu0 %1393
      %1395 = vrot.lane.b32.xlu0 %v1335, 4
      %v1396 = vpop.permute.xlu0 %1395
      %1397 = vrot.lane.b32.xlu0 %v1336, 4
      %v1398 = vpop.permute.xlu0 %1397
      %1399 = vrot.lane.b32.xlu0 %v1337, 4
      %v1400 = vpop.permute.xlu0 %1399
      %1401 = vrot.lane.b32.xlu0 %v1338, 4
      %v1402 = vpop.permute.xlu0 %1401
      %1435 = vrot.lane.b32.xlu0 %v1339, 8
      %v1436 = vpop.permute.xlu0 %1435
      %1437 = vrot.lane.b32.xlu0 %v1340, 8
      %v1438 = vpop.permute.xlu0 %1437
      %1439 = vrot.lane.b32.xlu0 %v1341, 8
      %v1440 = vpop.permute.xlu0 %1439
      %1441 = vrot.lane.b32.xlu0 %v1342, 8
      %v1442 = vpop.permute.xlu0 %1441
      %1443 = vrot.lane.b32.xlu0 %v1343, 8
      %v1444 = vpop.permute.xlu0 %1443
      %1445 = vrot.lane.b32.xlu0 %v1344, 8
      %v1446 = vpop.permute.xlu0 %1445
      %1447 = vrot.lane.b32.xlu0 %v1345, 8
      %v1448 = vpop.permute.xlu0 %1447
      %1449 = vrot.lane.b32.xlu0 %v1346, 8
      %v1450 = vpop.permute.xlu0 %1449
      %1451 = vrot.lane.b32.xlu0 %v1347, 8
      %v1452 = vpop.permute.xlu0 %1451
      %1453 = vrot.lane.b32.xlu0 %v1348, 8
      %v1454 = vpop.permute.xlu0 %1453
      %1455 = vrot.lane.b32.xlu0 %v1349, 8
      %v1456 = vpop.permute.xlu0 %1455
      %1457 = vrot.lane.b32.xlu0 %v1350, 8
      %v1458 = vpop.permute.xlu0 %1457
      %1459 = vrot.lane.b32.xlu0 %v1351, 8
      %v1460 = vpop.permute.xlu0 %1459
      %1461 = vrot.lane.b32.xlu0 %v1352, 8
      %v1462 = vpop.permute.xlu0 %1461
      %1463 = vrot.lane.b32.xlu0 %v1353, 8
      %v1464 = vpop.permute.xlu0 %1463
      %1465 = vrot.lane.b32.xlu0 %v1354, 8
      %v1466 = vpop.permute.xlu0 %1465
      %v1483 = vsel %vm446, %v1307, %v1372
      %v1484 = vsel %vm446, %v1308, %v1374
      %v1485 = vsel %vm446, %v1309, %v1376
      %v1486 = vsel %vm446, %v1310, %v1378
      %v1487 = vsel %vm446, %v1311, %v1380
      %v1488 = vsel %vm446, %v1312, %v1382
      %v1489 = vsel %vm446, %v1313, %v1384
      %v1490 = vsel %vm446, %v1314, %v1386
      %v1491 = vsel %vm446, %v1315, %v1388
      %v1492 = vsel %vm446, %v1316, %v1390
      %v1493 = vsel %vm446, %v1317, %v1392
      %v1494 = vsel %vm446, %v1318, %v1394
      %v1495 = vsel %vm446, %v1319, %v1396
      %v1496 = vsel %vm446, %v1320, %v1398
      %v1497 = vsel %vm446, %v1321, %v1400
      %v1498 = vsel %vm446, %v1322, %v1402
      %v1499 = vsel %vm682, %v1483, %v1436
      %v1500 = vsel %vm682, %v1484, %v1438
      %v1501 = vsel %vm682, %v1485, %v1440
      %v1502 = vsel %vm682, %v1486, %v1442
      %v1503 = vsel %vm682, %v1487, %v1444
      %v1504 = vsel %vm682, %v1488, %v1446
      %v1505 = vsel %vm682, %v1489, %v1448
      %v1506 = vsel %vm682, %v1490, %v1450
      %v1507 = vsel %vm682, %v1491, %v1452
      %v1508 = vsel %vm682, %v1492, %v1454
      %v1509 = vsel %vm682, %v1493, %v1456
      %v1510 = vsel %vm682, %v1494, %v1458
      %v1511 = vsel %vm682, %v1495, %v1460
      %v1512 = vsel %vm682, %v1496, %v1462
      %v1513 = vsel %vm682, %v1497, %v1464
      %v1514 = vsel %vm682, %v1498, %v1466
      %s1515 = scalar_lea.vmem %s3, 32
      %v1516 = vld [vmem:[%s1515] sm:$0xff]
      %v1517 = vld [vmem:[%s1515 + $0x8] sm:$0xf]
      %v1519 = vsel %vm912, %v1499, 0
      %v1522 = vsel %vm912, %v1500, 0
      %v1525 = vsel %vm912, %v1501, 0
      %v1528 = vsel %vm912, %v1502, 0
      %v1531 = vsel %vm912, %v1503, 0
      %v1534 = vsel %vm912, %v1504, 0
      %v1537 = vsel %vm912, %v1505, 0
      %v1540 = vsel %vm912, %v1506, 0
      %v1543 = vsel %vm912, %v1507, 0
      %v1546 = vsel %vm912, %v1508, 0
      %v1549 = vsel %vm912, %v1509, 0
      %v1552 = vsel %vm912, %v1510, 0
      %v1555 = vsel %vm912, %v1511, 0
      %v1558 = vsel %vm912, %v1512, 0
      %v1561 = vsel %vm912, %v1513, 0
      %v1564 = vsel %vm912, %v1514, 0
      %v1567 = vsel %vm961, %v1517, 0
      %1569 = vmatprep.subr.mxu0 0.0
      %1570 = vmatpush1.msra.mxu0 %v1516
      %1571 = vmatprep.subr.mxu0 0.0
      %1572 = vmatpush1.msra.mxu0 %v1567
      %1573 = vmatprep.subr.mxu0 0.0
      %1574 = vmatpush1.msra.mxu0 0.0
      %1575 = vmatprep.subr.mxu0 0.0
      %1576 = vmatpush1.msra.mxu0 0.0
      %1577 = vmatprep.subr.mxu0 0.0
      %1578 = vmatpush1.msra.mxu0 0.0
      %1579 = vmatprep.subr.mxu0 0.0
      %1580 = vmatpush1.msra.mxu0 0.0
      %1581 = vmatprep.subr.mxu0 0.0
      %1582 = vmatpush1.msra.mxu0 0.0
      %1583 = vmatprep.subr.mxu0 0.0
      %1584 = vmatpush1.msra.mxu0 0.0
      %1585 = vmatprep.subr.mxu0 0.0
      %1586 = vmatpush1.msra.mxu0 0.0
      %1587 = vmatprep.subr.mxu0 0.0
      %1588 = vmatpush1.msra.mxu0 0.0
      %1589 = vmatprep.subr.mxu0 0.0
      %1590 = vmatpush1.msra.mxu0 0.0
      %1591 = vmatprep.subr.mxu0 0.0
      %1592 = vmatpush1.msra.mxu0 0.0
      %1593 = vmatprep.subr.mxu0 0.0
      %1594 = vmatpush1.msra.mxu0 0.0
      %1595 = vmatprep.subr.mxu0 0.0
      %1596 = vmatpush1.msra.mxu0 0.0
      %1597 = vmatprep.subr.mxu0 0.0
      %1598 = vmatpush1.msra.mxu0 0.0
      %1599 = vmatprep.subr.mxu0 0.0
      %1600 = vmatpush1.msra.mxu0 0.0
      %1601 = vmatprep.subr.mxu0 0.0
      %1602 = vmatpush1.msra.mxu0 0.0
      %1603 = vmatprep.subr.mxu0 0.0
      %1604 = vmatpush1.msra.mxu0 0.0
      %1605 = vmatprep.subr.mxu0 0.0
      %1606 = vmatpush1.msra.mxu0 0.0
      %1607 = vmatprep.subr.mxu0 0.0
      %1608 = vmatpush1.msra.mxu0 0.0
      %1609 = vmatprep.subr.mxu0 0.0
      %1610 = vmatpush1.msra.mxu0 0.0
      %1611 = vmatprep.subr.mxu0 0.0
      %1612 = vmatpush1.msra.mxu0 0.0
      %1613 = vmatprep.subr.mxu0 0.0
      %1614 = vmatpush1.msra.mxu0 0.0
      %1615 = vmatprep.subr.mxu0 0.0
      %1616 = vmatpush1.msra.mxu0 0.0
      %1617 = vmatprep.subr.mxu0 0.0
      %1618 = vmatpush1.msra.mxu0 0.0
      %1619 = vmatprep.subr.mxu0 0.0
      %1620 = vmatpush1.msra.mxu0 0.0
      %1621 = vmatprep.subr.mxu0 0.0
      %1622 = vmatpush1.msra.mxu0 0.0
      %1623 = vmatprep.subr.mxu0 0.0
      %1624 = vmatpush1.msra.mxu0 0.0
      %1625 = vmatprep.subr.mxu0 0.0
      %1626 = vmatpush1.msra.mxu0 0.0
      %1627 = vmatprep.subr.mxu0 0.0
      %1628 = vmatpush1.msra.mxu0 0.0
      %1629 = vmatprep.subr.mxu0 0.0
      %1630 = vmatpush1.msra.mxu0 0.0
      %1631 = vmatprep.subr.mxu0 0.0
      %1632 = vmatpush1.msra.mxu0 0.0
      %1633 = vmatprep.mubr.f32.mxu0 0.0
      %1634 = vmatmul.mubr.f32.gmra.mrb[0].mxu0 %v1519
      %v1635 = vpop.f32.mrb[0].mxu0
      %v1636 = vadd.f32 0.0, %v1635
      %v1637 = vpop.f32.mrb[0].mxu0
      %1638 = vmatprep.mubr.f32.mxu0 0.0
      %1639 = vmatmul.mubr.f32.gmra.mrb[0].mxu0 %v1522
      %v1640 = vpop.f32.mrb[0].mxu0
      %v1641 = vadd.f32 0.0, %v1640
      %v1642 = vpop.f32.mrb[0].mxu0
      %1643 = vmatprep.mubr.f32.mxu0 0.0
      %1644 = vmatmul.mubr.f32.gmra.mrb[0].mxu0 %v1525
      %v1645 = vpop.f32.mrb[0].mxu0
      %v1646 = vadd.f32 0.0, %v1645
      %v1647 = vpop.f32.mrb[0].mxu0
      %1648 = vmatprep.mubr.f32.mxu0 0.0
      %1649 = vmatmul.mubr.f32.gmra.mrb[0].mxu0 %v1528
      %v1650 = vpop.f32.mrb[0].mxu0
      %v1651 = vadd.f32 0.0, %v1650
      %v1652 = vpop.f32.mrb[0].mxu0
      %1653 = vmatprep.mubr.f32.mxu0 0.0
      %1654 = vmatmul.mubr.f32.gmra.mrb[0].mxu0 %v1531
      %v1655 = vpop.f32.mrb[0].mxu0
      %v1656 = vadd.f32 0.0, %v1655
      %v1657 = vpop.f32.mrb[0].mxu0
      %1658 = vmatprep.mubr.f32.mxu0 0.0
      %1659 = vmatmul.mubr.f32.gmra.mrb[0].mxu0 %v1534
      %v1660 = vpop.f32.mrb[0].mxu0
      %v1661 = vadd.f32 0.0, %v1660
      %v1662 = vpop.f32.mrb[0].mxu0
      %1663 = vmatprep.mubr.f32.mxu0 0.0
      %1664 = vmatmul.mubr.f32.gmra.mrb[0].mxu0 %v1537
      %v1665 = vpop.f32.mrb[0].mxu0
      %v1666 = vadd.f32 0.0, %v1665
      %v1667 = vpop.f32.mrb[0].mxu0
      %1668 = vmatprep.mubr.f32.mxu0 0.0
      %1669 = vmatmul.mubr.f32.gmra.mrb[0].mxu0 %v1540
      %v1670 = vpop.f32.mrb[0].mxu0
      %v1671 = vadd.f32 0.0, %v1670
      %v1672 = vpop.f32.mrb[0].mxu0
      %1673 = vmatprep.mubr.f32.mxu0 0.0
      %1674 = vmatmul.mubr.f32.gmra.mrb[0].mxu0 %v1543
      %v1675 = vpop.f32.mrb[0].mxu0
      %v1676 = vadd.f32 0.0, %v1675
      %v1677 = vpop.f32.mrb[0].mxu0
      %1678 = vmatprep.mubr.f32.mxu0 0.0
      %1679 = vmatmul.mubr.f32.gmra.mrb[0].mxu0 %v1546
      %v1680 = vpop.f32.mrb[0].mxu0
      %v1681 = vadd.f32 0.0, %v1680
      %v1682 = vpop.f32.mrb[0].mxu0
      %1683 = vmatprep.mubr.f32.mxu0 0.0
      %1684 = vmatmul.mubr.f32.gmra.mrb[0].mxu0 %v1549
      %v1685 = vpop.f32.mrb[0].mxu0
      %v1686 = vadd.f32 0.0, %v1685
      %v1687 = vpop.f32.mrb[0].mxu0
      %1688 = vmatprep.mubr.f32.mxu0 0.0
      %1689 = vmatmul.mubr.f32.gmra.mrb[0].mxu0 %v1552
      %v1690 = vpop.f32.mrb[0].mxu0
      %v1691 = vadd.f32 0.0, %v1690
      %v1692 = vpop.f32.mrb[0].mxu0
      %1693 = vmatprep.mubr.f32.mxu0 0.0
      %1694 = vmatmul.mubr.f32.gmra.mrb[0].mxu0 %v1555
      %v1695 = vpop.f32.mrb[0].mxu0
      %v1696 = vadd.f32 0.0, %v1695
      %v1697 = vpop.f32.mrb[0].mxu0
      %1698 = vmatprep.mubr.f32.mxu0 0.0
      %1699 = vmatmul.mubr.f32.gmra.mrb[0].mxu0 %v1558
      %v1700 = vpop.f32.mrb[0].mxu0
      %v1701 = vadd.f32 0.0, %v1700
      %v1702 = vpop.f32.mrb[0].mxu0
      %1703 = vmatprep.mubr.f32.mxu0 0.0
      %1704 = vmatmul.mubr.f32.gmra.mrb[0].mxu0 %v1561
      %v1705 = vpop.f32.mrb[0].mxu0
      %v1706 = vadd.f32 0.0, %v1705
      %v1707 = vpop.f32.mrb[0].mxu0
      %1708 = vmatprep.mubr.f32.mxu0 0.0
      %1709 = vmatmul.mubr.f32.gmra.mrb[0].mxu0 %v1564
      %v1710 = vpop.f32.mrb[0].mxu0
      %v1711 = vadd.f32 0.0, %v1710
      %v1712 = vpop.f32.mrb[0].mxu0
      %1713 = vdwg.mxu0
      %v1714 = vadd.f32 %v1228, %v1636
      %v1715 = vadd.f32 %v1233, %v1641
      %v1716 = vadd.f32 %v1238, %v1646
      %v1717 = vadd.f32 %v1243, %v1651
      %v1718 = vadd.f32 %v1248, %v1656
      %v1719 = vadd.f32 %v1253, %v1661
      %v1720 = vadd.f32 %v1258, %v1666
      %v1721 = vadd.f32 %v1263, %v1671
      %v1722 = vadd.f32 %v1268, %v1676
      %v1723 = vadd.f32 %v1273, %v1681
      %v1724 = vadd.f32 %v1278, %v1686
      %v1725 = vadd.f32 %v1283, %v1691
      %v1726 = vadd.f32 %v1288, %v1696
      %v1727 = vadd.f32 %v1293, %v1701
      %v1728 = vadd.f32 %v1298, %v1706
      %v1729 = vadd.f32 %v1303, %v1711
      %v1730 = vsel %vm682, %v1714, 0.0
      %v1731 = vsel %vm682, %v1715, 0.0
      %v1732 = vadd.f32 %v1730, %v1731
      %v1733 = vsel %vm682, %v1716, 0.0
      %v1734 = vadd.f32 %v1732, %v1733
      %v1735 = vsel %vm682, %v1717, 0.0
      %v1736 = vadd.f32 %v1734, %v1735
      %v1737 = vsel %vm682, %v1718, 0.0
      %v1738 = vadd.f32 %v1736, %v1737
      %v1739 = vsel %vm682, %v1719, 0.0
      %v1740 = vadd.f32 %v1738, %v1739
      %v1741 = vsel %vm682, %v1720, 0.0
      %v1742 = vadd.f32 %v1740, %v1741
      %v1743 = vsel %vm682, %v1721, 0.0
      %v1744 = vadd.f32 %v1742, %v1743
      %v1745 = vsel %vm682, %v1722, 0.0
      %v1746 = vadd.f32 %v1744, %v1745
      %v1747 = vsel %vm682, %v1723, 0.0
      %v1748 = vadd.f32 %v1746, %v1747
      %v1749 = vsel %vm682, %v1724, 0.0
      %v1750 = vadd.f32 %v1748, %v1749
      %v1751 = vsel %vm682, %v1725, 0.0
      %v1752 = vadd.f32 %v1750, %v1751
      %v1753 = vsel %vm682, %v1726, 0.0
      %v1754 = vadd.f32 %v1752, %v1753
      %v1755 = vsel %vm682, %v1727, 0.0
      %v1756 = vadd.f32 %v1754, %v1755
      %v1757 = vsel %vm682, %v1728, 0.0
      %v1758 = vadd.f32 %v1756, %v1757
      %v1759 = vsel %vm682, %v1729, 0.0
      %v1760 = vadd.f32 %v1758, %v1759
      %v1761 = vrot.slane %v1760, 4
      %v1762 = vadd.f32 %v1760, %v1761
      %v1763 = vrot.slane %v1762, 2
      %v1764 = vadd.f32 %v1762, %v1763
      %v1765 = vrot.slane %v1764, 1
      %v1766 = vadd.f32 %v1764, %v1765
      %v1767 = vmul.f32 %v1714, %v1714
      %v1768 = vmul.f32 %v1715, %v1715
      %v1769 = vmul.f32 %v1716, %v1716
      %v1770 = vmul.f32 %v1717, %v1717
      %v1771 = vmul.f32 %v1718, %v1718
      %v1772 = vmul.f32 %v1719, %v1719
      %v1773 = vmul.f32 %v1720, %v1720
      %v1774 = vmul.f32 %v1721, %v1721
      %v1775 = vmul.f32 %v1722, %v1722
      %v1776 = vmul.f32 %v1723, %v1723
      %v1777 = vmul.f32 %v1724, %v1724
      %v1778 = vmul.f32 %v1725, %v1725
      %v1779 = vmul.f32 %v1726, %v1726
      %v1780 = vmul.f32 %v1727, %v1727
      %v1781 = vmul.f32 %v1728, %v1728
      %v1782 = vmul.f32 %v1729, %v1729
      %v1783 = vsel %vm682, %v1767, 0.0
      %v1784 = vsel %vm682, %v1768, 0.0
      %v1785 = vadd.f32 %v1783, %v1784
      %v1786 = vsel %vm682, %v1769, 0.0
      %v1787 = vadd.f32 %v1785, %v1786
      %v1788 = vsel %vm682, %v1770, 0.0
      %v1789 = vadd.f32 %v1787, %v1788
      %v1790 = vsel %vm682, %v1771, 0.0
      %v1791 = vadd.f32 %v1789, %v1790
      %v1792 = vsel %vm682, %v1772, 0.0
      %v1793 = vadd.f32 %v1791, %v1792
      %v1794 = vsel %vm682, %v1773, 0.0
      %v1795 = vadd.f32 %v1793, %v1794
      %v1796 = vsel %vm682, %v1774, 0.0
      %v1797 = vadd.f32 %v1795, %v1796
      %v1798 = vsel %vm682, %v1775, 0.0
      %v1799 = vadd.f32 %v1797, %v1798
      %v1800 = vsel %vm682, %v1776, 0.0
      %v1801 = vadd.f32 %v1799, %v1800
      %v1802 = vsel %vm682, %v1777, 0.0
      %v1803 = vadd.f32 %v1801, %v1802
      %v1804 = vsel %vm682, %v1778, 0.0
      %v1805 = vadd.f32 %v1803, %v1804
      %v1806 = vsel %vm682, %v1779, 0.0
      %v1807 = vadd.f32 %v1805, %v1806
      %v1808 = vsel %vm682, %v1780, 0.0
      %v1809 = vadd.f32 %v1807, %v1808
      %v1810 = vsel %vm682, %v1781, 0.0
      %v1811 = vadd.f32 %v1809, %v1810
      %v1812 = vsel %vm682, %v1782, 0.0
      %v1813 = vadd.f32 %v1811, %v1812
      %v1814 = vrot.slane %v1813, 4
      %v1815 = vadd.f32 %v1813, %v1814
      %v1816 = vrot.slane %v1815, 2
      %v1817 = vadd.f32 %v1815, %v1816
      %v1818 = vrot.slane %v1817, 1
      %v1819 = vadd.f32 %v1817, %v1818
      %1820 = vst.msk [vmem:[%s404] sm:$0xff] %vm682, %v1714
      %1821 = vst.msk [vmem:[%s404 + $0x8] sm:$0xff] %vm682, %v1715
      %1822 = vst.msk [vmem:[%s404 + $0x10] sm:$0xff] %vm682, %v1716
      %1823 = vst.msk [vmem:[%s404 + $0x18] sm:$0xff] %vm682, %v1717
      %1824 = vst.msk [vmem:[%s404 + $0x20] sm:$0xff] %vm682, %v1718
      %1825 = vst.msk [vmem:[%s404 + $0x28] sm:$0xff] %vm682, %v1719
      %1826 = vst.msk [vmem:[%s404 + $0x30] sm:$0xff] %vm682, %v1720
      %1827 = vst.msk [vmem:[%s404 + $0x38] sm:$0xff] %vm682, %v1721
      %1828 = vst.msk [vmem:[%s404 + $0x40] sm:$0xff] %vm682, %v1722
      %1829 = vst.msk [vmem:[%s404 + $0x48] sm:$0xff] %vm682, %v1723
      %1830 = vst.msk [vmem:[%s404 + $0x50] sm:$0xff] %vm682, %v1724
      %1831 = vst.msk [vmem:[%s404 + $0x58] sm:$0xff] %vm682, %v1725
      %1832 = vst.msk [vmem:[%s404 + $0x60] sm:$0xff] %vm682, %v1726
      %1833 = vst.msk [vmem:[%s404 + $0x68] sm:$0xff] %vm682, %v1727
      %1834 = vst.msk [vmem:[%s404 + $0x70] sm:$0xff] %vm682, %v1728
      %1835 = vst.msk [vmem:[%s404 + $0x78] sm:$0xff] %vm682, %v1729
      %vm1836 = vcmask 1040384
      %v1837 = vsel %vm1836, %v1766, %v1819
      %vm1838 = vcmask 58368
      %1839 = vst.msk [vmem:[%s413] sm:$0x3] %vm1838, %v1837
      %s1840 = smul.u32 8, %s22
      %p1841 = scmp.lt.s32.totalorder %s21, 1
      %s1842 = scalar_select %p1841, %s21, 1
      %p1843 = scmp.lt.s32.totalorder %s1840, 15
      %s1844 = scalar_select %p1843, %s1840, 15
      %s1845 = smul.addr %s1844, 2
      %s1846 = smul.addr %s1842, 32
      %s1847 = sadd.s32 %s1845, %s1846
      %s1848 = smul.addr %s1847, 8
      %s1849 = scalar_lea.vmem %s4, %s1848
      %p1850 = scmp.lt.s32.totalorder %s21, 1
      %s1851 = scalar_select %p1850, %s21, 1
      %p1852 = scmp.lt.s32.totalorder %s22, 1
      %s1853 = scalar_select %p1852, %s22, 1
      %s1854 = smul.addr %s1851, 2
      %s1855 = sadd.s32 %s1853, %s1854
      %s1856 = smul.addr %s1855, 2
      %s1857 = scalar_lea.vmem %s5, %s1856
      // Predicated region
      $region37: #{_bdouble_conv_impl.3} parent=35 // pred_check
        %p1858 = pneg %p170
      $region38: #{_bdouble_conv_impl.3} parent=35 // pred_check_branch
        %1860 = sbr.rel (%p1858) target = $region40
      $region39: #{_bdouble_conv_impl.3} parent=35 // pred_region
        %s1861 = smul.u32 8, %s22
      $region40: #{_bdouble_conv_impl.3} parent=35 // pred_fallthru
        _
      // Predicated region
      $region41: #{_bdouble_conv_impl.3} parent=35 // pred_check
        %p1862 = pneg %p198
      $region42: #{_bdouble_conv_impl.3} parent=35 // pred_check_branch
        %1864 = sbr.rel (%p1862) target = $region44
      $region43: #{_bdouble_conv_impl.3} parent=35 // pred_region
        _
      $region44: #{_bdouble_conv_impl.3} parent=35 // pred_fallthru
        _
    $region36: #{_bdouble_conv_impl.3} parent=5 // pred_fallthru
      _
    %p1865 = scmp.le.s32.totalorder 2, %s12
    // Predicated region
    $region45: #{_bdouble_conv_impl.3} parent=5 // pred_check
      %p1866 = pneg %p1865
    $region46: #{_bdouble_conv_impl.3} parent=5 // pred_check_branch
      %1868 = sbr.rel (%p1866) target = $region48
    $region47: #{_bdouble_conv_impl.3} parent=5 // pred_region
      %s1869 = ssub.s32 %s12, 2
      // Predicated region
      $region49: #{_bdouble_conv_impl.3} parent=47 // pred_check
        %p1870 = pneg %p176
      $region50: #{_bdouble_conv_impl.3} parent=47 // pred_check_branch
        %1872 = sbr.rel (%p1870) target = $region52
      $region51: #{_bdouble_conv_impl.3} parent=47 // pred_region
        %s1873 = smul.u32 8, %s24
        %p1874 = scmp.lt.s32.totalorder %s23, 1
        %s1875 = scalar_select %p1874, %s23, 1
        %p1876 = scmp.lt.s32.totalorder %s1873, 15
        %s1877 = scalar_select %p1876, %s1873, 15
        %s1878 = smul.addr %s1877, 2
        %s1879 = smul.addr %s1875, 32
        %s1880 = sadd.s32 %s1878, %s1879
        %s1881 = smul.addr %s1880, 8
        %s1882 = scalar_lea.vmem %s4, %s1881
      $region52: #{_bdouble_conv_impl.3} parent=47 // pred_fallthru
        _
      // Predicated region
      $region53: #{_bdouble_conv_impl.3} parent=47 // pred_check
        %p1883 = pneg %p204
      $region54: #{_bdouble_conv_impl.3} parent=47 // pred_check_branch
        %1885 = sbr.rel (%p1883) target = $region56
      $region55: #{_bdouble_conv_impl.3} parent=47 // pred_region
        %p1886 = scmp.lt.s32.totalorder %s23, 1
        %s1887 = scalar_select %p1886, %s23, 1
        %p1888 = scmp.lt.s32.totalorder %s24, 1
        %s1889 = scalar_select %p1888, %s24, 1
        %s1890 = smul.addr %s1887, 2
        %s1891 = sadd.s32 %s1889, %s1890
        %s1892 = smul.addr %s1891, 2
        %s1893 = scalar_lea.vmem %s5, %s1892
      $region56: #{_bdouble_conv_impl.3} parent=47 // pred_fallthru
        _
    $region48: #{_bdouble_conv_impl.3} parent=5 // pred_fallthru
      _
  $region6: #{_bdouble_conv_impl.3} parent=0 // loop_footer
    %s16 = sadd.s32 1, %s12
  $region7: #{_bdouble_conv_impl.3} parent=0 // loop_footer_branch
    %11 = sbr.rel target = $region3
  $region8: #{_bdouble_conv_impl.3} parent=0 // loop_exit
    _

// kernel: _bdouble_conv_impl.4
$region0: #{_bdouble_conv_impl.4}
  #allocation0 [shape = 'u32[]', space=smem, size = 0x4, offset = 0x4, fixed_abs, tag = 'smem constant byte address 0x4 - core index']
  #allocation1 [shape = 'u32[144,128]{1,0:T(1,128)}', space=vmem, size = 0x12000, scoped, tag = 'internal scratch']
  #allocation2 [shape = 'f32[10,25,8]{2,1,0:T(8,128)}', space=vmem, size = 0x28000, scoped, tag = 'scratch operand']
  %s0 = inlined_call_operand.vmem [shape: f32[2,16,16,8], index: 0, kind: input, shape index: {}, may-alias: {0,1,2}]
  %s1 = inlined_call_operand.vmem [shape: f32[2,16,16,8], index: 1, kind: input, shape index: {}, may-alias: {0,1,2}]
  %s2 = inlined_call_operand.vmem [shape: f32[2,16,16,8], index: 2, kind: input, shape index: {}, may-alias: {0,1,2}]
  %s3 = inlined_call_operand.vmem [shape: f32[1,8], index: 3, kind: input, shape index: {}]
  %s4 = inlined_call_operand.vmem [shape: f32[1,8], index: 4, kind: input, shape index: {}]
  %s5 = inlined_call_operand.vmem [shape: f32[3,24,8], index: 5, kind: input, shape index: {}]
  %s6 = inlined_call_operand.vmem [shape: f32[2,16,16,8], index: 6, kind: output, shape index: {0}]
  %s7 = inlined_call_operand.vmem [shape: f32[2,2,2,8], index: 7, kind: output, shape index: {1}]
  %8 = xla_tuple %s6, %s7
  %s9 = sld [smem:[#allocation0]]
  $region65: #{_bdouble_conv_impl.4} parent=0
    _
  %s11 = ssub.s32 1, %s9
  %s12 = scalar_select 0, %s11, %s9
  loop: start=0, step=1, limit=6
  $region2: #{_bdouble_conv_impl.4} parent=0 // loop_pre_header
    _
  $region3: #{_bdouble_conv_impl.4} parent=0 // loop_header
    %s14 = sphi 0, %s18
    %p15 = scmp.ge.s32.totalorder %s14, 6
    %s21 = sphi 0, %s33
    %s22 = sphi 0, %s29
    %s23 = sphi 0, %s21
    %s24 = sphi 0, %s22
    %s25 = sphi 0, %s23
    %s26 = sphi 0, %s24
    %s38 = sphi 0, %s40
    %s41 = sphi 0, %s38
    %s42 = sphi 0, %s41
    %s58 = sphi 0, %s42
    %s74 = sphi 0, %s76
    %s77 = sphi 0, %s74
    %s78 = sphi 0, %s77
    %s94 = sphi 0, %s78
    %s110 = sphi 0, %s112
    %s113 = sphi 0, %s110
    %s114 = sphi 0, %s113
    %s130 = sphi 0, %s114
    %s134 = sphi 0, %s134
    %s136 = sphi 0, %s134
    %s137 = sphi 0, %s136
    %s151 = sphi 0, %s137
    %s155 = sphi 0, %s155
    %s157 = sphi 0, %s155
    %s158 = sphi 0, %s157
    %s172 = sphi 0, %s158
    %s176 = sphi 0, %s176
    %s178 = sphi 0, %s176
    %s179 = sphi 0, %s178
    %s193 = sphi 0, %s179
    %s201 = sphi 0, %s203
    %s204 = sphi 0, %s201
    %s205 = sphi 0, %s204
    %s221 = sphi 0, %s205
    %s229 = sphi 0, %s231
    %s232 = sphi 0, %s229
    %s233 = sphi 0, %s232
    %s249 = sphi 0, %s233
  $region4: #{_bdouble_conv_impl.4} parent=0 // loop_header_branch
    %17 = sbr.rel (%p15) target = $region8
  $region5: #{_bdouble_conv_impl.4} parent=0 // loop_body
    %s19 = ssub.s32 %s14, 1
    %s20 = ssub.s32 %s14, 2
    %s27 = sadd.s32 1, %s22
    %p28 = scmp.ge.s32.totalorder %s27, 2
    %s29 = scalar_select %p28, 0, %s27
    %s30 = sadd.s32 1, %s21
    %s31 = scalar_select %p28, %s30, %s21
    %p32 = scmp.ge.s32.totalorder %s31, 2
    %s33 = scalar_select %p32, 0, %s31
    %s34 = ssub.s32 %s21, %s33
    %s35 = ssub.s32 %s22, %s29
    %s36 = sor.u32 %s34, %s35
    %p37 = scmp.eq.s32.totalorder %s36, 0
    %s39 = sadd.s32 %s38, 1
    %s40 = scalar_select %p37, %s38, %s39
    %p43 = pneg %p37
    %p44 = scmp.eq.s32.totalorder %s14, 3
    %p45 = por %p43, %p44
    %p46 = scmp.ne.s32.totalorder %s38, %s41
    %p47 = scmp.eq.s32.totalorder %s14, 0
    %p48 = por %p46, %p47
    %p49 = scmp.ne.s32.totalorder %s38, %s41
    %p50 = scmp.eq.s32.totalorder %s19, 3
    %p51 = por %p49, %p50
    %p52 = scmp.ne.s32.totalorder %s41, %s42
    %p53 = scmp.eq.s32.totalorder %s19, 0
    %p54 = por %p52, %p53
    %p55 = scmp.ne.s32.totalorder %s41, %s42
    %p56 = scmp.eq.s32.totalorder %s20, 3
    %p57 = por %p55, %p56
    %p59 = scmp.ne.s32.totalorder %s42, %s58
    %p60 = scmp.eq.s32.totalorder %s20, 0
    %p61 = por %p59, %p60
    %s62 = smul.u32 %s22, 8
    %s63 = ssub.s32 %s62, 1
    %p64 = scmp.gt.s32.totalorder %s63, 0
    %s65 = scalar_select %p64, %s63, 0
    %s66 = smul.u32 %s29, 8
    %s67 = ssub.s32 %s66, 1
    %p68 = scmp.gt.s32.totalorder %s67, 0
    %s69 = scalar_select %p68, %s67, 0
    %s70 = ssub.s32 %s21, %s33
    %s71 = ssub.s32 %s65, %s69
    %s72 = sor.u32 %s70, %s71
    %p73 = scmp.eq.s32.totalorder %s72, 0
    %s75 = sadd.s32 %s74, 1
    %s76 = scalar_select %p73, %s74, %s75
    %p79 = pneg %p73
    %p80 = scmp.eq.s32.totalorder %s14, 3
    %p81 = por %p79, %p80
    %p82 = scmp.ne.s32.totalorder %s74, %s77
    %p83 = scmp.eq.s32.totalorder %s14, 0
    %p84 = por %p82, %p83
    %p85 = scmp.ne.s32.totalorder %s74, %s77
    %p86 = scmp.eq.s32.totalorder %s19, 3
    %p87 = por %p85, %p86
    %p88 = scmp.ne.s32.totalorder %s77, %s78
    %p89 = scmp.eq.s32.totalorder %s19, 0
    %p90 = por %p88, %p89
    %p91 = scmp.ne.s32.totalorder %s77, %s78
    %p92 = scmp.eq.s32.totalorder %s20, 3
    %p93 = por %p91, %p92
    %p95 = scmp.ne.s32.totalorder %s78, %s94
    %p96 = scmp.eq.s32.totalorder %s20, 0
    %p97 = por %p95, %p96
    %s98 = smul.u32 %s22, 8
    %s99 = sadd.s32 %s98, 8
    %p100 = scmp.lt.s32.totalorder %s99, 15
    %s101 = scalar_select %p100, %s99, 15
    %s102 = smul.u32 %s29, 8
    %s103 = sadd.s32 %s102, 8
    %p104 = scmp.lt.s32.totalorder %s103, 15
    %s105 = scalar_select %p104, %s103, 15
    %s106 = ssub.s32 %s21, %s33
    %s107 = ssub.s32 %s101, %s105
    %s108 = sor.u32 %s106, %s107
    %p109 = scmp.eq.s32.totalorder %s108, 0
    %s111 = sadd.s32 %s110, 1
    %s112 = scalar_select %p109, %s110, %s111
    %p115 = pneg %p109
    %p116 = scmp.eq.s32.totalorder %s14, 3
    %p117 = por %p115, %p116
    %p118 = scmp.ne.s32.totalorder %s110, %s113
    %p119 = scmp.eq.s32.totalorder %s14, 0
    %p120 = por %p118, %p119
    %p121 = scmp.ne.s32.totalorder %s110, %s113
    %p122 = scmp.eq.s32.totalorder %s19, 3
    %p123 = por %p121, %p122
    %p124 = scmp.ne.s32.totalorder %s113, %s114
    %p125 = scmp.eq.s32.totalorder %s19, 0
    %p126 = por %p124, %p125
    %p127 = scmp.ne.s32.totalorder %s113, %s114
    %p128 = scmp.eq.s32.totalorder %s20, 3
    %p129 = por %p127, %p128
    %p131 = scmp.ne.s32.totalorder %s114, %s130
    %p132 = scmp.eq.s32.totalorder %s20, 0
    %p133 = por %p131, %p132
    %s135 = sadd.s32 %s134, 1
    %p138 = scmp.eq.s32.totalorder %s14, 3
    %p139 = scmp.ne.s32.totalorder %s134, %s136
    %p140 = scmp.eq.s32.totalorder %s14, 0
    %p141 = por %p139, %p140
    %p142 = scmp.ne.s32.totalorder %s134, %s136
    %p143 = scmp.eq.s32.totalorder %s19, 3
    %p144 = por %p142, %p143
    %p145 = scmp.ne.s32.totalorder %s136, %s137
    %p146 = scmp.eq.s32.totalorder %s19, 0
    %p147 = por %p145, %p146
    %p148 = scmp.ne.s32.totalorder %s136, %s137
    %p149 = scmp.eq.s32.totalorder %s20, 3
    %p150 = por %p148, %p149
    %p152 = scmp.ne.s32.totalorder %s137, %s151
    %p153 = scmp.eq.s32.totalorder %s20, 0
    %p154 = por %p152, %p153
    %s156 = sadd.s32 %s155, 1
    %p159 = scmp.eq.s32.totalorder %s14, 3
    %p160 = scmp.ne.s32.totalorder %s155, %s157
    %p161 = scmp.eq.s32.totalorder %s14, 0
    %p162 = por %p160, %p161
    %p163 = scmp.ne.s32.totalorder %s155, %s157
    %p164 = scmp.eq.s32.totalorder %s19, 3
    %p165 = por %p163, %p164
    %p166 = scmp.ne.s32.totalorder %s157, %s158
    %p167 = scmp.eq.s32.totalorder %s19, 0
    %p168 = por %p166, %p167
    %p169 = scmp.ne.s32.totalorder %s157, %s158
    %p170 = scmp.eq.s32.totalorder %s20, 3
    %p171 = por %p169, %p170
    %p173 = scmp.ne.s32.totalorder %s158, %s172
    %p174 = scmp.eq.s32.totalorder %s20, 0
    %p175 = por %p173, %p174
    %s177 = sadd.s32 %s176, 1
    %p180 = scmp.eq.s32.totalorder %s14, 3
    %p181 = scmp.ne.s32.totalorder %s176, %s178
    %p182 = scmp.eq.s32.totalorder %s14, 0
    %p183 = por %p181, %p182
    %p184 = scmp.ne.s32.totalorder %s176, %s178
    %p185 = scmp.eq.s32.totalorder %s19, 3
    %p186 = por %p184, %p185
    %p187 = scmp.ne.s32.totalorder %s178, %s179
    %p188 = scmp.eq.s32.totalorder %s19, 0
    %p189 = por %p187, %p188
    %p190 = scmp.ne.s32.totalorder %s178, %s179
    %p191 = scmp.eq.s32.totalorder %s20, 3
    %p192 = por %p190, %p191
    %p194 = scmp.ne.s32.totalorder %s179, %s193
    %p195 = scmp.eq.s32.totalorder %s20, 0
    %p196 = por %p194, %p195
    %s197 = ssub.s32 %s21, %s33
    %s198 = ssub.s32 %s22, %s29
    %s199 = sor.u32 %s197, %s198
    %p200 = scmp.eq.s32.totalorder %s199, 0
    %s202 = sadd.s32 %s201, 1
    %s203 = scalar_select %p200, %s201, %s202
    %p206 = pneg %p200
    %p207 = scmp.eq.s32.totalorder %s14, 3
    %p208 = por %p206, %p207
    %p209 = scmp.ne.s32.totalorder %s201, %s204
    %p210 = scmp.eq.s32.totalorder %s14, 0
    %p211 = por %p209, %p210
    %p212 = scmp.ne.s32.totalorder %s201, %s204
    %p213 = scmp.eq.s32.totalorder %s19, 3
    %p214 = por %p212, %p213
    %p215 = scmp.ne.s32.totalorder %s204, %s205
    %p216 = scmp.eq.s32.totalorder %s19, 0
    %p217 = por %p215, %p216
    %p218 = scmp.ne.s32.totalorder %s204, %s205
    %p219 = scmp.eq.s32.totalorder %s20, 3
    %p220 = por %p218, %p219
    %p222 = scmp.ne.s32.totalorder %s205, %s221
    %p223 = scmp.eq.s32.totalorder %s20, 0
    %p224 = por %p222, %p223
    %s225 = ssub.s32 %s21, %s33
    %s226 = ssub.s32 %s22, %s29
    %s227 = sor.u32 %s225, %s226
    %p228 = scmp.eq.s32.totalorder %s227, 0
    %s230 = sadd.s32 %s229, 1
    %s231 = scalar_select %p228, %s229, %s230
    %p234 = pneg %p228
    %p235 = scmp.eq.s32.totalorder %s14, 3
    %p236 = por %p234, %p235
    %p237 = scmp.ne.s32.totalorder %s229, %s232
    %p238 = scmp.eq.s32.totalorder %s14, 0
    %p239 = por %p237, %p238
    %p240 = scmp.ne.s32.totalorder %s229, %s232
    %p241 = scmp.eq.s32.totalorder %s19, 3
    %p242 = por %p240, %p241
    %p243 = scmp.ne.s32.totalorder %s232, %s233
    %p244 = scmp.eq.s32.totalorder %s19, 0
    %p245 = por %p243, %p244
    %p246 = scmp.ne.s32.totalorder %s232, %s233
    %p247 = scmp.eq.s32.totalorder %s20, 3
    %p248 = por %p246, %p247
    %p250 = scmp.ne.s32.totalorder %s233, %s249
    %p251 = scmp.eq.s32.totalorder %s20, 0
    %p252 = por %p250, %p251
    %p253 = scmp.le.s32.totalorder 1, %s14
    %p254 = scmp.lt.s32.totalorder %s14, 5
    %p255 = pnand %p253, %p254
    %p256 = pneg %p255
    // Predicated region
    $region9: #{_bdouble_conv_impl.4} parent=5 // pred_check
      _
    $region10: #{_bdouble_conv_impl.4} parent=5 // pred_check_branch
      %258 = sbr.rel (%p255) target = $region12
    $region11: #{_bdouble_conv_impl.4} parent=5 // pred_region
      %s259 = ssub.s32 %s14, 1
      // Predicated region
      $region13: #{_bdouble_conv_impl.4} parent=11 // pred_check
        %p260 = pneg %p147
      $region14: #{_bdouble_conv_impl.4} parent=11 // pred_check_branch
        %262 = sbr.rel (%p260) target = $region16
      $region15: #{_bdouble_conv_impl.4} parent=11 // pred_region
        _
      $region16: #{_bdouble_conv_impl.4} parent=11 // pred_fallthru
        _
      // Predicated region
      $region17: #{_bdouble_conv_impl.4} parent=11 // pred_check
        %p263 = pneg %p168
      $region18: #{_bdouble_conv_impl.4} parent=11 // pred_check_branch
        %265 = sbr.rel (%p263) target = $region20
      $region19: #{_bdouble_conv_impl.4} parent=11 // pred_region
        _
      $region20: #{_bdouble_conv_impl.4} parent=11 // pred_fallthru
        _
      // Predicated region
      $region21: #{_bdouble_conv_impl.4} parent=11 // pred_check
        %p266 = pneg %p189
      $region22: #{_bdouble_conv_impl.4} parent=11 // pred_check_branch
        %268 = sbr.rel (%p266) target = $region24
      $region23: #{_bdouble_conv_impl.4} parent=11 // pred_region
        _
      $region24: #{_bdouble_conv_impl.4} parent=11 // pred_fallthru
        _
    $region12: #{_bdouble_conv_impl.4} parent=5 // pred_fallthru
      _
    %p269 = scmp.lt.s32.totalorder %s14, 4
    // Predicated region
    $region25: #{_bdouble_conv_impl.4} parent=5 // pred_check
      %p270 = pneg %p269
    $region26: #{_bdouble_conv_impl.4} parent=5 // pred_check_branch
      %272 = sbr.rel (%p270) target = $region28
    $region27: #{_bdouble_conv_impl.4} parent=5 // pred_region
      // Predicated region
      $region29: #{_bdouble_conv_impl.4} parent=27 // pred_check
        %p273 = pneg %p48
      $region30: #{_bdouble_conv_impl.4} parent=27 // pred_check_branch
        %275 = sbr.rel (%p273) target = $region32
      $region31: #{_bdouble_conv_impl.4} parent=27 // pred_region
        %s276 = smul.u32 8, %s22
        %p277 = scmp.lt.s32.totalorder %s21, 1
        %s278 = scalar_select %p277, %s21, 1
        %p279 = scmp.lt.s32.totalorder %s276, 15
        %s280 = scalar_select %p279, %s276, 15
        %s281 = smul.addr %s280, 2
        %s282 = smul.addr %s278, 32
        %s283 = sadd.s32 %s281, %s282
        %s284 = smul.addr %s283, 8
        %s285 = scalar_lea.vmem %s0, %s284
        %s286 = smul.u32 8, %s22
      $region32: #{_bdouble_conv_impl.4} parent=27 // pred_fallthru
        _
      // Predicated region
      $region33: #{_bdouble_conv_impl.4} parent=27 // pred_check
        %p287 = pneg %p84
      $region34: #{_bdouble_conv_impl.4} parent=27 // pred_check_branch
        %289 = sbr.rel (%p287) target = $region36
      $region35: #{_bdouble_conv_impl.4} parent=27 // pred_region
        %s290 = smul.u32 %s22, 8
        %s291 = ssub.s32 %s290, 1
        %p292 = scmp.gt.s32.totalorder %s291, 0
        %s293 = scalar_select %p292, %s291, 0
        %p294 = scmp.lt.s32.totalorder %s21, 1
        %s295 = scalar_select %p294, %s21, 1
        %p296 = scmp.lt.s32.totalorder %s293, 15
        %s297 = scalar_select %p296, %s293, 15
        %s298 = smul.addr %s297, 2
        %s299 = smul.addr %s295, 32
        %s300 = sadd.s32 %s298, %s299
        %s301 = smul.addr %s300, 8
        %s302 = scalar_lea.vmem %s1, %s301
        %s303 = smul.u32 %s22, 8
        %s304 = ssub.s32 %s303, 1
        %p305 = scmp.gt.s32.totalorder %s304, 0
        %s306 = scalar_select %p305, %s304, 0
      $region36: #{_bdouble_conv_impl.4} parent=27 // pred_fallthru
        _
      // Predicated region
      $region37: #{_bdouble_conv_impl.4} parent=27 // pred_check
        %p307 = pneg %p120
      $region38: #{_bdouble_conv_impl.4} parent=27 // pred_check_branch
        %309 = sbr.rel (%p307) target = $region40
      $region39: #{_bdouble_conv_impl.4} parent=27 // pred_region
        %s310 = smul.u32 %s22, 8
        %s311 = sadd.s32 %s310, 8
        %p312 = scmp.lt.s32.totalorder %s311, 15
        %s313 = scalar_select %p312, %s311, 15
        %p314 = scmp.lt.s32.totalorder %s21, 1
        %s315 = scalar_select %p314, %s21, 1
        %p316 = scmp.lt.s32.totalorder %s313, 15
        %s317 = scalar_select %p316, %s313, 15
        %s318 = smul.addr %s317, 2
        %s319 = smul.addr %s315, 32
        %s320 = sadd.s32 %s318, %s319
        %s321 = smul.addr %s320, 8
        %s322 = scalar_lea.vmem %s2, %s321
        %s323 = smul.u32 %s22, 8
        %s324 = sadd.s32 %s323, 8
        %p325 = scmp.lt.s32.totalorder %s324, 15
        %s326 = scalar_select %p325, %s324, 15
      $region40: #{_bdouble_conv_impl.4} parent=27 // pred_fallthru
        _
    $region28: #{_bdouble_conv_impl.4} parent=5 // pred_fallthru
      _
    %p327 = scmp.le.s32.totalorder 1, %s14
    %p328 = scmp.lt.s32.totalorder %s14, 5
    %p329 = pnand %p327, %p328
    %p330 = pneg %p329
    // Predicated region
    $region41: #{_bdouble_conv_impl.4} parent=5 // pred_check
      _
    $region42: #{_bdouble_conv_impl.4} parent=5 // pred_check_branch
      %332 = sbr.rel (%p329) target = $region44
    $region43: #{_bdouble_conv_impl.4} parent=5 // pred_region
      %s333 = ssub.s32 %s14, 1
      %s334 = smul.u32 8, %s24
      %p335 = scmp.lt.s32.totalorder %s23, 1
      %s336 = scalar_select %p335, %s23, 1
      %p337 = scmp.lt.s32.totalorder %s334, 15
      %s338 = scalar_select %p337, %s334, 15
      %s339 = smul.addr %s338, 2
      %s340 = smul.addr %s336, 32
      %s341 = sadd.s32 %s339, %s340
      %s342 = smul.addr %s341, 8
      %s343 = scalar_lea.vmem %s0, %s342
      %p344 = pneg %p54
      %p345 = pneg %p51
      %s346 = smul.u32 %s24, 8
      %s347 = ssub.s32 %s346, 1
      %p348 = scmp.gt.s32.totalorder %s347, 0
      %s349 = scalar_select %p348, %s347, 0
      %p350 = scmp.lt.s32.totalorder %s23, 1
      %s351 = scalar_select %p350, %s23, 1
      %p352 = scmp.lt.s32.totalorder %s349, 15
      %s353 = scalar_select %p352, %s349, 15
      %s354 = smul.addr %s353, 2
      %s355 = smul.addr %s351, 32
      %s356 = sadd.s32 %s354, %s355
      %s357 = smul.addr %s356, 8
      %s358 = scalar_lea.vmem %s1, %s357
      %p359 = pneg %p90
      %p360 = pneg %p87
      %s361 = smul.u32 %s24, 8
      %s362 = sadd.s32 %s361, 8
      %p363 = scmp.lt.s32.totalorder %s362, 15
      %s364 = scalar_select %p363, %s362, 15
      %p365 = scmp.lt.s32.totalorder %s23, 1
      %s366 = scalar_select %p365, %s23, 1
      %p367 = scmp.lt.s32.totalorder %s364, 15
      %s368 = scalar_select %p367, %s364, 15
      %s369 = smul.addr %s368, 2
      %s370 = smul.addr %s366, 32
      %s371 = sadd.s32 %s369, %s370
      %s372 = smul.addr %s371, 8
      %s373 = scalar_lea.vmem %s2, %s372
      %p374 = pneg %p126
      %p375 = pneg %p123
      %p376 = pneg %p147
      %p377 = pneg %p144
      %p378 = pneg %p168
      %p379 = pneg %p165
      %p380 = pneg %p189
      %p381 = pneg %p186
      %p382 = pneg %p217
      %p383 = pneg %p214
      %s384 = smul.u32 8, %s24
      %p385 = scmp.lt.s32.totalorder %s23, 1
      %s386 = scalar_select %p385, %s23, 1
      %p387 = scmp.lt.s32.totalorder %s384, 15
      %s388 = scalar_select %p387, %s384, 15
      %s389 = smul.addr %s388, 2
      %s390 = smul.addr %s386, 32
      %s391 = sadd.s32 %s389, %s390
      %s392 = smul.addr %s391, 8
      %s393 = scalar_lea.vmem %s6, %s392
      %p394 = pneg %p245
      %p395 = pneg %p242
      %p396 = scmp.lt.s32.totalorder %s23, 1
      %s397 = scalar_select %p396, %s23, 1
      %p398 = scmp.lt.s32.totalorder %s24, 1
      %s399 = scalar_select %p398, %s24, 1
      %s400 = smul.addr %s397, 2
      %s401 = sadd.s32 %s399, %s400
      %s402 = smul.addr %s401, 2
      %s403 = scalar_lea.vmem %s7, %s402
      %s404 = smul.u32 8, %s24
      %p405 = scmp.lt.s32.totalorder %s23, 1
      %s406 = scalar_select %p405, %s23, 1
      %p407 = scmp.lt.s32.totalorder %s404, 15
      %s408 = scalar_select %p407, %s404, 15
      %s409 = smul.addr %s408, 2
      %s410 = smul.addr %s406, 32
      %s411 = sadd.s32 %s409, %s410
      %s412 = smul.addr %s411, 8
      %s413 = scalar_lea.vmem %s0, %s412
      %s414 = smul.u32 8, %s24
      %s415 = smul.u32 %s24, 8
      %s416 = ssub.s32 %s415, 1
      %p417 = scmp.gt.s32.totalorder %s416, 0
      %s418 = scalar_select %p417, %s416, 0
      %p419 = scmp.lt.s32.totalorder %s23, 1
      %s420 = scalar_select %p419, %s23, 1
      %p421 = scmp.lt.s32.totalorder %s418, 15
      %s422 = scalar_select %p421, %s418, 15
      %s423 = smul.addr %s422, 2
      %s424 = smul.addr %s420, 32
      %s425 = sadd.s32 %s423, %s424
      %s426 = smul.addr %s425, 8
      %s427 = scalar_lea.vmem %s1, %s426
      %s428 = smul.u32 %s24, 8
      %s429 = ssub.s32 %s428, 1
      %p430 = scmp.gt.s32.totalorder %s429, 0
      %s431 = scalar_select %p430, %s429, 0
      %s432 = smul.u32 %s24, 8
      %s433 = sadd.s32 %s432, 8
      %p434 = scmp.lt.s32.totalorder %s433, 15
      %s435 = scalar_select %p434, %s433, 15
      %p436 = scmp.lt.s32.totalorder %s23, 1
      %s437 = scalar_select %p436, %s23, 1
      %p438 = scmp.lt.s32.totalorder %s435, 15
      %s439 = scalar_select %p438, %s435, 15
      %s440 = smul.addr %s439, 2
      %s441 = smul.addr %s437, 32
      %s442 = sadd.s32 %s440, %s441
      %s443 = smul.addr %s442, 8
      %s444 = scalar_lea.vmem %s2, %s443
      %s445 = smul.u32 %s24, 8
      %s446 = sadd.s32 %s445, 8
      %p447 = scmp.lt.s32.totalorder %s446, 15
      %s448 = scalar_select %p447, %s446, 15
      %s449 = smul.u32 8, %s24
      %p450 = scmp.lt.s32.totalorder %s23, 1
      %s451 = scalar_select %p450, %s23, 1
      %p452 = scmp.lt.s32.totalorder %s449, 15
      %s453 = scalar_select %p452, %s449, 15
      %s454 = smul.addr %s453, 2
      %s455 = smul.addr %s451, 32
      %s456 = sadd.s32 %s454, %s455
      %s457 = smul.addr %s456, 8
      %s458 = scalar_lea.vmem %s6, %s457
      %s459 = smul.u32 8, %s24
      %p460 = scmp.lt.s32.totalorder %s23, 1
      %s461 = scalar_select %p460, %s23, 1
      %p462 = scmp.lt.s32.totalorder %s24, 1
      %s463 = scalar_select %p462, %s24, 1
      %s464 = smul.addr %s461, 2
      %s465 = sadd.s32 %s463, %s464
      %s466 = smul.addr %s465, 2
      %s467 = scalar_lea.vmem %s7, %s466
      %p468 = scmp.gt.s32.totalorder %s24, 0
      %s469 = scalar_select %p468, 1, 0
      %s470 = scvt.s32.f32 %s469
      %p471 = scmp.lt.s32.totalorder %s24, 1
      %s472 = scalar_select %p471, 1, 0
      %s473 = scvt.s32.f32 %s472
      %v474 = vld [vmem:[%s3] sm:$0x1]
      %v475 = vld [vmem:[%s4] sm:$0x1]
      %vm476 = vcmask 57344
      %477 = vst.msk [vmem:[#allocation2 + $0x7] sm:$0x1] %vm476, 0.0
      %478 = vst.msk [vmem:[#allocation2 + $0x27] sm:$0x1] %vm476, 0.0
      %479 = vst.msk [vmem:[#allocation2 + $0x47] sm:$0x1] %vm476, 0.0
      %480 = vst.msk [vmem:[#allocation2 + $0x67] sm:$0x1] %vm476, 0.0
      %481 = vst.msk [vmem:[#allocation2 + $0x87] sm:$0x1] %vm476, 0.0
      %482 = vst.msk [vmem:[#allocation2 + $0xa7] sm:$0x1] %vm476, 0.0
      %483 = vst.msk [vmem:[#allocation2 + $0xc7] sm:$0x1] %vm476, 0.0
      %484 = vst.msk [vmem:[#allocation2 + $0xe7] sm:$0x1] %vm476, 0.0
      %485 = vst.msk [vmem:[#allocation2 + $0x107] sm:$0x1] %vm476, 0.0
      %486 = vst.msk [vmem:[#allocation2 + $0x127] sm:$0x1] %vm476, 0.0
      %487 = vst.msk [vmem:[#allocation2 + $0x18] sm:$0x1] %vm476, 0.0
      %488 = vst.msk [vmem:[#allocation2 + $0x38] sm:$0x1] %vm476, 0.0
      %489 = vst.msk [vmem:[#allocation2 + $0x58] sm:$0x1] %vm476, 0.0
      %490 = vst.msk [vmem:[#allocation2 + $0x78] sm:$0x1] %vm476, 0.0
      %491 = vst.msk [vmem:[#allocation2 + $0x98] sm:$0x1] %vm476, 0.0
      %492 = vst.msk [vmem:[#allocation2 + $0xb8] sm:$0x1] %vm476, 0.0
      %493 = vst.msk [vmem:[#allocation2 + $0xd8] sm:$0x1] %vm476, 0.0
      %494 = vst.msk [vmem:[#allocation2 + $0xf8] sm:$0x1] %vm476, 0.0
      %495 = vst.msk [vmem:[#allocation2 + $0x118] sm:$0x1] %vm476, 0.0
      %496 = vst.msk [vmem:[#allocation2 + $0x138] sm:$0x1] %vm476, 0.0
      %v497 = vld [vmem:[%s427] sm:$0xff]
      %v498 = vld [vmem:[%s427 + $0x8] sm:$0xff]
      %v500 = vlaneseq
      %v501 = vshrl.u32 %v500, 7
      %v502 = vsub.s32 0, %v501
      %v503 = vrot.slane %v474, %v502
      %v505 = vmul.f32 %v497, %v503
      %v506 = vmul.f32 %v498, %v503
      %v508 = vlaneseq
      %v509 = vshrl.u32 %v508, 7
      %v510 = vsub.s32 0, %v509
      %v511 = vrot.slane %v475, %v510
      %v513 = vadd.f32 %v505, %v511
      %v514 = vadd.f32 %v506, %v511
      %v515 = vmax.f32 %v513, 0.0
      %v516 = vmax.f32 %v514, 0.0
      %v517 = vstv %s470
      %v518 = vmul.f32 %v515, %v517
      %v519 = vmul.f32 %v516, %v517
      %vm520 = vcmask 64512
      %521 = vst.msk [vmem:[#allocation2 + $0x8] sm:$0xff] %vm520, %v518
      %522 = vst.msk [vmem:[#allocation2 + $0x10] sm:$0xff] %vm520, %v519
      %v523 = vld [vmem:[%s444] sm:$0xff]
      %v524 = vld [vmem:[%s444 + $0x8] sm:$0xff]
      %v525 = vmul.f32 %v523, %v503
      %v526 = vmul.f32 %v524, %v503
      %v527 = vadd.f32 %v525, %v511
      %v528 = vadd.f32 %v526, %v511
      %v529 = vmax.f32 %v527, 0.0
      %v530 = vmax.f32 %v528, 0.0
      %v531 = vstv %s473
      %v532 = vmul.f32 %v529, %v531
      %v533 = vmul.f32 %v530, %v531
      %s534 = scalar_lea.vmem [#allocation2], 288
      %535 = vst.msk [vmem:[%s534 + $0x8] sm:$0xff] %vm520, %v532
      %536 = vst.msk [vmem:[%s534 + $0x10] sm:$0xff] %vm520, %v533
      %v537 = vld [vmem:[%s413] sm:$0xff]
      %v538 = vld [vmem:[%s413 + $0x8] sm:$0xff]
      %v539 = vld [vmem:[%s413 + $0x10] sm:$0xff]
      %v540 = vld [vmem:[%s413 + $0x18] sm:$0xff]
      %v541 = vld [vmem:[%s413 + $0x20] sm:$0xff]
      %v542 = vld [vmem:[%s413 + $0x28] sm:$0xff]
      %v543 = vld [vmem:[%s413 + $0x30] sm:$0xff]
      %v544 = vld [vmem:[%s413 + $0x38] sm:$0xff]
      %v545 = vld [vmem:[%s413 + $0x40] sm:$0xff]
      %v546 = vld [vmem:[%s413 + $0x48] sm:$0xff]
      %v547 = vld [vmem:[%s413 + $0x50] sm:$0xff]
      %v548 = vld [vmem:[%s413 + $0x58] sm:$0xff]
      %v549 = vld [vmem:[%s413 + $0x60] sm:$0xff]
      %v550 = vld [vmem:[%s413 + $0x68] sm:$0xff]
      %v551 = vld [vmem:[%s413 + $0x70] sm:$0xff]
      %v552 = vld [vmem:[%s413 + $0x78] sm:$0xff]
      %v553 = vmul.f32 %v537, %v503
      %v554 = vmul.f32 %v538, %v503
      %v555 = vmul.f32 %v539, %v503
      %v556 = vmul.f32 %v540, %v503
      %v557 = vmul.f32 %v541, %v503
      %v558 = vmul.f32 %v542, %v503
      %v559 = vmul.f32 %v543, %v503
      %v560 = vmul.f32 %v544, %v503
      %v561 = vmul.f32 %v545, %v503
      %v562 = vmul.f32 %v546, %v503
      %v563 = vmul.f32 %v547, %v503
      %v564 = vmul.f32 %v548, %v503
      %v565 = vmul.f32 %v549, %v503
      %v566 = vmul.f32 %v550, %v503
      %v567 = vmul.f32 %v551, %v503
      %v568 = vmul.f32 %v552, %v503
      %v569 = vadd.f32 %v553, %v511
      %v570 = vadd.f32 %v554, %v511
      %v571 = vadd.f32 %v555, %v511
      %v572 = vadd.f32 %v556, %v511
      %v573 = vadd.f32 %v557, %v511
      %v574 = vadd.f32 %v558, %v511
      %v575 = vadd.f32 %v559, %v511
      %v576 = vadd.f32 %v560, %v511
      %v577 = vadd.f32 %v561, %v511
      %v578 = vadd.f32 %v562, %v511
      %v579 = vadd.f32 %v563, %v511
      %v580 = vadd.f32 %v564, %v511
      %v581 = vadd.f32 %v565, %v511
      %v582 = vadd.f32 %v566, %v511
      %v583 = vadd.f32 %v567, %v511
      %v584 = vadd.f32 %v568, %v511
      %v585 = vmax.f32 %v569, 0.0
      %v586 = vmax.f32 %v570, 0.0
      %v587 = vmax.f32 %v571, 0.0
      %v588 = vmax.f32 %v572, 0.0
      %v589 = vmax.f32 %v573, 0.0
      %v590 = vmax.f32 %v574, 0.0
      %v591 = vmax.f32 %v575, 0.0
      %v592 = vmax.f32 %v576, 0.0
      %v593 = vmax.f32 %v577, 0.0
      %v594 = vmax.f32 %v578, 0.0
      %v595 = vmax.f32 %v579, 0.0
      %v596 = vmax.f32 %v580, 0.0
      %v597 = vmax.f32 %v581, 0.0
      %v598 = vmax.f32 %v582, 0.0
      %v599 = vmax.f32 %v583, 0.0
      %v600 = vmax.f32 %v584, 0.0
      %s601 = scalar_lea.vmem [#allocation2], 32
      %602 = vst.msk [vmem:[%s601 + $0x8] sm:$0xff] %vm520, %v585
      %603 = vst.msk [vmem:[%s601 + $0x10] sm:$0xff] %vm520, %v586
      %604 = vst.msk [vmem:[%s601 + $0x28] sm:$0xff] %vm520, %v587
      %605 = vst.msk [vmem:[%s601 + $0x30] sm:$0xff] %vm520, %v588
      %606 = vst.msk [vmem:[%s601 + $0x48] sm:$0xff] %vm520, %v589
      %607 = vst.msk [vmem:[%s601 + $0x50] sm:$0xff] %vm520, %v590
      %608 = vst.msk [vmem:[%s601 + $0x68] sm:$0xff] %vm520, %v591
      %609 = vst.msk [vmem:[%s601 + $0x70] sm:$0xff] %vm520, %v592
      %610 = vst.msk [vmem:[%s601 + $0x88] sm:$0xff] %vm520, %v593
      %611 = vst.msk [vmem:[%s601 + $0x90] sm:$0xff] %vm520, %v594
      %612 = vst.msk [vmem:[%s601 + $0xa8] sm:$0xff] %vm520, %v595
      %613 = vst.msk [vmem:[%s601 + $0xb0] sm:$0xff] %vm520, %v596
      %614 = vst.msk [vmem:[%s601 + $0xc8] sm:$0xff] %vm520, %v597
      %615 = vst.msk [vmem:[%s601 + $0xd0] sm:$0xff] %vm520, %v598
      %616 = vst.msk [vmem:[%s601 + $0xe8] sm:$0xff] %vm520, %v599
      %617 = vst.msk [vmem:[%s601 + $0xf0] sm:$0xff] %vm520, %v600
      %v618 = vld [vmem:[#allocation2 + $0x7] sm:$0xff]
      %v619 = vld [vmem:[#allocation2 + $0xf] sm:$0xff]
      %v620 = vld [vmem:[#allocation2 + $0x27] sm:$0xff]
      %v621 = vld [vmem:[#allocation2 + $0x2f] sm:$0xff]
      %v622 = vld [vmem:[#allocation2 + $0x47] sm:$0xff]
      %v623 = vld [vmem:[#allocation2 + $0x4f] sm:$0xff]
      %v624 = vld [vmem:[#allocation2 + $0x67] sm:$0xff]
      %v625 = vld [vmem:[#allocation2 + $0x6f] sm:$0xff]
      %v626 = vld [vmem:[#allocation2 + $0x87] sm:$0xff]
      %v627 = vld [vmem:[#allocation2 + $0x8f] sm:$0xff]
      %v628 = vld [vmem:[#allocation2 + $0xa7] sm:$0xff]
      %v629 = vld [vmem:[#allocation2 + $0xaf] sm:$0xff]
      %v630 = vld [vmem:[#allocation2 + $0xc7] sm:$0xff]
      %v631 = vld [vmem:[#allocation2 + $0xcf] sm:$0xff]
      %v632 = vld [vmem:[#allocation2 + $0xe7] sm:$0xff]
      %v633 = vld [vmem:[#allocation2 + $0xef] sm:$0xff]
      %v634 = vld [vmem:[#allocation2 + $0x8] sm:$0xff]
      %v635 = vld [vmem:[#allocation2 + $0x10] sm:$0xff]
      %v636 = vld [vmem:[#allocation2 + $0x28] sm:$0xff]
      %v637 = vld [vmem:[#allocation2 + $0x30] sm:$0xff]
      %v638 = vld [vmem:[#allocation2 + $0x48] sm:$0xff]
      %v639 = vld [vmem:[#allocation2 + $0x50] sm:$0xff]
      %v640 = vld [vmem:[#allocation2 + $0x68] sm:$0xff]
      %v641 = vld [vmem:[#allocation2 + $0x70] sm:$0xff]
      %v642 = vld [vmem:[#allocation2 + $0x88] sm:$0xff]
      %v643 = vld [vmem:[#allocation2 + $0x90] sm:$0xff]
      %v644 = vld [vmem:[#allocation2 + $0xa8] sm:$0xff]
      %v645 = vld [vmem:[#allocation2 + $0xb0] sm:$0xff]
      %v646 = vld [vmem:[#allocation2 + $0xc8] sm:$0xff]
      %v647 = vld [vmem:[#allocation2 + $0xd0] sm:$0xff]
      %v648 = vld [vmem:[#allocation2 + $0xe8] sm:$0xff]
      %v649 = vld [vmem:[#allocation2 + $0xf0] sm:$0xff]
      %v650 = vld [vmem:[#allocation2 + $0x9] sm:$0xff]
      %v651 = vld [vmem:[#allocation2 + $0x11] sm:$0xff]
      %v652 = vld [vmem:[#allocation2 + $0x29] sm:$0xff]
      %v653 = vld [vmem:[#allocation2 + $0x31] sm:$0xff]
      %v654 = vld [vmem:[#allocation2 + $0x49] sm:$0xff]
      %v655 = vld [vmem:[#allocation2 + $0x51] sm:$0xff]
      %v656 = vld [vmem:[#allocation2 + $0x69] sm:$0xff]
      %v657 = vld [vmem:[#allocation2 + $0x71] sm:$0xff]
      %v658 = vld [vmem:[#allocation2 + $0x89] sm:$0xff]
      %v659 = vld [vmem:[#allocation2 + $0x91] sm:$0xff]
      %v660 = vld [vmem:[#allocation2 + $0xa9] sm:$0xff]
      %v661 = vld [vmem:[#allocation2 + $0xb1] sm:$0xff]
      %v662 = vld [vmem:[#allocation2 + $0xc9] sm:$0xff]
      %v663 = vld [vmem:[#allocation2 + $0xd1] sm:$0xff]
      %v664 = vld [vmem:[#allocation2 + $0xe9] sm:$0xff]
      %v665 = vld [vmem:[#allocation2 + $0xf1] sm:$0xff]
      %682 = vrot.lane.b32.xlu0 %v634, 8
      %v683 = vpop.permute.xlu0 %682
      %684 = vrot.lane.b32.xlu0 %v635, 8
      %v685 = vpop.permute.xlu0 %684
      %686 = vrot.lane.b32.xlu0 %v636, 8
      %v687 = vpop.permute.xlu0 %686
      %688 = vrot.lane.b32.xlu0 %v637, 8
      %v689 = vpop.permute.xlu0 %688
      %690 = vrot.lane.b32.xlu0 %v638, 8
      %v691 = vpop.permute.xlu0 %690
      %692 = vrot.lane.b32.xlu0 %v639, 8
      %v693 = vpop.permute.xlu0 %692
      %694 = vrot.lane.b32.xlu0 %v640, 8
      %v695 = vpop.permute.xlu0 %694
      %696 = vrot.lane.b32.xlu0 %v641, 8
      %v697 = vpop.permute.xlu0 %696
      %698 = vrot.lane.b32.xlu0 %v642, 8
      %v699 = vpop.permute.xlu0 %698
      %700 = vrot.lane.b32.xlu0 %v643, 8
      %v701 = vpop.permute.xlu0 %700
      %702 = vrot.lane.b32.xlu0 %v644, 8
      %v703 = vpop.permute.xlu0 %702
      %704 = vrot.lane.b32.xlu0 %v645, 8
      %v705 = vpop.permute.xlu0 %704
      %706 = vrot.lane.b32.xlu0 %v646, 8
      %v707 = vpop.permute.xlu0 %706
      %708 = vrot.lane.b32.xlu0 %v647, 8
      %v709 = vpop.permute.xlu0 %708
      %710 = vrot.lane.b32.xlu0 %v648, 8
      %v711 = vpop.permute.xlu0 %710
      %712 = vrot.lane.b32.xlu0 %v649, 8
      %v713 = vpop.permute.xlu0 %712
      %746 = vrot.lane.b32.xlu0 %v650, 16
      %v747 = vpop.permute.xlu0 %746
      %748 = vrot.lane.b32.xlu0 %v651, 16
      %v749 = vpop.permute.xlu0 %748
      %750 = vrot.lane.b32.xlu0 %v652, 16
      %v751 = vpop.permute.xlu0 %750
      %752 = vrot.lane.b32.xlu0 %v653, 16
      %v753 = vpop.permute.xlu0 %752
      %754 = vrot.lane.b32.xlu0 %v654, 16
      %v755 = vpop.permute.xlu0 %754
      %756 = vrot.lane.b32.xlu0 %v655, 16
      %v757 = vpop.permute.xlu0 %756
      %758 = vrot.lane.b32.xlu0 %v656, 16
      %v759 = vpop.permute.xlu0 %758
      %760 = vrot.lane.b32.xlu0 %v657, 16
      %v761 = vpop.permute.xlu0 %760
      %762 = vrot.lane.b32.xlu0 %v658, 16
      %v763 = vpop.permute.xlu0 %762
      %764 = vrot.lane.b32.xlu0 %v659, 16
      %v765 = vpop.permute.xlu0 %764
      %766 = vrot.lane.b32.xlu0 %v660, 16
      %v767 = vpop.permute.xlu0 %766
      %768 = vrot.lane.b32.xlu0 %v661, 16
      %v769 = vpop.permute.xlu0 %768
      %770 = vrot.lane.b32.xlu0 %v662, 16
      %v771 = vpop.permute.xlu0 %770
      %772 = vrot.lane.b32.xlu0 %v663, 16
      %v773 = vpop.permute.xlu0 %772
      %774 = vrot.lane.b32.xlu0 %v664, 16
      %v775 = vpop.permute.xlu0 %774
      %776 = vrot.lane.b32.xlu0 %v665, 16
      %v777 = vpop.permute.xlu0 %776
      %v794 = vsel %vm520, %v618, %v683
      %v795 = vsel %vm520, %v619, %v685
      %v796 = vsel %vm520, %v620, %v687
      %v797 = vsel %vm520, %v621, %v689
      %v798 = vsel %vm520, %v622, %v691
      %v799 = vsel %vm520, %v623, %v693
      %v800 = vsel %vm520, %v624, %v695
      %v801 = vsel %vm520, %v625, %v697
      %v802 = vsel %vm520, %v626, %v699
      %v803 = vsel %vm520, %v627, %v701
      %v804 = vsel %vm520, %v628, %v703
      %v805 = vsel %vm520, %v629, %v705
      %v806 = vsel %vm520, %v630, %v707
      %v807 = vsel %vm520, %v631, %v709
      %v808 = vsel %vm520, %v632, %v711
      %v809 = vsel %vm520, %v633, %v713
      %vm810 = vcmask 130048
      %v811 = vsel %vm810, %v794, %v747
      %v812 = vsel %vm810, %v795, %v749
      %v813 = vsel %vm810, %v796, %v751
      %v814 = vsel %vm810, %v797, %v753
      %v815 = vsel %vm810, %v798, %v755
      %v816 = vsel %vm810, %v799, %v757
      %v817 = vsel %vm810, %v800, %v759
      %v818 = vsel %vm810, %v801, %v761
      %v819 = vsel %vm810, %v802, %v763
      %v820 = vsel %vm810, %v803, %v765
      %v821 = vsel %vm810, %v804, %v767
      %v822 = vsel %vm810, %v805, %v769
      %v823 = vsel %vm810, %v806, %v771
      %v824 = vsel %vm810, %v807, %v773
      %v825 = vsel %vm810, %v808, %v775
      %v826 = vsel %vm810, %v809, %v777
      %v827 = vld [vmem:[%s5] sm:$0xff]
      %v828 = vld [vmem:[%s5 + $0x8] sm:$0xff]
      %v829 = vld [vmem:[%s5 + $0x10] sm:$0xff]
      %v830 = vld [vmem:[%s601 + $0x7] sm:$0xff]
      %v831 = vld [vmem:[%s601 + $0xf] sm:$0xff]
      %v832 = vld [vmem:[%s601 + $0x27] sm:$0xff]
      %v833 = vld [vmem:[%s601 + $0x2f] sm:$0xff]
      %v834 = vld [vmem:[%s601 + $0x47] sm:$0xff]
      %v835 = vld [vmem:[%s601 + $0x4f] sm:$0xff]
      %v836 = vld [vmem:[%s601 + $0x67] sm:$0xff]
      %v837 = vld [vmem:[%s601 + $0x6f] sm:$0xff]
      %v838 = vld [vmem:[%s601 + $0x87] sm:$0xff]
      %v839 = vld [vmem:[%s601 + $0x8f] sm:$0xff]
      %v840 = vld [vmem:[%s601 + $0xa7] sm:$0xff]
      %v841 = vld [vmem:[%s601 + $0xaf] sm:$0xff]
      %v842 = vld [vmem:[%s601 + $0xc7] sm:$0xff]
      %v843 = vld [vmem:[%s601 + $0xcf] sm:$0xff]
      %v844 = vld [vmem:[%s601 + $0xe7] sm:$0xff]
      %v845 = vld [vmem:[%s601 + $0xef] sm:$0xff]
      %v846 = vld [vmem:[%s601 + $0x8] sm:$0xff]
      %v847 = vld [vmem:[%s601 + $0x10] sm:$0xff]
      %v848 = vld [vmem:[%s601 + $0x28] sm:$0xff]
      %v849 = vld [vmem:[%s601 + $0x30] sm:$0xff]
      %v850 = vld [vmem:[%s601 + $0x48] sm:$0xff]
      %v851 = vld [vmem:[%s601 + $0x50] sm:$0xff]
      %v852 = vld [vmem:[%s601 + $0x68] sm:$0xff]
      %v853 = vld [vmem:[%s601 + $0x70] sm:$0xff]
      %v854 = vld [vmem:[%s601 + $0x88] sm:$0xff]
      %v855 = vld [vmem:[%s601 + $0x90] sm:$0xff]
      %v856 = vld [vmem:[%s601 + $0xa8] sm:$0xff]
      %v857 = vld [vmem:[%s601 + $0xb0] sm:$0xff]
      %v858 = vld [vmem:[%s601 + $0xc8] sm:$0xff]
      %v859 = vld [vmem:[%s601 + $0xd0] sm:$0xff]
      %v860 = vld [vmem:[%s601 + $0xe8] sm:$0xff]
      %v861 = vld [vmem:[%s601 + $0xf0] sm:$0xff]
      %v862 = vld [vmem:[%s601 + $0x9] sm:$0xff]
      %v863 = vld [vmem:[%s601 + $0x11] sm:$0xff]
      %v864 = vld [vmem:[%s601 + $0x29] sm:$0xff]
      %v865 = vld [vmem:[%s601 + $0x31] sm:$0xff]
      %v866 = vld [vmem:[%s601 + $0x49] sm:$0xff]
      %v867 = vld [vmem:[%s601 + $0x51] sm:$0xff]
      %v868 = vld [vmem:[%s601 + $0x69] sm:$0xff]
      %v869 = vld [vmem:[%s601 + $0x71] sm:$0xff]
      %v870 = vld [vmem:[%s601 + $0x89] sm:$0xff]
      %v871 = vld [vmem:[%s601 + $0x91] sm:$0xff]
      %v872 = vld [vmem:[%s601 + $0xa9] sm:$0xff]
      %v873 = vld [vmem:[%s601 + $0xb1] sm:$0xff]
      %v874 = vld [vmem:[%s601 + $0xc9] sm:$0xff]
      %v875 = vld [vmem:[%s601 + $0xd1] sm:$0xff]
      %v876 = vld [vmem:[%s601 + $0xe9] sm:$0xff]
      %v877 = vld [vmem:[%s601 + $0xf1] sm:$0xff]
      %894 = vrot.lane.b32.xlu0 %v846, 8
      %v895 = vpop.permute.xlu0 %894
      %896 = vrot.lane.b32.xlu0 %v847, 8
      %v897 = vpop.permute.xlu0 %896
      %898 = vrot.lane.b32.xlu0 %v848, 8
      %v899 = vpop.permute.xlu0 %898
      %900 = vrot.lane.b32.xlu0 %v849, 8
      %v901 = vpop.permute.xlu0 %900
      %902 = vrot.lane.b32.xlu0 %v850, 8
      %v903 = vpop.permute.xlu0 %902
      %904 = vrot.lane.b32.xlu0 %v851, 8
      %v905 = vpop.permute.xlu0 %904
      %906 = vrot.lane.b32.xlu0 %v852, 8
      %v907 = vpop.permute.xlu0 %906
      %908 = vrot.lane.b32.xlu0 %v853, 8
      %v909 = vpop.permute.xlu0 %908
      %910 = vrot.lane.b32.xlu0 %v854, 8
      %v911 = vpop.permute.xlu0 %910
      %912 = vrot.lane.b32.xlu0 %v855, 8
      %v913 = vpop.permute.xlu0 %912
      %914 = vrot.lane.b32.xlu0 %v856, 8
      %v915 = vpop.permute.xlu0 %914
      %916 = vrot.lane.b32.xlu0 %v857, 8
      %v917 = vpop.permute.xlu0 %916
      %918 = vrot.lane.b32.xlu0 %v858, 8
      %v919 = vpop.permute.xlu0 %918
      %920 = vrot.lane.b32.xlu0 %v859, 8
      %v921 = vpop.permute.xlu0 %920
      %922 = vrot.lane.b32.xlu0 %v860, 8
      %v923 = vpop.permute.xlu0 %922
      %924 = vrot.lane.b32.xlu0 %v861, 8
      %v925 = vpop.permute.xlu0 %924
      %958 = vrot.lane.b32.xlu0 %v862, 16
      %v959 = vpop.permute.xlu0 %958
      %960 = vrot.lane.b32.xlu0 %v863, 16
      %v961 = vpop.permute.xlu0 %960
      %962 = vrot.lane.b32.xlu0 %v864, 16
      %v963 = vpop.permute.xlu0 %962
      %964 = vrot.lane.b32.xlu0 %v865, 16
      %v965 = vpop.permute.xlu0 %964
      %966 = vrot.lane.b32.xlu0 %v866, 16
      %v967 = vpop.permute.xlu0 %966
      %968 = vrot.lane.b32.xlu0 %v867, 16
      %v969 = vpop.permute.xlu0 %968
      %970 = vrot.lane.b32.xlu0 %v868, 16
      %v971 = vpop.permute.xlu0 %970
      %972 = vrot.lane.b32.xlu0 %v869, 16
      %v973 = vpop.permute.xlu0 %972
      %974 = vrot.lane.b32.xlu0 %v870, 16
      %v975 = vpop.permute.xlu0 %974
      %976 = vrot.lane.b32.xlu0 %v871, 16
      %v977 = vpop.permute.xlu0 %976
      %978 = vrot.lane.b32.xlu0 %v872, 16
      %v979 = vpop.permute.xlu0 %978
      %980 = vrot.lane.b32.xlu0 %v873, 16
      %v981 = vpop.permute.xlu0 %980
      %982 = vrot.lane.b32.xlu0 %v874, 16
      %v983 = vpop.permute.xlu0 %982
      %984 = vrot.lane.b32.xlu0 %v875, 16
      %v985 = vpop.permute.xlu0 %984
      %986 = vrot.lane.b32.xlu0 %v876, 16
      %v987 = vpop.permute.xlu0 %986
      %988 = vrot.lane.b32.xlu0 %v877, 16
      %v989 = vpop.permute.xlu0 %988
      %v1006 = vsel %vm520, %v830, %v895
      %v1007 = vsel %vm520, %v831, %v897
      %v1008 = vsel %vm520, %v832, %v899
      %v1009 = vsel %vm520, %v833, %v901
      %v1010 = vsel %vm520, %v834, %v903
      %v1011 = vsel %vm520, %v835, %v905
      %v1012 = vsel %vm520, %v836, %v907
      %v1013 = vsel %vm520, %v837, %v909
      %v1014 = vsel %vm520, %v838, %v911
      %v1015 = vsel %vm520, %v839, %v913
      %v1016 = vsel %vm520, %v840, %v915
      %v1017 = vsel %vm520, %v841, %v917
      %v1018 = vsel %vm520, %v842, %v919
      %v1019 = vsel %vm520, %v843, %v921
      %v1020 = vsel %vm520, %v844, %v923
      %v1021 = vsel %vm520, %v845, %v925
      %v1022 = vsel %vm810, %v1006, %v959
      %v1023 = vsel %vm810, %v1007, %v961
      %v1024 = vsel %vm810, %v1008, %v963
      %v1025 = vsel %vm810, %v1009, %v965
      %v1026 = vsel %vm810, %v1010, %v967
      %v1027 = vsel %vm810, %v1011, %v969
      %v1028 = vsel %vm810, %v1012, %v971
      %v1029 = vsel %vm810, %v1013, %v973
      %v1030 = vsel %vm810, %v1014, %v975
      %v1031 = vsel %vm810, %v1015, %v977
      %v1032 = vsel %vm810, %v1016, %v979
      %v1033 = vsel %vm810, %v1017, %v981
      %v1034 = vsel %vm810, %v1018, %v983
      %v1035 = vsel %vm810, %v1019, %v985
      %v1036 = vsel %vm810, %v1020, %v987
      %v1037 = vsel %vm810, %v1021, %v989
      %s1038 = scalar_lea.vmem %s5, 24
      %v1039 = vld [vmem:[%s1038] sm:$0xff]
      %v1040 = vld [vmem:[%s1038 + $0x8] sm:$0xff]
      %v1041 = vld [vmem:[%s1038 + $0x10] sm:$0xff]
      %vm1042 = vcmask 195584
      %v1044 = vsel %vm1042, %v1022, 0
      %v1047 = vsel %vm1042, %v1023, 0
      %v1050 = vsel %vm1042, %v1024, 0
      %v1053 = vsel %vm1042, %v1025, 0
      %v1056 = vsel %vm1042, %v1026, 0
      %v1059 = vsel %vm1042, %v1027, 0
      %v1062 = vsel %vm1042, %v1028, 0
      %v1065 = vsel %vm1042, %v1029, 0
      %v1068 = vsel %vm1042, %v1030, 0
      %v1071 = vsel %vm1042, %v1031, 0
      %v1074 = vsel %vm1042, %v1032, 0
      %v1077 = vsel %vm1042, %v1033, 0
      %v1080 = vsel %vm1042, %v1034, 0
      %v1083 = vsel %vm1042, %v1035, 0
      %v1086 = vsel %vm1042, %v1036, 0
      %v1089 = vsel %vm1042, %v1037, 0
      %1091 = vmatprep.subr.mxu0 0.0
      %1092 = vmatpush1.msra.mxu0 %v1039
      %1093 = vmatprep.subr.mxu0 0.0
      %1094 = vmatpush1.msra.mxu0 %v1040
      %1095 = vmatprep.subr.mxu0 0.0
      %1096 = vmatpush1.msra.mxu0 %v1041
      %1097 = vmatprep.subr.mxu0 0.0
      %1098 = vmatpush1.msra.mxu0 0.0
      %1099 = vmatprep.subr.mxu0 0.0
      %1100 = vmatpush1.msra.mxu0 0.0
      %1101 = vmatprep.subr.mxu0 0.0
      %1102 = vmatpush1.msra.mxu0 0.0
      %1103 = vmatprep.subr.mxu0 0.0
      %1104 = vmatpush1.msra.mxu0 0.0
      %1105 = vmatprep.subr.mxu0 0.0
      %1106 = vmatpush1.msra.mxu0 0.0
      %1107 = vmatprep.subr.mxu0 0.0
      %1108 = vmatpush1.msra.mxu0 0.0
      %1109 = vmatprep.subr.mxu0 0.0
      %1110 = vmatpush1.msra.mxu0 0.0
      %1111 = vmatprep.subr.mxu0 0.0
      %1112 = vmatpush1.msra.mxu0 0.0
      %1113 = vmatprep.subr.mxu0 0.0
      %1114 = vmatpush1.msra.mxu0 0.0
      %1115 = vmatprep.subr.mxu0 0.0
      %1116 = vmatpush1.msra.mxu0 0.0
      %1117 = vmatprep.subr.mxu0 0.0
      %1118 = vmatpush1.msra.mxu0 0.0
      %1119 = vmatprep.subr.mxu0 0.0
      %1120 = vmatpush1.msra.mxu0 0.0
      %1121 = vmatprep.subr.mxu0 0.0
      %1122 = vmatpush1.msra.mxu0 0.0
      %1123 = vmatprep.subr.mxu0 0.0
      %1124 = vmatpush1.msra.mxu0 0.0
      %1125 = vmatprep.subr.mxu0 0.0
      %1126 = vmatpush1.msra.mxu0 0.0
      %1127 = vmatprep.subr.mxu0 0.0
      %1128 = vmatpush1.msra.mxu0 0.0
      %1129 = vmatprep.subr.mxu0 0.0
      %1130 = vmatpush1.msra.mxu0 0.0
      %1131 = vmatprep.subr.mxu0 0.0
      %1132 = vmatpush1.msra.mxu0 0.0
      %1133 = vmatprep.subr.mxu0 0.0
      %1134 = vmatpush1.msra.mxu0 0.0
      %1135 = vmatprep.subr.mxu0 0.0
      %1136 = vmatpush1.msra.mxu0 0.0
      %1137 = vmatprep.subr.mxu0 0.0
      %1138 = vmatpush1.msra.mxu0 0.0
      %1139 = vmatprep.subr.mxu0 0.0
      %1140 = vmatpush1.msra.mxu0 0.0
      %1141 = vmatprep.subr.mxu0 0.0
      %1142 = vmatpush1.msra.mxu0 0.0
      %1143 = vmatprep.subr.mxu0 0.0
      %1144 = vmatpush1.msra.mxu0 0.0
      %1145 = vmatprep.subr.mxu0 0.0
      %1146 = vmatpush1.msra.mxu0 0.0
      %1147 = vmatprep.subr.mxu0 0.0
      %1148 = vmatpush1.msra.mxu0 0.0
      %1149 = vmatprep.subr.mxu0 0.0
      %1150 = vmatpush1.msra.mxu0 0.0
      %1151 = vmatprep.subr.mxu0 0.0
      %1152 = vmatpush1.msra.mxu0 0.0
      %1153 = vmatprep.subr.mxu0 0.0
      %1154 = vmatpush1.msra.mxu0 0.0
      %1155 = vmatprep.mubr.f32.mxu0 0.0
      %1156 = vmatmul.mubr.f32.gmra.mrb[0].mxu0 %v1044
      %v1157 = vpop.f32.mrb[0].mxu0
      %v1158 = vadd.f32 0.0, %v1157
      %v1159 = vpop.f32.mrb[0].mxu0
      %1160 = vmatprep.mubr.f32.mxu0 0.0
      %1161 = vmatmul.mubr.f32.gmra.mrb[0].mxu0 %v1047
      %v1162 = vpop.f32.mrb[0].mxu0
      %v1163 = vadd.f32 0.0, %v1162
      %v1164 = vpop.f32.mrb[0].mxu0
      %1165 = vmatprep.mubr.f32.mxu0 0.0
      %1166 = vmatmul.mubr.f32.gmra.mrb[0].mxu0 %v1050
      %v1167 = vpop.f32.mrb[0].mxu0
      %v1168 = vadd.f32 0.0, %v1167
      %v1169 = vpop.f32.mrb[0].mxu0
      %1170 = vmatprep.mubr.f32.mxu0 0.0
      %1171 = vmatmul.mubr.f32.gmra.mrb[0].mxu0 %v1053
      %v1172 = vpop.f32.mrb[0].mxu0
      %v1173 = vadd.f32 0.0, %v1172
      %v1174 = vpop.f32.mrb[0].mxu0
      %1175 = vmatprep.mubr.f32.mxu0 0.0
      %1176 = vmatmul.mubr.f32.gmra.mrb[0].mxu0 %v1056
      %v1177 = vpop.f32.mrb[0].mxu0
      %v1178 = vadd.f32 0.0, %v1177
      %v1179 = vpop.f32.mrb[0].mxu0
      %1180 = vmatprep.mubr.f32.mxu0 0.0
      %1181 = vmatmul.mubr.f32.gmra.mrb[0].mxu0 %v1059
      %v1182 = vpop.f32.mrb[0].mxu0
      %v1183 = vadd.f32 0.0, %v1182
      %v1184 = vpop.f32.mrb[0].mxu0
      %1185 = vmatprep.mubr.f32.mxu0 0.0
      %1186 = vmatmul.mubr.f32.gmra.mrb[0].mxu0 %v1062
      %v1187 = vpop.f32.mrb[0].mxu0
      %v1188 = vadd.f32 0.0, %v1187
      %v1189 = vpop.f32.mrb[0].mxu0
      %1190 = vmatprep.mubr.f32.mxu0 0.0
      %1191 = vmatmul.mubr.f32.gmra.mrb[0].mxu0 %v1065
      %v1192 = vpop.f32.mrb[0].mxu0
      %v1193 = vadd.f32 0.0, %v1192
      %v1194 = vpop.f32.mrb[0].mxu0
      %1195 = vmatprep.mubr.f32.mxu0 0.0
      %1196 = vmatmul.mubr.f32.gmra.mrb[0].mxu0 %v1068
      %v1197 = vpop.f32.mrb[0].mxu0
      %v1198 = vadd.f32 0.0, %v1197
      %v1199 = vpop.f32.mrb[0].mxu0
      %1200 = vmatprep.mubr.f32.mxu0 0.0
      %1201 = vmatmul.mubr.f32.gmra.mrb[0].mxu0 %v1071
      %v1202 = vpop.f32.mrb[0].mxu0
      %v1203 = vadd.f32 0.0, %v1202
      %v1204 = vpop.f32.mrb[0].mxu0
      %1205 = vmatprep.mubr.f32.mxu0 0.0
      %1206 = vmatmul.mubr.f32.gmra.mrb[0].mxu0 %v1074
      %v1207 = vpop.f32.mrb[0].mxu0
      %v1208 = vadd.f32 0.0, %v1207
      %v1209 = vpop.f32.mrb[0].mxu0
      %1210 = vmatprep.mubr.f32.mxu0 0.0
      %1211 = vmatmul.mubr.f32.gmra.mrb[0].mxu0 %v1077
      %v1212 = vpop.f32.mrb[0].mxu0
      %v1213 = vadd.f32 0.0, %v1212
      %v1214 = vpop.f32.mrb[0].mxu0
      %1215 = vmatprep.mubr.f32.mxu0 0.0
      %1216 = vmatmul.mubr.f32.gmra.mrb[0].mxu0 %v1080
      %v1217 = vpop.f32.mrb[0].mxu0
      %v1218 = vadd.f32 0.0, %v1217
      %v1219 = vpop.f32.mrb[0].mxu0
      %1220 = vmatprep.mubr.f32.mxu0 0.0
      %1221 = vmatmul.mubr.f32.gmra.mrb[0].mxu0 %v1083
      %v1222 = vpop.f32.mrb[0].mxu0
      %v1223 = vadd.f32 0.0, %v1222
      %v1224 = vpop.f32.mrb[0].mxu0
      %1225 = vmatprep.mubr.f32.mxu0 0.0
      %1226 = vmatmul.mubr.f32.gmra.mrb[0].mxu0 %v1086
      %v1227 = vpop.f32.mrb[0].mxu0
      %v1228 = vadd.f32 0.0, %v1227
      %v1229 = vpop.f32.mrb[0].mxu0
      %1230 = vmatprep.mubr.f32.mxu0 0.0
      %1231 = vmatmul.mubr.f32.gmra.mrb[0].mxu0 %v1089
      %v1232 = vpop.f32.mrb[0].mxu0
      %v1233 = vadd.f32 0.0, %v1232
      %v1234 = vpop.f32.mrb[0].mxu0
      %1235 = vdwg.mxu0
      %v1237 = vsel %vm1042, %v811, 0
      %v1240 = vsel %vm1042, %v812, 0
      %v1243 = vsel %vm1042, %v813, 0
      %v1246 = vsel %vm1042, %v814, 0
      %v1249 = vsel %vm1042, %v815, 0
      %v1252 = vsel %vm1042, %v816, 0
      %v1255 = vsel %vm1042, %v817, 0
      %v1258 = vsel %vm1042, %v818, 0
      %v1261 = vsel %vm1042, %v819, 0
      %v1264 = vsel %vm1042, %v820, 0
      %v1267 = vsel %vm1042, %v821, 0
      %v1270 = vsel %vm1042, %v822, 0
      %v1273 = vsel %vm1042, %v823, 0
      %v1276 = vsel %vm1042, %v824, 0
      %v1279 = vsel %vm1042, %v825, 0
      %v1282 = vsel %vm1042, %v826, 0
      %1284 = vmatprep.subr.mxu0 0.0
      %1285 = vmatpush1.msra.mxu0 %v827
      %1286 = vmatprep.subr.mxu0 0.0
      %1287 = vmatpush1.msra.mxu0 %v828
      %1288 = vmatprep.subr.mxu0 0.0
      %1289 = vmatpush1.msra.mxu0 %v829
      %1290 = vmatprep.subr.mxu0 0.0
      %1291 = vmatpush1.msra.mxu0 0.0
      %1292 = vmatprep.subr.mxu0 0.0
      %1293 = vmatpush1.msra.mxu0 0.0
      %1294 = vmatprep.subr.mxu0 0.0
      %1295 = vmatpush1.msra.mxu0 0.0
      %1296 = vmatprep.subr.mxu0 0.0
      %1297 = vmatpush1.msra.mxu0 0.0
      %1298 = vmatprep.subr.mxu0 0.0
      %1299 = vmatpush1.msra.mxu0 0.0
      %1300 = vmatprep.subr.mxu0 0.0
      %1301 = vmatpush1.msra.mxu0 0.0
      %1302 = vmatprep.subr.mxu0 0.0
      %1303 = vmatpush1.msra.mxu0 0.0
      %1304 = vmatprep.subr.mxu0 0.0
      %1305 = vmatpush1.msra.mxu0 0.0
      %1306 = vmatprep.subr.mxu0 0.0
      %1307 = vmatpush1.msra.mxu0 0.0
      %1308 = vmatprep.subr.mxu0 0.0
      %1309 = vmatpush1.msra.mxu0 0.0
      %1310 = vmatprep.subr.mxu0 0.0
      %1311 = vmatpush1.msra.mxu0 0.0
      %1312 = vmatprep.subr.mxu0 0.0
      %1313 = vmatpush1.msra.mxu0 0.0
      %1314 = vmatprep.subr.mxu0 0.0
      %1315 = vmatpush1.msra.mxu0 0.0
      %1316 = vmatprep.subr.mxu0 0.0
      %1317 = vmatpush1.msra.mxu0 0.0
      %1318 = vmatprep.subr.mxu0 0.0
      %1319 = vmatpush1.msra.mxu0 0.0
      %1320 = vmatprep.subr.mxu0 0.0
      %1321 = vmatpush1.msra.mxu0 0.0
      %1322 = vmatprep.subr.mxu0 0.0
      %1323 = vmatpush1.msra.mxu0 0.0
      %1324 = vmatprep.subr.mxu0 0.0
      %1325 = vmatpush1.msra.mxu0 0.0
      %1326 = vmatprep.subr.mxu0 0.0
      %1327 = vmatpush1.msra.mxu0 0.0
      %1328 = vmatprep.subr.mxu0 0.0
      %1329 = vmatpush1.msra.mxu0 0.0
      %1330 = vmatprep.subr.mxu0 0.0
      %1331 = vmatpush1.msra.mxu0 0.0
      %1332 = vmatprep.subr.mxu0 0.0
      %1333 = vmatpush1.msra.mxu0 0.0
      %1334 = vmatprep.subr.mxu0 0.0
      %1335 = vmatpush1.msra.mxu0 0.0
      %1336 = vmatprep.subr.mxu0 0.0
      %1337 = vmatpush1.msra.mxu0 0.0
      %1338 = vmatprep.subr.mxu0 0.0
      %1339 = vmatpush1.msra.mxu0 0.0
      %1340 = vmatprep.subr.mxu0 0.0
      %1341 = vmatpush1.msra.mxu0 0.0
      %1342 = vmatprep.subr.mxu0 0.0
      %1343 = vmatpush1.msra.mxu0 0.0
      %1344 = vmatprep.subr.mxu0 0.0
      %1345 = vmatpush1.msra.mxu0 0.0
      %1346 = vmatprep.subr.mxu0 0.0
      %1347 = vmatpush1.msra.mxu0 0.0
      %1348 = vmatprep.mubr.f32.mxu0 0.0
      %1349 = vmatmul.mubr.f32.gmra.mrb[0].mxu0 %v1237
      %v1350 = vpop.f32.mrb[0].mxu0
      %v1351 = vadd.f32 %v1158, %v1350
      %v1352 = vpop.f32.mrb[0].mxu0
      %1353 = vmatprep.mubr.f32.mxu0 0.0
      %1354 = vmatmul.mubr.f32.gmra.mrb[0].mxu0 %v1240
      %v1355 = vpop.f32.mrb[0].mxu0
      %v1356 = vadd.f32 %v1163, %v1355
      %v1357 = vpop.f32.mrb[0].mxu0
      %1358 = vmatprep.mubr.f32.mxu0 0.0
      %1359 = vmatmul.mubr.f32.gmra.mrb[0].mxu0 %v1243
      %v1360 = vpop.f32.mrb[0].mxu0
      %v1361 = vadd.f32 %v1168, %v1360
      %v1362 = vpop.f32.mrb[0].mxu0
      %1363 = vmatprep.mubr.f32.mxu0 0.0
      %1364 = vmatmul.mubr.f32.gmra.mrb[0].mxu0 %v1246
      %v1365 = vpop.f32.mrb[0].mxu0
      %v1366 = vadd.f32 %v1173, %v1365
      %v1367 = vpop.f32.mrb[0].mxu0
      %1368 = vmatprep.mubr.f32.mxu0 0.0
      %1369 = vmatmul.mubr.f32.gmra.mrb[0].mxu0 %v1249
      %v1370 = vpop.f32.mrb[0].mxu0
      %v1371 = vadd.f32 %v1178, %v1370
      %v1372 = vpop.f32.mrb[0].mxu0
      %1373 = vmatprep.mubr.f32.mxu0 0.0
      %1374 = vmatmul.mubr.f32.gmra.mrb[0].mxu0 %v1252
      %v1375 = vpop.f32.mrb[0].mxu0
      %v1376 = vadd.f32 %v1183, %v1375
      %v1377 = vpop.f32.mrb[0].mxu0
      %1378 = vmatprep.mubr.f32.mxu0 0.0
      %1379 = vmatmul.mubr.f32.gmra.mrb[0].mxu0 %v1255
      %v1380 = vpop.f32.mrb[0].mxu0
      %v1381 = vadd.f32 %v1188, %v1380
      %v1382 = vpop.f32.mrb[0].mxu0
      %1383 = vmatprep.mubr.f32.mxu0 0.0
      %1384 = vmatmul.mubr.f32.gmra.mrb[0].mxu0 %v1258
      %v1385 = vpop.f32.mrb[0].mxu0
      %v1386 = vadd.f32 %v1193, %v1385
      %v1387 = vpop.f32.mrb[0].mxu0
      %1388 = vmatprep.mubr.f32.mxu0 0.0
      %1389 = vmatmul.mubr.f32.gmra.mrb[0].mxu0 %v1261
      %v1390 = vpop.f32.mrb[0].mxu0
      %v1391 = vadd.f32 %v1198, %v1390
      %v1392 = vpop.f32.mrb[0].mxu0
      %1393 = vmatprep.mubr.f32.mxu0 0.0
      %1394 = vmatmul.mubr.f32.gmra.mrb[0].mxu0 %v1264
      %v1395 = vpop.f32.mrb[0].mxu0
      %v1396 = vadd.f32 %v1203, %v1395
      %v1397 = vpop.f32.mrb[0].mxu0
      %1398 = vmatprep.mubr.f32.mxu0 0.0
      %1399 = vmatmul.mubr.f32.gmra.mrb[0].mxu0 %v1267
      %v1400 = vpop.f32.mrb[0].mxu0
      %v1401 = vadd.f32 %v1208, %v1400
      %v1402 = vpop.f32.mrb[0].mxu0
      %1403 = vmatprep.mubr.f32.mxu0 0.0
      %1404 = vmatmul.mubr.f32.gmra.mrb[0].mxu0 %v1270
      %v1405 = vpop.f32.mrb[0].mxu0
      %v1406 = vadd.f32 %v1213, %v1405
      %v1407 = vpop.f32.mrb[0].mxu0
      %1408 = vmatprep.mubr.f32.mxu0 0.0
      %1409 = vmatmul.mubr.f32.gmra.mrb[0].mxu0 %v1273
      %v1410 = vpop.f32.mrb[0].mxu0
      %v1411 = vadd.f32 %v1218, %v1410
      %v1412 = vpop.f32.mrb[0].mxu0
      %1413 = vmatprep.mubr.f32.mxu0 0.0
      %1414 = vmatmul.mubr.f32.gmra.mrb[0].mxu0 %v1276
      %v1415 = vpop.f32.mrb[0].mxu0
      %v1416 = vadd.f32 %v1223, %v1415
      %v1417 = vpop.f32.mrb[0].mxu0
      %1418 = vmatprep.mubr.f32.mxu0 0.0
      %1419 = vmatmul.mubr.f32.gmra.mrb[0].mxu0 %v1279
      %v1420 = vpop.f32.mrb[0].mxu0
      %v1421 = vadd.f32 %v1228, %v1420
      %v1422 = vpop.f32.mrb[0].mxu0
      %1423 = vmatprep.mubr.f32.mxu0 0.0
      %1424 = vmatmul.mubr.f32.gmra.mrb[0].mxu0 %v1282
      %v1425 = vpop.f32.mrb[0].mxu0
      %v1426 = vadd.f32 %v1233, %v1425
      %v1427 = vpop.f32.mrb[0].mxu0
      %1428 = vdwg.mxu0
      %s1429 = scalar_lea.vmem [#allocation2], 64
      %v1430 = vld [vmem:[%s1429 + $0x7] sm:$0xff]
      %v1431 = vld [vmem:[%s1429 + $0xf] sm:$0xff]
      %v1432 = vld [vmem:[%s1429 + $0x27] sm:$0xff]
      %v1433 = vld [vmem:[%s1429 + $0x2f] sm:$0xff]
      %v1434 = vld [vmem:[%s1429 + $0x47] sm:$0xff]
      %v1435 = vld [vmem:[%s1429 + $0x4f] sm:$0xff]
      %v1436 = vld [vmem:[%s1429 + $0x67] sm:$0xff]
      %v1437 = vld [vmem:[%s1429 + $0x6f] sm:$0xff]
      %v1438 = vld [vmem:[%s1429 + $0x87] sm:$0xff]
      %v1439 = vld [vmem:[%s1429 + $0x8f] sm:$0xff]
      %v1440 = vld [vmem:[%s1429 + $0xa7] sm:$0xff]
      %v1441 = vld [vmem:[%s1429 + $0xaf] sm:$0xff]
      %v1442 = vld [vmem:[%s1429 + $0xc7] sm:$0xff]
      %v1443 = vld [vmem:[%s1429 + $0xcf] sm:$0xff]
      %v1444 = vld [vmem:[%s1429 + $0xe7] sm:$0xff]
      %v1445 = vld [vmem:[%s1429 + $0xef] sm:$0xff]
      %v1446 = vld [vmem:[%s1429 + $0x8] sm:$0xff]
      %v1447 = vld [vmem:[%s1429 + $0x10] sm:$0xff]
      %v1448 = vld [vmem:[%s1429 + $0x28] sm:$0xff]
      %v1449 = vld [vmem:[%s1429 + $0x30] sm:$0xff]
      %v1450 = vld [vmem:[%s1429 + $0x48] sm:$0xff]
      %v1451 = vld [vmem:[%s1429 + $0x50] sm:$0xff]
      %v1452 = vld [vmem:[%s1429 + $0x68] sm:$0xff]
      %v1453 = vld [vmem:[%s1429 + $0x70] sm:$0xff]
      %v1454 = vld [vmem:[%s1429 + $0x88] sm:$0xff]
      %v1455 = vld [vmem:[%s1429 + $0x90] sm:$0xff]
      %v1456 = vld [vmem:[%s1429 + $0xa8] sm:$0xff]
      %v1457 = vld [vmem:[%s1429 + $0xb0] sm:$0xff]
      %v1458 = vld [vmem:[%s1429 + $0xc8] sm:$0xff]
      %v1459 = vld [vmem:[%s1429 + $0xd0] sm:$0xff]
      %v1460 = vld [vmem:[%s1429 + $0xe8] sm:$0xff]
      %v1461 = vld [vmem:[%s1429 + $0xf0] sm:$0xff]
      %v1462 = vld [vmem:[%s1429 + $0x9] sm:$0xff]
      %v1463 = vld [vmem:[%s1429 + $0x11] sm:$0xff]
      %v1464 = vld [vmem:[%s1429 + $0x29] sm:$0xff]
      %v1465 = vld [vmem:[%s1429 + $0x31] sm:$0xff]
      %v1466 = vld [vmem:[%s1429 + $0x49] sm:$0xff]
      %v1467 = vld [vmem:[%s1429 + $0x51] sm:$0xff]
      %v1468 = vld [vmem:[%s1429 + $0x69] sm:$0xff]
      %v1469 = vld [vmem:[%s1429 + $0x71] sm:$0xff]
      %v1470 = vld [vmem:[%s1429 + $0x89] sm:$0xff]
      %v1471 = vld [vmem:[%s1429 + $0x91] sm:$0xff]
      %v1472 = vld [vmem:[%s1429 + $0xa9] sm:$0xff]
      %v1473 = vld [vmem:[%s1429 + $0xb1] sm:$0xff]
      %v1474 = vld [vmem:[%s1429 + $0xc9] sm:$0xff]
      %v1475 = vld [vmem:[%s1429 + $0xd1] sm:$0xff]
      %v1476 = vld [vmem:[%s1429 + $0xe9] sm:$0xff]
      %v1477 = vld [vmem:[%s1429 + $0xf1] sm:$0xff]
      %1494 = vrot.lane.b32.xlu0 %v1446, 8
      %v1495 = vpop.permute.xlu0 %1494
      %1496 = vrot.lane.b32.xlu0 %v1447, 8
      %v1497 = vpop.permute.xlu0 %1496
      %1498 = vrot.lane.b32.xlu0 %v1448, 8
      %v1499 = vpop.permute.xlu0 %1498
      %1500 = vrot.lane.b32.xlu0 %v1449, 8
      %v1501 = vpop.permute.xlu0 %1500
      %1502 = vrot.lane.b32.xlu0 %v1450, 8
      %v1503 = vpop.permute.xlu0 %1502
      %1504 = vrot.lane.b32.xlu0 %v1451, 8
      %v1505 = vpop.permute.xlu0 %1504
      %1506 = vrot.lane.b32.xlu0 %v1452, 8
      %v1507 = vpop.permute.xlu0 %1506
      %1508 = vrot.lane.b32.xlu0 %v1453, 8
      %v1509 = vpop.permute.xlu0 %1508
      %1510 = vrot.lane.b32.xlu0 %v1454, 8
      %v1511 = vpop.permute.xlu0 %1510
      %1512 = vrot.lane.b32.xlu0 %v1455, 8
      %v1513 = vpop.permute.xlu0 %1512
      %1514 = vrot.lane.b32.xlu0 %v1456, 8
      %v1515 = vpop.permute.xlu0 %1514
      %1516 = vrot.lane.b32.xlu0 %v1457, 8
      %v1517 = vpop.permute.xlu0 %1516
      %1518 = vrot.lane.b32.xlu0 %v1458, 8
      %v1519 = vpop.permute.xlu0 %1518
      %1520 = vrot.lane.b32.xlu0 %v1459, 8
      %v1521 = vpop.permute.xlu0 %1520
      %1522 = vrot.lane.b32.xlu0 %v1460, 8
      %v1523 = vpop.permute.xlu0 %1522
      %1524 = vrot.lane.b32.xlu0 %v1461, 8
      %v1525 = vpop.permute.xlu0 %1524
      %1558 = vrot.lane.b32.xlu0 %v1462, 16
      %v1559 = vpop.permute.xlu0 %1558
      %1560 = vrot.lane.b32.xlu0 %v1463, 16
      %v1561 = vpop.permute.xlu0 %1560
      %1562 = vrot.lane.b32.xlu0 %v1464, 16
      %v1563 = vpop.permute.xlu0 %1562
      %1564 = vrot.lane.b32.xlu0 %v1465, 16
      %v1565 = vpop.permute.xlu0 %1564
      %1566 = vrot.lane.b32.xlu0 %v1466, 16
      %v1567 = vpop.permute.xlu0 %1566
      %1568 = vrot.lane.b32.xlu0 %v1467, 16
      %v1569 = vpop.permute.xlu0 %1568
      %1570 = vrot.lane.b32.xlu0 %v1468, 16
      %v1571 = vpop.permute.xlu0 %1570
      %1572 = vrot.lane.b32.xlu0 %v1469, 16
      %v1573 = vpop.permute.xlu0 %1572
      %1574 = vrot.lane.b32.xlu0 %v1470, 16
      %v1575 = vpop.permute.xlu0 %1574
      %1576 = vrot.lane.b32.xlu0 %v1471, 16
      %v1577 = vpop.permute.xlu0 %1576
      %1578 = vrot.lane.b32.xlu0 %v1472, 16
      %v1579 = vpop.permute.xlu0 %1578
      %1580 = vrot.lane.b32.xlu0 %v1473, 16
      %v1581 = vpop.permute.xlu0 %1580
      %1582 = vrot.lane.b32.xlu0 %v1474, 16
      %v1583 = vpop.permute.xlu0 %1582
      %1584 = vrot.lane.b32.xlu0 %v1475, 16
      %v1585 = vpop.permute.xlu0 %1584
      %1586 = vrot.lane.b32.xlu0 %v1476, 16
      %v1587 = vpop.permute.xlu0 %1586
      %1588 = vrot.lane.b32.xlu0 %v1477, 16
      %v1589 = vpop.permute.xlu0 %1588
      %v1606 = vsel %vm520, %v1430, %v1495
      %v1607 = vsel %vm520, %v1431, %v1497
      %v1608 = vsel %vm520, %v1432, %v1499
      %v1609 = vsel %vm520, %v1433, %v1501
      %v1610 = vsel %vm520, %v1434, %v1503
      %v1611 = vsel %vm520, %v1435, %v1505
      %v1612 = vsel %vm520, %v1436, %v1507
      %v1613 = vsel %vm520, %v1437, %v1509
      %v1614 = vsel %vm520, %v1438, %v1511
      %v1615 = vsel %vm520, %v1439, %v1513
      %v1616 = vsel %vm520, %v1440, %v1515
      %v1617 = vsel %vm520, %v1441, %v1517
      %v1618 = vsel %vm520, %v1442, %v1519
      %v1619 = vsel %vm520, %v1443, %v1521
      %v1620 = vsel %vm520, %v1444, %v1523
      %v1621 = vsel %vm520, %v1445, %v1525
      %v1622 = vsel %vm810, %v1606, %v1559
      %v1623 = vsel %vm810, %v1607, %v1561
      %v1624 = vsel %vm810, %v1608, %v1563
      %v1625 = vsel %vm810, %v1609, %v1565
      %v1626 = vsel %vm810, %v1610, %v1567
      %v1627 = vsel %vm810, %v1611, %v1569
      %v1628 = vsel %vm810, %v1612, %v1571
      %v1629 = vsel %vm810, %v1613, %v1573
      %v1630 = vsel %vm810, %v1614, %v1575
      %v1631 = vsel %vm810, %v1615, %v1577
      %v1632 = vsel %vm810, %v1616, %v1579
      %v1633 = vsel %vm810, %v1617, %v1581
      %v1634 = vsel %vm810, %v1618, %v1583
      %v1635 = vsel %vm810, %v1619, %v1585
      %v1636 = vsel %vm810, %v1620, %v1587
      %v1637 = vsel %vm810, %v1621, %v1589
      %s1638 = scalar_lea.vmem %s5, 48
      %v1639 = vld [vmem:[%s1638] sm:$0xff]
      %v1640 = vld [vmem:[%s1638 + $0x8] sm:$0xff]
      %v1641 = vld [vmem:[%s1638 + $0x10] sm:$0xff]
      %v1643 = vsel %vm1042, %v1622, 0
      %v1646 = vsel %vm1042, %v1623, 0
      %v1649 = vsel %vm1042, %v1624, 0
      %v1652 = vsel %vm1042, %v1625, 0
      %v1655 = vsel %vm1042, %v1626, 0
      %v1658 = vsel %vm1042, %v1627, 0
      %v1661 = vsel %vm1042, %v1628, 0
      %v1664 = vsel %vm1042, %v1629, 0
      %v1667 = vsel %vm1042, %v1630, 0
      %v1670 = vsel %vm1042, %v1631, 0
      %v1673 = vsel %vm1042, %v1632, 0
      %v1676 = vsel %vm1042, %v1633, 0
      %v1679 = vsel %vm1042, %v1634, 0
      %v1682 = vsel %vm1042, %v1635, 0
      %v1685 = vsel %vm1042, %v1636, 0
      %v1688 = vsel %vm1042, %v1637, 0
      %1690 = vmatprep.subr.mxu0 0.0
      %1691 = vmatpush1.msra.mxu0 %v1639
      %1692 = vmatprep.subr.mxu0 0.0
      %1693 = vmatpush1.msra.mxu0 %v1640
      %1694 = vmatprep.subr.mxu0 0.0
      %1695 = vmatpush1.msra.mxu0 %v1641
      %1696 = vmatprep.subr.mxu0 0.0
      %1697 = vmatpush1.msra.mxu0 0.0
      %1698 = vmatprep.subr.mxu0 0.0
      %1699 = vmatpush1.msra.mxu0 0.0
      %1700 = vmatprep.subr.mxu0 0.0
      %1701 = vmatpush1.msra.mxu0 0.0
      %1702 = vmatprep.subr.mxu0 0.0
      %1703 = vmatpush1.msra.mxu0 0.0
      %1704 = vmatprep.subr.mxu0 0.0
      %1705 = vmatpush1.msra.mxu0 0.0
      %1706 = vmatprep.subr.mxu0 0.0
      %1707 = vmatpush1.msra.mxu0 0.0
      %1708 = vmatprep.subr.mxu0 0.0
      %1709 = vmatpush1.msra.mxu0 0.0
      %1710 = vmatprep.subr.mxu0 0.0
      %1711 = vmatpush1.msra.mxu0 0.0
      %1712 = vmatprep.subr.mxu0 0.0
      %1713 = vmatpush1.msra.mxu0 0.0
      %1714 = vmatprep.subr.mxu0 0.0
      %1715 = vmatpush1.msra.mxu0 0.0
      %1716 = vmatprep.subr.mxu0 0.0
      %1717 = vmatpush1.msra.mxu0 0.0
      %1718 = vmatprep.subr.mxu0 0.0
      %1719 = vmatpush1.msra.mxu0 0.0
      %1720 = vmatprep.subr.mxu0 0.0
      %1721 = vmatpush1.msra.mxu0 0.0
      %1722 = vmatprep.subr.mxu0 0.0
      %1723 = vmatpush1.msra.mxu0 0.0
      %1724 = vmatprep.subr.mxu0 0.0
      %1725 = vmatpush1.msra.mxu0 0.0
      %1726 = vmatprep.subr.mxu0 0.0
      %1727 = vmatpush1.msra.mxu0 0.0
      %1728 = vmatprep.subr.mxu0 0.0
      %1729 = vmatpush1.msra.mxu0 0.0
      %1730 = vmatprep.subr.mxu0 0.0
      %1731 = vmatpush1.msra.mxu0 0.0
      %1732 = vmatprep.subr.mxu0 0.0
      %1733 = vmatpush1.msra.mxu0 0.0
      %1734 = vmatprep.subr.mxu0 0.0
      %1735 = vmatpush1.msra.mxu0 0.0
      %1736 = vmatprep.subr.mxu0 0.0
      %1737 = vmatpush1.msra.mxu0 0.0
      %1738 = vmatprep.subr.mxu0 0.0
      %1739 = vmatpush1.msra.mxu0 0.0
      %1740 = vmatprep.subr.mxu0 0.0
      %1741 = vmatpush1.msra.mxu0 0.0
      %1742 = vmatprep.subr.mxu0 0.0
      %1743 = vmatpush1.msra.mxu0 0.0
      %1744 = vmatprep.subr.mxu0 0.0
      %1745 = vmatpush1.msra.mxu0 0.0
      %1746 = vmatprep.subr.mxu0 0.0
      %1747 = vmatpush1.msra.mxu0 0.0
      %1748 = vmatprep.subr.mxu0 0.0
      %1749 = vmatpush1.msra.mxu0 0.0
      %1750 = vmatprep.subr.mxu0 0.0
      %1751 = vmatpush1.msra.mxu0 0.0
      %1752 = vmatprep.subr.mxu0 0.0
      %1753 = vmatpush1.msra.mxu0 0.0
      %1754 = vmatprep.mubr.f32.mxu0 0.0
      %1755 = vmatmul.mubr.f32.gmra.mrb[0].mxu0 %v1643
      %v1756 = vpop.f32.mrb[0].mxu0
      %v1757 = vadd.f32 0.0, %v1756
      %v1758 = vpop.f32.mrb[0].mxu0
      %1759 = vmatprep.mubr.f32.mxu0 0.0
      %1760 = vmatmul.mubr.f32.gmra.mrb[0].mxu0 %v1646
      %v1761 = vpop.f32.mrb[0].mxu0
      %v1762 = vadd.f32 0.0, %v1761
      %v1763 = vpop.f32.mrb[0].mxu0
      %1764 = vmatprep.mubr.f32.mxu0 0.0
      %1765 = vmatmul.mubr.f32.gmra.mrb[0].mxu0 %v1649
      %v1766 = vpop.f32.mrb[0].mxu0
      %v1767 = vadd.f32 0.0, %v1766
      %v1768 = vpop.f32.mrb[0].mxu0
      %1769 = vmatprep.mubr.f32.mxu0 0.0
      %1770 = vmatmul.mubr.f32.gmra.mrb[0].mxu0 %v1652
      %v1771 = vpop.f32.mrb[0].mxu0
      %v1772 = vadd.f32 0.0, %v1771
      %v1773 = vpop.f32.mrb[0].mxu0
      %1774 = vmatprep.mubr.f32.mxu0 0.0
      %1775 = vmatmul.mubr.f32.gmra.mrb[0].mxu0 %v1655
      %v1776 = vpop.f32.mrb[0].mxu0
      %v1777 = vadd.f32 0.0, %v1776
      %v1778 = vpop.f32.mrb[0].mxu0
      %1779 = vmatprep.mubr.f32.mxu0 0.0
      %1780 = vmatmul.mubr.f32.gmra.mrb[0].mxu0 %v1658
      %v1781 = vpop.f32.mrb[0].mxu0
      %v1782 = vadd.f32 0.0, %v1781
      %v1783 = vpop.f32.mrb[0].mxu0
      %1784 = vmatprep.mubr.f32.mxu0 0.0
      %1785 = vmatmul.mubr.f32.gmra.mrb[0].mxu0 %v1661
      %v1786 = vpop.f32.mrb[0].mxu0
      %v1787 = vadd.f32 0.0, %v1786
      %v1788 = vpop.f32.mrb[0].mxu0
      %1789 = vmatprep.mubr.f32.mxu0 0.0
      %1790 = vmatmul.mubr.f32.gmra.mrb[0].mxu0 %v1664
      %v1791 = vpop.f32.mrb[0].mxu0
      %v1792 = vadd.f32 0.0, %v1791
      %v1793 = vpop.f32.mrb[0].mxu0
      %1794 = vmatprep.mubr.f32.mxu0 0.0
      %1795 = vmatmul.mubr.f32.gmra.mrb[0].mxu0 %v1667
      %v1796 = vpop.f32.mrb[0].mxu0
      %v1797 = vadd.f32 0.0, %v1796
      %v1798 = vpop.f32.mrb[0].mxu0
      %1799 = vmatprep.mubr.f32.mxu0 0.0
      %1800 = vmatmul.mubr.f32.gmra.mrb[0].mxu0 %v1670
      %v1801 = vpop.f32.mrb[0].mxu0
      %v1802 = vadd.f32 0.0, %v1801
      %v1803 = vpop.f32.mrb[0].mxu0
      %1804 = vmatprep.mubr.f32.mxu0 0.0
      %1805 = vmatmul.mubr.f32.gmra.mrb[0].mxu0 %v1673
      %v1806 = vpop.f32.mrb[0].mxu0
      %v1807 = vadd.f32 0.0, %v1806
      %v1808 = vpop.f32.mrb[0].mxu0
      %1809 = vmatprep.mubr.f32.mxu0 0.0
      %1810 = vmatmul.mubr.f32.gmra.mrb[0].mxu0 %v1676
      %v1811 = vpop.f32.mrb[0].mxu0
      %v1812 = vadd.f32 0.0, %v1811
      %v1813 = vpop.f32.mrb[0].mxu0
      %1814 = vmatprep.mubr.f32.mxu0 0.0
      %1815 = vmatmul.mubr.f32.gmra.mrb[0].mxu0 %v1679
      %v1816 = vpop.f32.mrb[0].mxu0
      %v1817 = vadd.f32 0.0, %v1816
      %v1818 = vpop.f32.mrb[0].mxu0
      %1819 = vmatprep.mubr.f32.mxu0 0.0
      %1820 = vmatmul.mubr.f32.gmra.mrb[0].mxu0 %v1682
      %v1821 = vpop.f32.mrb[0].mxu0
      %v1822 = vadd.f32 0.0, %v1821
      %v1823 = vpop.f32.mrb[0].mxu0
      %1824 = vmatprep.mubr.f32.mxu0 0.0
      %1825 = vmatmul.mubr.f32.gmra.mrb[0].mxu0 %v1685
      %v1826 = vpop.f32.mrb[0].mxu0
      %v1827 = vadd.f32 0.0, %v1826
      %v1828 = vpop.f32.mrb[0].mxu0
      %1829 = vmatprep.mubr.f32.mxu0 0.0
      %1830 = vmatmul.mubr.f32.gmra.mrb[0].mxu0 %v1688
      %v1831 = vpop.f32.mrb[0].mxu0
      %v1832 = vadd.f32 0.0, %v1831
      %v1833 = vpop.f32.mrb[0].mxu0
      %1834 = vdwg.mxu0
      %v1835 = vadd.f32 %v1351, %v1757
      %v1836 = vadd.f32 %v1356, %v1762
      %v1837 = vadd.f32 %v1361, %v1767
      %v1838 = vadd.f32 %v1366, %v1772
      %v1839 = vadd.f32 %v1371, %v1777
      %v1840 = vadd.f32 %v1376, %v1782
      %v1841 = vadd.f32 %v1381, %v1787
      %v1842 = vadd.f32 %v1386, %v1792
      %v1843 = vadd.f32 %v1391, %v1797
      %v1844 = vadd.f32 %v1396, %v1802
      %v1845 = vadd.f32 %v1401, %v1807
      %v1846 = vadd.f32 %v1406, %v1812
      %v1847 = vadd.f32 %v1411, %v1817
      %v1848 = vadd.f32 %v1416, %v1822
      %v1849 = vadd.f32 %v1421, %v1827
      %v1850 = vadd.f32 %v1426, %v1832
      %v1851 = vsel %vm520, %v1835, 0.0
      %v1852 = vsel %vm520, %v1836, 0.0
      %v1853 = vadd.f32 %v1851, %v1852
      %v1854 = vsel %vm520, %v1837, 0.0
      %v1855 = vadd.f32 %v1853, %v1854
      %v1856 = vsel %vm520, %v1838, 0.0
      %v1857 = vadd.f32 %v1855, %v1856
      %v1858 = vsel %vm520, %v1839, 0.0
      %v1859 = vadd.f32 %v1857, %v1858
      %v1860 = vsel %vm520, %v1840, 0.0
      %v1861 = vadd.f32 %v1859, %v1860
      %v1862 = vsel %vm520, %v1841, 0.0
      %v1863 = vadd.f32 %v1861, %v1862
      %v1864 = vsel %vm520, %v1842, 0.0
      %v1865 = vadd.f32 %v1863, %v1864
      %v1866 = vsel %vm520, %v1843, 0.0
      %v1867 = vadd.f32 %v1865, %v1866
      %v1868 = vsel %vm520, %v1844, 0.0
      %v1869 = vadd.f32 %v1867, %v1868
      %v1870 = vsel %vm520, %v1845, 0.0
      %v1871 = vadd.f32 %v1869, %v1870
      %v1872 = vsel %vm520, %v1846, 0.0
      %v1873 = vadd.f32 %v1871, %v1872
      %v1874 = vsel %vm520, %v1847, 0.0
      %v1875 = vadd.f32 %v1873, %v1874
      %v1876 = vsel %vm520, %v1848, 0.0
      %v1877 = vadd.f32 %v1875, %v1876
      %v1878 = vsel %vm520, %v1849, 0.0
      %v1879 = vadd.f32 %v1877, %v1878
      %v1880 = vsel %vm520, %v1850, 0.0
      %v1881 = vadd.f32 %v1879, %v1880
      %v1882 = vrot.slane %v1881, 4
      %v1883 = vadd.f32 %v1881, %v1882
      %v1884 = vrot.slane %v1883, 2
      %v1885 = vadd.f32 %v1883, %v1884
      %v1886 = vrot.slane %v1885, 1
      %v1887 = vadd.f32 %v1885, %v1886
      %v1888 = vmul.f32 %v1835, %v1835
      %v1889 = vmul.f32 %v1836, %v1836
      %v1890 = vmul.f32 %v1837, %v1837
      %v1891 = vmul.f32 %v1838, %v1838
      %v1892 = vmul.f32 %v1839, %v1839
      %v1893 = vmul.f32 %v1840, %v1840
      %v1894 = vmul.f32 %v1841, %v1841
      %v1895 = vmul.f32 %v1842, %v1842
      %v1896 = vmul.f32 %v1843, %v1843
      %v1897 = vmul.f32 %v1844, %v1844
      %v1898 = vmul.f32 %v1845, %v1845
      %v1899 = vmul.f32 %v1846, %v1846
      %v1900 = vmul.f32 %v1847, %v1847
      %v1901 = vmul.f32 %v1848, %v1848
      %v1902 = vmul.f32 %v1849, %v1849
      %v1903 = vmul.f32 %v1850, %v1850
      %v1904 = vsel %vm520, %v1888, 0.0
      %v1905 = vsel %vm520, %v1889, 0.0
      %v1906 = vadd.f32 %v1904, %v1905
      %v1907 = vsel %vm520, %v1890, 0.0
      %v1908 = vadd.f32 %v1906, %v1907
      %v1909 = vsel %vm520, %v1891, 0.0
      %v1910 = vadd.f32 %v1908, %v1909
      %v1911 = vsel %vm520, %v1892, 0.0
      %v1912 = vadd.f32 %v1910, %v1911
      %v1913 = vsel %vm520, %v1893, 0.0
      %v1914 = vadd.f32 %v1912, %v1913
      %v1915 = vsel %vm520, %v1894, 0.0
      %v1916 = vadd.f32 %v1914, %v1915
      %v1917 = vsel %vm520, %v1895, 0.0
      %v1918 = vadd.f32 %v1916, %v1917
      %v1919 = vsel %vm520, %v1896, 0.0
      %v1920 = vadd.f32 %v1918, %v1919
      %v1921 = vsel %vm520, %v1897, 0.0
      %v1922 = vadd.f32 %v1920, %v1921
      %v1923 = vsel %vm520, %v1898, 0.0
      %v1924 = vadd.f32 %v1922, %v1923
      %v1925 = vsel %vm520, %v1899, 0.0
      %v1926 = vadd.f32 %v1924, %v1925
      %v1927 = vsel %vm520, %v1900, 0.0
      %v1928 = vadd.f32 %v1926, %v1927
      %v1929 = vsel %vm520, %v1901, 0.0
      %v1930 = vadd.f32 %v1928, %v1929
      %v1931 = vsel %vm520, %v1902, 0.0
      %v1932 = vadd.f32 %v1930, %v1931
      %v1933 = vsel %vm520, %v1903, 0.0
      %v1934 = vadd.f32 %v1932, %v1933
      %v1935 = vrot.slane %v1934, 4
      %v1936 = vadd.f32 %v1934, %v1935
      %v1937 = vrot.slane %v1936, 2
      %v1938 = vadd.f32 %v1936, %v1937
      %v1939 = vrot.slane %v1938, 1
      %v1940 = vadd.f32 %v1938, %v1939
      %1941 = vst.msk [vmem:[%s458] sm:$0xff] %vm520, %v1835
      %1942 = vst.msk [vmem:[%s458 + $0x8] sm:$0xff] %vm520, %v1836
      %1943 = vst.msk [vmem:[%s458 + $0x10] sm:$0xff] %vm520, %v1837
      %1944 = vst.msk [vmem:[%s458 + $0x18] sm:$0xff] %vm520, %v1838
      %1945 = vst.msk [vmem:[%s458 + $0x20] sm:$0xff] %vm520, %v1839
      %1946 = vst.msk [vmem:[%s458 + $0x28] sm:$0xff] %vm520, %v1840
      %1947 = vst.msk [vmem:[%s458 + $0x30] sm:$0xff] %vm520, %v1841
      %1948 = vst.msk [vmem:[%s458 + $0x38] sm:$0xff] %vm520, %v1842
      %1949 = vst.msk [vmem:[%s458 + $0x40] sm:$0xff] %vm520, %v1843
      %1950 = vst.msk [vmem:[%s458 + $0x48] sm:$0xff] %vm520, %v1844
      %1951 = vst.msk [vmem:[%s458 + $0x50] sm:$0xff] %vm520, %v1845
      %1952 = vst.msk [vmem:[%s458 + $0x58] sm:$0xff] %vm520, %v1846
      %1953 = vst.msk [vmem:[%s458 + $0x60] sm:$0xff] %vm520, %v1847
      %1954 = vst.msk [vmem:[%s458 + $0x68] sm:$0xff] %vm520, %v1848
      %1955 = vst.msk [vmem:[%s458 + $0x70] sm:$0xff] %vm520, %v1849
      %1956 = vst.msk [vmem:[%s458 + $0x78] sm:$0xff] %vm520, %v1850
      %vm1957 = vcmask 1040384
      %v1958 = vsel %vm1957, %v1887, %v1940
      %vm1959 = vcmask 58368
      %1960 = vst.msk [vmem:[%s467] sm:$0x3] %vm1959, %v1958
      %s1961 = smul.u32 8, %s24
      %p1962 = scmp.lt.s32.totalorder %s23, 1
      %s1963 = scalar_select %p1962, %s23, 1
      %p1964 = scmp.lt.s32.totalorder %s1961, 15
      %s1965 = scalar_select %p1964, %s1961, 15
      %s1966 = smul.addr %s1965, 2
      %s1967 = smul.addr %s1963, 32
      %s1968 = sadd.s32 %s1966, %s1967
      %s1969 = smul.addr %s1968, 8
      %s1970 = scalar_lea.vmem %s6, %s1969
      %p1971 = scmp.lt.s32.totalorder %s23, 1
      %s1972 = scalar_select %p1971, %s23, 1
      %p1973 = scmp.lt.s32.totalorder %s24, 1
      %s1974 = scalar_select %p1973, %s24, 1
      %s1975 = smul.addr %s1972, 2
      %s1976 = sadd.s32 %s1974, %s1975
      %s1977 = smul.addr %s1976, 2
      %s1978 = scalar_lea.vmem %s7, %s1977
      // Predicated region
      $region45: #{_bdouble_conv_impl.4} parent=43 // pred_check
        %p1979 = pneg %p214
      $region46: #{_bdouble_conv_impl.4} parent=43 // pred_check_branch
        %1981 = sbr.rel (%p1979) target = $region48
      $region47: #{_bdouble_conv_impl.4} parent=43 // pred_region
        %s1982 = smul.u32 8, %s24
      $region48: #{_bdouble_conv_impl.4} parent=43 // pred_fallthru
        _
      // Predicated region
      $region49: #{_bdouble_conv_impl.4} parent=43 // pred_check
        %p1983 = pneg %p242
      $region50: #{_bdouble_conv_impl.4} parent=43 // pred_check_branch
        %1985 = sbr.rel (%p1983) target = $region52
      $region51: #{_bdouble_conv_impl.4} parent=43 // pred_region
        _
      $region52: #{_bdouble_conv_impl.4} parent=43 // pred_fallthru
        _
    $region44: #{_bdouble_conv_impl.4} parent=5 // pred_fallthru
      _
    %p1986 = scmp.le.s32.totalorder 2, %s14
    // Predicated region
    $region53: #{_bdouble_conv_impl.4} parent=5 // pred_check
      %p1987 = pneg %p1986
    $region54: #{_bdouble_conv_impl.4} parent=5 // pred_check_branch
      %1989 = sbr.rel (%p1987) target = $region56
    $region55: #{_bdouble_conv_impl.4} parent=5 // pred_region
      %s1990 = ssub.s32 %s14, 2
      // Predicated region
      $region57: #{_bdouble_conv_impl.4} parent=55 // pred_check
        %p1991 = pneg %p220
      $region58: #{_bdouble_conv_impl.4} parent=55 // pred_check_branch
        %1993 = sbr.rel (%p1991) target = $region60
      $region59: #{_bdouble_conv_impl.4} parent=55 // pred_region
        %s1994 = smul.u32 8, %s26
        %p1995 = scmp.lt.s32.totalorder %s25, 1
        %s1996 = scalar_select %p1995, %s25, 1
        %p1997 = scmp.lt.s32.totalorder %s1994, 15
        %s1998 = scalar_select %p1997, %s1994, 15
        %s1999 = smul.addr %s1998, 2
        %s2000 = smul.addr %s1996, 32
        %s2001 = sadd.s32 %s1999, %s2000
        %s2002 = smul.addr %s2001, 8
        %s2003 = scalar_lea.vmem %s6, %s2002
      $region60: #{_bdouble_conv_impl.4} parent=55 // pred_fallthru
        _
      // Predicated region
      $region61: #{_bdouble_conv_impl.4} parent=55 // pred_check
        %p2004 = pneg %p248
      $region62: #{_bdouble_conv_impl.4} parent=55 // pred_check_branch
        %2006 = sbr.rel (%p2004) target = $region64
      $region63: #{_bdouble_conv_impl.4} parent=55 // pred_region
        %p2007 = scmp.lt.s32.totalorder %s25, 1
        %s2008 = scalar_select %p2007, %s25, 1
        %p2009 = scmp.lt.s32.totalorder %s26, 1
        %s2010 = scalar_select %p2009, %s26, 1
        %s2011 = smul.addr %s2008, 2
        %s2012 = sadd.s32 %s2010, %s2011
        %s2013 = smul.addr %s2012, 2
        %s2014 = scalar_lea.vmem %s7, %s2013
      $region64: #{_bdouble_conv_impl.4} parent=55 // pred_fallthru
        _
    $region56: #{_bdouble_conv_impl.4} parent=5 // pred_fallthru
      _
  $region6: #{_bdouble_conv_impl.4} parent=0 // loop_footer
    %s18 = sadd.s32 1, %s14
  $region7: #{_bdouble_conv_impl.4} parent=0 // loop_footer_branch
    %13 = sbr.rel target = $region3
  $region8: #{_bdouble_conv_impl.4} parent=0 // loop_exit
    _

// kernel: _bdouble_conv_impl.5
$region0: #{_bdouble_conv_impl.5}
  #allocation0 [shape = 'u32[]', space=smem, size = 0x4, offset = 0x4, fixed_abs, tag = 'smem constant byte address 0x4 - core index']
  #allocation1 [shape = 'u32[144,128]{1,0:T(1,128)}', space=vmem, size = 0x12000, scoped, tag = 'internal scratch']
  %s0 = inlined_call_operand.vmem [shape: f32[32,128], index: 0, kind: input, shape index: {}]
  %s1 = inlined_call_operand.vmem [shape: f32[1,128], index: 1, kind: input, shape index: {}]
  %s2 = inlined_call_operand.vmem [shape: f32[1,128], index: 2, kind: input, shape index: {}]
  %s3 = inlined_call_operand.vmem [shape: f32[32,128], index: 3, kind: output, shape index: {}]
  %s4 = sld [smem:[#allocation0]]
  $region45: #{_bdouble_conv_impl.5} parent=0
    _
  %s6 = ssub.s32 1, %s4
  %s7 = scalar_select 0, %s6, %s4
  loop: start=0, step=1, limit=4
  $region2: #{_bdouble_conv_impl.5} parent=0 // loop_pre_header
    _
  $region3: #{_bdouble_conv_impl.5} parent=0 // loop_header
    %s9 = sphi 0, %s13
    %p10 = scmp.ge.s32.totalorder %s9, 4
    %s19 = sphi 0, %s21
    %s22 = sphi 0, %s19
    %s23 = sphi 0, %s22
    %s39 = sphi 0, %s23
    %s43 = sphi 0, %s43
    %s45 = sphi 0, %s43
    %s46 = sphi 0, %s45
    %s60 = sphi 0, %s46
    %s64 = sphi 0, %s64
    %s66 = sphi 0, %s64
    %s67 = sphi 0, %s66
    %s81 = sphi 0, %s67
    %s87 = sphi 0, %s89
    %s90 = sphi 0, %s87
    %s91 = sphi 0, %s90
    %s107 = sphi 0, %s91
  $region4: #{_bdouble_conv_impl.5} parent=0 // loop_header_branch
    %12 = sbr.rel (%p10) target = $region8
  $region5: #{_bdouble_conv_impl.5} parent=0 // loop_body
    %s14 = ssub.s32 %s9, 1
    %s15 = ssub.s32 %s9, 2
    %s16 = sadd.s32 %s9, 1
    %s17 = ssub.s32 %s9, %s16
    %p18 = scmp.eq.s32.totalorder %s17, 0
    %s20 = sadd.s32 %s19, 1
    %s21 = scalar_select %p18, %s19, %s20
    %p24 = pneg %p18
    %p25 = scmp.eq.s32.totalorder %s9, 1
    %p26 = por %p24, %p25
    %p27 = scmp.ne.s32.totalorder %s19, %s22
    %p28 = scmp.eq.s32.totalorder %s9, 0
    %p29 = por %p27, %p28
    %p30 = scmp.ne.s32.totalorder %s19, %s22
    %p31 = scmp.eq.s32.totalorder %s14, 1
    %p32 = por %p30, %p31
    %p33 = scmp.ne.s32.totalorder %s22, %s23
    %p34 = scmp.eq.s32.totalorder %s14, 0
    %p35 = por %p33, %p34
    %p36 = scmp.ne.s32.totalorder %s22, %s23
    %p37 = scmp.eq.s32.totalorder %s15, 1
    %p38 = por %p36, %p37
    %p40 = scmp.ne.s32.totalorder %s23, %s39
    %p41 = scmp.eq.s32.totalorder %s15, 0
    %p42 = por %p40, %p41
    %s44 = sadd.s32 %s43, 1
    %p47 = scmp.eq.s32.totalorder %s9, 1
    %p48 = scmp.ne.s32.totalorder %s43, %s45
    %p49 = scmp.eq.s32.totalorder %s9, 0
    %p50 = por %p48, %p49
    %p51 = scmp.ne.s32.totalorder %s43, %s45
    %p52 = scmp.eq.s32.totalorder %s14, 1
    %p53 = por %p51, %p52
    %p54 = scmp.ne.s32.totalorder %s45, %s46
    %p55 = scmp.eq.s32.totalorder %s14, 0
    %p56 = por %p54, %p55
    %p57 = scmp.ne.s32.totalorder %s45, %s46
    %p58 = scmp.eq.s32.totalorder %s15, 1
    %p59 = por %p57, %p58
    %p61 = scmp.ne.s32.totalorder %s46, %s60
    %p62 = scmp.eq.s32.totalorder %s15, 0
    %p63 = por %p61, %p62
    %s65 = sadd.s32 %s64, 1
    %p68 = scmp.eq.s32.totalorder %s9, 1
    %p69 = scmp.ne.s32.totalorder %s64, %s66
    %p70 = scmp.eq.s32.totalorder %s9, 0
    %p71 = por %p69, %p70
    %p72 = scmp.ne.s32.totalorder %s64, %s66
    %p73 = scmp.eq.s32.totalorder %s14, 1
    %p74 = por %p72, %p73
    %p75 = scmp.ne.s32.totalorder %s66, %s67
    %p76 = scmp.eq.s32.totalorder %s14, 0
    %p77 = por %p75, %p76
    %p78 = scmp.ne.s32.totalorder %s66, %s67
    %p79 = scmp.eq.s32.totalorder %s15, 1
    %p80 = por %p78, %p79
    %p82 = scmp.ne.s32.totalorder %s67, %s81
    %p83 = scmp.eq.s32.totalorder %s15, 0
    %p84 = por %p82, %p83
    %s85 = ssub.s32 %s9, %s16
    %p86 = scmp.eq.s32.totalorder %s85, 0
    %s88 = sadd.s32 %s87, 1
    %s89 = scalar_select %p86, %s87, %s88
    %p92 = pneg %p86
    %p93 = scmp.eq.s32.totalorder %s9, 1
    %p94 = por %p92, %p93
    %p95 = scmp.ne.s32.totalorder %s87, %s90
    %p96 = scmp.eq.s32.totalorder %s9, 0
    %p97 = por %p95, %p96
    %p98 = scmp.ne.s32.totalorder %s87, %s90
    %p99 = scmp.eq.s32.totalorder %s14, 1
    %p100 = por %p98, %p99
    %p101 = scmp.ne.s32.totalorder %s90, %s91
    %p102 = scmp.eq.s32.totalorder %s14, 0
    %p103 = por %p101, %p102
    %p104 = scmp.ne.s32.totalorder %s90, %s91
    %p105 = scmp.eq.s32.totalorder %s15, 1
    %p106 = por %p104, %p105
    %p108 = scmp.ne.s32.totalorder %s91, %s107
    %p109 = scmp.eq.s32.totalorder %s15, 0
    %p110 = por %p108, %p109
    %p111 = scmp.le.s32.totalorder 1, %s9
    %p112 = scmp.lt.s32.totalorder %s9, 3
    %p113 = pnand %p111, %p112
    %p114 = pneg %p113
    // Predicated region
    $region9: #{_bdouble_conv_impl.5} parent=5 // pred_check
      _
    $region10: #{_bdouble_conv_impl.5} parent=5 // pred_check_branch
      %116 = sbr.rel (%p113) target = $region12
    $region11: #{_bdouble_conv_impl.5} parent=5 // pred_region
      %s117 = ssub.s32 %s9, 1
      // Predicated region
      $region13: #{_bdouble_conv_impl.5} parent=11 // pred_check
        %p118 = pneg %p56
      $region14: #{_bdouble_conv_impl.5} parent=11 // pred_check_branch
        %120 = sbr.rel (%p118) target = $region16
      $region15: #{_bdouble_conv_impl.5} parent=11 // pred_region
        _
      $region16: #{_bdouble_conv_impl.5} parent=11 // pred_fallthru
        _
      // Predicated region
      $region17: #{_bdouble_conv_impl.5} parent=11 // pred_check
        %p121 = pneg %p77
      $region18: #{_bdouble_conv_impl.5} parent=11 // pred_check_branch
        %123 = sbr.rel (%p121) target = $region20
      $region19: #{_bdouble_conv_impl.5} parent=11 // pred_region
        _
      $region20: #{_bdouble_conv_impl.5} parent=11 // pred_fallthru
        _
    $region12: #{_bdouble_conv_impl.5} parent=5 // pred_fallthru
      _
    %p124 = scmp.lt.s32.totalorder %s9, 2
    // Predicated region
    $region21: #{_bdouble_conv_impl.5} parent=5 // pred_check
      %p125 = pneg %p124
    $region22: #{_bdouble_conv_impl.5} parent=5 // pred_check_branch
      %127 = sbr.rel (%p125) target = $region24
    $region23: #{_bdouble_conv_impl.5} parent=5 // pred_region
      // Predicated region
      $region25: #{_bdouble_conv_impl.5} parent=23 // pred_check
        %p128 = pneg %p29
      $region26: #{_bdouble_conv_impl.5} parent=23 // pred_check_branch
        %130 = sbr.rel (%p128) target = $region28
      $region27: #{_bdouble_conv_impl.5} parent=23 // pred_region
        %s131 = smul.u32 2, %s9
        %p132 = scmp.lt.s32.totalorder %s131, 3
        %s133 = scalar_select %p132, %s131, 3
        %s134 = smul.addr %s133, 8
        %s135 = scalar_lea.vmem %s0, %s134
        %s136 = smul.u32 2, %s9
      $region28: #{_bdouble_conv_impl.5} parent=23 // pred_fallthru
        _
    $region24: #{_bdouble_conv_impl.5} parent=5 // pred_fallthru
      _
    %p137 = scmp.le.s32.totalorder 1, %s9
    %p138 = scmp.lt.s32.totalorder %s9, 3
    %p139 = pnand %p137, %p138
    %p140 = pneg %p139
    // Predicated region
    $region29: #{_bdouble_conv_impl.5} parent=5 // pred_check
      _
    $region30: #{_bdouble_conv_impl.5} parent=5 // pred_check_branch
      %142 = sbr.rel (%p139) target = $region32
    $region31: #{_bdouble_conv_impl.5} parent=5 // pred_region
      %s143 = ssub.s32 %s9, 1
      %s144 = smul.u32 2, %s14
      %p145 = scmp.lt.s32.totalorder %s144, 3
      %s146 = scalar_select %p145, %s144, 3
      %s147 = smul.addr %s146, 8
      %s148 = scalar_lea.vmem %s0, %s147
      %p149 = pneg %p35
      %p150 = pneg %p32
      %p151 = pneg %p56
      %p152 = pneg %p53
      %p153 = pneg %p77
      %p154 = pneg %p74
      %p155 = pneg %p103
      %p156 = pneg %p100
      %s157 = smul.u32 2, %s14
      %p158 = scmp.lt.s32.totalorder %s157, 3
      %s159 = scalar_select %p158, %s157, 3
      %s160 = smul.addr %s159, 8
      %s161 = scalar_lea.vmem %s3, %s160
      %s162 = smul.u32 2, %s14
      %p163 = scmp.lt.s32.totalorder %s162, 3
      %s164 = scalar_select %p163, %s162, 3
      %s165 = smul.addr %s164, 8
      %s166 = scalar_lea.vmem %s0, %s165
      %s167 = smul.u32 2, %s14
      %s168 = smul.u32 2, %s14
      %p169 = scmp.lt.s32.totalorder %s168, 3
      %s170 = scalar_select %p169, %s168, 3
      %s171 = smul.addr %s170, 8
      %s172 = scalar_lea.vmem %s3, %s171
      %s173 = smul.u32 2, %s14
      %v174 = vld [vmem:[%s166] sm:$0xff]
      %v175 = vld [vmem:[%s166 + $0x8] sm:$0xff]
      %v176 = vld [vmem:[%s1] sm:$0x1]
      %v178 = vlaneseq
      %v179 = vshrl.u32 %v178, 7
      %v180 = vsub.s32 0, %v179
      %v181 = vrot.slane %v176, %v180
      %v183 = vmul.f32 %v174, %v181
      %v184 = vmul.f32 %v175, %v181
      %v185 = vld [vmem:[%s2] sm:$0x1]
      %v187 = vlaneseq
      %v188 = vshrl.u32 %v187, 7
      %v189 = vsub.s32 0, %v188
      %v190 = vrot.slane %v185, %v189
      %v192 = vadd.f32 %v183, %v190
      %v193 = vadd.f32 %v184, %v190
      %v194 = vmax.f32 %v192, 0.0
      %v195 = vmax.f32 %v193, 0.0
      %196 = vst [vmem:[%s172] sm:$0xff] %v194
      %197 = vst [vmem:[%s172 + $0x8] sm:$0xff] %v195
      %s198 = smul.u32 2, %s14
      %p199 = scmp.lt.s32.totalorder %s198, 3
      %s200 = scalar_select %p199, %s198, 3
      %s201 = smul.addr %s200, 8
      %s202 = scalar_lea.vmem %s3, %s201
      // Predicated region
      $region33: #{_bdouble_conv_impl.5} parent=31 // pred_check
        %p203 = pneg %p100
      $region34: #{_bdouble_conv_impl.5} parent=31 // pred_check_branch
        %205 = sbr.rel (%p203) target = $region36
      $region35: #{_bdouble_conv_impl.5} parent=31 // pred_region
        %s206 = smul.u32 2, %s14
      $region36: #{_bdouble_conv_impl.5} parent=31 // pred_fallthru
        _
    $region32: #{_bdouble_conv_impl.5} parent=5 // pred_fallthru
      _
    %p207 = scmp.le.s32.totalorder 2, %s9
    // Predicated region
    $region37: #{_bdouble_conv_impl.5} parent=5 // pred_check
      %p208 = pneg %p207
    $region38: #{_bdouble_conv_impl.5} parent=5 // pred_check_branch
      %210 = sbr.rel (%p208) target = $region40
    $region39: #{_bdouble_conv_impl.5} parent=5 // pred_region
      %s211 = ssub.s32 %s9, 2
      // Predicated region
      $region41: #{_bdouble_conv_impl.5} parent=39 // pred_check
        %p212 = pneg %p106
      $region42: #{_bdouble_conv_impl.5} parent=39 // pred_check_branch
        %214 = sbr.rel (%p212) target = $region44
      $region43: #{_bdouble_conv_impl.5} parent=39 // pred_region
        %s215 = smul.u32 2, %s15
        %p216 = scmp.lt.s32.totalorder %s215, 3
        %s217 = scalar_select %p216, %s215, 3
        %s218 = smul.addr %s217, 8
        %s219 = scalar_lea.vmem %s3, %s218
      $region44: #{_bdouble_conv_impl.5} parent=39 // pred_fallthru
        _
    $region40: #{_bdouble_conv_impl.5} parent=5 // pred_fallthru
      _
  $region6: #{_bdouble_conv_impl.5} parent=0 // loop_footer
    %s13 = sadd.s32 1, %s9
  $region7: #{_bdouble_conv_impl.5} parent=0 // loop_footer_branch
    %8 = sbr.rel target = $region3
  $region8: #{_bdouble_conv_impl.5} parent=0 // loop_exit
    _

</llo_original>
